<compile_context>
chip_gen: v7x
topology: tpu7x:2x2x1
jax: 0.10.0
libtpu: 0.0.40
codegen_flags: <defaults>
</compile_context>

<pallas_src>
import math
import jax
import jax.numpy as jnp
from jax.experimental import pallas as pl
from jax.experimental.pallas import tpu as pltpu

# ------------------------- synthetic "YAMLElectraConfig" -------------------------
B = 2            # batch
S = 8            # sequence length
H = 32           # hidden size (== embedding size, so no embeddings_project)
I = 64           # intermediate (FFN) size
NH = 2           # attention heads
HD = H // NH     # head dim
V = 64           # vocab size
VP = 128         # lane-padded vocab for LM-head logits (128 = v5e-native; use 256 at real vocab on v6e/v7x)
DP = 128         # lane-padded discriminator logit row
P = 16           # max position embeddings
L = 2            # encoder layers (same depth for generator & discriminator)
EPS = 1e-12      # layer_norm_eps
MASK_ID = 3      # tokenizer.mask_token_id
LOSS_WEIGHTS = (1.0, 50.0)   # (generator, discriminator): loss = w[1]*d + w[0]*g
SCALE = 1.0 / math.sqrt(HD)

GEN, DISC = 0, 1   # index into the stacked encoder weights


# --------------------------------- kernel helpers ---------------------------------
def _bf(x):
    return x.astype(jnp.bfloat16)


def _ln(x, g, b):
    mu = jnp.mean(x, axis=-1, keepdims=True)
    var = jnp.mean((x - mu) ** 2, axis=-1, keepdims=True)
    return (x - mu) * jax.lax.rsqrt(var + EPS) * g + b


def _gelu(x):
    # TODO(synk): HF ELECTRA defaults to exact erf-GELU; tanh approximation used here.
    return jax.nn.gelu(x, approximate=True)


def _softmax(s):
    s = s - jnp.max(s, axis=-1, keepdims=True)
    e = jnp.exp(s)
    return e * pl.reciprocal(jnp.sum(e, axis=-1, keepdims=True), approx=True)


def _encoder(x, mbias, m, emb_ln_ref, w_attn_ref, b_attn_ref, w_o_ref,
             w1_ref, w2_ref, vecs_ref):
    """Embedding LayerNorm + L transformer layers for model index m (0=gen, 1=disc).

    x: (S, H) f32.  mbias: (1, S) additive key bias or None.
    Per-head weight blocks -> only 2-D matmuls, no lane slicing / concatenation.
    vecs rows: 0=bo 1=ln1_g 2=ln1_b 3=b1 4=b2 5=ln2_g 6=ln2_b.
    """
    eln = emb_ln_ref[m]                                   # (2, H)
    x = _ln(x, eln[0:1], eln[1:2])

    for l in range(L):                                    # statically unrolled (L small)
        li = m * L + l
        vec = vecs_ref[li]                                # (7, I) f32
        xb = _bf(x)

        attn = jnp.zeros((S, H), jnp.float32)
        for h in range(NH):                               # per-head weight blocks
            base = (li * NH + h) * 3
            q = jnp.dot(xb, w_attn_ref[base + 0],
                        preferred_element_type=jnp.float32) + b_attn_ref[base + 0]
            k = jnp.dot(xb, w_attn_ref[base + 1],
                        preferred_element_type=jnp.float32) + b_attn_ref[base + 1]
            v = jnp.dot(xb, w_attn_ref[base + 2],
                        preferred_element_type=jnp.float32) + b_attn_ref[base + 2]
            s = jnp.dot(_bf(q), _bf(k).T,
                        preferred_element_type=jnp.float32) * SCALE      # (S, S)
            if mbias is not None:
                s = s + mbias                                            # key bias
            probs = _softmax(s)
            ctx = jnp.dot(_bf(probs), _bf(v),
                          preferred_element_type=jnp.float32)            # (S, HD)
            attn = attn + jnp.dot(_bf(ctx), w_o_ref[li * NH + h],
                                  preferred_element_type=jnp.float32)    # (S, H)
        attn = attn + vec[0:1, :H]

        h1 = _ln(x + attn, vec[1:2, :H], vec[2:3, :H])
        mid = _gelu(jnp.dot(_bf(h1), w1_ref[li],
                            preferred_element_type=jnp.float32) + vec[3:4])
        ffn = jnp.dot(_bf(mid), w2_ref[li],
                      preferred_element_type=jnp.float32) + vec[4:5, :H]
        x = _ln(h1 + ffn, vec[5:6, :H], vec[6:7, :H])
    return x


# ------------------------------ fused whole-model kernel ------------------------------
def electra_kernel(gen_x_ref, mbias_ref, d_wemb_ref, ism_ref,
                   d_posadd_ref, emb_ln_ref, w_attn_ref, b_attn_ref, w_o_ref,
                   w1_ref, w2_ref, vecs_ref,
                   g_hdw_ref, g_hdvec_ref, g_decw_ref, g_decb_ref,
                   d_word_ref, d_hdw_ref, d_hdb_ref, d_predw_ref, d_predb_ref,
                   gen_logits_ref, d_out_ref):
    enc = (emb_ln_ref, w_attn_ref, b_attn_ref, w_o_ref, w1_ref, w2_ref, vecs_ref)

    # ---------------- generator: encoder + MLM head ----------------
    hg = _encoder(gen_x_ref[...], mbias_ref[...], GEN, *enc)             # (S, H)
    t = _gelu(jnp.dot(_bf(hg), g_hdw_ref[...],
                      preferred_element_type=jnp.float32) + g_hdvec_ref[0:1, :])
    t = _ln(t, g_hdvec_ref[1:2, :], g_hdvec_ref[2:3, :])
    logits = jnp.dot(_bf(t), g_decw_ref[...],
                     preferred_element_type=jnp.float32) + g_decb_ref[...]   # (S, VP)
    gen_logits_ref[...] = logits                                         # lane-dense store

    # ---------------- in-kernel argmax + [MASK] replacement + re-embedding ----------------
    # Padded vocab lanes carry a -1e9 bias, so the argmax over VP lanes is safe.
    maxv = jnp.max(logits, axis=-1, keepdims=True)                       # (S, 1)
    lane = jax.lax.broadcasted_iota(jnp.int32, (S, VP), 1).astype(jnp.float32)
    idx = jnp.min(jnp.where(logits >= maxv, lane, float(VP)),
                  axis=-1, keepdims=True)                                # (S, 1) first-max index
    vlane = jax.lax.broadcasted_iota(jnp.int32, (S, V), 1).astype(jnp.float32)
    onehot = (vlane == idx).astype(jnp.bfloat16)                         # (S, V)
    samp_emb = jnp.dot(onehot, d_word_ref[...],
                       preferred_element_type=jnp.float32)               # (S, H) MXU gather
    ism = ism_ref[...]                                                   # (S, 1) 1.0 where [MASK]
    dx = ism * samp_emb + (1.0 - ism) * d_wemb_ref[...] + d_posadd_ref[...]

    # ---------------- discriminator: encoder + RTD head ----------------
    hd = _encoder(dx, None, DISC, *enc)                                  # (S, H)
    td = _gelu(jnp.dot(_bf(hd), d_hdw_ref[...],
                       preferred_element_type=jnp.float32) + d_hdb_ref[...])
    # 1-wide projection computed as predw @ t^T so the S logits land on lanes.
    row = jnp.dot(_bf(d_predw_ref[...]), _bf(td).T,
                  preferred_element_type=jnp.float32) + d_predb_ref[...]     # (1, S)
    d_out_ref[...] = jnp.concatenate(
        [row, jnp.zeros((1, DP - S), jnp.float32)], axis=-1)             # (1, 128) lane-dense


# --------------------------------- pallas_call wrapper ---------------------------------
def _whole_spec(shape):
    zeros = (0,) * len(shape)
    return pl.BlockSpec(tuple(shape), lambda b: zeros)


def _batch_spec(tail):
    zeros = (0,) * len(tail)
    return pl.BlockSpec((None,) + tuple(tail), lambda b: (b,) + zeros)


def fused_forward_call(p, gen_x, mbias, d_wemb, ism):
    args = (gen_x, mbias, d_wemb, ism,
            p["d_posadd"], p["emb_ln"], p["w_attn"], p["b_attn"], p["w_o"],
            p["w1"], p["w2"], p["vecs"],
            p["g_hdw"], p["g_hdvec"], p["g_decw"], p["g_decb"],
            p["d_word"], p["d_hdw"], p["d_hdb"], p["d_predw"], p["d_predb"])
    in_specs = [_batch_spec((S, H)),      # gen_x
                _batch_spec((1, S)),      # mask bias
                _batch_spec((S, H)),      # disc word-emb of original tokens
                _batch_spec((S, 1))]      # is-mask flag
    in_specs += [_whole_spec(a.shape) for a in args[4:]]
    out_specs = (pl.BlockSpec((None, S, VP), lambda b: (b, 0, 0)),
                 pl.BlockSpec((None, 1, DP), lambda b: (b, 0, 0)))
    out_shape = (jax.ShapeDtypeStruct((B, S, VP), jnp.float32),
                 jax.ShapeDtypeStruct((B, 1, DP), jnp.float32))
    return pl.pallas_call(
        electra_kernel,
        grid=(B,),
        in_specs=in_specs,
        out_specs=out_specs,
        out_shape=out_shape,
        compiler_params=pltpu.CompilerParams(dimension_semantics=("parallel",)),
    )(*args)


# ------------------------------------ parameter init ------------------------------------
def _nrm(key, shape, dtype=jnp.float32):
    return (0.02 * jax.random.normal(key, shape, jnp.float32)).astype(dtype)


def init_params(key):
    ks = jax.random.split(key, 13)
    g_word = _nrm(ks[0], (V, H))
    d_word = _nrm(ks[1], (V, H))
    g_pos, g_type = _nrm(ks[2], (P, H)), _nrm(ks[3], (2, H))
    d_pos, d_type = _nrm(ks[4], (P, H)), _nrm(ks[5], (2, H))

    # encoder weights stacked for [generator, discriminator], leading axes flattened
    emb_ln = jnp.stack([jnp.stack([jnp.ones((H,), jnp.float32),
                                   jnp.zeros((H,), jnp.float32)])] * 2)          # (2,2,H)
    w_attn = _nrm(ks[6], (2 * L * NH * 3, H, HD), jnp.bfloat16)                  # per-head q|k|v
    b_attn = jnp.zeros((2 * L * NH * 3, 1, HD), jnp.float32)
    w_o = _nrm(ks[7], (2 * L * NH, HD, H), jnp.bfloat16)                         # per-head out proj
    w1 = _nrm(ks[8], (2 * L, H, I), jnp.bfloat16)
    w2 = _nrm(ks[9], (2 * L, I, H), jnp.bfloat16)
    vecs = jnp.zeros((2 * L, 7, I), jnp.float32).at[:, 1, :H].set(1.0).at[:, 5, :H].set(1.0)

    # generator MLM head (tied decoder, lane-padded; padded lanes biased to -1e9)
    g_hdw = _nrm(ks[10], (H, H), jnp.bfloat16)
    g_hdvec = jnp.zeros((3, H), jnp.float32).at[1].set(1.0)          # dense_b, ln_g, ln_b
    g_decw = jnp.zeros((H, VP), jnp.float32).at[:, :V].set(g_word.T).astype(jnp.bfloat16)
    g_decb = jnp.full((1, VP), -1e9, jnp.float32).at[:, :V].set(0.0)

    # discriminator RTD head
    d_hdw = _nrm(ks[11], (H, H), jnp.bfloat16)
    d_hdb = jnp.zeros((1, H), jnp.float32)
    d_predw = _nrm(ks[12], (1, H))
    d_predb = jnp.zeros((1, 1), jnp.float32)

    d_word_bf = d_word.astype(jnp.bfloat16)
    return dict(
        g_word=g_word,
        g_posadd=g_pos[:S] + g_type[0][None, :],
        d_word=d_word_bf,
        d_posadd=d_pos[:S] + d_type[0][None, :],
        emb_ln=emb_ln, w_attn=w_attn, b_attn=b_attn, w_o=w_o, w1=w1, w2=w2, vecs=vecs,
        g_hdw=g_hdw, g_hdvec=g_hdvec, g_decw=g_decw, g_decb=g_decb,
        d_hdw=d_hdw, d_hdb=d_hdb, d_predw=d_predw, d_predb=d_predb,
    )


# --------------------------------------- losses ------------------------------------------
def masked_cross_entropy(logits, labels):
    lf = logits.reshape(-1, V)
    yf = labels.reshape(-1)
    valid = yf != -100
    safe = jnp.where(valid, yf, 0)
    logp = jax.nn.log_softmax(lf, axis=-1)
    nll = -jnp.take_along_axis(logp, safe[:, None], axis=-1)[:, 0]
    return jnp.sum(jnp.where(valid, nll, 0.0)) / jnp.maximum(jnp.sum(valid), 1)


# ------------------------------------- model forward -------------------------------------
def electra_wrapper_forward(params, input_tokens, generator_labels, attention_mask):
    p = params
    is_mask = input_tokens == MASK_ID

    # cheap, kernel-independent input prep (single tiny gathers, fused by XLA)
    gen_x = jnp.take(p["g_word"], input_tokens, axis=0) + p["g_posadd"][None]      # (B,S,H)
    d_wemb = jnp.take(p["d_word"], input_tokens, axis=0).astype(jnp.float32)       # (B,S,H)
    mbias = (1.0 - attention_mask.astype(jnp.float32))[:, None, :] * -1e9          # (B,1,S)
    ism = is_mask.astype(jnp.float32)[..., None]                                   # (B,S,1)

    gen_logits_padded, d_out = fused_forward_call(p, gen_x, mbias, d_wemb, ism)
    gen_logits = gen_logits_padded[..., :V]                                        # (B,S,V)
    disc_logits = d_out[:, 0, :S]                                                  # (B,S)

    # generator loss: CrossEntropy with ignore_index=-100 (mean over valid tokens)
    gen_loss = masked_cross_entropy(gen_logits, generator_labels)

    # discriminator labels: 1 where input was [MASK]; BCEWithLogits mean over all tokens
    disc_labels = is_mask.astype(jnp.float32)
    disc_loss = jnp.mean(jax.nn.softplus(disc_logits) - disc_logits * disc_labels)

    loss = LOSS_WEIGHTS[1] * disc_loss + LOSS_WEIGHTS[0] * gen_loss
    return loss, (disc_loss, disc_logits), (gen_loss, gen_logits)


# ------------------------------------------ main ------------------------------------------
if __name__ == "__main__":
    key = jax.random.PRNGKey(0)
    k_tok, k_mask, k_par = jax.random.split(key, 3)

    original_tokens = jax.random.randint(k_tok, (B, S), 0, V, dtype=jnp.int32)
    mask_positions = jax.random.bernoulli(k_mask, 0.25, (B, S))
    input_tokens = jnp.where(mask_positions, MASK_ID, original_tokens)
    generator_labels = jnp.where(mask_positions, original_tokens, -100)
    attention_mask = jnp.ones((B, S), jnp.int32)

    params = init_params(k_par)

    fwd = jax.jit(lambda it, gl, am: electra_wrapper_forward(params, it, gl, am))
    loss, disc_out, gen_out = fwd(input_tokens, generator_labels, attention_mask)
    jax.block_until_ready(loss)
    jax.block_until_ready(disc_out[1])
    jax.block_until_ready(gen_out[1])

    assert loss.shape == ()
    assert gen_out[1].shape == (B, S, V)
    assert disc_out[1].shape == (B, S)
    assert bool(jnp.isfinite(loss))
    print("KERNEL_OK")
</pallas_src>

<mosaic_0001>
module attributes {stable_mosaic.version = 11 : i64} {
  func.func @electra_kernel(%arg0: i32, %arg1: memref<1x8x32xf32, #tpu.memory_space<vmem>>, %arg2: memref<1x1x8xf32, #tpu.memory_space<vmem>>, %arg3: memref<1x8x32xf32, #tpu.memory_space<vmem>>, %arg4: memref<1x8x1xf32, #tpu.memory_space<vmem>>, %arg5: memref<8x32xf32, #tpu.memory_space<vmem>>, %arg6: memref<2x2x32xf32, #tpu.memory_space<vmem>>, %arg7: memref<24x32x16xbf16, #tpu.memory_space<vmem>>, %arg8: memref<24x1x16xf32, #tpu.memory_space<vmem>>, %arg9: memref<8x16x32xbf16, #tpu.memory_space<vmem>>, %arg10: memref<4x32x64xbf16, #tpu.memory_space<vmem>>, %arg11: memref<4x64x32xbf16, #tpu.memory_space<vmem>>, %arg12: memref<4x7x64xf32, #tpu.memory_space<vmem>>, %arg13: memref<32x32xbf16, #tpu.memory_space<vmem>>, %arg14: memref<3x32xf32, #tpu.memory_space<vmem>>, %arg15: memref<32x128xbf16, #tpu.memory_space<vmem>>, %arg16: memref<1x128xf32, #tpu.memory_space<vmem>>, %arg17: memref<64x32xbf16, #tpu.memory_space<vmem>>, %arg18: memref<32x32xbf16, #tpu.memory_space<vmem>>, %arg19: memref<1x32xf32, #tpu.memory_space<vmem>>, %arg20: memref<1x32xf32, #tpu.memory_space<vmem>>, %arg21: memref<1x1xf32, #tpu.memory_space<vmem>>, %arg22: memref<1x8x128xf32, #tpu.memory_space<vmem>>, %arg23: memref<1x1x128xf32, #tpu.memory_space<vmem>>) attributes {dimension_semantics = [#tpu.dimension_semantics<parallel>], iteration_bounds = array<i64: 2>, scalar_prefetch = 0 : i64, scratch_operands = 0 : i64, tpu.core_type = #tpu.core_type<tc>, window_params = [{transform_indices = @transform_0, window_bounds = array<i64: 1, 8, 32>}, {transform_indices = @transform_1, window_bounds = array<i64: 1, 1, 8>}, {transform_indices = @transform_2, window_bounds = array<i64: 1, 8, 32>}, {transform_indices = @transform_3, window_bounds = array<i64: 1, 8, 1>}, {pipeline_mode = #tpu.pipeline_mode<synchronous>, transform_indices = @transform_4, window_bounds = array<i64: 8, 32>}, {pipeline_mode = #tpu.pipeline_mode<synchronous>, transform_indices = @transform_5, window_bounds = array<i64: 2, 2, 32>}, {pipeline_mode = #tpu.pipeline_mode<synchronous>, transform_indices = @transform_6, window_bounds = array<i64: 24, 32, 16>}, {pipeline_mode = #tpu.pipeline_mode<synchronous>, transform_indices = @transform_7, window_bounds = array<i64: 24, 1, 16>}, {pipeline_mode = #tpu.pipeline_mode<synchronous>, transform_indices = @transform_8, window_bounds = array<i64: 8, 16, 32>}, {pipeline_mode = #tpu.pipeline_mode<synchronous>, transform_indices = @transform_9, window_bounds = array<i64: 4, 32, 64>}, {pipeline_mode = #tpu.pipeline_mode<synchronous>, transform_indices = @transform_10, window_bounds = array<i64: 4, 64, 32>}, {pipeline_mode = #tpu.pipeline_mode<synchronous>, transform_indices = @transform_11, window_bounds = array<i64: 4, 7, 64>}, {pipeline_mode = #tpu.pipeline_mode<synchronous>, transform_indices = @transform_12, window_bounds = array<i64: 32, 32>}, {pipeline_mode = #tpu.pipeline_mode<synchronous>, transform_indices = @transform_13, window_bounds = array<i64: 3, 32>}, {pipeline_mode = #tpu.pipeline_mode<synchronous>, transform_indices = @transform_14, window_bounds = array<i64: 32, 128>}, {pipeline_mode = #tpu.pipeline_mode<synchronous>, transform_indices = @transform_15, window_bounds = array<i64: 1, 128>}, {pipeline_mode = #tpu.pipeline_mode<synchronous>, transform_indices = @transform_16, window_bounds = array<i64: 64, 32>}, {pipeline_mode = #tpu.pipeline_mode<synchronous>, transform_indices = @transform_17, window_bounds = array<i64: 32, 32>}, {pipeline_mode = #tpu.pipeline_mode<synchronous>, transform_indices = @transform_18, window_bounds = array<i64: 1, 32>}, {pipeline_mode = #tpu.pipeline_mode<synchronous>, transform_indices = @transform_19, window_bounds = array<i64: 1, 32>}, {pipeline_mode = #tpu.pipeline_mode<synchronous>, transform_indices = @transform_20, window_bounds = array<i64: 1, 1>}, {transform_indices = @transform_21, window_bounds = array<i64: 1, 8, 128>}, {transform_indices = @transform_22, window_bounds = array<i64: 1, 1, 128>}]} {
    %c0 = arith.constant 0 : index
    %c0_0 = arith.constant 0 : index
    %c0_1 = arith.constant 0 : index
    %0 = vector.load %arg1[%c0, %c0_0, %c0_1] : memref<1x8x32xf32, #tpu.memory_space<vmem>>, vector<1x8x32xf32>
    %1 = vector.shape_cast %0 : vector<1x8x32xf32> to vector<8x32xf32>
    %c0_2 = arith.constant 0 : index
    %c0_3 = arith.constant 0 : index
    %c0_4 = arith.constant 0 : index
    %2 = vector.load %arg2[%c0_2, %c0_3, %c0_4] : memref<1x1x8xf32, #tpu.memory_space<vmem>>, vector<1x1x8xf32>
    %3 = vector.shape_cast %2 : vector<1x1x8xf32> to vector<1x8xf32>
    %c0_5 = arith.constant 0 : index
    %c0_6 = arith.constant 0 : index
    %c0_7 = arith.constant 0 : index
    %4 = vector.load %arg6[%c0_5, %c0_6, %c0_7] : memref<2x2x32xf32, #tpu.memory_space<vmem>>, vector<1x2x32xf32>
    %5 = vector.shape_cast %4 : vector<1x2x32xf32> to vector<2x32xf32>
    %6 = vector.extract_strided_slice %5 {offsets = [0, 0], sizes = [1, 32], strides = [1, 1]} : vector<2x32xf32> to vector<1x32xf32>
    %7 = vector.extract_strided_slice %5 {offsets = [1, 0], sizes = [1, 32], strides = [1, 1]} : vector<2x32xf32> to vector<1x32xf32>
    %cst = arith.constant dense<0.000000e+00> : vector<8xf32>
    %8 = vector.multi_reduction <add>, %1, %cst [1] : vector<8x32xf32> to vector<8xf32>
    %9 = vector.shape_cast %8 : vector<8xf32> to vector<8x1xf32>
    %cst_8 = arith.constant 3.200000e+01 : f32
    %10 = vector.broadcast %cst_8 : f32 to vector<8x1xf32>
    %11 = arith.divf %9, %10 : vector<8x1xf32>
    %12 = vector.broadcast %11 : vector<8x1xf32> to vector<8x32xf32>
    %13 = arith.subf %1, %12 : vector<8x32xf32>
    %14 = arith.mulf %13, %13 : vector<8x32xf32>
    %cst_9 = arith.constant dense<0.000000e+00> : vector<8xf32>
    %15 = vector.multi_reduction <add>, %14, %cst_9 [1] : vector<8x32xf32> to vector<8xf32>
    %16 = vector.shape_cast %15 : vector<8xf32> to vector<8x1xf32>
    %cst_10 = arith.constant 3.200000e+01 : f32
    %17 = vector.broadcast %cst_10 : f32 to vector<8x1xf32>
    %18 = arith.divf %16, %17 : vector<8x1xf32>
    %19 = vector.broadcast %11 : vector<8x1xf32> to vector<8x32xf32>
    %20 = arith.subf %1, %19 : vector<8x32xf32>
    %cst_11 = arith.constant 9.99999996E-13 : f32
    %21 = vector.broadcast %cst_11 : f32 to vector<8x1xf32>
    %22 = arith.addf %18, %21 : vector<8x1xf32>
    %23 = math.rsqrt %22 : vector<8x1xf32>
    %24 = vector.broadcast %23 : vector<8x1xf32> to vector<8x32xf32>
    %25 = arith.mulf %20, %24 : vector<8x32xf32>
    %26 = vector.broadcast %6 : vector<1x32xf32> to vector<8x32xf32>
    %27 = arith.mulf %25, %26 : vector<8x32xf32>
    %28 = vector.broadcast %7 : vector<1x32xf32> to vector<8x32xf32>
    %29 = arith.addf %27, %28 : vector<8x32xf32>
    %c0_12 = arith.constant 0 : index
    %c0_13 = arith.constant 0 : index
    %c0_14 = arith.constant 0 : index
    %30 = vector.load %arg12[%c0_12, %c0_13, %c0_14] : memref<4x7x64xf32, #tpu.memory_space<vmem>>, vector<1x7x64xf32>
    %31 = vector.shape_cast %30 : vector<1x7x64xf32> to vector<7x64xf32>
    %32 = arith.truncf %29 : vector<8x32xf32> to vector<8x32xbf16>
    %cst_15 = arith.constant 0.000000e+00 : f32
    %33 = vector.broadcast %cst_15 : f32 to vector<8x32xf32>
    %c0_16 = arith.constant 0 : index
    %c0_17 = arith.constant 0 : index
    %c0_18 = arith.constant 0 : index
    %34 = vector.load %arg7[%c0_16, %c0_17, %c0_18] : memref<24x32x16xbf16, #tpu.memory_space<vmem>>, vector<1x32x16xbf16>
    %35 = vector.shape_cast %34 : vector<1x32x16xbf16> to vector<32x16xbf16>
    %cst_19 = arith.constant dense<0.000000e+00> : vector<8x16xf32>
    %36 = tpu.matmul %32, %35, %cst_19 {dimension_numbers = #tpu.dot_dimension_numbers<[1], [0], [0], [1], [0, 0, 1, 1], [], []>} : vector<8x32xbf16>, vector<32x16xbf16>, vector<8x16xf32> -> vector<8x16xf32>
    %c0_20 = arith.constant 0 : index
    %c0_21 = arith.constant 0 : index
    %c0_22 = arith.constant 0 : index
    %37 = vector.load %arg8[%c0_20, %c0_21, %c0_22] : memref<24x1x16xf32, #tpu.memory_space<vmem>>, vector<1x1x16xf32>
    %38 = vector.shape_cast %37 : vector<1x1x16xf32> to vector<1x16xf32>
    %39 = vector.broadcast %38 : vector<1x16xf32> to vector<8x16xf32>
    %40 = arith.addf %36, %39 : vector<8x16xf32>
    %c1 = arith.constant 1 : index
    %c0_23 = arith.constant 0 : index
    %c0_24 = arith.constant 0 : index
    %41 = vector.load %arg7[%c1, %c0_23, %c0_24] : memref<24x32x16xbf16, #tpu.memory_space<vmem>>, vector<1x32x16xbf16>
    %42 = vector.shape_cast %41 : vector<1x32x16xbf16> to vector<32x16xbf16>
    %cst_25 = arith.constant dense<0.000000e+00> : vector<8x16xf32>
    %43 = tpu.matmul %32, %42, %cst_25 {dimension_numbers = #tpu.dot_dimension_numbers<[1], [0], [0], [1], [0, 0, 1, 1], [], []>} : vector<8x32xbf16>, vector<32x16xbf16>, vector<8x16xf32> -> vector<8x16xf32>
    %c1_26 = arith.constant 1 : index
    %c0_27 = arith.constant 0 : index
    %c0_28 = arith.constant 0 : index
    %44 = vector.load %arg8[%c1_26, %c0_27, %c0_28] : memref<24x1x16xf32, #tpu.memory_space<vmem>>, vector<1x1x16xf32>
    %45 = vector.shape_cast %44 : vector<1x1x16xf32> to vector<1x16xf32>
    %46 = vector.broadcast %45 : vector<1x16xf32> to vector<8x16xf32>
    %47 = arith.addf %43, %46 : vector<8x16xf32>
    %c2 = arith.constant 2 : index
    %c0_29 = arith.constant 0 : index
    %c0_30 = arith.constant 0 : index
    %48 = vector.load %arg7[%c2, %c0_29, %c0_30] : memref<24x32x16xbf16, #tpu.memory_space<vmem>>, vector<1x32x16xbf16>
    %49 = vector.shape_cast %48 : vector<1x32x16xbf16> to vector<32x16xbf16>
    %cst_31 = arith.constant dense<0.000000e+00> : vector<8x16xf32>
    %50 = tpu.matmul %32, %49, %cst_31 {dimension_numbers = #tpu.dot_dimension_numbers<[1], [0], [0], [1], [0, 0, 1, 1], [], []>} : vector<8x32xbf16>, vector<32x16xbf16>, vector<8x16xf32> -> vector<8x16xf32>
    %c2_32 = arith.constant 2 : index
    %c0_33 = arith.constant 0 : index
    %c0_34 = arith.constant 0 : index
    %51 = vector.load %arg8[%c2_32, %c0_33, %c0_34] : memref<24x1x16xf32, #tpu.memory_space<vmem>>, vector<1x1x16xf32>
    %52 = vector.shape_cast %51 : vector<1x1x16xf32> to vector<1x16xf32>
    %53 = vector.broadcast %52 : vector<1x16xf32> to vector<8x16xf32>
    %54 = arith.addf %50, %53 : vector<8x16xf32>
    %55 = arith.truncf %40 : vector<8x16xf32> to vector<8x16xbf16>
    %56 = arith.truncf %47 : vector<8x16xf32> to vector<8x16xbf16>
    %57 = tpu.transpose %56, [1, 0] : vector<8x16xbf16> -> vector<16x8xbf16>
    %cst_35 = arith.constant dense<0.000000e+00> : vector<8x8xf32>
    %58 = tpu.matmul %55, %57, %cst_35 {dimension_numbers = #tpu.dot_dimension_numbers<[1], [0], [0], [1], [0, 0, 1, 1], [], []>} : vector<8x16xbf16>, vector<16x8xbf16>, vector<8x8xf32> -> vector<8x8xf32>
    %cst_36 = arith.constant 2.500000e-01 : f32
    %59 = vector.broadcast %cst_36 : f32 to vector<8x8xf32>
    %60 = arith.mulf %58, %59 : vector<8x8xf32>
    %61 = vector.broadcast %3 : vector<1x8xf32> to vector<8x8xf32>
    %62 = arith.addf %60, %61 : vector<8x8xf32>
    %cst_37 = arith.constant dense<0xFF800000> : vector<8xf32>
    %63 = vector.multi_reduction <maximumf>, %62, %cst_37 [1] : vector<8x8xf32> to vector<8xf32>
    %64 = vector.shape_cast %63 : vector<8xf32> to vector<8x1xf32>
    %65 = vector.broadcast %64 : vector<8x1xf32> to vector<8x8xf32>
    %66 = arith.subf %62, %65 : vector<8x8xf32>
    %67 = math.exp %66 : vector<8x8xf32>
    %cst_38 = arith.constant dense<0.000000e+00> : vector<8xf32>
    %68 = vector.multi_reduction <add>, %67, %cst_38 [1] : vector<8x8xf32> to vector<8xf32>
    %69 = vector.shape_cast %68 : vector<8xf32> to vector<8x1xf32>
    %70 = tpu.reciprocal %69 {approx = true} : vector<8x1xf32> -> vector<8x1xf32>
    %71 = vector.broadcast %70 : vector<8x1xf32> to vector<8x8xf32>
    %72 = arith.mulf %67, %71 : vector<8x8xf32>
    %73 = arith.truncf %72 : vector<8x8xf32> to vector<8x8xbf16>
    %74 = arith.truncf %54 : vector<8x16xf32> to vector<8x16xbf16>
    %cst_39 = arith.constant dense<0.000000e+00> : vector<8x16xf32>
    %75 = tpu.matmul %73, %74, %cst_39 {dimension_numbers = #tpu.dot_dimension_numbers<[1], [0], [0], [1], [0, 0, 1, 1], [], []>} : vector<8x8xbf16>, vector<8x16xbf16>, vector<8x16xf32> -> vector<8x16xf32>
    %76 = arith.truncf %75 : vector<8x16xf32> to vector<8x16xbf16>
    %c0_40 = arith.constant 0 : index
    %c0_41 = arith.constant 0 : index
    %c0_42 = arith.constant 0 : index
    %77 = vector.load %arg9[%c0_40, %c0_41, %c0_42] : memref<8x16x32xbf16, #tpu.memory_space<vmem>>, vector<1x16x32xbf16>
    %78 = vector.shape_cast %77 : vector<1x16x32xbf16> to vector<16x32xbf16>
    %cst_43 = arith.constant dense<0.000000e+00> : vector<8x32xf32>
    %79 = tpu.matmul %76, %78, %cst_43 {dimension_numbers = #tpu.dot_dimension_numbers<[1], [0], [0], [1], [0, 0, 1, 1], [], []>} : vector<8x16xbf16>, vector<16x32xbf16>, vector<8x32xf32> -> vector<8x32xf32>
    %80 = arith.addf %33, %79 : vector<8x32xf32>
    %c3 = arith.constant 3 : index
    %c0_44 = arith.constant 0 : index
    %c0_45 = arith.constant 0 : index
    %81 = vector.load %arg7[%c3, %c0_44, %c0_45] : memref<24x32x16xbf16, #tpu.memory_space<vmem>>, vector<1x32x16xbf16>
    %82 = vector.shape_cast %81 : vector<1x32x16xbf16> to vector<32x16xbf16>
    %cst_46 = arith.constant dense<0.000000e+00> : vector<8x16xf32>
    %83 = tpu.matmul %32, %82, %cst_46 {dimension_numbers = #tpu.dot_dimension_numbers<[1], [0], [0], [1], [0, 0, 1, 1], [], []>} : vector<8x32xbf16>, vector<32x16xbf16>, vector<8x16xf32> -> vector<8x16xf32>
    %c3_47 = arith.constant 3 : index
    %c0_48 = arith.constant 0 : index
    %c0_49 = arith.constant 0 : index
    %84 = vector.load %arg8[%c3_47, %c0_48, %c0_49] : memref<24x1x16xf32, #tpu.memory_space<vmem>>, vector<1x1x16xf32>
    %85 = vector.shape_cast %84 : vector<1x1x16xf32> to vector<1x16xf32>
    %86 = vector.broadcast %85 : vector<1x16xf32> to vector<8x16xf32>
    %87 = arith.addf %83, %86 : vector<8x16xf32>
    %c4 = arith.constant 4 : index
    %c0_50 = arith.constant 0 : index
    %c0_51 = arith.constant 0 : index
    %88 = vector.load %arg7[%c4, %c0_50, %c0_51] : memref<24x32x16xbf16, #tpu.memory_space<vmem>>, vector<1x32x16xbf16>
    %89 = vector.shape_cast %88 : vector<1x32x16xbf16> to vector<32x16xbf16>
    %cst_52 = arith.constant dense<0.000000e+00> : vector<8x16xf32>
    %90 = tpu.matmul %32, %89, %cst_52 {dimension_numbers = #tpu.dot_dimension_numbers<[1], [0], [0], [1], [0, 0, 1, 1], [], []>} : vector<8x32xbf16>, vector<32x16xbf16>, vector<8x16xf32> -> vector<8x16xf32>
    %c4_53 = arith.constant 4 : index
    %c0_54 = arith.constant 0 : index
    %c0_55 = arith.constant 0 : index
    %91 = vector.load %arg8[%c4_53, %c0_54, %c0_55] : memref<24x1x16xf32, #tpu.memory_space<vmem>>, vector<1x1x16xf32>
    %92 = vector.shape_cast %91 : vector<1x1x16xf32> to vector<1x16xf32>
    %93 = vector.broadcast %92 : vector<1x16xf32> to vector<8x16xf32>
    %94 = arith.addf %90, %93 : vector<8x16xf32>
    %c5 = arith.constant 5 : index
    %c0_56 = arith.constant 0 : index
    %c0_57 = arith.constant 0 : index
    %95 = vector.load %arg7[%c5, %c0_56, %c0_57] : memref<24x32x16xbf16, #tpu.memory_space<vmem>>, vector<1x32x16xbf16>
    %96 = vector.shape_cast %95 : vector<1x32x16xbf16> to vector<32x16xbf16>
    %cst_58 = arith.constant dense<0.000000e+00> : vector<8x16xf32>
    %97 = tpu.matmul %32, %96, %cst_58 {dimension_numbers = #tpu.dot_dimension_numbers<[1], [0], [0], [1], [0, 0, 1, 1], [], []>} : vector<8x32xbf16>, vector<32x16xbf16>, vector<8x16xf32> -> vector<8x16xf32>
    %c5_59 = arith.constant 5 : index
    %c0_60 = arith.constant 0 : index
    %c0_61 = arith.constant 0 : index
    %98 = vector.load %arg8[%c5_59, %c0_60, %c0_61] : memref<24x1x16xf32, #tpu.memory_space<vmem>>, vector<1x1x16xf32>
    %99 = vector.shape_cast %98 : vector<1x1x16xf32> to vector<1x16xf32>
    %100 = vector.broadcast %99 : vector<1x16xf32> to vector<8x16xf32>
    %101 = arith.addf %97, %100 : vector<8x16xf32>
    %102 = arith.truncf %87 : vector<8x16xf32> to vector<8x16xbf16>
    %103 = arith.truncf %94 : vector<8x16xf32> to vector<8x16xbf16>
    %104 = tpu.transpose %103, [1, 0] : vector<8x16xbf16> -> vector<16x8xbf16>
    %cst_62 = arith.constant dense<0.000000e+00> : vector<8x8xf32>
    %105 = tpu.matmul %102, %104, %cst_62 {dimension_numbers = #tpu.dot_dimension_numbers<[1], [0], [0], [1], [0, 0, 1, 1], [], []>} : vector<8x16xbf16>, vector<16x8xbf16>, vector<8x8xf32> -> vector<8x8xf32>
    %cst_63 = arith.constant 2.500000e-01 : f32
    %106 = vector.broadcast %cst_63 : f32 to vector<8x8xf32>
    %107 = arith.mulf %105, %106 : vector<8x8xf32>
    %108 = vector.broadcast %3 : vector<1x8xf32> to vector<8x8xf32>
    %109 = arith.addf %107, %108 : vector<8x8xf32>
    %cst_64 = arith.constant dense<0xFF800000> : vector<8xf32>
    %110 = vector.multi_reduction <maximumf>, %109, %cst_64 [1] : vector<8x8xf32> to vector<8xf32>
    %111 = vector.shape_cast %110 : vector<8xf32> to vector<8x1xf32>
    %112 = vector.broadcast %111 : vector<8x1xf32> to vector<8x8xf32>
    %113 = arith.subf %109, %112 : vector<8x8xf32>
    %114 = math.exp %113 : vector<8x8xf32>
    %cst_65 = arith.constant dense<0.000000e+00> : vector<8xf32>
    %115 = vector.multi_reduction <add>, %114, %cst_65 [1] : vector<8x8xf32> to vector<8xf32>
    %116 = vector.shape_cast %115 : vector<8xf32> to vector<8x1xf32>
    %117 = tpu.reciprocal %116 {approx = true} : vector<8x1xf32> -> vector<8x1xf32>
    %118 = vector.broadcast %117 : vector<8x1xf32> to vector<8x8xf32>
    %119 = arith.mulf %114, %118 : vector<8x8xf32>
    %120 = arith.truncf %119 : vector<8x8xf32> to vector<8x8xbf16>
    %121 = arith.truncf %101 : vector<8x16xf32> to vector<8x16xbf16>
    %cst_66 = arith.constant dense<0.000000e+00> : vector<8x16xf32>
    %122 = tpu.matmul %120, %121, %cst_66 {dimension_numbers = #tpu.dot_dimension_numbers<[1], [0], [0], [1], [0, 0, 1, 1], [], []>} : vector<8x8xbf16>, vector<8x16xbf16>, vector<8x16xf32> -> vector<8x16xf32>
    %123 = arith.truncf %122 : vector<8x16xf32> to vector<8x16xbf16>
    %c1_67 = arith.constant 1 : index
    %c0_68 = arith.constant 0 : index
    %c0_69 = arith.constant 0 : index
    %124 = vector.load %arg9[%c1_67, %c0_68, %c0_69] : memref<8x16x32xbf16, #tpu.memory_space<vmem>>, vector<1x16x32xbf16>
    %125 = vector.shape_cast %124 : vector<1x16x32xbf16> to vector<16x32xbf16>
    %cst_70 = arith.constant dense<0.000000e+00> : vector<8x32xf32>
    %126 = tpu.matmul %123, %125, %cst_70 {dimension_numbers = #tpu.dot_dimension_numbers<[1], [0], [0], [1], [0, 0, 1, 1], [], []>} : vector<8x16xbf16>, vector<16x32xbf16>, vector<8x32xf32> -> vector<8x32xf32>
    %127 = arith.addf %80, %126 : vector<8x32xf32>
    %128 = vector.extract_strided_slice %31 {offsets = [0, 0], sizes = [1, 32], strides = [1, 1]} : vector<7x64xf32> to vector<1x32xf32>
    %129 = vector.broadcast %128 : vector<1x32xf32> to vector<8x32xf32>
    %130 = arith.addf %127, %129 : vector<8x32xf32>
    %131 = arith.addf %29, %130 : vector<8x32xf32>
    %132 = vector.extract_strided_slice %31 {offsets = [1, 0], sizes = [1, 32], strides = [1, 1]} : vector<7x64xf32> to vector<1x32xf32>
    %133 = vector.extract_strided_slice %31 {offsets = [2, 0], sizes = [1, 32], strides = [1, 1]} : vector<7x64xf32> to vector<1x32xf32>
    %cst_71 = arith.constant dense<0.000000e+00> : vector<8xf32>
    %134 = vector.multi_reduction <add>, %131, %cst_71 [1] : vector<8x32xf32> to vector<8xf32>
    %135 = vector.shape_cast %134 : vector<8xf32> to vector<8x1xf32>
    %cst_72 = arith.constant 3.200000e+01 : f32
    %136 = vector.broadcast %cst_72 : f32 to vector<8x1xf32>
    %137 = arith.divf %135, %136 : vector<8x1xf32>
    %138 = vector.broadcast %137 : vector<8x1xf32> to vector<8x32xf32>
    %139 = arith.subf %131, %138 : vector<8x32xf32>
    %140 = arith.mulf %139, %139 : vector<8x32xf32>
    %cst_73 = arith.constant dense<0.000000e+00> : vector<8xf32>
    %141 = vector.multi_reduction <add>, %140, %cst_73 [1] : vector<8x32xf32> to vector<8xf32>
    %142 = vector.shape_cast %141 : vector<8xf32> to vector<8x1xf32>
    %cst_74 = arith.constant 3.200000e+01 : f32
    %143 = vector.broadcast %cst_74 : f32 to vector<8x1xf32>
    %144 = arith.divf %142, %143 : vector<8x1xf32>
    %145 = vector.broadcast %137 : vector<8x1xf32> to vector<8x32xf32>
    %146 = arith.subf %131, %145 : vector<8x32xf32>
    %cst_75 = arith.constant 9.99999996E-13 : f32
    %147 = vector.broadcast %cst_75 : f32 to vector<8x1xf32>
    %148 = arith.addf %144, %147 : vector<8x1xf32>
    %149 = math.rsqrt %148 : vector<8x1xf32>
    %150 = vector.broadcast %149 : vector<8x1xf32> to vector<8x32xf32>
    %151 = arith.mulf %146, %150 : vector<8x32xf32>
    %152 = vector.broadcast %132 : vector<1x32xf32> to vector<8x32xf32>
    %153 = arith.mulf %151, %152 : vector<8x32xf32>
    %154 = vector.broadcast %133 : vector<1x32xf32> to vector<8x32xf32>
    %155 = arith.addf %153, %154 : vector<8x32xf32>
    %156 = arith.truncf %155 : vector<8x32xf32> to vector<8x32xbf16>
    %c0_76 = arith.constant 0 : index
    %c0_77 = arith.constant 0 : index
    %c0_78 = arith.constant 0 : index
    %157 = vector.load %arg10[%c0_76, %c0_77, %c0_78] : memref<4x32x64xbf16, #tpu.memory_space<vmem>>, vector<1x32x64xbf16>
    %158 = vector.shape_cast %157 : vector<1x32x64xbf16> to vector<32x64xbf16>
    %cst_79 = arith.constant dense<0.000000e+00> : vector<8x64xf32>
    %159 = tpu.matmul %156, %158, %cst_79 {dimension_numbers = #tpu.dot_dimension_numbers<[1], [0], [0], [1], [0, 0, 1, 1], [], []>} : vector<8x32xbf16>, vector<32x64xbf16>, vector<8x64xf32> -> vector<8x64xf32>
    %160 = vector.extract_strided_slice %31 {offsets = [3, 0], sizes = [1, 64], strides = [1, 1]} : vector<7x64xf32> to vector<1x64xf32>
    %161 = vector.broadcast %160 : vector<1x64xf32> to vector<8x64xf32>
    %162 = arith.addf %159, %161 : vector<8x64xf32>
    %163 = arith.mulf %162, %162 : vector<8x64xf32>
    %164 = arith.mulf %162, %163 : vector<8x64xf32>
    %cst_80 = arith.constant 4.471500e-02 : f32
    %165 = vector.broadcast %cst_80 : f32 to vector<8x64xf32>
    %166 = arith.mulf %165, %164 : vector<8x64xf32>
    %167 = arith.addf %162, %166 : vector<8x64xf32>
    %cst_81 = arith.constant 0.797884583 : f32
    %168 = vector.broadcast %cst_81 : f32 to vector<8x64xf32>
    %169 = arith.mulf %168, %167 : vector<8x64xf32>
    %170 = math.tanh %169 : vector<8x64xf32>
    %cst_82 = arith.constant 1.000000e+00 : f32
    %171 = vector.broadcast %cst_82 : f32 to vector<8x64xf32>
    %172 = arith.addf %171, %170 : vector<8x64xf32>
    %cst_83 = arith.constant 5.000000e-01 : f32
    %173 = vector.broadcast %cst_83 : f32 to vector<8x64xf32>
    %174 = arith.mulf %173, %172 : vector<8x64xf32>
    %175 = arith.mulf %162, %174 : vector<8x64xf32>
    %176 = arith.truncf %175 : vector<8x64xf32> to vector<8x64xbf16>
    %c0_84 = arith.constant 0 : index
    %c0_85 = arith.constant 0 : index
    %c0_86 = arith.constant 0 : index
    %177 = vector.load %arg11[%c0_84, %c0_85, %c0_86] : memref<4x64x32xbf16, #tpu.memory_space<vmem>>, vector<1x64x32xbf16>
    %178 = vector.shape_cast %177 : vector<1x64x32xbf16> to vector<64x32xbf16>
    %cst_87 = arith.constant dense<0.000000e+00> : vector<8x32xf32>
    %179 = tpu.matmul %176, %178, %cst_87 {dimension_numbers = #tpu.dot_dimension_numbers<[1], [0], [0], [1], [0, 0, 1, 1], [], []>} : vector<8x64xbf16>, vector<64x32xbf16>, vector<8x32xf32> -> vector<8x32xf32>
    %180 = vector.extract_strided_slice %31 {offsets = [4, 0], sizes = [1, 32], strides = [1, 1]} : vector<7x64xf32> to vector<1x32xf32>
    %181 = vector.broadcast %180 : vector<1x32xf32> to vector<8x32xf32>
    %182 = arith.addf %179, %181 : vector<8x32xf32>
    %183 = arith.addf %155, %182 : vector<8x32xf32>
    %184 = vector.extract_strided_slice %31 {offsets = [5, 0], sizes = [1, 32], strides = [1, 1]} : vector<7x64xf32> to vector<1x32xf32>
    %185 = vector.extract_strided_slice %31 {offsets = [6, 0], sizes = [1, 32], strides = [1, 1]} : vector<7x64xf32> to vector<1x32xf32>
    %cst_88 = arith.constant dense<0.000000e+00> : vector<8xf32>
    %186 = vector.multi_reduction <add>, %183, %cst_88 [1] : vector<8x32xf32> to vector<8xf32>
    %187 = vector.shape_cast %186 : vector<8xf32> to vector<8x1xf32>
    %cst_89 = arith.constant 3.200000e+01 : f32
    %188 = vector.broadcast %cst_89 : f32 to vector<8x1xf32>
    %189 = arith.divf %187, %188 : vector<8x1xf32>
    %190 = vector.broadcast %189 : vector<8x1xf32> to vector<8x32xf32>
    %191 = arith.subf %183, %190 : vector<8x32xf32>
    %192 = arith.mulf %191, %191 : vector<8x32xf32>
    %cst_90 = arith.constant dense<0.000000e+00> : vector<8xf32>
    %193 = vector.multi_reduction <add>, %192, %cst_90 [1] : vector<8x32xf32> to vector<8xf32>
    %194 = vector.shape_cast %193 : vector<8xf32> to vector<8x1xf32>
    %cst_91 = arith.constant 3.200000e+01 : f32
    %195 = vector.broadcast %cst_91 : f32 to vector<8x1xf32>
    %196 = arith.divf %194, %195 : vector<8x1xf32>
    %197 = vector.broadcast %189 : vector<8x1xf32> to vector<8x32xf32>
    %198 = arith.subf %183, %197 : vector<8x32xf32>
    %cst_92 = arith.constant 9.99999996E-13 : f32
    %199 = vector.broadcast %cst_92 : f32 to vector<8x1xf32>
    %200 = arith.addf %196, %199 : vector<8x1xf32>
    %201 = math.rsqrt %200 : vector<8x1xf32>
    %202 = vector.broadcast %201 : vector<8x1xf32> to vector<8x32xf32>
    %203 = arith.mulf %198, %202 : vector<8x32xf32>
    %204 = vector.broadcast %184 : vector<1x32xf32> to vector<8x32xf32>
    %205 = arith.mulf %203, %204 : vector<8x32xf32>
    %206 = vector.broadcast %185 : vector<1x32xf32> to vector<8x32xf32>
    %207 = arith.addf %205, %206 : vector<8x32xf32>
    %c1_93 = arith.constant 1 : index
    %c0_94 = arith.constant 0 : index
    %c0_95 = arith.constant 0 : index
    %208 = vector.load %arg12[%c1_93, %c0_94, %c0_95] : memref<4x7x64xf32, #tpu.memory_space<vmem>>, vector<1x7x64xf32>
    %209 = vector.shape_cast %208 : vector<1x7x64xf32> to vector<7x64xf32>
    %210 = arith.truncf %207 : vector<8x32xf32> to vector<8x32xbf16>
    %cst_96 = arith.constant 0.000000e+00 : f32
    %211 = vector.broadcast %cst_96 : f32 to vector<8x32xf32>
    %c6 = arith.constant 6 : index
    %c0_97 = arith.constant 0 : index
    %c0_98 = arith.constant 0 : index
    %212 = vector.load %arg7[%c6, %c0_97, %c0_98] : memref<24x32x16xbf16, #tpu.memory_space<vmem>>, vector<1x32x16xbf16>
    %213 = vector.shape_cast %212 : vector<1x32x16xbf16> to vector<32x16xbf16>
    %cst_99 = arith.constant dense<0.000000e+00> : vector<8x16xf32>
    %214 = tpu.matmul %210, %213, %cst_99 {dimension_numbers = #tpu.dot_dimension_numbers<[1], [0], [0], [1], [0, 0, 1, 1], [], []>} : vector<8x32xbf16>, vector<32x16xbf16>, vector<8x16xf32> -> vector<8x16xf32>
    %c6_100 = arith.constant 6 : index
    %c0_101 = arith.constant 0 : index
    %c0_102 = arith.constant 0 : index
    %215 = vector.load %arg8[%c6_100, %c0_101, %c0_102] : memref<24x1x16xf32, #tpu.memory_space<vmem>>, vector<1x1x16xf32>
    %216 = vector.shape_cast %215 : vector<1x1x16xf32> to vector<1x16xf32>
    %217 = vector.broadcast %216 : vector<1x16xf32> to vector<8x16xf32>
    %218 = arith.addf %214, %217 : vector<8x16xf32>
    %c7 = arith.constant 7 : index
    %c0_103 = arith.constant 0 : index
    %c0_104 = arith.constant 0 : index
    %219 = vector.load %arg7[%c7, %c0_103, %c0_104] : memref<24x32x16xbf16, #tpu.memory_space<vmem>>, vector<1x32x16xbf16>
    %220 = vector.shape_cast %219 : vector<1x32x16xbf16> to vector<32x16xbf16>
    %cst_105 = arith.constant dense<0.000000e+00> : vector<8x16xf32>
    %221 = tpu.matmul %210, %220, %cst_105 {dimension_numbers = #tpu.dot_dimension_numbers<[1], [0], [0], [1], [0, 0, 1, 1], [], []>} : vector<8x32xbf16>, vector<32x16xbf16>, vector<8x16xf32> -> vector<8x16xf32>
    %c7_106 = arith.constant 7 : index
    %c0_107 = arith.constant 0 : index
    %c0_108 = arith.constant 0 : index
    %222 = vector.load %arg8[%c7_106, %c0_107, %c0_108] : memref<24x1x16xf32, #tpu.memory_space<vmem>>, vector<1x1x16xf32>
    %223 = vector.shape_cast %222 : vector<1x1x16xf32> to vector<1x16xf32>
    %224 = vector.broadcast %223 : vector<1x16xf32> to vector<8x16xf32>
    %225 = arith.addf %221, %224 : vector<8x16xf32>
    %c8 = arith.constant 8 : index
    %c0_109 = arith.constant 0 : index
    %c0_110 = arith.constant 0 : index
    %226 = vector.load %arg7[%c8, %c0_109, %c0_110] : memref<24x32x16xbf16, #tpu.memory_space<vmem>>, vector<1x32x16xbf16>
    %227 = vector.shape_cast %226 : vector<1x32x16xbf16> to vector<32x16xbf16>
    %cst_111 = arith.constant dense<0.000000e+00> : vector<8x16xf32>
    %228 = tpu.matmul %210, %227, %cst_111 {dimension_numbers = #tpu.dot_dimension_numbers<[1], [0], [0], [1], [0, 0, 1, 1], [], []>} : vector<8x32xbf16>, vector<32x16xbf16>, vector<8x16xf32> -> vector<8x16xf32>
    %c8_112 = arith.constant 8 : index
    %c0_113 = arith.constant 0 : index
    %c0_114 = arith.constant 0 : index
    %229 = vector.load %arg8[%c8_112, %c0_113, %c0_114] : memref<24x1x16xf32, #tpu.memory_space<vmem>>, vector<1x1x16xf32>
    %230 = vector.shape_cast %229 : vector<1x1x16xf32> to vector<1x16xf32>
    %231 = vector.broadcast %230 : vector<1x16xf32> to vector<8x16xf32>
    %232 = arith.addf %228, %231 : vector<8x16xf32>
    %233 = arith.truncf %218 : vector<8x16xf32> to vector<8x16xbf16>
    %234 = arith.truncf %225 : vector<8x16xf32> to vector<8x16xbf16>
    %235 = tpu.transpose %234, [1, 0] : vector<8x16xbf16> -> vector<16x8xbf16>
    %cst_115 = arith.constant dense<0.000000e+00> : vector<8x8xf32>
    %236 = tpu.matmul %233, %235, %cst_115 {dimension_numbers = #tpu.dot_dimension_numbers<[1], [0], [0], [1], [0, 0, 1, 1], [], []>} : vector<8x16xbf16>, vector<16x8xbf16>, vector<8x8xf32> -> vector<8x8xf32>
    %cst_116 = arith.constant 2.500000e-01 : f32
    %237 = vector.broadcast %cst_116 : f32 to vector<8x8xf32>
    %238 = arith.mulf %236, %237 : vector<8x8xf32>
    %239 = vector.broadcast %3 : vector<1x8xf32> to vector<8x8xf32>
    %240 = arith.addf %238, %239 : vector<8x8xf32>
    %cst_117 = arith.constant dense<0xFF800000> : vector<8xf32>
    %241 = vector.multi_reduction <maximumf>, %240, %cst_117 [1] : vector<8x8xf32> to vector<8xf32>
    %242 = vector.shape_cast %241 : vector<8xf32> to vector<8x1xf32>
    %243 = vector.broadcast %242 : vector<8x1xf32> to vector<8x8xf32>
    %244 = arith.subf %240, %243 : vector<8x8xf32>
    %245 = math.exp %244 : vector<8x8xf32>
    %cst_118 = arith.constant dense<0.000000e+00> : vector<8xf32>
    %246 = vector.multi_reduction <add>, %245, %cst_118 [1] : vector<8x8xf32> to vector<8xf32>
    %247 = vector.shape_cast %246 : vector<8xf32> to vector<8x1xf32>
    %248 = tpu.reciprocal %247 {approx = true} : vector<8x1xf32> -> vector<8x1xf32>
    %249 = vector.broadcast %248 : vector<8x1xf32> to vector<8x8xf32>
    %250 = arith.mulf %245, %249 : vector<8x8xf32>
    %251 = arith.truncf %250 : vector<8x8xf32> to vector<8x8xbf16>
    %252 = arith.truncf %232 : vector<8x16xf32> to vector<8x16xbf16>
    %cst_119 = arith.constant dense<0.000000e+00> : vector<8x16xf32>
    %253 = tpu.matmul %251, %252, %cst_119 {dimension_numbers = #tpu.dot_dimension_numbers<[1], [0], [0], [1], [0, 0, 1, 1], [], []>} : vector<8x8xbf16>, vector<8x16xbf16>, vector<8x16xf32> -> vector<8x16xf32>
    %254 = arith.truncf %253 : vector<8x16xf32> to vector<8x16xbf16>
    %c2_120 = arith.constant 2 : index
    %c0_121 = arith.constant 0 : index
    %c0_122 = arith.constant 0 : index
    %255 = vector.load %arg9[%c2_120, %c0_121, %c0_122] : memref<8x16x32xbf16, #tpu.memory_space<vmem>>, vector<1x16x32xbf16>
    %256 = vector.shape_cast %255 : vector<1x16x32xbf16> to vector<16x32xbf16>
    %cst_123 = arith.constant dense<0.000000e+00> : vector<8x32xf32>
    %257 = tpu.matmul %254, %256, %cst_123 {dimension_numbers = #tpu.dot_dimension_numbers<[1], [0], [0], [1], [0, 0, 1, 1], [], []>} : vector<8x16xbf16>, vector<16x32xbf16>, vector<8x32xf32> -> vector<8x32xf32>
    %258 = arith.addf %211, %257 : vector<8x32xf32>
    %c9 = arith.constant 9 : index
    %c0_124 = arith.constant 0 : index
    %c0_125 = arith.constant 0 : index
    %259 = vector.load %arg7[%c9, %c0_124, %c0_125] : memref<24x32x16xbf16, #tpu.memory_space<vmem>>, vector<1x32x16xbf16>
    %260 = vector.shape_cast %259 : vector<1x32x16xbf16> to vector<32x16xbf16>
    %cst_126 = arith.constant dense<0.000000e+00> : vector<8x16xf32>
    %261 = tpu.matmul %210, %260, %cst_126 {dimension_numbers = #tpu.dot_dimension_numbers<[1], [0], [0], [1], [0, 0, 1, 1], [], []>} : vector<8x32xbf16>, vector<32x16xbf16>, vector<8x16xf32> -> vector<8x16xf32>
    %c9_127 = arith.constant 9 : index
    %c0_128 = arith.constant 0 : index
    %c0_129 = arith.constant 0 : index
    %262 = vector.load %arg8[%c9_127, %c0_128, %c0_129] : memref<24x1x16xf32, #tpu.memory_space<vmem>>, vector<1x1x16xf32>
    %263 = vector.shape_cast %262 : vector<1x1x16xf32> to vector<1x16xf32>
    %264 = vector.broadcast %263 : vector<1x16xf32> to vector<8x16xf32>
    %265 = arith.addf %261, %264 : vector<8x16xf32>
    %c10 = arith.constant 10 : index
    %c0_130 = arith.constant 0 : index
    %c0_131 = arith.constant 0 : index
    %266 = vector.load %arg7[%c10, %c0_130, %c0_131] : memref<24x32x16xbf16, #tpu.memory_space<vmem>>, vector<1x32x16xbf16>
    %267 = vector.shape_cast %266 : vector<1x32x16xbf16> to vector<32x16xbf16>
    %cst_132 = arith.constant dense<0.000000e+00> : vector<8x16xf32>
    %268 = tpu.matmul %210, %267, %cst_132 {dimension_numbers = #tpu.dot_dimension_numbers<[1], [0], [0], [1], [0, 0, 1, 1], [], []>} : vector<8x32xbf16>, vector<32x16xbf16>, vector<8x16xf32> -> vector<8x16xf32>
    %c10_133 = arith.constant 10 : index
    %c0_134 = arith.constant 0 : index
    %c0_135 = arith.constant 0 : index
    %269 = vector.load %arg8[%c10_133, %c0_134, %c0_135] : memref<24x1x16xf32, #tpu.memory_space<vmem>>, vector<1x1x16xf32>
    %270 = vector.shape_cast %269 : vector<1x1x16xf32> to vector<1x16xf32>
    %271 = vector.broadcast %270 : vector<1x16xf32> to vector<8x16xf32>
    %272 = arith.addf %268, %271 : vector<8x16xf32>
    %c11 = arith.constant 11 : index
    %c0_136 = arith.constant 0 : index
    %c0_137 = arith.constant 0 : index
    %273 = vector.load %arg7[%c11, %c0_136, %c0_137] : memref<24x32x16xbf16, #tpu.memory_space<vmem>>, vector<1x32x16xbf16>
    %274 = vector.shape_cast %273 : vector<1x32x16xbf16> to vector<32x16xbf16>
    %cst_138 = arith.constant dense<0.000000e+00> : vector<8x16xf32>
    %275 = tpu.matmul %210, %274, %cst_138 {dimension_numbers = #tpu.dot_dimension_numbers<[1], [0], [0], [1], [0, 0, 1, 1], [], []>} : vector<8x32xbf16>, vector<32x16xbf16>, vector<8x16xf32> -> vector<8x16xf32>
    %c11_139 = arith.constant 11 : index
    %c0_140 = arith.constant 0 : index
    %c0_141 = arith.constant 0 : index
    %276 = vector.load %arg8[%c11_139, %c0_140, %c0_141] : memref<24x1x16xf32, #tpu.memory_space<vmem>>, vector<1x1x16xf32>
    %277 = vector.shape_cast %276 : vector<1x1x16xf32> to vector<1x16xf32>
    %278 = vector.broadcast %277 : vector<1x16xf32> to vector<8x16xf32>
    %279 = arith.addf %275, %278 : vector<8x16xf32>
    %280 = arith.truncf %265 : vector<8x16xf32> to vector<8x16xbf16>
    %281 = arith.truncf %272 : vector<8x16xf32> to vector<8x16xbf16>
    %282 = tpu.transpose %281, [1, 0] : vector<8x16xbf16> -> vector<16x8xbf16>
    %cst_142 = arith.constant dense<0.000000e+00> : vector<8x8xf32>
    %283 = tpu.matmul %280, %282, %cst_142 {dimension_numbers = #tpu.dot_dimension_numbers<[1], [0], [0], [1], [0, 0, 1, 1], [], []>} : vector<8x16xbf16>, vector<16x8xbf16>, vector<8x8xf32> -> vector<8x8xf32>
    %cst_143 = arith.constant 2.500000e-01 : f32
    %284 = vector.broadcast %cst_143 : f32 to vector<8x8xf32>
    %285 = arith.mulf %283, %284 : vector<8x8xf32>
    %286 = vector.broadcast %3 : vector<1x8xf32> to vector<8x8xf32>
    %287 = arith.addf %285, %286 : vector<8x8xf32>
    %cst_144 = arith.constant dense<0xFF800000> : vector<8xf32>
    %288 = vector.multi_reduction <maximumf>, %287, %cst_144 [1] : vector<8x8xf32> to vector<8xf32>
    %289 = vector.shape_cast %288 : vector<8xf32> to vector<8x1xf32>
    %290 = vector.broadcast %289 : vector<8x1xf32> to vector<8x8xf32>
    %291 = arith.subf %287, %290 : vector<8x8xf32>
    %292 = math.exp %291 : vector<8x8xf32>
    %cst_145 = arith.constant dense<0.000000e+00> : vector<8xf32>
    %293 = vector.multi_reduction <add>, %292, %cst_145 [1] : vector<8x8xf32> to vector<8xf32>
    %294 = vector.shape_cast %293 : vector<8xf32> to vector<8x1xf32>
    %295 = tpu.reciprocal %294 {approx = true} : vector<8x1xf32> -> vector<8x1xf32>
    %296 = vector.broadcast %295 : vector<8x1xf32> to vector<8x8xf32>
    %297 = arith.mulf %292, %296 : vector<8x8xf32>
    %298 = arith.truncf %297 : vector<8x8xf32> to vector<8x8xbf16>
    %299 = arith.truncf %279 : vector<8x16xf32> to vector<8x16xbf16>
    %cst_146 = arith.constant dense<0.000000e+00> : vector<8x16xf32>
    %300 = tpu.matmul %298, %299, %cst_146 {dimension_numbers = #tpu.dot_dimension_numbers<[1], [0], [0], [1], [0, 0, 1, 1], [], []>} : vector<8x8xbf16>, vector<8x16xbf16>, vector<8x16xf32> -> vector<8x16xf32>
    %301 = arith.truncf %300 : vector<8x16xf32> to vector<8x16xbf16>
    %c3_147 = arith.constant 3 : index
    %c0_148 = arith.constant 0 : index
    %c0_149 = arith.constant 0 : index
    %302 = vector.load %arg9[%c3_147, %c0_148, %c0_149] : memref<8x16x32xbf16, #tpu.memory_space<vmem>>, vector<1x16x32xbf16>
    %303 = vector.shape_cast %302 : vector<1x16x32xbf16> to vector<16x32xbf16>
    %cst_150 = arith.constant dense<0.000000e+00> : vector<8x32xf32>
    %304 = tpu.matmul %301, %303, %cst_150 {dimension_numbers = #tpu.dot_dimension_numbers<[1], [0], [0], [1], [0, 0, 1, 1], [], []>} : vector<8x16xbf16>, vector<16x32xbf16>, vector<8x32xf32> -> vector<8x32xf32>
    %305 = arith.addf %258, %304 : vector<8x32xf32>
    %306 = vector.extract_strided_slice %209 {offsets = [0, 0], sizes = [1, 32], strides = [1, 1]} : vector<7x64xf32> to vector<1x32xf32>
    %307 = vector.broadcast %306 : vector<1x32xf32> to vector<8x32xf32>
    %308 = arith.addf %305, %307 : vector<8x32xf32>
    %309 = arith.addf %207, %308 : vector<8x32xf32>
    %310 = vector.extract_strided_slice %209 {offsets = [1, 0], sizes = [1, 32], strides = [1, 1]} : vector<7x64xf32> to vector<1x32xf32>
    %311 = vector.extract_strided_slice %209 {offsets = [2, 0], sizes = [1, 32], strides = [1, 1]} : vector<7x64xf32> to vector<1x32xf32>
    %cst_151 = arith.constant dense<0.000000e+00> : vector<8xf32>
    %312 = vector.multi_reduction <add>, %309, %cst_151 [1] : vector<8x32xf32> to vector<8xf32>
    %313 = vector.shape_cast %312 : vector<8xf32> to vector<8x1xf32>
    %cst_152 = arith.constant 3.200000e+01 : f32
    %314 = vector.broadcast %cst_152 : f32 to vector<8x1xf32>
    %315 = arith.divf %313, %314 : vector<8x1xf32>
    %316 = vector.broadcast %315 : vector<8x1xf32> to vector<8x32xf32>
    %317 = arith.subf %309, %316 : vector<8x32xf32>
    %318 = arith.mulf %317, %317 : vector<8x32xf32>
    %cst_153 = arith.constant dense<0.000000e+00> : vector<8xf32>
    %319 = vector.multi_reduction <add>, %318, %cst_153 [1] : vector<8x32xf32> to vector<8xf32>
    %320 = vector.shape_cast %319 : vector<8xf32> to vector<8x1xf32>
    %cst_154 = arith.constant 3.200000e+01 : f32
    %321 = vector.broadcast %cst_154 : f32 to vector<8x1xf32>
    %322 = arith.divf %320, %321 : vector<8x1xf32>
    %323 = vector.broadcast %315 : vector<8x1xf32> to vector<8x32xf32>
    %324 = arith.subf %309, %323 : vector<8x32xf32>
    %cst_155 = arith.constant 9.99999996E-13 : f32
    %325 = vector.broadcast %cst_155 : f32 to vector<8x1xf32>
    %326 = arith.addf %322, %325 : vector<8x1xf32>
    %327 = math.rsqrt %326 : vector<8x1xf32>
    %328 = vector.broadcast %327 : vector<8x1xf32> to vector<8x32xf32>
    %329 = arith.mulf %324, %328 : vector<8x32xf32>
    %330 = vector.broadcast %310 : vector<1x32xf32> to vector<8x32xf32>
    %331 = arith.mulf %329, %330 : vector<8x32xf32>
    %332 = vector.broadcast %311 : vector<1x32xf32> to vector<8x32xf32>
    %333 = arith.addf %331, %332 : vector<8x32xf32>
    %334 = arith.truncf %333 : vector<8x32xf32> to vector<8x32xbf16>
    %c1_156 = arith.constant 1 : index
    %c0_157 = arith.constant 0 : index
    %c0_158 = arith.constant 0 : index
    %335 = vector.load %arg10[%c1_156, %c0_157, %c0_158] : memref<4x32x64xbf16, #tpu.memory_space<vmem>>, vector<1x32x64xbf16>
    %336 = vector.shape_cast %335 : vector<1x32x64xbf16> to vector<32x64xbf16>
    %cst_159 = arith.constant dense<0.000000e+00> : vector<8x64xf32>
    %337 = tpu.matmul %334, %336, %cst_159 {dimension_numbers = #tpu.dot_dimension_numbers<[1], [0], [0], [1], [0, 0, 1, 1], [], []>} : vector<8x32xbf16>, vector<32x64xbf16>, vector<8x64xf32> -> vector<8x64xf32>
    %338 = vector.extract_strided_slice %209 {offsets = [3, 0], sizes = [1, 64], strides = [1, 1]} : vector<7x64xf32> to vector<1x64xf32>
    %339 = vector.broadcast %338 : vector<1x64xf32> to vector<8x64xf32>
    %340 = arith.addf %337, %339 : vector<8x64xf32>
    %341 = arith.mulf %340, %340 : vector<8x64xf32>
    %342 = arith.mulf %340, %341 : vector<8x64xf32>
    %cst_160 = arith.constant 4.471500e-02 : f32
    %343 = vector.broadcast %cst_160 : f32 to vector<8x64xf32>
    %344 = arith.mulf %343, %342 : vector<8x64xf32>
    %345 = arith.addf %340, %344 : vector<8x64xf32>
    %cst_161 = arith.constant 0.797884583 : f32
    %346 = vector.broadcast %cst_161 : f32 to vector<8x64xf32>
    %347 = arith.mulf %346, %345 : vector<8x64xf32>
    %348 = math.tanh %347 : vector<8x64xf32>
    %cst_162 = arith.constant 1.000000e+00 : f32
    %349 = vector.broadcast %cst_162 : f32 to vector<8x64xf32>
    %350 = arith.addf %349, %348 : vector<8x64xf32>
    %cst_163 = arith.constant 5.000000e-01 : f32
    %351 = vector.broadcast %cst_163 : f32 to vector<8x64xf32>
    %352 = arith.mulf %351, %350 : vector<8x64xf32>
    %353 = arith.mulf %340, %352 : vector<8x64xf32>
    %354 = arith.truncf %353 : vector<8x64xf32> to vector<8x64xbf16>
    %c1_164 = arith.constant 1 : index
    %c0_165 = arith.constant 0 : index
    %c0_166 = arith.constant 0 : index
    %355 = vector.load %arg11[%c1_164, %c0_165, %c0_166] : memref<4x64x32xbf16, #tpu.memory_space<vmem>>, vector<1x64x32xbf16>
    %356 = vector.shape_cast %355 : vector<1x64x32xbf16> to vector<64x32xbf16>
    %cst_167 = arith.constant dense<0.000000e+00> : vector<8x32xf32>
    %357 = tpu.matmul %354, %356, %cst_167 {dimension_numbers = #tpu.dot_dimension_numbers<[1], [0], [0], [1], [0, 0, 1, 1], [], []>} : vector<8x64xbf16>, vector<64x32xbf16>, vector<8x32xf32> -> vector<8x32xf32>
    %358 = vector.extract_strided_slice %209 {offsets = [4, 0], sizes = [1, 32], strides = [1, 1]} : vector<7x64xf32> to vector<1x32xf32>
    %359 = vector.broadcast %358 : vector<1x32xf32> to vector<8x32xf32>
    %360 = arith.addf %357, %359 : vector<8x32xf32>
    %361 = arith.addf %333, %360 : vector<8x32xf32>
    %362 = vector.extract_strided_slice %209 {offsets = [5, 0], sizes = [1, 32], strides = [1, 1]} : vector<7x64xf32> to vector<1x32xf32>
    %363 = vector.extract_strided_slice %209 {offsets = [6, 0], sizes = [1, 32], strides = [1, 1]} : vector<7x64xf32> to vector<1x32xf32>
    %cst_168 = arith.constant dense<0.000000e+00> : vector<8xf32>
    %364 = vector.multi_reduction <add>, %361, %cst_168 [1] : vector<8x32xf32> to vector<8xf32>
    %365 = vector.shape_cast %364 : vector<8xf32> to vector<8x1xf32>
    %cst_169 = arith.constant 3.200000e+01 : f32
    %366 = vector.broadcast %cst_169 : f32 to vector<8x1xf32>
    %367 = arith.divf %365, %366 : vector<8x1xf32>
    %368 = vector.broadcast %367 : vector<8x1xf32> to vector<8x32xf32>
    %369 = arith.subf %361, %368 : vector<8x32xf32>
    %370 = arith.mulf %369, %369 : vector<8x32xf32>
    %cst_170 = arith.constant dense<0.000000e+00> : vector<8xf32>
    %371 = vector.multi_reduction <add>, %370, %cst_170 [1] : vector<8x32xf32> to vector<8xf32>
    %372 = vector.shape_cast %371 : vector<8xf32> to vector<8x1xf32>
    %cst_171 = arith.constant 3.200000e+01 : f32
    %373 = vector.broadcast %cst_171 : f32 to vector<8x1xf32>
    %374 = arith.divf %372, %373 : vector<8x1xf32>
    %375 = vector.broadcast %367 : vector<8x1xf32> to vector<8x32xf32>
    %376 = arith.subf %361, %375 : vector<8x32xf32>
    %cst_172 = arith.constant 9.99999996E-13 : f32
    %377 = vector.broadcast %cst_172 : f32 to vector<8x1xf32>
    %378 = arith.addf %374, %377 : vector<8x1xf32>
    %379 = math.rsqrt %378 : vector<8x1xf32>
    %380 = vector.broadcast %379 : vector<8x1xf32> to vector<8x32xf32>
    %381 = arith.mulf %376, %380 : vector<8x32xf32>
    %382 = vector.broadcast %362 : vector<1x32xf32> to vector<8x32xf32>
    %383 = arith.mulf %381, %382 : vector<8x32xf32>
    %384 = vector.broadcast %363 : vector<1x32xf32> to vector<8x32xf32>
    %385 = arith.addf %383, %384 : vector<8x32xf32>
    %386 = arith.truncf %385 : vector<8x32xf32> to vector<8x32xbf16>
    %c0_173 = arith.constant 0 : index
    %c0_174 = arith.constant 0 : index
    %387 = vector.load %arg13[%c0_173, %c0_174] : memref<32x32xbf16, #tpu.memory_space<vmem>>, vector<32x32xbf16>
    %cst_175 = arith.constant dense<0.000000e+00> : vector<8x32xf32>
    %388 = tpu.matmul %386, %387, %cst_175 {dimension_numbers = #tpu.dot_dimension_numbers<[1], [0], [0], [1], [0, 0, 1, 1], [], []>} : vector<8x32xbf16>, vector<32x32xbf16>, vector<8x32xf32> -> vector<8x32xf32>
    %c0_176 = arith.constant 0 : index
    %c0_177 = arith.constant 0 : index
    %389 = vector.load %arg14[%c0_176, %c0_177] : memref<3x32xf32, #tpu.memory_space<vmem>>, vector<1x32xf32>
    %390 = vector.broadcast %389 : vector<1x32xf32> to vector<8x32xf32>
    %391 = arith.addf %388, %390 : vector<8x32xf32>
    %392 = arith.mulf %391, %391 : vector<8x32xf32>
    %393 = arith.mulf %391, %392 : vector<8x32xf32>
    %cst_178 = arith.constant 4.471500e-02 : f32
    %394 = vector.broadcast %cst_178 : f32 to vector<8x32xf32>
    %395 = arith.mulf %394, %393 : vector<8x32xf32>
    %396 = arith.addf %391, %395 : vector<8x32xf32>
    %cst_179 = arith.constant 0.797884583 : f32
    %397 = vector.broadcast %cst_179 : f32 to vector<8x32xf32>
    %398 = arith.mulf %397, %396 : vector<8x32xf32>
    %399 = math.tanh %398 : vector<8x32xf32>
    %cst_180 = arith.constant 1.000000e+00 : f32
    %400 = vector.broadcast %cst_180 : f32 to vector<8x32xf32>
    %401 = arith.addf %400, %399 : vector<8x32xf32>
    %cst_181 = arith.constant 5.000000e-01 : f32
    %402 = vector.broadcast %cst_181 : f32 to vector<8x32xf32>
    %403 = arith.mulf %402, %401 : vector<8x32xf32>
    %404 = arith.mulf %391, %403 : vector<8x32xf32>
    %c1_182 = arith.constant 1 : index
    %c0_183 = arith.constant 0 : index
    %405 = vector.load %arg14[%c1_182, %c0_183] : memref<3x32xf32, #tpu.memory_space<vmem>>, vector<1x32xf32>
    %c2_184 = arith.constant 2 : index
    %c0_185 = arith.constant 0 : index
    %406 = vector.load %arg14[%c2_184, %c0_185] : memref<3x32xf32, #tpu.memory_space<vmem>>, vector<1x32xf32>
    %cst_186 = arith.constant dense<0.000000e+00> : vector<8xf32>
    %407 = vector.multi_reduction <add>, %404, %cst_186 [1] : vector<8x32xf32> to vector<8xf32>
    %408 = vector.shape_cast %407 : vector<8xf32> to vector<8x1xf32>
    %cst_187 = arith.constant 3.200000e+01 : f32
    %409 = vector.broadcast %cst_187 : f32 to vector<8x1xf32>
    %410 = arith.divf %408, %409 : vector<8x1xf32>
    %411 = vector.broadcast %410 : vector<8x1xf32> to vector<8x32xf32>
    %412 = arith.subf %404, %411 : vector<8x32xf32>
    %413 = arith.mulf %412, %412 : vector<8x32xf32>
    %cst_188 = arith.constant dense<0.000000e+00> : vector<8xf32>
    %414 = vector.multi_reduction <add>, %413, %cst_188 [1] : vector<8x32xf32> to vector<8xf32>
    %415 = vector.shape_cast %414 : vector<8xf32> to vector<8x1xf32>
    %cst_189 = arith.constant 3.200000e+01 : f32
    %416 = vector.broadcast %cst_189 : f32 to vector<8x1xf32>
    %417 = arith.divf %415, %416 : vector<8x1xf32>
    %418 = vector.broadcast %410 : vector<8x1xf32> to vector<8x32xf32>
    %419 = arith.subf %404, %418 : vector<8x32xf32>
    %cst_190 = arith.constant 9.99999996E-13 : f32
    %420 = vector.broadcast %cst_190 : f32 to vector<8x1xf32>
    %421 = arith.addf %417, %420 : vector<8x1xf32>
    %422 = math.rsqrt %421 : vector<8x1xf32>
    %423 = vector.broadcast %422 : vector<8x1xf32> to vector<8x32xf32>
    %424 = arith.mulf %419, %423 : vector<8x32xf32>
    %425 = vector.broadcast %405 : vector<1x32xf32> to vector<8x32xf32>
    %426 = arith.mulf %424, %425 : vector<8x32xf32>
    %427 = vector.broadcast %406 : vector<1x32xf32> to vector<8x32xf32>
    %428 = arith.addf %426, %427 : vector<8x32xf32>
    %429 = arith.truncf %428 : vector<8x32xf32> to vector<8x32xbf16>
    %c0_191 = arith.constant 0 : index
    %c0_192 = arith.constant 0 : index
    %430 = vector.load %arg15[%c0_191, %c0_192] : memref<32x128xbf16, #tpu.memory_space<vmem>>, vector<32x128xbf16>
    %cst_193 = arith.constant dense<0.000000e+00> : vector<8x128xf32>
    %431 = tpu.matmul %429, %430, %cst_193 {dimension_numbers = #tpu.dot_dimension_numbers<[1], [0], [0], [1], [0, 0, 1, 1], [], []>} : vector<8x32xbf16>, vector<32x128xbf16>, vector<8x128xf32> -> vector<8x128xf32>
    %c0_194 = arith.constant 0 : index
    %c0_195 = arith.constant 0 : index
    %432 = vector.load %arg16[%c0_194, %c0_195] : memref<1x128xf32, #tpu.memory_space<vmem>>, vector<1x128xf32>
    %433 = vector.broadcast %432 : vector<1x128xf32> to vector<8x128xf32>
    %434 = arith.addf %431, %433 : vector<8x128xf32>
    %c0_196 = arith.constant 0 : index
    %c0_197 = arith.constant 0 : index
    %c0_198 = arith.constant 0 : index
    %435 = vector.load %arg22[%c0_196, %c0_197, %c0_198] : memref<1x8x128xf32, #tpu.memory_space<vmem>>, vector<1x8x128xf32>
    %436 = vector.shape_cast %435 : vector<1x8x128xf32> to vector<8x128xf32>
    %437 = vector.shape_cast %434 : vector<8x128xf32> to vector<1x8x128xf32>
    tpu.vector_store %arg22[%c0_196, %c0_197, %c0_198], %437 {strides = array<i32>} : memref<1x8x128xf32, #tpu.memory_space<vmem>>, vector<1x8x128xf32>,
    %cst_199 = arith.constant dense<0xFF800000> : vector<8xf32>
    %438 = vector.multi_reduction <maximumf>, %434, %cst_199 [1] : vector<8x128xf32> to vector<8xf32>
    %439 = vector.shape_cast %438 : vector<8xf32> to vector<8x1xf32>
    %440 = tpu.iota {dimensions = array<i32: 1>} : vector<8x128xi32>
    %441 = arith.sitofp %440 : vector<8x128xi32> to vector<8x128xf32>
    %442 = vector.broadcast %439 : vector<8x1xf32> to vector<8x128xf32>
    %443 = arith.cmpf oge, %434, %442 : vector<8x128xf32>
    %cst_200 = arith.constant 1.280000e+02 : f32
    %444 = vector.broadcast %cst_200 : f32 to vector<8x128xf32>
    %445 = arith.select %443, %441, %444 : vector<8x128xi1>, vector<8x128xf32>
    %cst_201 = arith.constant dense<0x7F800000> : vector<8xf32>
    %446 = vector.multi_reduction <minimumf>, %445, %cst_201 [1] : vector<8x128xf32> to vector<8xf32>
    %447 = vector.shape_cast %446 : vector<8xf32> to vector<8x1xf32>
    %448 = tpu.iota {dimensions = array<i32: 1>} : vector<8x64xi32>
    %449 = arith.sitofp %448 : vector<8x64xi32> to vector<8x64xf32>
    %450 = vector.broadcast %447 : vector<8x1xf32> to vector<8x64xf32>
    %451 = arith.cmpf oeq, %449, %450 : vector<8x64xf32>
    %452 = arith.extui %451 : vector<8x64xi1> to vector<8x64xi32>
    %453 = arith.sitofp %452 : vector<8x64xi32> to vector<8x64xf32>
    %454 = arith.truncf %453 : vector<8x64xf32> to vector<8x64xbf16>
    %c0_202 = arith.constant 0 : index
    %c0_203 = arith.constant 0 : index
    %455 = vector.load %arg17[%c0_202, %c0_203] : memref<64x32xbf16, #tpu.memory_space<vmem>>, vector<64x32xbf16>
    %cst_204 = arith.constant dense<0.000000e+00> : vector<8x32xf32>
    %456 = tpu.matmul %454, %455, %cst_204 {dimension_numbers = #tpu.dot_dimension_numbers<[1], [0], [0], [1], [0, 0, 1, 1], [], []>} : vector<8x64xbf16>, vector<64x32xbf16>, vector<8x32xf32> -> vector<8x32xf32>
    %c0_205 = arith.constant 0 : index
    %c0_206 = arith.constant 0 : index
    %c0_207 = arith.constant 0 : index
    %457 = vector.load %arg4[%c0_205, %c0_206, %c0_207] : memref<1x8x1xf32, #tpu.memory_space<vmem>>, vector<1x8x1xf32>
    %458 = vector.shape_cast %457 : vector<1x8x1xf32> to vector<8x1xf32>
    %459 = vector.broadcast %458 : vector<8x1xf32> to vector<8x32xf32>
    %460 = arith.mulf %459, %456 : vector<8x32xf32>
    %cst_208 = arith.constant 1.000000e+00 : f32
    %461 = vector.broadcast %cst_208 : f32 to vector<8x1xf32>
    %462 = arith.subf %461, %458 : vector<8x1xf32>
    %c0_209 = arith.constant 0 : index
    %c0_210 = arith.constant 0 : index
    %c0_211 = arith.constant 0 : index
    %463 = vector.load %arg3[%c0_209, %c0_210, %c0_211] : memref<1x8x32xf32, #tpu.memory_space<vmem>>, vector<1x8x32xf32>
    %464 = vector.shape_cast %463 : vector<1x8x32xf32> to vector<8x32xf32>
    %465 = vector.broadcast %462 : vector<8x1xf32> to vector<8x32xf32>
    %466 = arith.mulf %465, %464 : vector<8x32xf32>
    %467 = arith.addf %460, %466 : vector<8x32xf32>
    %c0_212 = arith.constant 0 : index
    %c0_213 = arith.constant 0 : index
    %468 = vector.load %arg5[%c0_212, %c0_213] : memref<8x32xf32, #tpu.memory_space<vmem>>, vector<8x32xf32>
    %469 = arith.addf %467, %468 : vector<8x32xf32>
    %c1_214 = arith.constant 1 : index
    %c0_215 = arith.constant 0 : index
    %c0_216 = arith.constant 0 : index
    %470 = vector.load %arg6[%c1_214, %c0_215, %c0_216] : memref<2x2x32xf32, #tpu.memory_space<vmem>>, vector<1x2x32xf32>
    %471 = vector.shape_cast %470 : vector<1x2x32xf32> to vector<2x32xf32>
    %472 = vector.extract_strided_slice %471 {offsets = [0, 0], sizes = [1, 32], strides = [1, 1]} : vector<2x32xf32> to vector<1x32xf32>
    %473 = vector.extract_strided_slice %471 {offsets = [1, 0], sizes = [1, 32], strides = [1, 1]} : vector<2x32xf32> to vector<1x32xf32>
    %cst_217 = arith.constant dense<0.000000e+00> : vector<8xf32>
    %474 = vector.multi_reduction <add>, %469, %cst_217 [1] : vector<8x32xf32> to vector<8xf32>
    %475 = vector.shape_cast %474 : vector<8xf32> to vector<8x1xf32>
    %cst_218 = arith.constant 3.200000e+01 : f32
    %476 = vector.broadcast %cst_218 : f32 to vector<8x1xf32>
    %477 = arith.divf %475, %476 : vector<8x1xf32>
    %478 = vector.broadcast %477 : vector<8x1xf32> to vector<8x32xf32>
    %479 = arith.subf %469, %478 : vector<8x32xf32>
    %480 = arith.mulf %479, %479 : vector<8x32xf32>
    %cst_219 = arith.constant dense<0.000000e+00> : vector<8xf32>
    %481 = vector.multi_reduction <add>, %480, %cst_219 [1] : vector<8x32xf32> to vector<8xf32>
    %482 = vector.shape_cast %481 : vector<8xf32> to vector<8x1xf32>
    %cst_220 = arith.constant 3.200000e+01 : f32
    %483 = vector.broadcast %cst_220 : f32 to vector<8x1xf32>
    %484 = arith.divf %482, %483 : vector<8x1xf32>
    %485 = vector.broadcast %477 : vector<8x1xf32> to vector<8x32xf32>
    %486 = arith.subf %469, %485 : vector<8x32xf32>
    %cst_221 = arith.constant 9.99999996E-13 : f32
    %487 = vector.broadcast %cst_221 : f32 to vector<8x1xf32>
    %488 = arith.addf %484, %487 : vector<8x1xf32>
    %489 = math.rsqrt %488 : vector<8x1xf32>
    %490 = vector.broadcast %489 : vector<8x1xf32> to vector<8x32xf32>
    %491 = arith.mulf %486, %490 : vector<8x32xf32>
    %492 = vector.broadcast %472 : vector<1x32xf32> to vector<8x32xf32>
    %493 = arith.mulf %491, %492 : vector<8x32xf32>
    %494 = vector.broadcast %473 : vector<1x32xf32> to vector<8x32xf32>
    %495 = arith.addf %493, %494 : vector<8x32xf32>
    %c2_222 = arith.constant 2 : index
    %c0_223 = arith.constant 0 : index
    %c0_224 = arith.constant 0 : index
    %496 = vector.load %arg12[%c2_222, %c0_223, %c0_224] : memref<4x7x64xf32, #tpu.memory_space<vmem>>, vector<1x7x64xf32>
    %497 = vector.shape_cast %496 : vector<1x7x64xf32> to vector<7x64xf32>
    %498 = arith.truncf %495 : vector<8x32xf32> to vector<8x32xbf16>
    %cst_225 = arith.constant 0.000000e+00 : f32
    %499 = vector.broadcast %cst_225 : f32 to vector<8x32xf32>
    %c12 = arith.constant 12 : index
    %c0_226 = arith.constant 0 : index
    %c0_227 = arith.constant 0 : index
    %500 = vector.load %arg7[%c12, %c0_226, %c0_227] : memref<24x32x16xbf16, #tpu.memory_space<vmem>>, vector<1x32x16xbf16>
    %501 = vector.shape_cast %500 : vector<1x32x16xbf16> to vector<32x16xbf16>
    %cst_228 = arith.constant dense<0.000000e+00> : vector<8x16xf32>
    %502 = tpu.matmul %498, %501, %cst_228 {dimension_numbers = #tpu.dot_dimension_numbers<[1], [0], [0], [1], [0, 0, 1, 1], [], []>} : vector<8x32xbf16>, vector<32x16xbf16>, vector<8x16xf32> -> vector<8x16xf32>
    %c12_229 = arith.constant 12 : index
    %c0_230 = arith.constant 0 : index
    %c0_231 = arith.constant 0 : index
    %503 = vector.load %arg8[%c12_229, %c0_230, %c0_231] : memref<24x1x16xf32, #tpu.memory_space<vmem>>, vector<1x1x16xf32>
    %504 = vector.shape_cast %503 : vector<1x1x16xf32> to vector<1x16xf32>
    %505 = vector.broadcast %504 : vector<1x16xf32> to vector<8x16xf32>
    %506 = arith.addf %502, %505 : vector<8x16xf32>
    %c13 = arith.constant 13 : index
    %c0_232 = arith.constant 0 : index
    %c0_233 = arith.constant 0 : index
    %507 = vector.load %arg7[%c13, %c0_232, %c0_233] : memref<24x32x16xbf16, #tpu.memory_space<vmem>>, vector<1x32x16xbf16>
    %508 = vector.shape_cast %507 : vector<1x32x16xbf16> to vector<32x16xbf16>
    %cst_234 = arith.constant dense<0.000000e+00> : vector<8x16xf32>
    %509 = tpu.matmul %498, %508, %cst_234 {dimension_numbers = #tpu.dot_dimension_numbers<[1], [0], [0], [1], [0, 0, 1, 1], [], []>} : vector<8x32xbf16>, vector<32x16xbf16>, vector<8x16xf32> -> vector<8x16xf32>
    %c13_235 = arith.constant 13 : index
    %c0_236 = arith.constant 0 : index
    %c0_237 = arith.constant 0 : index
    %510 = vector.load %arg8[%c13_235, %c0_236, %c0_237] : memref<24x1x16xf32, #tpu.memory_space<vmem>>, vector<1x1x16xf32>
    %511 = vector.shape_cast %510 : vector<1x1x16xf32> to vector<1x16xf32>
    %512 = vector.broadcast %511 : vector<1x16xf32> to vector<8x16xf32>
    %513 = arith.addf %509, %512 : vector<8x16xf32>
    %c14 = arith.constant 14 : index
    %c0_238 = arith.constant 0 : index
    %c0_239 = arith.constant 0 : index
    %514 = vector.load %arg7[%c14, %c0_238, %c0_239] : memref<24x32x16xbf16, #tpu.memory_space<vmem>>, vector<1x32x16xbf16>
    %515 = vector.shape_cast %514 : vector<1x32x16xbf16> to vector<32x16xbf16>
    %cst_240 = arith.constant dense<0.000000e+00> : vector<8x16xf32>
    %516 = tpu.matmul %498, %515, %cst_240 {dimension_numbers = #tpu.dot_dimension_numbers<[1], [0], [0], [1], [0, 0, 1, 1], [], []>} : vector<8x32xbf16>, vector<32x16xbf16>, vector<8x16xf32> -> vector<8x16xf32>
    %c14_241 = arith.constant 14 : index
    %c0_242 = arith.constant 0 : index
    %c0_243 = arith.constant 0 : index
    %517 = vector.load %arg8[%c14_241, %c0_242, %c0_243] : memref<24x1x16xf32, #tpu.memory_space<vmem>>, vector<1x1x16xf32>
    %518 = vector.shape_cast %517 : vector<1x1x16xf32> to vector<1x16xf32>
    %519 = vector.broadcast %518 : vector<1x16xf32> to vector<8x16xf32>
    %520 = arith.addf %516, %519 : vector<8x16xf32>
    %521 = arith.truncf %506 : vector<8x16xf32> to vector<8x16xbf16>
    %522 = arith.truncf %513 : vector<8x16xf32> to vector<8x16xbf16>
    %523 = tpu.transpose %522, [1, 0] : vector<8x16xbf16> -> vector<16x8xbf16>
    %cst_244 = arith.constant dense<0.000000e+00> : vector<8x8xf32>
    %524 = tpu.matmul %521, %523, %cst_244 {dimension_numbers = #tpu.dot_dimension_numbers<[1], [0], [0], [1], [0, 0, 1, 1], [], []>} : vector<8x16xbf16>, vector<16x8xbf16>, vector<8x8xf32> -> vector<8x8xf32>
    %cst_245 = arith.constant 2.500000e-01 : f32
    %525 = vector.broadcast %cst_245 : f32 to vector<8x8xf32>
    %526 = arith.mulf %524, %525 : vector<8x8xf32>
    %cst_246 = arith.constant dense<0xFF800000> : vector<8xf32>
    %527 = vector.multi_reduction <maximumf>, %526, %cst_246 [1] : vector<8x8xf32> to vector<8xf32>
    %528 = vector.shape_cast %527 : vector<8xf32> to vector<8x1xf32>
    %529 = vector.broadcast %528 : vector<8x1xf32> to vector<8x8xf32>
    %530 = arith.subf %526, %529 : vector<8x8xf32>
    %531 = math.exp %530 : vector<8x8xf32>
    %cst_247 = arith.constant dense<0.000000e+00> : vector<8xf32>
    %532 = vector.multi_reduction <add>, %531, %cst_247 [1] : vector<8x8xf32> to vector<8xf32>
    %533 = vector.shape_cast %532 : vector<8xf32> to vector<8x1xf32>
    %534 = tpu.reciprocal %533 {approx = true} : vector<8x1xf32> -> vector<8x1xf32>
    %535 = vector.broadcast %534 : vector<8x1xf32> to vector<8x8xf32>
    %536 = arith.mulf %531, %535 : vector<8x8xf32>
    %537 = arith.truncf %536 : vector<8x8xf32> to vector<8x8xbf16>
    %538 = arith.truncf %520 : vector<8x16xf32> to vector<8x16xbf16>
    %cst_248 = arith.constant dense<0.000000e+00> : vector<8x16xf32>
    %539 = tpu.matmul %537, %538, %cst_248 {dimension_numbers = #tpu.dot_dimension_numbers<[1], [0], [0], [1], [0, 0, 1, 1], [], []>} : vector<8x8xbf16>, vector<8x16xbf16>, vector<8x16xf32> -> vector<8x16xf32>
    %540 = arith.truncf %539 : vector<8x16xf32> to vector<8x16xbf16>
    %c4_249 = arith.constant 4 : index
    %c0_250 = arith.constant 0 : index
    %c0_251 = arith.constant 0 : index
    %541 = vector.load %arg9[%c4_249, %c0_250, %c0_251] : memref<8x16x32xbf16, #tpu.memory_space<vmem>>, vector<1x16x32xbf16>
    %542 = vector.shape_cast %541 : vector<1x16x32xbf16> to vector<16x32xbf16>
    %cst_252 = arith.constant dense<0.000000e+00> : vector<8x32xf32>
    %543 = tpu.matmul %540, %542, %cst_252 {dimension_numbers = #tpu.dot_dimension_numbers<[1], [0], [0], [1], [0, 0, 1, 1], [], []>} : vector<8x16xbf16>, vector<16x32xbf16>, vector<8x32xf32> -> vector<8x32xf32>
    %544 = arith.addf %499, %543 : vector<8x32xf32>
    %c15 = arith.constant 15 : index
    %c0_253 = arith.constant 0 : index
    %c0_254 = arith.constant 0 : index
    %545 = vector.load %arg7[%c15, %c0_253, %c0_254] : memref<24x32x16xbf16, #tpu.memory_space<vmem>>, vector<1x32x16xbf16>
    %546 = vector.shape_cast %545 : vector<1x32x16xbf16> to vector<32x16xbf16>
    %cst_255 = arith.constant dense<0.000000e+00> : vector<8x16xf32>
    %547 = tpu.matmul %498, %546, %cst_255 {dimension_numbers = #tpu.dot_dimension_numbers<[1], [0], [0], [1], [0, 0, 1, 1], [], []>} : vector<8x32xbf16>, vector<32x16xbf16>, vector<8x16xf32> -> vector<8x16xf32>
    %c15_256 = arith.constant 15 : index
    %c0_257 = arith.constant 0 : index
    %c0_258 = arith.constant 0 : index
    %548 = vector.load %arg8[%c15_256, %c0_257, %c0_258] : memref<24x1x16xf32, #tpu.memory_space<vmem>>, vector<1x1x16xf32>
    %549 = vector.shape_cast %548 : vector<1x1x16xf32> to vector<1x16xf32>
    %550 = vector.broadcast %549 : vector<1x16xf32> to vector<8x16xf32>
    %551 = arith.addf %547, %550 : vector<8x16xf32>
    %c16 = arith.constant 16 : index
    %c0_259 = arith.constant 0 : index
    %c0_260 = arith.constant 0 : index
    %552 = vector.load %arg7[%c16, %c0_259, %c0_260] : memref<24x32x16xbf16, #tpu.memory_space<vmem>>, vector<1x32x16xbf16>
    %553 = vector.shape_cast %552 : vector<1x32x16xbf16> to vector<32x16xbf16>
    %cst_261 = arith.constant dense<0.000000e+00> : vector<8x16xf32>
    %554 = tpu.matmul %498, %553, %cst_261 {dimension_numbers = #tpu.dot_dimension_numbers<[1], [0], [0], [1], [0, 0, 1, 1], [], []>} : vector<8x32xbf16>, vector<32x16xbf16>, vector<8x16xf32> -> vector<8x16xf32>
    %c16_262 = arith.constant 16 : index
    %c0_263 = arith.constant 0 : index
    %c0_264 = arith.constant 0 : index
    %555 = vector.load %arg8[%c16_262, %c0_263, %c0_264] : memref<24x1x16xf32, #tpu.memory_space<vmem>>, vector<1x1x16xf32>
    %556 = vector.shape_cast %555 : vector<1x1x16xf32> to vector<1x16xf32>
    %557 = vector.broadcast %556 : vector<1x16xf32> to vector<8x16xf32>
    %558 = arith.addf %554, %557 : vector<8x16xf32>
    %c17 = arith.constant 17 : index
    %c0_265 = arith.constant 0 : index
    %c0_266 = arith.constant 0 : index
    %559 = vector.load %arg7[%c17, %c0_265, %c0_266] : memref<24x32x16xbf16, #tpu.memory_space<vmem>>, vector<1x32x16xbf16>
    %560 = vector.shape_cast %559 : vector<1x32x16xbf16> to vector<32x16xbf16>
    %cst_267 = arith.constant dense<0.000000e+00> : vector<8x16xf32>
    %561 = tpu.matmul %498, %560, %cst_267 {dimension_numbers = #tpu.dot_dimension_numbers<[1], [0], [0], [1], [0, 0, 1, 1], [], []>} : vector<8x32xbf16>, vector<32x16xbf16>, vector<8x16xf32> -> vector<8x16xf32>
    %c17_268 = arith.constant 17 : index
    %c0_269 = arith.constant 0 : index
    %c0_270 = arith.constant 0 : index
    %562 = vector.load %arg8[%c17_268, %c0_269, %c0_270] : memref<24x1x16xf32, #tpu.memory_space<vmem>>, vector<1x1x16xf32>
    %563 = vector.shape_cast %562 : vector<1x1x16xf32> to vector<1x16xf32>
    %564 = vector.broadcast %563 : vector<1x16xf32> to vector<8x16xf32>
    %565 = arith.addf %561, %564 : vector<8x16xf32>
    %566 = arith.truncf %551 : vector<8x16xf32> to vector<8x16xbf16>
    %567 = arith.truncf %558 : vector<8x16xf32> to vector<8x16xbf16>
    %568 = tpu.transpose %567, [1, 0] : vector<8x16xbf16> -> vector<16x8xbf16>
    %cst_271 = arith.constant dense<0.000000e+00> : vector<8x8xf32>
    %569 = tpu.matmul %566, %568, %cst_271 {dimension_numbers = #tpu.dot_dimension_numbers<[1], [0], [0], [1], [0, 0, 1, 1], [], []>} : vector<8x16xbf16>, vector<16x8xbf16>, vector<8x8xf32> -> vector<8x8xf32>
    %cst_272 = arith.constant 2.500000e-01 : f32
    %570 = vector.broadcast %cst_272 : f32 to vector<8x8xf32>
    %571 = arith.mulf %569, %570 : vector<8x8xf32>
    %cst_273 = arith.constant dense<0xFF800000> : vector<8xf32>
    %572 = vector.multi_reduction <maximumf>, %571, %cst_273 [1] : vector<8x8xf32> to vector<8xf32>
    %573 = vector.shape_cast %572 : vector<8xf32> to vector<8x1xf32>
    %574 = vector.broadcast %573 : vector<8x1xf32> to vector<8x8xf32>
    %575 = arith.subf %571, %574 : vector<8x8xf32>
    %576 = math.exp %575 : vector<8x8xf32>
    %cst_274 = arith.constant dense<0.000000e+00> : vector<8xf32>
    %577 = vector.multi_reduction <add>, %576, %cst_274 [1] : vector<8x8xf32> to vector<8xf32>
    %578 = vector.shape_cast %577 : vector<8xf32> to vector<8x1xf32>
    %579 = tpu.reciprocal %578 {approx = true} : vector<8x1xf32> -> vector<8x1xf32>
    %580 = vector.broadcast %579 : vector<8x1xf32> to vector<8x8xf32>
    %581 = arith.mulf %576, %580 : vector<8x8xf32>
    %582 = arith.truncf %581 : vector<8x8xf32> to vector<8x8xbf16>
    %583 = arith.truncf %565 : vector<8x16xf32> to vector<8x16xbf16>
    %cst_275 = arith.constant dense<0.000000e+00> : vector<8x16xf32>
    %584 = tpu.matmul %582, %583, %cst_275 {dimension_numbers = #tpu.dot_dimension_numbers<[1], [0], [0], [1], [0, 0, 1, 1], [], []>} : vector<8x8xbf16>, vector<8x16xbf16>, vector<8x16xf32> -> vector<8x16xf32>
    %585 = arith.truncf %584 : vector<8x16xf32> to vector<8x16xbf16>
    %c5_276 = arith.constant 5 : index
    %c0_277 = arith.constant 0 : index
    %c0_278 = arith.constant 0 : index
    %586 = vector.load %arg9[%c5_276, %c0_277, %c0_278] : memref<8x16x32xbf16, #tpu.memory_space<vmem>>, vector<1x16x32xbf16>
    %587 = vector.shape_cast %586 : vector<1x16x32xbf16> to vector<16x32xbf16>
    %cst_279 = arith.constant dense<0.000000e+00> : vector<8x32xf32>
    %588 = tpu.matmul %585, %587, %cst_279 {dimension_numbers = #tpu.dot_dimension_numbers<[1], [0], [0], [1], [0, 0, 1, 1], [], []>} : vector<8x16xbf16>, vector<16x32xbf16>, vector<8x32xf32> -> vector<8x32xf32>
    %589 = arith.addf %544, %588 : vector<8x32xf32>
    %590 = vector.extract_strided_slice %497 {offsets = [0, 0], sizes = [1, 32], strides = [1, 1]} : vector<7x64xf32> to vector<1x32xf32>
    %591 = vector.broadcast %590 : vector<1x32xf32> to vector<8x32xf32>
    %592 = arith.addf %589, %591 : vector<8x32xf32>
    %593 = arith.addf %495, %592 : vector<8x32xf32>
    %594 = vector.extract_strided_slice %497 {offsets = [1, 0], sizes = [1, 32], strides = [1, 1]} : vector<7x64xf32> to vector<1x32xf32>
    %595 = vector.extract_strided_slice %497 {offsets = [2, 0], sizes = [1, 32], strides = [1, 1]} : vector<7x64xf32> to vector<1x32xf32>
    %cst_280 = arith.constant dense<0.000000e+00> : vector<8xf32>
    %596 = vector.multi_reduction <add>, %593, %cst_280 [1] : vector<8x32xf32> to vector<8xf32>
    %597 = vector.shape_cast %596 : vector<8xf32> to vector<8x1xf32>
    %cst_281 = arith.constant 3.200000e+01 : f32
    %598 = vector.broadcast %cst_281 : f32 to vector<8x1xf32>
    %599 = arith.divf %597, %598 : vector<8x1xf32>
    %600 = vector.broadcast %599 : vector<8x1xf32> to vector<8x32xf32>
    %601 = arith.subf %593, %600 : vector<8x32xf32>
    %602 = arith.mulf %601, %601 : vector<8x32xf32>
    %cst_282 = arith.constant dense<0.000000e+00> : vector<8xf32>
    %603 = vector.multi_reduction <add>, %602, %cst_282 [1] : vector<8x32xf32> to vector<8xf32>
    %604 = vector.shape_cast %603 : vector<8xf32> to vector<8x1xf32>
    %cst_283 = arith.constant 3.200000e+01 : f32
    %605 = vector.broadcast %cst_283 : f32 to vector<8x1xf32>
    %606 = arith.divf %604, %605 : vector<8x1xf32>
    %607 = vector.broadcast %599 : vector<8x1xf32> to vector<8x32xf32>
    %608 = arith.subf %593, %607 : vector<8x32xf32>
    %cst_284 = arith.constant 9.99999996E-13 : f32
    %609 = vector.broadcast %cst_284 : f32 to vector<8x1xf32>
    %610 = arith.addf %606, %609 : vector<8x1xf32>
    %611 = math.rsqrt %610 : vector<8x1xf32>
    %612 = vector.broadcast %611 : vector<8x1xf32> to vector<8x32xf32>
    %613 = arith.mulf %608, %612 : vector<8x32xf32>
    %614 = vector.broadcast %594 : vector<1x32xf32> to vector<8x32xf32>
    %615 = arith.mulf %613, %614 : vector<8x32xf32>
    %616 = vector.broadcast %595 : vector<1x32xf32> to vector<8x32xf32>
    %617 = arith.addf %615, %616 : vector<8x32xf32>
    %618 = arith.truncf %617 : vector<8x32xf32> to vector<8x32xbf16>
    %c2_285 = arith.constant 2 : index
    %c0_286 = arith.constant 0 : index
    %c0_287 = arith.constant 0 : index
    %619 = vector.load %arg10[%c2_285, %c0_286, %c0_287] : memref<4x32x64xbf16, #tpu.memory_space<vmem>>, vector<1x32x64xbf16>
    %620 = vector.shape_cast %619 : vector<1x32x64xbf16> to vector<32x64xbf16>
    %cst_288 = arith.constant dense<0.000000e+00> : vector<8x64xf32>
    %621 = tpu.matmul %618, %620, %cst_288 {dimension_numbers = #tpu.dot_dimension_numbers<[1], [0], [0], [1], [0, 0, 1, 1], [], []>} : vector<8x32xbf16>, vector<32x64xbf16>, vector<8x64xf32> -> vector<8x64xf32>
    %622 = vector.extract_strided_slice %497 {offsets = [3, 0], sizes = [1, 64], strides = [1, 1]} : vector<7x64xf32> to vector<1x64xf32>
    %623 = vector.broadcast %622 : vector<1x64xf32> to vector<8x64xf32>
    %624 = arith.addf %621, %623 : vector<8x64xf32>
    %625 = arith.mulf %624, %624 : vector<8x64xf32>
    %626 = arith.mulf %624, %625 : vector<8x64xf32>
    %cst_289 = arith.constant 4.471500e-02 : f32
    %627 = vector.broadcast %cst_289 : f32 to vector<8x64xf32>
    %628 = arith.mulf %627, %626 : vector<8x64xf32>
    %629 = arith.addf %624, %628 : vector<8x64xf32>
    %cst_290 = arith.constant 0.797884583 : f32
    %630 = vector.broadcast %cst_290 : f32 to vector<8x64xf32>
    %631 = arith.mulf %630, %629 : vector<8x64xf32>
    %632 = math.tanh %631 : vector<8x64xf32>
    %cst_291 = arith.constant 1.000000e+00 : f32
    %633 = vector.broadcast %cst_291 : f32 to vector<8x64xf32>
    %634 = arith.addf %633, %632 : vector<8x64xf32>
    %cst_292 = arith.constant 5.000000e-01 : f32
    %635 = vector.broadcast %cst_292 : f32 to vector<8x64xf32>
    %636 = arith.mulf %635, %634 : vector<8x64xf32>
    %637 = arith.mulf %624, %636 : vector<8x64xf32>
    %638 = arith.truncf %637 : vector<8x64xf32> to vector<8x64xbf16>
    %c2_293 = arith.constant 2 : index
    %c0_294 = arith.constant 0 : index
    %c0_295 = arith.constant 0 : index
    %639 = vector.load %arg11[%c2_293, %c0_294, %c0_295] : memref<4x64x32xbf16, #tpu.memory_space<vmem>>, vector<1x64x32xbf16>
    %640 = vector.shape_cast %639 : vector<1x64x32xbf16> to vector<64x32xbf16>
    %cst_296 = arith.constant dense<0.000000e+00> : vector<8x32xf32>
    %641 = tpu.matmul %638, %640, %cst_296 {dimension_numbers = #tpu.dot_dimension_numbers<[1], [0], [0], [1], [0, 0, 1, 1], [], []>} : vector<8x64xbf16>, vector<64x32xbf16>, vector<8x32xf32> -> vector<8x32xf32>
    %642 = vector.extract_strided_slice %497 {offsets = [4, 0], sizes = [1, 32], strides = [1, 1]} : vector<7x64xf32> to vector<1x32xf32>
    %643 = vector.broadcast %642 : vector<1x32xf32> to vector<8x32xf32>
    %644 = arith.addf %641, %643 : vector<8x32xf32>
    %645 = arith.addf %617, %644 : vector<8x32xf32>
    %646 = vector.extract_strided_slice %497 {offsets = [5, 0], sizes = [1, 32], strides = [1, 1]} : vector<7x64xf32> to vector<1x32xf32>
    %647 = vector.extract_strided_slice %497 {offsets = [6, 0], sizes = [1, 32], strides = [1, 1]} : vector<7x64xf32> to vector<1x32xf32>
    %cst_297 = arith.constant dense<0.000000e+00> : vector<8xf32>
    %648 = vector.multi_reduction <add>, %645, %cst_297 [1] : vector<8x32xf32> to vector<8xf32>
    %649 = vector.shape_cast %648 : vector<8xf32> to vector<8x1xf32>
    %cst_298 = arith.constant 3.200000e+01 : f32
    %650 = vector.broadcast %cst_298 : f32 to vector<8x1xf32>
    %651 = arith.divf %649, %650 : vector<8x1xf32>
    %652 = vector.broadcast %651 : vector<8x1xf32> to vector<8x32xf32>
    %653 = arith.subf %645, %652 : vector<8x32xf32>
    %654 = arith.mulf %653, %653 : vector<8x32xf32>
    %cst_299 = arith.constant dense<0.000000e+00> : vector<8xf32>
    %655 = vector.multi_reduction <add>, %654, %cst_299 [1] : vector<8x32xf32> to vector<8xf32>
    %656 = vector.shape_cast %655 : vector<8xf32> to vector<8x1xf32>
    %cst_300 = arith.constant 3.200000e+01 : f32
    %657 = vector.broadcast %cst_300 : f32 to vector<8x1xf32>
    %658 = arith.divf %656, %657 : vector<8x1xf32>
    %659 = vector.broadcast %651 : vector<8x1xf32> to vector<8x32xf32>
    %660 = arith.subf %645, %659 : vector<8x32xf32>
    %cst_301 = arith.constant 9.99999996E-13 : f32
    %661 = vector.broadcast %cst_301 : f32 to vector<8x1xf32>
    %662 = arith.addf %658, %661 : vector<8x1xf32>
    %663 = math.rsqrt %662 : vector<8x1xf32>
    %664 = vector.broadcast %663 : vector<8x1xf32> to vector<8x32xf32>
    %665 = arith.mulf %660, %664 : vector<8x32xf32>
    %666 = vector.broadcast %646 : vector<1x32xf32> to vector<8x32xf32>
    %667 = arith.mulf %665, %666 : vector<8x32xf32>
    %668 = vector.broadcast %647 : vector<1x32xf32> to vector<8x32xf32>
    %669 = arith.addf %667, %668 : vector<8x32xf32>
    %c3_302 = arith.constant 3 : index
    %c0_303 = arith.constant 0 : index
    %c0_304 = arith.constant 0 : index
    %670 = vector.load %arg12[%c3_302, %c0_303, %c0_304] : memref<4x7x64xf32, #tpu.memory_space<vmem>>, vector<1x7x64xf32>
    %671 = vector.shape_cast %670 : vector<1x7x64xf32> to vector<7x64xf32>
    %672 = arith.truncf %669 : vector<8x32xf32> to vector<8x32xbf16>
    %cst_305 = arith.constant 0.000000e+00 : f32
    %673 = vector.broadcast %cst_305 : f32 to vector<8x32xf32>
    %c18 = arith.constant 18 : index
    %c0_306 = arith.constant 0 : index
    %c0_307 = arith.constant 0 : index
    %674 = vector.load %arg7[%c18, %c0_306, %c0_307] : memref<24x32x16xbf16, #tpu.memory_space<vmem>>, vector<1x32x16xbf16>
    %675 = vector.shape_cast %674 : vector<1x32x16xbf16> to vector<32x16xbf16>
    %cst_308 = arith.constant dense<0.000000e+00> : vector<8x16xf32>
    %676 = tpu.matmul %672, %675, %cst_308 {dimension_numbers = #tpu.dot_dimension_numbers<[1], [0], [0], [1], [0, 0, 1, 1], [], []>} : vector<8x32xbf16>, vector<32x16xbf16>, vector<8x16xf32> -> vector<8x16xf32>
    %c18_309 = arith.constant 18 : index
    %c0_310 = arith.constant 0 : index
    %c0_311 = arith.constant 0 : index
    %677 = vector.load %arg8[%c18_309, %c0_310, %c0_311] : memref<24x1x16xf32, #tpu.memory_space<vmem>>, vector<1x1x16xf32>
    %678 = vector.shape_cast %677 : vector<1x1x16xf32> to vector<1x16xf32>
    %679 = vector.broadcast %678 : vector<1x16xf32> to vector<8x16xf32>
    %680 = arith.addf %676, %679 : vector<8x16xf32>
    %c19 = arith.constant 19 : index
    %c0_312 = arith.constant 0 : index
    %c0_313 = arith.constant 0 : index
    %681 = vector.load %arg7[%c19, %c0_312, %c0_313] : memref<24x32x16xbf16, #tpu.memory_space<vmem>>, vector<1x32x16xbf16>
    %682 = vector.shape_cast %681 : vector<1x32x16xbf16> to vector<32x16xbf16>
    %cst_314 = arith.constant dense<0.000000e+00> : vector<8x16xf32>
    %683 = tpu.matmul %672, %682, %cst_314 {dimension_numbers = #tpu.dot_dimension_numbers<[1], [0], [0], [1], [0, 0, 1, 1], [], []>} : vector<8x32xbf16>, vector<32x16xbf16>, vector<8x16xf32> -> vector<8x16xf32>
    %c19_315 = arith.constant 19 : index
    %c0_316 = arith.constant 0 : index
    %c0_317 = arith.constant 0 : index
    %684 = vector.load %arg8[%c19_315, %c0_316, %c0_317] : memref<24x1x16xf32, #tpu.memory_space<vmem>>, vector<1x1x16xf32>
    %685 = vector.shape_cast %684 : vector<1x1x16xf32> to vector<1x16xf32>
    %686 = vector.broadcast %685 : vector<1x16xf32> to vector<8x16xf32>
    %687 = arith.addf %683, %686 : vector<8x16xf32>
    %c20 = arith.constant 20 : index
    %c0_318 = arith.constant 0 : index
    %c0_319 = arith.constant 0 : index
    %688 = vector.load %arg7[%c20, %c0_318, %c0_319] : memref<24x32x16xbf16, #tpu.memory_space<vmem>>, vector<1x32x16xbf16>
    %689 = vector.shape_cast %688 : vector<1x32x16xbf16> to vector<32x16xbf16>
    %cst_320 = arith.constant dense<0.000000e+00> : vector<8x16xf32>
    %690 = tpu.matmul %672, %689, %cst_320 {dimension_numbers = #tpu.dot_dimension_numbers<[1], [0], [0], [1], [0, 0, 1, 1], [], []>} : vector<8x32xbf16>, vector<32x16xbf16>, vector<8x16xf32> -> vector<8x16xf32>
    %c20_321 = arith.constant 20 : index
    %c0_322 = arith.constant 0 : index
    %c0_323 = arith.constant 0 : index
    %691 = vector.load %arg8[%c20_321, %c0_322, %c0_323] : memref<24x1x16xf32, #tpu.memory_space<vmem>>, vector<1x1x16xf32>
    %692 = vector.shape_cast %691 : vector<1x1x16xf32> to vector<1x16xf32>
    %693 = vector.broadcast %692 : vector<1x16xf32> to vector<8x16xf32>
    %694 = arith.addf %690, %693 : vector<8x16xf32>
    %695 = arith.truncf %680 : vector<8x16xf32> to vector<8x16xbf16>
    %696 = arith.truncf %687 : vector<8x16xf32> to vector<8x16xbf16>
    %697 = tpu.transpose %696, [1, 0] : vector<8x16xbf16> -> vector<16x8xbf16>
    %cst_324 = arith.constant dense<0.000000e+00> : vector<8x8xf32>
    %698 = tpu.matmul %695, %697, %cst_324 {dimension_numbers = #tpu.dot_dimension_numbers<[1], [0], [0], [1], [0, 0, 1, 1], [], []>} : vector<8x16xbf16>, vector<16x8xbf16>, vector<8x8xf32> -> vector<8x8xf32>
    %cst_325 = arith.constant 2.500000e-01 : f32
    %699 = vector.broadcast %cst_325 : f32 to vector<8x8xf32>
    %700 = arith.mulf %698, %699 : vector<8x8xf32>
    %cst_326 = arith.constant dense<0xFF800000> : vector<8xf32>
    %701 = vector.multi_reduction <maximumf>, %700, %cst_326 [1] : vector<8x8xf32> to vector<8xf32>
    %702 = vector.shape_cast %701 : vector<8xf32> to vector<8x1xf32>
    %703 = vector.broadcast %702 : vector<8x1xf32> to vector<8x8xf32>
    %704 = arith.subf %700, %703 : vector<8x8xf32>
    %705 = math.exp %704 : vector<8x8xf32>
    %cst_327 = arith.constant dense<0.000000e+00> : vector<8xf32>
    %706 = vector.multi_reduction <add>, %705, %cst_327 [1] : vector<8x8xf32> to vector<8xf32>
    %707 = vector.shape_cast %706 : vector<8xf32> to vector<8x1xf32>
    %708 = tpu.reciprocal %707 {approx = true} : vector<8x1xf32> -> vector<8x1xf32>
    %709 = vector.broadcast %708 : vector<8x1xf32> to vector<8x8xf32>
    %710 = arith.mulf %705, %709 : vector<8x8xf32>
    %711 = arith.truncf %710 : vector<8x8xf32> to vector<8x8xbf16>
    %712 = arith.truncf %694 : vector<8x16xf32> to vector<8x16xbf16>
    %cst_328 = arith.constant dense<0.000000e+00> : vector<8x16xf32>
    %713 = tpu.matmul %711, %712, %cst_328 {dimension_numbers = #tpu.dot_dimension_numbers<[1], [0], [0], [1], [0, 0, 1, 1], [], []>} : vector<8x8xbf16>, vector<8x16xbf16>, vector<8x16xf32> -> vector<8x16xf32>
    %714 = arith.truncf %713 : vector<8x16xf32> to vector<8x16xbf16>
    %c6_329 = arith.constant 6 : index
    %c0_330 = arith.constant 0 : index
    %c0_331 = arith.constant 0 : index
    %715 = vector.load %arg9[%c6_329, %c0_330, %c0_331] : memref<8x16x32xbf16, #tpu.memory_space<vmem>>, vector<1x16x32xbf16>
    %716 = vector.shape_cast %715 : vector<1x16x32xbf16> to vector<16x32xbf16>
    %cst_332 = arith.constant dense<0.000000e+00> : vector<8x32xf32>
    %717 = tpu.matmul %714, %716, %cst_332 {dimension_numbers = #tpu.dot_dimension_numbers<[1], [0], [0], [1], [0, 0, 1, 1], [], []>} : vector<8x16xbf16>, vector<16x32xbf16>, vector<8x32xf32> -> vector<8x32xf32>
    %718 = arith.addf %673, %717 : vector<8x32xf32>
    %c21 = arith.constant 21 : index
    %c0_333 = arith.constant 0 : index
    %c0_334 = arith.constant 0 : index
    %719 = vector.load %arg7[%c21, %c0_333, %c0_334] : memref<24x32x16xbf16, #tpu.memory_space<vmem>>, vector<1x32x16xbf16>
    %720 = vector.shape_cast %719 : vector<1x32x16xbf16> to vector<32x16xbf16>
    %cst_335 = arith.constant dense<0.000000e+00> : vector<8x16xf32>
    %721 = tpu.matmul %672, %720, %cst_335 {dimension_numbers = #tpu.dot_dimension_numbers<[1], [0], [0], [1], [0, 0, 1, 1], [], []>} : vector<8x32xbf16>, vector<32x16xbf16>, vector<8x16xf32> -> vector<8x16xf32>
    %c21_336 = arith.constant 21 : index
    %c0_337 = arith.constant 0 : index
    %c0_338 = arith.constant 0 : index
    %722 = vector.load %arg8[%c21_336, %c0_337, %c0_338] : memref<24x1x16xf32, #tpu.memory_space<vmem>>, vector<1x1x16xf32>
    %723 = vector.shape_cast %722 : vector<1x1x16xf32> to vector<1x16xf32>
    %724 = vector.broadcast %723 : vector<1x16xf32> to vector<8x16xf32>
    %725 = arith.addf %721, %724 : vector<8x16xf32>
    %c22 = arith.constant 22 : index
    %c0_339 = arith.constant 0 : index
    %c0_340 = arith.constant 0 : index
    %726 = vector.load %arg7[%c22, %c0_339, %c0_340] : memref<24x32x16xbf16, #tpu.memory_space<vmem>>, vector<1x32x16xbf16>
    %727 = vector.shape_cast %726 : vector<1x32x16xbf16> to vector<32x16xbf16>
    %cst_341 = arith.constant dense<0.000000e+00> : vector<8x16xf32>
    %728 = tpu.matmul %672, %727, %cst_341 {dimension_numbers = #tpu.dot_dimension_numbers<[1], [0], [0], [1], [0, 0, 1, 1], [], []>} : vector<8x32xbf16>, vector<32x16xbf16>, vector<8x16xf32> -> vector<8x16xf32>
    %c22_342 = arith.constant 22 : index
    %c0_343 = arith.constant 0 : index
    %c0_344 = arith.constant 0 : index
    %729 = vector.load %arg8[%c22_342, %c0_343, %c0_344] : memref<24x1x16xf32, #tpu.memory_space<vmem>>, vector<1x1x16xf32>
    %730 = vector.shape_cast %729 : vector<1x1x16xf32> to vector<1x16xf32>
    %731 = vector.broadcast %730 : vector<1x16xf32> to vector<8x16xf32>
    %732 = arith.addf %728, %731 : vector<8x16xf32>
    %c23 = arith.constant 23 : index
    %c0_345 = arith.constant 0 : index
    %c0_346 = arith.constant 0 : index
    %733 = vector.load %arg7[%c23, %c0_345, %c0_346] : memref<24x32x16xbf16, #tpu.memory_space<vmem>>, vector<1x32x16xbf16>
    %734 = vector.shape_cast %733 : vector<1x32x16xbf16> to vector<32x16xbf16>
    %cst_347 = arith.constant dense<0.000000e+00> : vector<8x16xf32>
    %735 = tpu.matmul %672, %734, %cst_347 {dimension_numbers = #tpu.dot_dimension_numbers<[1], [0], [0], [1], [0, 0, 1, 1], [], []>} : vector<8x32xbf16>, vector<32x16xbf16>, vector<8x16xf32> -> vector<8x16xf32>
    %c23_348 = arith.constant 23 : index
    %c0_349 = arith.constant 0 : index
    %c0_350 = arith.constant 0 : index
    %736 = vector.load %arg8[%c23_348, %c0_349, %c0_350] : memref<24x1x16xf32, #tpu.memory_space<vmem>>, vector<1x1x16xf32>
    %737 = vector.shape_cast %736 : vector<1x1x16xf32> to vector<1x16xf32>
    %738 = vector.broadcast %737 : vector<1x16xf32> to vector<8x16xf32>
    %739 = arith.addf %735, %738 : vector<8x16xf32>
    %740 = arith.truncf %725 : vector<8x16xf32> to vector<8x16xbf16>
    %741 = arith.truncf %732 : vector<8x16xf32> to vector<8x16xbf16>
    %742 = tpu.transpose %741, [1, 0] : vector<8x16xbf16> -> vector<16x8xbf16>
    %cst_351 = arith.constant dense<0.000000e+00> : vector<8x8xf32>
    %743 = tpu.matmul %740, %742, %cst_351 {dimension_numbers = #tpu.dot_dimension_numbers<[1], [0], [0], [1], [0, 0, 1, 1], [], []>} : vector<8x16xbf16>, vector<16x8xbf16>, vector<8x8xf32> -> vector<8x8xf32>
    %cst_352 = arith.constant 2.500000e-01 : f32
    %744 = vector.broadcast %cst_352 : f32 to vector<8x8xf32>
    %745 = arith.mulf %743, %744 : vector<8x8xf32>
    %cst_353 = arith.constant dense<0xFF800000> : vector<8xf32>
    %746 = vector.multi_reduction <maximumf>, %745, %cst_353 [1] : vector<8x8xf32> to vector<8xf32>
    %747 = vector.shape_cast %746 : vector<8xf32> to vector<8x1xf32>
    %748 = vector.broadcast %747 : vector<8x1xf32> to vector<8x8xf32>
    %749 = arith.subf %745, %748 : vector<8x8xf32>
    %750 = math.exp %749 : vector<8x8xf32>
    %cst_354 = arith.constant dense<0.000000e+00> : vector<8xf32>
    %751 = vector.multi_reduction <add>, %750, %cst_354 [1] : vector<8x8xf32> to vector<8xf32>
    %752 = vector.shape_cast %751 : vector<8xf32> to vector<8x1xf32>
    %753 = tpu.reciprocal %752 {approx = true} : vector<8x1xf32> -> vector<8x1xf32>
    %754 = vector.broadcast %753 : vector<8x1xf32> to vector<8x8xf32>
    %755 = arith.mulf %750, %754 : vector<8x8xf32>
    %756 = arith.truncf %755 : vector<8x8xf32> to vector<8x8xbf16>
    %757 = arith.truncf %739 : vector<8x16xf32> to vector<8x16xbf16>
    %cst_355 = arith.constant dense<0.000000e+00> : vector<8x16xf32>
    %758 = tpu.matmul %756, %757, %cst_355 {dimension_numbers = #tpu.dot_dimension_numbers<[1], [0], [0], [1], [0, 0, 1, 1], [], []>} : vector<8x8xbf16>, vector<8x16xbf16>, vector<8x16xf32> -> vector<8x16xf32>
    %759 = arith.truncf %758 : vector<8x16xf32> to vector<8x16xbf16>
    %c7_356 = arith.constant 7 : index
    %c0_357 = arith.constant 0 : index
    %c0_358 = arith.constant 0 : index
    %760 = vector.load %arg9[%c7_356, %c0_357, %c0_358] : memref<8x16x32xbf16, #tpu.memory_space<vmem>>, vector<1x16x32xbf16>
    %761 = vector.shape_cast %760 : vector<1x16x32xbf16> to vector<16x32xbf16>
    %cst_359 = arith.constant dense<0.000000e+00> : vector<8x32xf32>
    %762 = tpu.matmul %759, %761, %cst_359 {dimension_numbers = #tpu.dot_dimension_numbers<[1], [0], [0], [1], [0, 0, 1, 1], [], []>} : vector<8x16xbf16>, vector<16x32xbf16>, vector<8x32xf32> -> vector<8x32xf32>
    %763 = arith.addf %718, %762 : vector<8x32xf32>
    %764 = vector.extract_strided_slice %671 {offsets = [0, 0], sizes = [1, 32], strides = [1, 1]} : vector<7x64xf32> to vector<1x32xf32>
    %765 = vector.broadcast %764 : vector<1x32xf32> to vector<8x32xf32>
    %766 = arith.addf %763, %765 : vector<8x32xf32>
    %767 = arith.addf %669, %766 : vector<8x32xf32>
    %768 = vector.extract_strided_slice %671 {offsets = [1, 0], sizes = [1, 32], strides = [1, 1]} : vector<7x64xf32> to vector<1x32xf32>
    %769 = vector.extract_strided_slice %671 {offsets = [2, 0], sizes = [1, 32], strides = [1, 1]} : vector<7x64xf32> to vector<1x32xf32>
    %cst_360 = arith.constant dense<0.000000e+00> : vector<8xf32>
    %770 = vector.multi_reduction <add>, %767, %cst_360 [1] : vector<8x32xf32> to vector<8xf32>
    %771 = vector.shape_cast %770 : vector<8xf32> to vector<8x1xf32>
    %cst_361 = arith.constant 3.200000e+01 : f32
    %772 = vector.broadcast %cst_361 : f32 to vector<8x1xf32>
    %773 = arith.divf %771, %772 : vector<8x1xf32>
    %774 = vector.broadcast %773 : vector<8x1xf32> to vector<8x32xf32>
    %775 = arith.subf %767, %774 : vector<8x32xf32>
    %776 = arith.mulf %775, %775 : vector<8x32xf32>
    %cst_362 = arith.constant dense<0.000000e+00> : vector<8xf32>
    %777 = vector.multi_reduction <add>, %776, %cst_362 [1] : vector<8x32xf32> to vector<8xf32>
    %778 = vector.shape_cast %777 : vector<8xf32> to vector<8x1xf32>
    %cst_363 = arith.constant 3.200000e+01 : f32
    %779 = vector.broadcast %cst_363 : f32 to vector<8x1xf32>
    %780 = arith.divf %778, %779 : vector<8x1xf32>
    %781 = vector.broadcast %773 : vector<8x1xf32> to vector<8x32xf32>
    %782 = arith.subf %767, %781 : vector<8x32xf32>
    %cst_364 = arith.constant 9.99999996E-13 : f32
    %783 = vector.broadcast %cst_364 : f32 to vector<8x1xf32>
    %784 = arith.addf %780, %783 : vector<8x1xf32>
    %785 = math.rsqrt %784 : vector<8x1xf32>
    %786 = vector.broadcast %785 : vector<8x1xf32> to vector<8x32xf32>
    %787 = arith.mulf %782, %786 : vector<8x32xf32>
    %788 = vector.broadcast %768 : vector<1x32xf32> to vector<8x32xf32>
    %789 = arith.mulf %787, %788 : vector<8x32xf32>
    %790 = vector.broadcast %769 : vector<1x32xf32> to vector<8x32xf32>
    %791 = arith.addf %789, %790 : vector<8x32xf32>
    %792 = arith.truncf %791 : vector<8x32xf32> to vector<8x32xbf16>
    %c3_365 = arith.constant 3 : index
    %c0_366 = arith.constant 0 : index
    %c0_367 = arith.constant 0 : index
    %793 = vector.load %arg10[%c3_365, %c0_366, %c0_367] : memref<4x32x64xbf16, #tpu.memory_space<vmem>>, vector<1x32x64xbf16>
    %794 = vector.shape_cast %793 : vector<1x32x64xbf16> to vector<32x64xbf16>
    %cst_368 = arith.constant dense<0.000000e+00> : vector<8x64xf32>
    %795 = tpu.matmul %792, %794, %cst_368 {dimension_numbers = #tpu.dot_dimension_numbers<[1], [0], [0], [1], [0, 0, 1, 1], [], []>} : vector<8x32xbf16>, vector<32x64xbf16>, vector<8x64xf32> -> vector<8x64xf32>
    %796 = vector.extract_strided_slice %671 {offsets = [3, 0], sizes = [1, 64], strides = [1, 1]} : vector<7x64xf32> to vector<1x64xf32>
    %797 = vector.broadcast %796 : vector<1x64xf32> to vector<8x64xf32>
    %798 = arith.addf %795, %797 : vector<8x64xf32>
    %799 = arith.mulf %798, %798 : vector<8x64xf32>
    %800 = arith.mulf %798, %799 : vector<8x64xf32>
    %cst_369 = arith.constant 4.471500e-02 : f32
    %801 = vector.broadcast %cst_369 : f32 to vector<8x64xf32>
    %802 = arith.mulf %801, %800 : vector<8x64xf32>
    %803 = arith.addf %798, %802 : vector<8x64xf32>
    %cst_370 = arith.constant 0.797884583 : f32
    %804 = vector.broadcast %cst_370 : f32 to vector<8x64xf32>
    %805 = arith.mulf %804, %803 : vector<8x64xf32>
    %806 = math.tanh %805 : vector<8x64xf32>
    %cst_371 = arith.constant 1.000000e+00 : f32
    %807 = vector.broadcast %cst_371 : f32 to vector<8x64xf32>
    %808 = arith.addf %807, %806 : vector<8x64xf32>
    %cst_372 = arith.constant 5.000000e-01 : f32
    %809 = vector.broadcast %cst_372 : f32 to vector<8x64xf32>
    %810 = arith.mulf %809, %808 : vector<8x64xf32>
    %811 = arith.mulf %798, %810 : vector<8x64xf32>
    %812 = arith.truncf %811 : vector<8x64xf32> to vector<8x64xbf16>
    %c3_373 = arith.constant 3 : index
    %c0_374 = arith.constant 0 : index
    %c0_375 = arith.constant 0 : index
    %813 = vector.load %arg11[%c3_373, %c0_374, %c0_375] : memref<4x64x32xbf16, #tpu.memory_space<vmem>>, vector<1x64x32xbf16>
    %814 = vector.shape_cast %813 : vector<1x64x32xbf16> to vector<64x32xbf16>
    %cst_376 = arith.constant dense<0.000000e+00> : vector<8x32xf32>
    %815 = tpu.matmul %812, %814, %cst_376 {dimension_numbers = #tpu.dot_dimension_numbers<[1], [0], [0], [1], [0, 0, 1, 1], [], []>} : vector<8x64xbf16>, vector<64x32xbf16>, vector<8x32xf32> -> vector<8x32xf32>
    %816 = vector.extract_strided_slice %671 {offsets = [4, 0], sizes = [1, 32], strides = [1, 1]} : vector<7x64xf32> to vector<1x32xf32>
    %817 = vector.broadcast %816 : vector<1x32xf32> to vector<8x32xf32>
    %818 = arith.addf %815, %817 : vector<8x32xf32>
    %819 = arith.addf %791, %818 : vector<8x32xf32>
    %820 = vector.extract_strided_slice %671 {offsets = [5, 0], sizes = [1, 32], strides = [1, 1]} : vector<7x64xf32> to vector<1x32xf32>
    %821 = vector.extract_strided_slice %671 {offsets = [6, 0], sizes = [1, 32], strides = [1, 1]} : vector<7x64xf32> to vector<1x32xf32>
    %cst_377 = arith.constant dense<0.000000e+00> : vector<8xf32>
    %822 = vector.multi_reduction <add>, %819, %cst_377 [1] : vector<8x32xf32> to vector<8xf32>
    %823 = vector.shape_cast %822 : vector<8xf32> to vector<8x1xf32>
    %cst_378 = arith.constant 3.200000e+01 : f32
    %824 = vector.broadcast %cst_378 : f32 to vector<8x1xf32>
    %825 = arith.divf %823, %824 : vector<8x1xf32>
    %826 = vector.broadcast %825 : vector<8x1xf32> to vector<8x32xf32>
    %827 = arith.subf %819, %826 : vector<8x32xf32>
    %828 = arith.mulf %827, %827 : vector<8x32xf32>
    %cst_379 = arith.constant dense<0.000000e+00> : vector<8xf32>
    %829 = vector.multi_reduction <add>, %828, %cst_379 [1] : vector<8x32xf32> to vector<8xf32>
    %830 = vector.shape_cast %829 : vector<8xf32> to vector<8x1xf32>
    %cst_380 = arith.constant 3.200000e+01 : f32
    %831 = vector.broadcast %cst_380 : f32 to vector<8x1xf32>
    %832 = arith.divf %830, %831 : vector<8x1xf32>
    %833 = vector.broadcast %825 : vector<8x1xf32> to vector<8x32xf32>
    %834 = arith.subf %819, %833 : vector<8x32xf32>
    %cst_381 = arith.constant 9.99999996E-13 : f32
    %835 = vector.broadcast %cst_381 : f32 to vector<8x1xf32>
    %836 = arith.addf %832, %835 : vector<8x1xf32>
    %837 = math.rsqrt %836 : vector<8x1xf32>
    %838 = vector.broadcast %837 : vector<8x1xf32> to vector<8x32xf32>
    %839 = arith.mulf %834, %838 : vector<8x32xf32>
    %840 = vector.broadcast %820 : vector<1x32xf32> to vector<8x32xf32>
    %841 = arith.mulf %839, %840 : vector<8x32xf32>
    %842 = vector.broadcast %821 : vector<1x32xf32> to vector<8x32xf32>
    %843 = arith.addf %841, %842 : vector<8x32xf32>
    %844 = arith.truncf %843 : vector<8x32xf32> to vector<8x32xbf16>
    %c0_382 = arith.constant 0 : index
    %c0_383 = arith.constant 0 : index
    %845 = vector.load %arg18[%c0_382, %c0_383] : memref<32x32xbf16, #tpu.memory_space<vmem>>, vector<32x32xbf16>
    %cst_384 = arith.constant dense<0.000000e+00> : vector<8x32xf32>
    %846 = tpu.matmul %844, %845, %cst_384 {dimension_numbers = #tpu.dot_dimension_numbers<[1], [0], [0], [1], [0, 0, 1, 1], [], []>} : vector<8x32xbf16>, vector<32x32xbf16>, vector<8x32xf32> -> vector<8x32xf32>
    %c0_385 = arith.constant 0 : index
    %c0_386 = arith.constant 0 : index
    %847 = vector.load %arg19[%c0_385, %c0_386] : memref<1x32xf32, #tpu.memory_space<vmem>>, vector<1x32xf32>
    %848 = vector.broadcast %847 : vector<1x32xf32> to vector<8x32xf32>
    %849 = arith.addf %846, %848 : vector<8x32xf32>
    %850 = arith.mulf %849, %849 : vector<8x32xf32>
    %851 = arith.mulf %849, %850 : vector<8x32xf32>
    %cst_387 = arith.constant 4.471500e-02 : f32
    %852 = vector.broadcast %cst_387 : f32 to vector<8x32xf32>
    %853 = arith.mulf %852, %851 : vector<8x32xf32>
    %854 = arith.addf %849, %853 : vector<8x32xf32>
    %cst_388 = arith.constant 0.797884583 : f32
    %855 = vector.broadcast %cst_388 : f32 to vector<8x32xf32>
    %856 = arith.mulf %855, %854 : vector<8x32xf32>
    %857 = math.tanh %856 : vector<8x32xf32>
    %cst_389 = arith.constant 1.000000e+00 : f32
    %858 = vector.broadcast %cst_389 : f32 to vector<8x32xf32>
    %859 = arith.addf %858, %857 : vector<8x32xf32>
    %cst_390 = arith.constant 5.000000e-01 : f32
    %860 = vector.broadcast %cst_390 : f32 to vector<8x32xf32>
    %861 = arith.mulf %860, %859 : vector<8x32xf32>
    %862 = arith.mulf %849, %861 : vector<8x32xf32>
    %c0_391 = arith.constant 0 : index
    %c0_392 = arith.constant 0 : index
    %863 = vector.load %arg20[%c0_391, %c0_392] : memref<1x32xf32, #tpu.memory_space<vmem>>, vector<1x32xf32>
    %864 = arith.truncf %863 : vector<1x32xf32> to vector<1x32xbf16>
    %865 = arith.truncf %862 : vector<8x32xf32> to vector<8x32xbf16>
    %866 = tpu.transpose %865, [1, 0] : vector<8x32xbf16> -> vector<32x8xbf16>
    %cst_393 = arith.constant dense<0.000000e+00> : vector<1x8xf32>
    %867 = tpu.matmul %864, %866, %cst_393 {dimension_numbers = #tpu.dot_dimension_numbers<[1], [0], [0], [1], [0, 0, 1, 1], [], []>} : vector<1x32xbf16>, vector<32x8xbf16>, vector<1x8xf32> -> vector<1x8xf32>
    %c0_394 = arith.constant 0 : index
    %c0_395 = arith.constant 0 : index
    %868 = vector.load %arg21[%c0_394, %c0_395] : memref<1x1xf32, #tpu.memory_space<vmem>>, vector<1x1xf32>
    %869 = vector.broadcast %868 : vector<1x1xf32> to vector<1x8xf32>
    %870 = arith.addf %867, %869 : vector<1x8xf32>
    %cst_396 = arith.constant 0.000000e+00 : f32
    %871 = vector.broadcast %cst_396 : f32 to vector<1x120xf32>
    %872 = tpu.concatenate %870, %871 in 1 : vector<1x8xf32>, vector<1x120xf32> -> vector<1x128xf32>
    %c0_397 = arith.constant 0 : index
    %c0_398 = arith.constant 0 : index
    %c0_399 = arith.constant 0 : index
    %873 = vector.load %arg23[%c0_397, %c0_398, %c0_399] : memref<1x1x128xf32, #tpu.memory_space<vmem>>, vector<1x1x128xf32>
    %874 = vector.shape_cast %873 : vector<1x1x128xf32> to vector<1x128xf32>
    %875 = vector.shape_cast %872 : vector<1x128xf32> to vector<1x1x128xf32>
    tpu.vector_store %arg23[%c0_397, %c0_398, %c0_399], %875 {strides = array<i32>} : memref<1x1x128xf32, #tpu.memory_space<vmem>>, vector<1x1x128xf32>,
    return
  }
  func.func @transform_0(%arg0: i32) -> (i32, i32, i32) {
    %c0_i32 = arith.constant 0 : i32
    %c0_i32_0 = arith.constant 0 : i32
    %c0_i32_1 = arith.constant 0 : i32
    return %arg0, %c0_i32, %c0_i32_0 : i32, i32, i32
  }
  func.func @transform_1(%arg0: i32) -> (i32, i32, i32) {
    %c0_i32 = arith.constant 0 : i32
    %c0_i32_0 = arith.constant 0 : i32
    %c0_i32_1 = arith.constant 0 : i32
    return %arg0, %c0_i32, %c0_i32_0 : i32, i32, i32
  }
  func.func @transform_2(%arg0: i32) -> (i32, i32, i32) {
    %c0_i32 = arith.constant 0 : i32
    %c0_i32_0 = arith.constant 0 : i32
    %c0_i32_1 = arith.constant 0 : i32
    return %arg0, %c0_i32, %c0_i32_0 : i32, i32, i32
  }
  func.func @transform_3(%arg0: i32) -> (i32, i32, i32) {
    %c0_i32 = arith.constant 0 : i32
    %c0_i32_0 = arith.constant 0 : i32
    %c0_i32_1 = arith.constant 0 : i32
    return %arg0, %c0_i32, %c0_i32_0 : i32, i32, i32
  }
  func.func @transform_4(%arg0: i32) -> (i32, i32) {
    %c0_i32 = arith.constant 0 : i32
    %c0_i32_0 = arith.constant 0 : i32
    %c0_i32_1 = arith.constant 0 : i32
    return %c0_i32, %c0_i32_0 : i32, i32
  }
  func.func @transform_5(%arg0: i32) -> (i32, i32, i32) {
    %c0_i32 = arith.constant 0 : i32
    %c0_i32_0 = arith.constant 0 : i32
    %c0_i32_1 = arith.constant 0 : i32
    %c0_i32_2 = arith.constant 0 : i32
    return %c0_i32, %c0_i32_0, %c0_i32_1 : i32, i32, i32
  }
  func.func @transform_6(%arg0: i32) -> (i32, i32, i32) {
    %c0_i32 = arith.constant 0 : i32
    %c0_i32_0 = arith.constant 0 : i32
    %c0_i32_1 = arith.constant 0 : i32
    %c0_i32_2 = arith.constant 0 : i32
    return %c0_i32, %c0_i32_0, %c0_i32_1 : i32, i32, i32
  }
  func.func @transform_7(%arg0: i32) -> (i32, i32, i32) {
    %c0_i32 = arith.constant 0 : i32
    %c0_i32_0 = arith.constant 0 : i32
    %c0_i32_1 = arith.constant 0 : i32
    %c0_i32_2 = arith.constant 0 : i32
    return %c0_i32, %c0_i32_0, %c0_i32_1 : i32, i32, i32
  }
  func.func @transform_8(%arg0: i32) -> (i32, i32, i32) {
    %c0_i32 = arith.constant 0 : i32
    %c0_i32_0 = arith.constant 0 : i32
    %c0_i32_1 = arith.constant 0 : i32
    %c0_i32_2 = arith.constant 0 : i32
    return %c0_i32, %c0_i32_0, %c0_i32_1 : i32, i32, i32
  }
  func.func @transform_9(%arg0: i32) -> (i32, i32, i32) {
    %c0_i32 = arith.constant 0 : i32
    %c0_i32_0 = arith.constant 0 : i32
    %c0_i32_1 = arith.constant 0 : i32
    %c0_i32_2 = arith.constant 0 : i32
    return %c0_i32, %c0_i32_0, %c0_i32_1 : i32, i32, i32
  }
  func.func @transform_10(%arg0: i32) -> (i32, i32, i32) {
    %c0_i32 = arith.constant 0 : i32
    %c0_i32_0 = arith.constant 0 : i32
    %c0_i32_1 = arith.constant 0 : i32
    %c0_i32_2 = arith.constant 0 : i32
    return %c0_i32, %c0_i32_0, %c0_i32_1 : i32, i32, i32
  }
  func.func @transform_11(%arg0: i32) -> (i32, i32, i32) {
    %c0_i32 = arith.constant 0 : i32
    %c0_i32_0 = arith.constant 0 : i32
    %c0_i32_1 = arith.constant 0 : i32
    %c0_i32_2 = arith.constant 0 : i32
    return %c0_i32, %c0_i32_0, %c0_i32_1 : i32, i32, i32
  }
  func.func @transform_12(%arg0: i32) -> (i32, i32) {
    %c0_i32 = arith.constant 0 : i32
    %c0_i32_0 = arith.constant 0 : i32
    %c0_i32_1 = arith.constant 0 : i32
    return %c0_i32, %c0_i32_0 : i32, i32
  }
  func.func @transform_13(%arg0: i32) -> (i32, i32) {
    %c0_i32 = arith.constant 0 : i32
    %c0_i32_0 = arith.constant 0 : i32
    %c0_i32_1 = arith.constant 0 : i32
    return %c0_i32, %c0_i32_0 : i32, i32
  }
  func.func @transform_14(%arg0: i32) -> (i32, i32) {
    %c0_i32 = arith.constant 0 : i32
    %c0_i32_0 = arith.constant 0 : i32
    %c0_i32_1 = arith.constant 0 : i32
    return %c0_i32, %c0_i32_0 : i32, i32
  }
  func.func @transform_15(%arg0: i32) -> (i32, i32) {
    %c0_i32 = arith.constant 0 : i32
    %c0_i32_0 = arith.constant 0 : i32
    %c0_i32_1 = arith.constant 0 : i32
    return %c0_i32, %c0_i32_0 : i32, i32
  }
  func.func @transform_16(%arg0: i32) -> (i32, i32) {
    %c0_i32 = arith.constant 0 : i32
    %c0_i32_0 = arith.constant 0 : i32
    %c0_i32_1 = arith.constant 0 : i32
    return %c0_i32, %c0_i32_0 : i32, i32
  }
  func.func @transform_17(%arg0: i32) -> (i32, i32) {
    %c0_i32 = arith.constant 0 : i32
    %c0_i32_0 = arith.constant 0 : i32
    %c0_i32_1 = arith.constant 0 : i32
    return %c0_i32, %c0_i32_0 : i32, i32
  }
  func.func @transform_18(%arg0: i32) -> (i32, i32) {
    %c0_i32 = arith.constant 0 : i32
    %c0_i32_0 = arith.constant 0 : i32
    %c0_i32_1 = arith.constant 0 : i32
    return %c0_i32, %c0_i32_0 : i32, i32
  }
  func.func @transform_19(%arg0: i32) -> (i32, i32) {
    %c0_i32 = arith.constant 0 : i32
    %c0_i32_0 = arith.constant 0 : i32
    %c0_i32_1 = arith.constant 0 : i32
    return %c0_i32, %c0_i32_0 : i32, i32
  }
  func.func @transform_20(%arg0: i32) -> (i32, i32) {
    %c0_i32 = arith.constant 0 : i32
    %c0_i32_0 = arith.constant 0 : i32
    %c0_i32_1 = arith.constant 0 : i32
    return %c0_i32, %c0_i32_0 : i32, i32
  }
  func.func @transform_21(%arg0: i32) -> (i32, i32, i32) {
    %c0_i32 = arith.constant 0 : i32
    %c0_i32_0 = arith.constant 0 : i32
    %c0_i32_1 = arith.constant 0 : i32
    return %arg0, %c0_i32, %c0_i32_0 : i32, i32, i32
  }
  func.func @transform_22(%arg0: i32) -> (i32, i32, i32) {
    %c0_i32 = arith.constant 0 : i32
    %c0_i32_0 = arith.constant 0 : i32
    %c0_i32_1 = arith.constant 0 : i32
    return %arg0, %c0_i32, %c0_i32_0 : i32, i32, i32
  }
}

</mosaic_0001>

<llo_original>
// kernel: _lambda_.1
$region0: #{_lambda_.1}
  #allocation0 [shape = 'u32[]', space=smem, size = 0x4, offset = 0x4, fixed_abs, tag = 'smem constant byte address 0x4 - core index']
  #allocation1 [shape = 'u32[144,128]{1,0:T(1,128)}', space=vmem, size = 0x12000, scoped, tag = 'internal scratch']
  #allocation2 [shape = 'f32[1,1]{1,0:T(1,128)S(1)}', space=vmem, size = 0x200, scoped, tag = 'scoped memory for _lambda_.1']
  %s0 = inlined_call_operand.vmem [shape: f32[2,8,32], index: 0, kind: input, shape index: {}]
  %s1 = inlined_call_operand.vmem [shape: f32[2,1,8], index: 1, kind: input, shape index: {}]
  %s2 = inlined_call_operand.vmem [shape: f32[2,8,32], index: 2, kind: input, shape index: {}]
  %s3 = inlined_call_operand.vmem [shape: f32[2,8,1], index: 3, kind: input, shape index: {}]
  %s4 = inlined_call_operand.hbm [shape: f32[8,32], index: 4, kind: input, shape index: {}]
  %s5 = inlined_call_operand.vmem [shape: f32[2,2,32], index: 5, kind: input, shape index: {}]
  %s6 = inlined_call_operand.vmem [shape: bf16[24,32,16], index: 6, kind: input, shape index: {}]
  %s7 = inlined_call_operand.vmem [shape: f32[24,1,16], index: 7, kind: input, shape index: {}]
  %s8 = inlined_call_operand.hbm [shape: bf16[8,16,32], index: 8, kind: input, shape index: {}]
  %s9 = inlined_call_operand.hbm [shape: bf16[4,32,64], index: 9, kind: input, shape index: {}]
  %s10 = inlined_call_operand.hbm [shape: bf16[4,64,32], index: 10, kind: input, shape index: {}]
  %s11 = inlined_call_operand.hbm [shape: f32[4,7,64], index: 11, kind: input, shape index: {}]
  %s12 = inlined_call_operand.hbm [shape: bf16[32,32], index: 12, kind: input, shape index: {}]
  %s13 = inlined_call_operand.hbm [shape: f32[3,32], index: 13, kind: input, shape index: {}]
  %s14 = inlined_call_operand.hbm [shape: bf16[32,128], index: 14, kind: input, shape index: {}]
  %s15 = inlined_call_operand.vmem [shape: f32[1,128], index: 15, kind: input, shape index: {}]
  %s16 = inlined_call_operand.vmem [shape: bf16[64,32], index: 16, kind: input, shape index: {}]
  %s17 = inlined_call_operand.hbm [shape: bf16[32,32], index: 17, kind: input, shape index: {}]
  %s18 = inlined_call_operand.vmem [shape: f32[1,32], index: 18, kind: input, shape index: {}]
  %s19 = inlined_call_operand.vmem [shape: f32[1,32], index: 19, kind: input, shape index: {}]
  %s20 = inlined_call_operand.<no memory space> [shape: f32[1,1], index: 20, kind: input, shape index: {}]
  %s21 = inlined_call_operand.vmem [shape: f32[2,8,128], index: 21, kind: output, shape index: {0}]
  %s22 = inlined_call_operand.vmem [shape: f32[2,1,128], index: 22, kind: output, shape index: {1}]
  %23 = xla_tuple %s21, %s22
  %s24 = sld [smem:[#allocation0]]
  $region161: #{_lambda_.1} parent=0
    _
  %s26 = ssub.s32 1, %s24
  %s27 = scalar_select 0, %s26, %s24
  %v28 = vstv %s20
  %29 = vst [vmem:[#allocation2] sm:$0x1] %v28
  $region1: #{_lambda_.1} parent=0
    #allocation3 [shape = 'u8[4096]{0}', space=vmem, size = 0x1000, scoped, tag = 'input window, operand 4, single buffered']
    #allocation4 [shape = 's32[2]{0}', space=sflag, size = 0x8, scoped, tag = 'scoped memory for _lambda_.1']
    #allocation5 [shape = 'u8[32768]{0}', space=vmem, size = 0x8000, scoped, tag = 'input window, operand 8, single buffered']
    #allocation6 [shape = 's32[1]{0}', space=sflag, size = 0x4, scoped, tag = 'scoped memory for _lambda_.1']
    #allocation7 [shape = 'u8[32768]{0}', space=vmem, size = 0x8000, scoped, tag = 'input window, operand 9, single buffered']
    #allocation8 [shape = 'u8[65536]{0}', space=vmem, size = 0x10000, scoped, tag = 'input window, operand 10, single buffered']
    #allocation9 [shape = 's32[1]{0}', space=sflag, size = 0x4, scoped, tag = 'scoped memory for _lambda_.1']
    #allocation10 [shape = 'u8[16384]{0}', space=vmem, size = 0x4000, scoped, tag = 'input window, operand 11, single buffered']
    #allocation11 [shape = 'u8[8192]{0}', space=vmem, size = 0x2000, scoped, tag = 'input window, operand 12, single buffered']
    #allocation12 [shape = 's32[1]{0}', space=sflag, size = 0x4, scoped, tag = 'scoped memory for _lambda_.1']
    #allocation13 [shape = 'u8[2048]{0}', space=vmem, size = 0x800, scoped, tag = 'input window, operand 13, single buffered']
    #allocation14 [shape = 'u8[8192]{0}', space=vmem, size = 0x2000, scoped, tag = 'input window, operand 14, single buffered']
    #allocation15 [shape = 's32[1]{0}', space=sflag, size = 0x4, scoped, tag = 'scoped memory for _lambda_.1']
    #allocation16 [shape = 'u8[8192]{0}', space=vmem, size = 0x2000, scoped, tag = 'input window, operand 17, single buffered']
    %30 = vsyncpa [#allocation4], 0
    %31 = vsyncpa [#allocation6], 0
    %32 = vsyncpa [#allocation9], 0
    %33 = vsyncpa [#allocation12], 0
    %34 = vsyncpa [#allocation15], 0
    loop: start=0, step=1, limit=4
    $region2: #{_lambda_.1} parent=1 // loop_pre_header
      _
    $region3: #{_lambda_.1} parent=1 // loop_header
      %s36 = sphi 0, %s40
      %p37 = scmp.ge.s32.totalorder %s36, 4
      %s46 = sphi 0, %s48
      %s49 = sphi 0, %s46
      %s50 = sphi 0, %s49
      %s66 = sphi 0, %s50
      %s72 = sphi 0, %s74
      %s75 = sphi 0, %s72
      %s76 = sphi 0, %s75
      %s92 = sphi 0, %s76
      %s98 = sphi 0, %s100
      %s101 = sphi 0, %s98
      %s102 = sphi 0, %s101
      %s118 = sphi 0, %s102
      %s124 = sphi 0, %s126
      %s127 = sphi 0, %s124
      %s128 = sphi 0, %s127
      %s144 = sphi 0, %s128
      %s148 = sphi 0, %s148
      %s150 = sphi 0, %s148
      %s151 = sphi 0, %s150
      %s165 = sphi 0, %s151
      %s169 = sphi 0, %s169
      %s171 = sphi 0, %s169
      %s172 = sphi 0, %s171
      %s186 = sphi 0, %s172
      %s190 = sphi 0, %s190
      %s192 = sphi 0, %s190
      %s193 = sphi 0, %s192
      %s207 = sphi 0, %s193
      %s211 = sphi 0, %s211
      %s213 = sphi 0, %s211
      %s214 = sphi 0, %s213
      %s228 = sphi 0, %s214
      %s232 = sphi 0, %s232
      %s234 = sphi 0, %s232
      %s235 = sphi 0, %s234
      %s249 = sphi 0, %s235
      %s253 = sphi 0, %s253
      %s255 = sphi 0, %s253
      %s256 = sphi 0, %s255
      %s270 = sphi 0, %s256
      %s274 = sphi 0, %s274
      %s276 = sphi 0, %s274
      %s277 = sphi 0, %s276
      %s291 = sphi 0, %s277
      %s295 = sphi 0, %s295
      %s297 = sphi 0, %s295
      %s298 = sphi 0, %s297
      %s312 = sphi 0, %s298
      %s316 = sphi 0, %s316
      %s318 = sphi 0, %s316
      %s319 = sphi 0, %s318
      %s333 = sphi 0, %s319
      %s337 = sphi 0, %s337
      %s339 = sphi 0, %s337
      %s340 = sphi 0, %s339
      %s354 = sphi 0, %s340
      %s358 = sphi 0, %s358
      %s360 = sphi 0, %s358
      %s361 = sphi 0, %s360
      %s375 = sphi 0, %s361
      %s379 = sphi 0, %s379
      %s381 = sphi 0, %s379
      %s382 = sphi 0, %s381
      %s396 = sphi 0, %s382
      %s400 = sphi 0, %s400
      %s402 = sphi 0, %s400
      %s403 = sphi 0, %s402
      %s417 = sphi 0, %s403
      %s421 = sphi 0, %s421
      %s423 = sphi 0, %s421
      %s424 = sphi 0, %s423
      %s438 = sphi 0, %s424
      %s442 = sphi 0, %s442
      %s444 = sphi 0, %s442
      %s445 = sphi 0, %s444
      %s459 = sphi 0, %s445
      %s463 = sphi 0, %s463
      %s465 = sphi 0, %s463
      %s466 = sphi 0, %s465
      %s480 = sphi 0, %s466
      %s484 = sphi 0, %s484
      %s486 = sphi 0, %s484
      %s487 = sphi 0, %s486
      %s501 = sphi 0, %s487
      %s507 = sphi 0, %s509
      %s510 = sphi 0, %s507
      %s511 = sphi 0, %s510
      %s527 = sphi 0, %s511
      %s533 = sphi 0, %s535
      %s536 = sphi 0, %s533
      %s537 = sphi 0, %s536
      %s553 = sphi 0, %s537
    $region4: #{_lambda_.1} parent=1 // loop_header_branch
      %39 = sbr.rel (%p37) target = $region8
    $region5: #{_lambda_.1} parent=1 // loop_body
      %s41 = ssub.s32 %s36, 1
      %s42 = ssub.s32 %s36, 2
      %s43 = sadd.s32 %s36, 1
      %s44 = ssub.s32 %s36, %s43
      %p45 = scmp.eq.s32.totalorder %s44, 0
      %s47 = sadd.s32 %s46, 1
      %s48 = scalar_select %p45, %s46, %s47
      %p51 = pneg %p45
      %p52 = scmp.eq.s32.totalorder %s36, 1
      %p53 = por %p51, %p52
      %p54 = scmp.ne.s32.totalorder %s46, %s49
      %p55 = scmp.eq.s32.totalorder %s36, 0
      %p56 = por %p54, %p55
      %p57 = scmp.ne.s32.totalorder %s46, %s49
      %p58 = scmp.eq.s32.totalorder %s41, 1
      %p59 = por %p57, %p58
      %p60 = scmp.ne.s32.totalorder %s49, %s50
      %p61 = scmp.eq.s32.totalorder %s41, 0
      %p62 = por %p60, %p61
      %p63 = scmp.ne.s32.totalorder %s49, %s50
      %p64 = scmp.eq.s32.totalorder %s42, 1
      %p65 = por %p63, %p64
      %p67 = scmp.ne.s32.totalorder %s50, %s66
      %p68 = scmp.eq.s32.totalorder %s42, 0
      %p69 = por %p67, %p68
      %s70 = ssub.s32 %s36, %s43
      %p71 = scmp.eq.s32.totalorder %s70, 0
      %s73 = sadd.s32 %s72, 1
      %s74 = scalar_select %p71, %s72, %s73
      %p77 = pneg %p71
      %p78 = scmp.eq.s32.totalorder %s36, 1
      %p79 = por %p77, %p78
      %p80 = scmp.ne.s32.totalorder %s72, %s75
      %p81 = scmp.eq.s32.totalorder %s36, 0
      %p82 = por %p80, %p81
      %p83 = scmp.ne.s32.totalorder %s72, %s75
      %p84 = scmp.eq.s32.totalorder %s41, 1
      %p85 = por %p83, %p84
      %p86 = scmp.ne.s32.totalorder %s75, %s76
      %p87 = scmp.eq.s32.totalorder %s41, 0
      %p88 = por %p86, %p87
      %p89 = scmp.ne.s32.totalorder %s75, %s76
      %p90 = scmp.eq.s32.totalorder %s42, 1
      %p91 = por %p89, %p90
      %p93 = scmp.ne.s32.totalorder %s76, %s92
      %p94 = scmp.eq.s32.totalorder %s42, 0
      %p95 = por %p93, %p94
      %s96 = ssub.s32 %s36, %s43
      %p97 = scmp.eq.s32.totalorder %s96, 0
      %s99 = sadd.s32 %s98, 1
      %s100 = scalar_select %p97, %s98, %s99
      %p103 = pneg %p97
      %p104 = scmp.eq.s32.totalorder %s36, 1
      %p105 = por %p103, %p104
      %p106 = scmp.ne.s32.totalorder %s98, %s101
      %p107 = scmp.eq.s32.totalorder %s36, 0
      %p108 = por %p106, %p107
      %p109 = scmp.ne.s32.totalorder %s98, %s101
      %p110 = scmp.eq.s32.totalorder %s41, 1
      %p111 = por %p109, %p110
      %p112 = scmp.ne.s32.totalorder %s101, %s102
      %p113 = scmp.eq.s32.totalorder %s41, 0
      %p114 = por %p112, %p113
      %p115 = scmp.ne.s32.totalorder %s101, %s102
      %p116 = scmp.eq.s32.totalorder %s42, 1
      %p117 = por %p115, %p116
      %p119 = scmp.ne.s32.totalorder %s102, %s118
      %p120 = scmp.eq.s32.totalorder %s42, 0
      %p121 = por %p119, %p120
      %s122 = ssub.s32 %s36, %s43
      %p123 = scmp.eq.s32.totalorder %s122, 0
      %s125 = sadd.s32 %s124, 1
      %s126 = scalar_select %p123, %s124, %s125
      %p129 = pneg %p123
      %p130 = scmp.eq.s32.totalorder %s36, 1
      %p131 = por %p129, %p130
      %p132 = scmp.ne.s32.totalorder %s124, %s127
      %p133 = scmp.eq.s32.totalorder %s36, 0
      %p134 = por %p132, %p133
      %p135 = scmp.ne.s32.totalorder %s124, %s127
      %p136 = scmp.eq.s32.totalorder %s41, 1
      %p137 = por %p135, %p136
      %p138 = scmp.ne.s32.totalorder %s127, %s128
      %p139 = scmp.eq.s32.totalorder %s41, 0
      %p140 = por %p138, %p139
      %p141 = scmp.ne.s32.totalorder %s127, %s128
      %p142 = scmp.eq.s32.totalorder %s42, 1
      %p143 = por %p141, %p142
      %p145 = scmp.ne.s32.totalorder %s128, %s144
      %p146 = scmp.eq.s32.totalorder %s42, 0
      %p147 = por %p145, %p146
      %s149 = sadd.s32 %s148, 1
      %p152 = scmp.eq.s32.totalorder %s36, 1
      %p153 = scmp.ne.s32.totalorder %s148, %s150
      %p154 = scmp.eq.s32.totalorder %s36, 0
      %p155 = por %p153, %p154
      %p156 = scmp.ne.s32.totalorder %s148, %s150
      %p157 = scmp.eq.s32.totalorder %s41, 1
      %p158 = por %p156, %p157
      %p159 = scmp.ne.s32.totalorder %s150, %s151
      %p160 = scmp.eq.s32.totalorder %s41, 0
      %p161 = por %p159, %p160
      %p162 = scmp.ne.s32.totalorder %s150, %s151
      %p163 = scmp.eq.s32.totalorder %s42, 1
      %p164 = por %p162, %p163
      %p166 = scmp.ne.s32.totalorder %s151, %s165
      %p167 = scmp.eq.s32.totalorder %s42, 0
      %p168 = por %p166, %p167
      %s170 = sadd.s32 %s169, 1
      %p173 = scmp.eq.s32.totalorder %s36, 1
      %p174 = scmp.ne.s32.totalorder %s169, %s171
      %p175 = scmp.eq.s32.totalorder %s36, 0
      %p176 = por %p174, %p175
      %p177 = scmp.ne.s32.totalorder %s169, %s171
      %p178 = scmp.eq.s32.totalorder %s41, 1
      %p179 = por %p177, %p178
      %p180 = scmp.ne.s32.totalorder %s171, %s172
      %p181 = scmp.eq.s32.totalorder %s41, 0
      %p182 = por %p180, %p181
      %p183 = scmp.ne.s32.totalorder %s171, %s172
      %p184 = scmp.eq.s32.totalorder %s42, 1
      %p185 = por %p183, %p184
      %p187 = scmp.ne.s32.totalorder %s172, %s186
      %p188 = scmp.eq.s32.totalorder %s42, 0
      %p189 = por %p187, %p188
      %s191 = sadd.s32 %s190, 1
      %p194 = scmp.eq.s32.totalorder %s36, 1
      %p195 = scmp.ne.s32.totalorder %s190, %s192
      %p196 = scmp.eq.s32.totalorder %s36, 0
      %p197 = por %p195, %p196
      %p198 = scmp.ne.s32.totalorder %s190, %s192
      %p199 = scmp.eq.s32.totalorder %s41, 1
      %p200 = por %p198, %p199
      %p201 = scmp.ne.s32.totalorder %s192, %s193
      %p202 = scmp.eq.s32.totalorder %s41, 0
      %p203 = por %p201, %p202
      %p204 = scmp.ne.s32.totalorder %s192, %s193
      %p205 = scmp.eq.s32.totalorder %s42, 1
      %p206 = por %p204, %p205
      %p208 = scmp.ne.s32.totalorder %s193, %s207
      %p209 = scmp.eq.s32.totalorder %s42, 0
      %p210 = por %p208, %p209
      %s212 = sadd.s32 %s211, 1
      %p215 = scmp.eq.s32.totalorder %s36, 1
      %p216 = scmp.ne.s32.totalorder %s211, %s213
      %p217 = scmp.eq.s32.totalorder %s36, 0
      %p218 = por %p216, %p217
      %p219 = scmp.ne.s32.totalorder %s211, %s213
      %p220 = scmp.eq.s32.totalorder %s41, 1
      %p221 = por %p219, %p220
      %p222 = scmp.ne.s32.totalorder %s213, %s214
      %p223 = scmp.eq.s32.totalorder %s41, 0
      %p224 = por %p222, %p223
      %p225 = scmp.ne.s32.totalorder %s213, %s214
      %p226 = scmp.eq.s32.totalorder %s42, 1
      %p227 = por %p225, %p226
      %p229 = scmp.ne.s32.totalorder %s214, %s228
      %p230 = scmp.eq.s32.totalorder %s42, 0
      %p231 = por %p229, %p230
      %s233 = sadd.s32 %s232, 1
      %p236 = scmp.eq.s32.totalorder %s36, 1
      %p237 = scmp.ne.s32.totalorder %s232, %s234
      %p238 = scmp.eq.s32.totalorder %s36, 0
      %p239 = por %p237, %p238
      %p240 = scmp.ne.s32.totalorder %s232, %s234
      %p241 = scmp.eq.s32.totalorder %s41, 1
      %p242 = por %p240, %p241
      %p243 = scmp.ne.s32.totalorder %s234, %s235
      %p244 = scmp.eq.s32.totalorder %s41, 0
      %p245 = por %p243, %p244
      %p246 = scmp.ne.s32.totalorder %s234, %s235
      %p247 = scmp.eq.s32.totalorder %s42, 1
      %p248 = por %p246, %p247
      %p250 = scmp.ne.s32.totalorder %s235, %s249
      %p251 = scmp.eq.s32.totalorder %s42, 0
      %p252 = por %p250, %p251
      %s254 = sadd.s32 %s253, 1
      %p257 = scmp.eq.s32.totalorder %s36, 1
      %p258 = scmp.ne.s32.totalorder %s253, %s255
      %p259 = scmp.eq.s32.totalorder %s36, 0
      %p260 = por %p258, %p259
      %p261 = scmp.ne.s32.totalorder %s253, %s255
      %p262 = scmp.eq.s32.totalorder %s41, 1
      %p263 = por %p261, %p262
      %p264 = scmp.ne.s32.totalorder %s255, %s256
      %p265 = scmp.eq.s32.totalorder %s41, 0
      %p266 = por %p264, %p265
      %p267 = scmp.ne.s32.totalorder %s255, %s256
      %p268 = scmp.eq.s32.totalorder %s42, 1
      %p269 = por %p267, %p268
      %p271 = scmp.ne.s32.totalorder %s256, %s270
      %p272 = scmp.eq.s32.totalorder %s42, 0
      %p273 = por %p271, %p272
      %s275 = sadd.s32 %s274, 1
      %p278 = scmp.eq.s32.totalorder %s36, 1
      %p279 = scmp.ne.s32.totalorder %s274, %s276
      %p280 = scmp.eq.s32.totalorder %s36, 0
      %p281 = por %p279, %p280
      %p282 = scmp.ne.s32.totalorder %s274, %s276
      %p283 = scmp.eq.s32.totalorder %s41, 1
      %p284 = por %p282, %p283
      %p285 = scmp.ne.s32.totalorder %s276, %s277
      %p286 = scmp.eq.s32.totalorder %s41, 0
      %p287 = por %p285, %p286
      %p288 = scmp.ne.s32.totalorder %s276, %s277
      %p289 = scmp.eq.s32.totalorder %s42, 1
      %p290 = por %p288, %p289
      %p292 = scmp.ne.s32.totalorder %s277, %s291
      %p293 = scmp.eq.s32.totalorder %s42, 0
      %p294 = por %p292, %p293
      %s296 = sadd.s32 %s295, 1
      %p299 = scmp.eq.s32.totalorder %s36, 1
      %p300 = scmp.ne.s32.totalorder %s295, %s297
      %p301 = scmp.eq.s32.totalorder %s36, 0
      %p302 = por %p300, %p301
      %p303 = scmp.ne.s32.totalorder %s295, %s297
      %p304 = scmp.eq.s32.totalorder %s41, 1
      %p305 = por %p303, %p304
      %p306 = scmp.ne.s32.totalorder %s297, %s298
      %p307 = scmp.eq.s32.totalorder %s41, 0
      %p308 = por %p306, %p307
      %p309 = scmp.ne.s32.totalorder %s297, %s298
      %p310 = scmp.eq.s32.totalorder %s42, 1
      %p311 = por %p309, %p310
      %p313 = scmp.ne.s32.totalorder %s298, %s312
      %p314 = scmp.eq.s32.totalorder %s42, 0
      %p315 = por %p313, %p314
      %s317 = sadd.s32 %s316, 1
      %p320 = scmp.eq.s32.totalorder %s36, 1
      %p321 = scmp.ne.s32.totalorder %s316, %s318
      %p322 = scmp.eq.s32.totalorder %s36, 0
      %p323 = por %p321, %p322
      %p324 = scmp.ne.s32.totalorder %s316, %s318
      %p325 = scmp.eq.s32.totalorder %s41, 1
      %p326 = por %p324, %p325
      %p327 = scmp.ne.s32.totalorder %s318, %s319
      %p328 = scmp.eq.s32.totalorder %s41, 0
      %p329 = por %p327, %p328
      %p330 = scmp.ne.s32.totalorder %s318, %s319
      %p331 = scmp.eq.s32.totalorder %s42, 1
      %p332 = por %p330, %p331
      %p334 = scmp.ne.s32.totalorder %s319, %s333
      %p335 = scmp.eq.s32.totalorder %s42, 0
      %p336 = por %p334, %p335
      %s338 = sadd.s32 %s337, 1
      %p341 = scmp.eq.s32.totalorder %s36, 1
      %p342 = scmp.ne.s32.totalorder %s337, %s339
      %p343 = scmp.eq.s32.totalorder %s36, 0
      %p344 = por %p342, %p343
      %p345 = scmp.ne.s32.totalorder %s337, %s339
      %p346 = scmp.eq.s32.totalorder %s41, 1
      %p347 = por %p345, %p346
      %p348 = scmp.ne.s32.totalorder %s339, %s340
      %p349 = scmp.eq.s32.totalorder %s41, 0
      %p350 = por %p348, %p349
      %p351 = scmp.ne.s32.totalorder %s339, %s340
      %p352 = scmp.eq.s32.totalorder %s42, 1
      %p353 = por %p351, %p352
      %p355 = scmp.ne.s32.totalorder %s340, %s354
      %p356 = scmp.eq.s32.totalorder %s42, 0
      %p357 = por %p355, %p356
      %s359 = sadd.s32 %s358, 1
      %p362 = scmp.eq.s32.totalorder %s36, 1
      %p363 = scmp.ne.s32.totalorder %s358, %s360
      %p364 = scmp.eq.s32.totalorder %s36, 0
      %p365 = por %p363, %p364
      %p366 = scmp.ne.s32.totalorder %s358, %s360
      %p367 = scmp.eq.s32.totalorder %s41, 1
      %p368 = por %p366, %p367
      %p369 = scmp.ne.s32.totalorder %s360, %s361
      %p370 = scmp.eq.s32.totalorder %s41, 0
      %p371 = por %p369, %p370
      %p372 = scmp.ne.s32.totalorder %s360, %s361
      %p373 = scmp.eq.s32.totalorder %s42, 1
      %p374 = por %p372, %p373
      %p376 = scmp.ne.s32.totalorder %s361, %s375
      %p377 = scmp.eq.s32.totalorder %s42, 0
      %p378 = por %p376, %p377
      %s380 = sadd.s32 %s379, 1
      %p383 = scmp.eq.s32.totalorder %s36, 1
      %p384 = scmp.ne.s32.totalorder %s379, %s381
      %p385 = scmp.eq.s32.totalorder %s36, 0
      %p386 = por %p384, %p385
      %p387 = scmp.ne.s32.totalorder %s379, %s381
      %p388 = scmp.eq.s32.totalorder %s41, 1
      %p389 = por %p387, %p388
      %p390 = scmp.ne.s32.totalorder %s381, %s382
      %p391 = scmp.eq.s32.totalorder %s41, 0
      %p392 = por %p390, %p391
      %p393 = scmp.ne.s32.totalorder %s381, %s382
      %p394 = scmp.eq.s32.totalorder %s42, 1
      %p395 = por %p393, %p394
      %p397 = scmp.ne.s32.totalorder %s382, %s396
      %p398 = scmp.eq.s32.totalorder %s42, 0
      %p399 = por %p397, %p398
      %s401 = sadd.s32 %s400, 1
      %p404 = scmp.eq.s32.totalorder %s36, 1
      %p405 = scmp.ne.s32.totalorder %s400, %s402
      %p406 = scmp.eq.s32.totalorder %s36, 0
      %p407 = por %p405, %p406
      %p408 = scmp.ne.s32.totalorder %s400, %s402
      %p409 = scmp.eq.s32.totalorder %s41, 1
      %p410 = por %p408, %p409
      %p411 = scmp.ne.s32.totalorder %s402, %s403
      %p412 = scmp.eq.s32.totalorder %s41, 0
      %p413 = por %p411, %p412
      %p414 = scmp.ne.s32.totalorder %s402, %s403
      %p415 = scmp.eq.s32.totalorder %s42, 1
      %p416 = por %p414, %p415
      %p418 = scmp.ne.s32.totalorder %s403, %s417
      %p419 = scmp.eq.s32.totalorder %s42, 0
      %p420 = por %p418, %p419
      %s422 = sadd.s32 %s421, 1
      %p425 = scmp.eq.s32.totalorder %s36, 1
      %p426 = scmp.ne.s32.totalorder %s421, %s423
      %p427 = scmp.eq.s32.totalorder %s36, 0
      %p428 = por %p426, %p427
      %p429 = scmp.ne.s32.totalorder %s421, %s423
      %p430 = scmp.eq.s32.totalorder %s41, 1
      %p431 = por %p429, %p430
      %p432 = scmp.ne.s32.totalorder %s423, %s424
      %p433 = scmp.eq.s32.totalorder %s41, 0
      %p434 = por %p432, %p433
      %p435 = scmp.ne.s32.totalorder %s423, %s424
      %p436 = scmp.eq.s32.totalorder %s42, 1
      %p437 = por %p435, %p436
      %p439 = scmp.ne.s32.totalorder %s424, %s438
      %p440 = scmp.eq.s32.totalorder %s42, 0
      %p441 = por %p439, %p440
      %s443 = sadd.s32 %s442, 1
      %p446 = scmp.eq.s32.totalorder %s36, 1
      %p447 = scmp.ne.s32.totalorder %s442, %s444
      %p448 = scmp.eq.s32.totalorder %s36, 0
      %p449 = por %p447, %p448
      %p450 = scmp.ne.s32.totalorder %s442, %s444
      %p451 = scmp.eq.s32.totalorder %s41, 1
      %p452 = por %p450, %p451
      %p453 = scmp.ne.s32.totalorder %s444, %s445
      %p454 = scmp.eq.s32.totalorder %s41, 0
      %p455 = por %p453, %p454
      %p456 = scmp.ne.s32.totalorder %s444, %s445
      %p457 = scmp.eq.s32.totalorder %s42, 1
      %p458 = por %p456, %p457
      %p460 = scmp.ne.s32.totalorder %s445, %s459
      %p461 = scmp.eq.s32.totalorder %s42, 0
      %p462 = por %p460, %p461
      %s464 = sadd.s32 %s463, 1
      %p467 = scmp.eq.s32.totalorder %s36, 1
      %p468 = scmp.ne.s32.totalorder %s463, %s465
      %p469 = scmp.eq.s32.totalorder %s36, 0
      %p470 = por %p468, %p469
      %p471 = scmp.ne.s32.totalorder %s463, %s465
      %p472 = scmp.eq.s32.totalorder %s41, 1
      %p473 = por %p471, %p472
      %p474 = scmp.ne.s32.totalorder %s465, %s466
      %p475 = scmp.eq.s32.totalorder %s41, 0
      %p476 = por %p474, %p475
      %p477 = scmp.ne.s32.totalorder %s465, %s466
      %p478 = scmp.eq.s32.totalorder %s42, 1
      %p479 = por %p477, %p478
      %p481 = scmp.ne.s32.totalorder %s466, %s480
      %p482 = scmp.eq.s32.totalorder %s42, 0
      %p483 = por %p481, %p482
      %s485 = sadd.s32 %s484, 1
      %p488 = scmp.eq.s32.totalorder %s36, 1
      %p489 = scmp.ne.s32.totalorder %s484, %s486
      %p490 = scmp.eq.s32.totalorder %s36, 0
      %p491 = por %p489, %p490
      %p492 = scmp.ne.s32.totalorder %s484, %s486
      %p493 = scmp.eq.s32.totalorder %s41, 1
      %p494 = por %p492, %p493
      %p495 = scmp.ne.s32.totalorder %s486, %s487
      %p496 = scmp.eq.s32.totalorder %s41, 0
      %p497 = por %p495, %p496
      %p498 = scmp.ne.s32.totalorder %s486, %s487
      %p499 = scmp.eq.s32.totalorder %s42, 1
      %p500 = por %p498, %p499
      %p502 = scmp.ne.s32.totalorder %s487, %s501
      %p503 = scmp.eq.s32.totalorder %s42, 0
      %p504 = por %p502, %p503
      %s505 = ssub.s32 %s36, %s43
      %p506 = scmp.eq.s32.totalorder %s505, 0
      %s508 = sadd.s32 %s507, 1
      %s509 = scalar_select %p506, %s507, %s508
      %p512 = pneg %p506
      %p513 = scmp.eq.s32.totalorder %s36, 1
      %p514 = por %p512, %p513
      %p515 = scmp.ne.s32.totalorder %s507, %s510
      %p516 = scmp.eq.s32.totalorder %s36, 0
      %p517 = por %p515, %p516
      %p518 = scmp.ne.s32.totalorder %s507, %s510
      %p519 = scmp.eq.s32.totalorder %s41, 1
      %p520 = por %p518, %p519
      %p521 = scmp.ne.s32.totalorder %s510, %s511
      %p522 = scmp.eq.s32.totalorder %s41, 0
      %p523 = por %p521, %p522
      %p524 = scmp.ne.s32.totalorder %s510, %s511
      %p525 = scmp.eq.s32.totalorder %s42, 1
      %p526 = por %p524, %p525
      %p528 = scmp.ne.s32.totalorder %s511, %s527
      %p529 = scmp.eq.s32.totalorder %s42, 0
      %p530 = por %p528, %p529
      %s531 = ssub.s32 %s36, %s43
      %p532 = scmp.eq.s32.totalorder %s531, 0
      %s534 = sadd.s32 %s533, 1
      %s535 = scalar_select %p532, %s533, %s534
      %p538 = pneg %p532
      %p539 = scmp.eq.s32.totalorder %s36, 1
      %p540 = por %p538, %p539
      %p541 = scmp.ne.s32.totalorder %s533, %s536
      %p542 = scmp.eq.s32.totalorder %s36, 0
      %p543 = por %p541, %p542
      %p544 = scmp.ne.s32.totalorder %s533, %s536
      %p545 = scmp.eq.s32.totalorder %s41, 1
      %p546 = por %p544, %p545
      %p547 = scmp.ne.s32.totalorder %s536, %s537
      %p548 = scmp.eq.s32.totalorder %s41, 0
      %p549 = por %p547, %p548
      %p550 = scmp.ne.s32.totalorder %s536, %s537
      %p551 = scmp.eq.s32.totalorder %s42, 1
      %p552 = por %p550, %p551
      %p554 = scmp.ne.s32.totalorder %s537, %s553
      %p555 = scmp.eq.s32.totalorder %s42, 0
      %p556 = por %p554, %p555
      %p557 = scmp.le.s32.totalorder 1, %s36
      %p558 = scmp.lt.s32.totalorder %s36, 3
      %p559 = pnand %p557, %p558
      %p560 = pneg %p559
      // Predicated region
      $region9: #{_lambda_.1} parent=5 // pred_check
        _
      $region10: #{_lambda_.1} parent=5 // pred_check_branch
        %562 = sbr.rel (%p559) target = $region12
      $region11: #{_lambda_.1} parent=5 // pred_region
        %s563 = ssub.s32 %s36, 1
        // Predicated region
        $region13: #{_lambda_.1} parent=11 // pred_check
          %p564 = pneg %p161
        $region14: #{_lambda_.1} parent=11 // pred_check_branch
          %566 = sbr.rel (%p564) target = $region16
        $region15: #{_lambda_.1} parent=11 // pred_region
          %s568 = ssub.s32 128, 128
          %569 = vsyncadd [#allocation4], %s568
          %s571 = sshll.u32 [#allocation3], 4
          %s572 = int_to_ptr.vmem [resolvable:$true] %s571
          %574 = dma.hbm_to_vmem [thread:$0]  %s4, 128, %s572, [#allocation4]
        $region16: #{_lambda_.1} parent=11 // pred_fallthru
          _
        // Predicated region
        $region17: #{_lambda_.1} parent=11 // pred_check
          %p575 = pneg %p182
        $region18: #{_lambda_.1} parent=11 // pred_check_branch
          %577 = sbr.rel (%p575) target = $region20
        $region19: #{_lambda_.1} parent=11 // pred_region
          _
        $region20: #{_lambda_.1} parent=11 // pred_fallthru
          _
        // Predicated region
        $region21: #{_lambda_.1} parent=11 // pred_check
          %p578 = pneg %p203
        $region22: #{_lambda_.1} parent=11 // pred_check_branch
          %580 = sbr.rel (%p578) target = $region24
        $region23: #{_lambda_.1} parent=11 // pred_region
          _
        $region24: #{_lambda_.1} parent=11 // pred_fallthru
          _
        // Predicated region
        $region25: #{_lambda_.1} parent=11 // pred_check
          %p581 = pneg %p224
        $region26: #{_lambda_.1} parent=11 // pred_check_branch
          %583 = sbr.rel (%p581) target = $region28
        $region27: #{_lambda_.1} parent=11 // pred_region
          _
        $region28: #{_lambda_.1} parent=11 // pred_fallthru
          _
        // Predicated region
        $region29: #{_lambda_.1} parent=11 // pred_check
          %p584 = pneg %p245
        $region30: #{_lambda_.1} parent=11 // pred_check_branch
          %586 = sbr.rel (%p584) target = $region32
        $region31: #{_lambda_.1} parent=11 // pred_region
          %s588 = ssub.s32 1024, 1024
          %589 = vsyncadd [#allocation6], %s588
          %s590 = sshll.u32 [#allocation5], 4
          %s591 = int_to_ptr.vmem [resolvable:$true] %s590
          %596 = dma.hbm_to_vmem [thread:$0]  %s8, 1024, %s591, [#allocation6], 64, 64, 4
        $region32: #{_lambda_.1} parent=11 // pred_fallthru
          _
        // Predicated region
        $region33: #{_lambda_.1} parent=11 // pred_check
          %p597 = pneg %p266
        $region34: #{_lambda_.1} parent=11 // pred_check_branch
          %599 = sbr.rel (%p597) target = $region36
        $region35: #{_lambda_.1} parent=11 // pred_region
          %s601 = ssub.s32 1024, 1024
          %602 = vsyncadd [#allocation6], %s601
          %s603 = sshll.u32 [#allocation7], 4
          %s604 = int_to_ptr.vmem [resolvable:$true] %s603
          %609 = dma.hbm_to_vmem [thread:$0]  %s9, 1024, %s604, [#allocation6], 64, 64, 4
        $region36: #{_lambda_.1} parent=11 // pred_fallthru
          _
        // Predicated region
        $region37: #{_lambda_.1} parent=11 // pred_check
          %p610 = pneg %p287
        $region38: #{_lambda_.1} parent=11 // pred_check_branch
          %612 = sbr.rel (%p610) target = $region40
        $region39: #{_lambda_.1} parent=11 // pred_region
          %s614 = ssub.s32 2048, 2048
          %615 = vsyncadd [#allocation9], %s614
          %s616 = sshll.u32 [#allocation8], 4
          %s617 = int_to_ptr.vmem [resolvable:$true] %s616
          %622 = dma.hbm_to_vmem [thread:$0]  %s10, 2048, %s617, [#allocation9], 64, 64, 4
        $region40: #{_lambda_.1} parent=11 // pred_fallthru
          _
        // Predicated region
        $region41: #{_lambda_.1} parent=11 // pred_check
          %p623 = pneg %p308
        $region42: #{_lambda_.1} parent=11 // pred_check_branch
          %625 = sbr.rel (%p623) target = $region44
        $region43: #{_lambda_.1} parent=11 // pred_region
          %s627 = ssub.s32 512, 512
          %628 = vsyncadd [#allocation9], %s627
          %s629 = sshll.u32 [#allocation10], 4
          %s630 = int_to_ptr.vmem [resolvable:$true] %s629
          %635 = dma.hbm_to_vmem [thread:$0]  %s11, 512, %s630, [#allocation9], 128, 128, 8
        $region44: #{_lambda_.1} parent=11 // pred_fallthru
          _
        // Predicated region
        $region45: #{_lambda_.1} parent=11 // pred_check
          %p636 = pneg %p329
        $region46: #{_lambda_.1} parent=11 // pred_check_branch
          %638 = sbr.rel (%p636) target = $region48
        $region47: #{_lambda_.1} parent=11 // pred_region
          %s640 = ssub.s32 256, 256
          %641 = vsyncadd [#allocation12], %s640
          %s642 = sshll.u32 [#allocation11], 4
          %s643 = int_to_ptr.vmem [resolvable:$true] %s642
          %648 = dma.hbm_to_vmem [thread:$0]  %s12, 256, %s643, [#allocation12], 64, 64, 4
        $region48: #{_lambda_.1} parent=11 // pred_fallthru
          _
        // Predicated region
        $region49: #{_lambda_.1} parent=11 // pred_check
          %p649 = pneg %p350
        $region50: #{_lambda_.1} parent=11 // pred_check_branch
          %651 = sbr.rel (%p649) target = $region52
        $region51: #{_lambda_.1} parent=11 // pred_region
          %s653 = ssub.s32 64, 64
          %654 = vsyncadd [#allocation12], %s653
          %s656 = sshll.u32 [#allocation13], 4
          %s657 = int_to_ptr.vmem [resolvable:$true] %s656
          %659 = dma.hbm_to_vmem [thread:$0]  %s13, 64, %s657, [#allocation12]
        $region52: #{_lambda_.1} parent=11 // pred_fallthru
          _
        // Predicated region
        $region53: #{_lambda_.1} parent=11 // pred_check
          %p660 = pneg %p371
        $region54: #{_lambda_.1} parent=11 // pred_check_branch
          %662 = sbr.rel (%p660) target = $region56
        $region55: #{_lambda_.1} parent=11 // pred_region
          %s664 = ssub.s32 256, 256
          %665 = vsyncadd [#allocation15], %s664
          %s666 = sshll.u32 [#allocation14], 4
          %s667 = int_to_ptr.vmem [resolvable:$true] %s666
          %672 = dma.hbm_to_vmem [thread:$0]  %s14, 256, %s667, [#allocation15], 64, 64, 4
        $region56: #{_lambda_.1} parent=11 // pred_fallthru
          _
        // Predicated region
        $region57: #{_lambda_.1} parent=11 // pred_check
          %p673 = pneg %p392
        $region58: #{_lambda_.1} parent=11 // pred_check_branch
          %675 = sbr.rel (%p673) target = $region60
        $region59: #{_lambda_.1} parent=11 // pred_region
          _
        $region60: #{_lambda_.1} parent=11 // pred_fallthru
          _
        // Predicated region
        $region61: #{_lambda_.1} parent=11 // pred_check
          %p676 = pneg %p413
        $region62: #{_lambda_.1} parent=11 // pred_check_branch
          %678 = sbr.rel (%p676) target = $region64
        $region63: #{_lambda_.1} parent=11 // pred_region
          _
        $region64: #{_lambda_.1} parent=11 // pred_fallthru
          _
        // Predicated region
        $region65: #{_lambda_.1} parent=11 // pred_check
          %p679 = pneg %p434
        $region66: #{_lambda_.1} parent=11 // pred_check_branch
          %681 = sbr.rel (%p679) target = $region68
        $region67: #{_lambda_.1} parent=11 // pred_region
          %s683 = ssub.s32 256, 256
          %684 = vsyncadd [#allocation15], %s683
          %s685 = sshll.u32 [#allocation16], 4
          %s686 = int_to_ptr.vmem [resolvable:$true] %s685
          %691 = dma.hbm_to_vmem [thread:$0]  %s17, 256, %s686, [#allocation15], 64, 64, 4
        $region68: #{_lambda_.1} parent=11 // pred_fallthru
          _
        // Predicated region
        $region69: #{_lambda_.1} parent=11 // pred_check
          %p692 = pneg %p455
        $region70: #{_lambda_.1} parent=11 // pred_check_branch
          %694 = sbr.rel (%p692) target = $region72
        $region71: #{_lambda_.1} parent=11 // pred_region
          _
        $region72: #{_lambda_.1} parent=11 // pred_fallthru
          _
        // Predicated region
        $region73: #{_lambda_.1} parent=11 // pred_check
          %p695 = pneg %p476
        $region74: #{_lambda_.1} parent=11 // pred_check_branch
          %697 = sbr.rel (%p695) target = $region76
        $region75: #{_lambda_.1} parent=11 // pred_region
          _
        $region76: #{_lambda_.1} parent=11 // pred_fallthru
          _
        // Predicated region
        $region77: #{_lambda_.1} parent=11 // pred_check
          %p698 = pneg %p497
        $region78: #{_lambda_.1} parent=11 // pred_check_branch
          %700 = sbr.rel (%p698) target = $region80
        $region79: #{_lambda_.1} parent=11 // pred_region
          _
        $region80: #{_lambda_.1} parent=11 // pred_fallthru
          _
      $region12: #{_lambda_.1} parent=5 // pred_fallthru
        _
      %p701 = scmp.lt.s32.totalorder %s36, 2
      // Predicated region
      $region81: #{_lambda_.1} parent=5 // pred_check
        %p702 = pneg %p701
      $region82: #{_lambda_.1} parent=5 // pred_check_branch
        %704 = sbr.rel (%p702) target = $region84
      $region83: #{_lambda_.1} parent=5 // pred_region
        // Predicated region
        $region85: #{_lambda_.1} parent=83 // pred_check
          %p705 = pneg %p56
        $region86: #{_lambda_.1} parent=83 // pred_check_branch
          %707 = sbr.rel (%p705) target = $region88
        $region87: #{_lambda_.1} parent=83 // pred_region
          %p708 = scmp.lt.s32.totalorder %s36, 1
          %s709 = scalar_select %p708, %s36, 1
          %s710 = smul.addr %s709, 8
          %s711 = scalar_lea.vmem %s0, %s710
        $region88: #{_lambda_.1} parent=83 // pred_fallthru
          _
        // Predicated region
        $region89: #{_lambda_.1} parent=83 // pred_check
          %p712 = pneg %p82
        $region90: #{_lambda_.1} parent=83 // pred_check_branch
          %714 = sbr.rel (%p712) target = $region92
        $region91: #{_lambda_.1} parent=83 // pred_region
          %p715 = scmp.lt.s32.totalorder %s36, 1
          %s716 = scalar_select %p715, %s36, 1
          %s717 = scalar_lea.vmem %s1, %s716
        $region92: #{_lambda_.1} parent=83 // pred_fallthru
          _
        // Predicated region
        $region93: #{_lambda_.1} parent=83 // pred_check
          %p718 = pneg %p108
        $region94: #{_lambda_.1} parent=83 // pred_check_branch
          %720 = sbr.rel (%p718) target = $region96
        $region95: #{_lambda_.1} parent=83 // pred_region
          %p721 = scmp.lt.s32.totalorder %s36, 1
          %s722 = scalar_select %p721, %s36, 1
          %s723 = smul.addr %s722, 8
          %s724 = scalar_lea.vmem %s2, %s723
        $region96: #{_lambda_.1} parent=83 // pred_fallthru
          _
        // Predicated region
        $region97: #{_lambda_.1} parent=83 // pred_check
          %p725 = pneg %p134
        $region98: #{_lambda_.1} parent=83 // pred_check_branch
          %727 = sbr.rel (%p725) target = $region100
        $region99: #{_lambda_.1} parent=83 // pred_region
          %p728 = scmp.lt.s32.totalorder %s36, 1
          %s729 = scalar_select %p728, %s36, 1
          %s730 = smul.addr %s729, 8
          %s731 = scalar_lea.vmem %s3, %s730
        $region100: #{_lambda_.1} parent=83 // pred_fallthru
          _
      $region84: #{_lambda_.1} parent=5 // pred_fallthru
        _
      %p732 = scmp.le.s32.totalorder 1, %s36
      %p733 = scmp.lt.s32.totalorder %s36, 3
      %p734 = pnand %p732, %p733
      %p735 = pneg %p734
      // Predicated region
      $region101: #{_lambda_.1} parent=5 // pred_check
        _
      $region102: #{_lambda_.1} parent=5 // pred_check_branch
        %737 = sbr.rel (%p734) target = $region104
      $region103: #{_lambda_.1} parent=5 // pred_region
        %s738 = ssub.s32 %s36, 1
        // Predicated region
        $region105: #{_lambda_.1} parent=103 // pred_check
          %p739 = pneg %p161
        $region106: #{_lambda_.1} parent=103 // pred_check_branch
          %741 = sbr.rel (%p739) target = $region108
        $region107: #{_lambda_.1} parent=103 // pred_region
          %742 = dma.done [#allocation4], 128
        $region108: #{_lambda_.1} parent=103 // pred_fallthru
          _
        // Predicated region
        $region109: #{_lambda_.1} parent=103 // pred_check
          %p743 = pneg %p245
        $region110: #{_lambda_.1} parent=103 // pred_check_branch
          %745 = sbr.rel (%p743) target = $region112
        $region111: #{_lambda_.1} parent=103 // pred_region
          %746 = dma.done [#allocation6], 1024
        $region112: #{_lambda_.1} parent=103 // pred_fallthru
          _
        // Predicated region
        $region113: #{_lambda_.1} parent=103 // pred_check
          %p747 = pneg %p266
        $region114: #{_lambda_.1} parent=103 // pred_check_branch
          %749 = sbr.rel (%p747) target = $region116
        $region115: #{_lambda_.1} parent=103 // pred_region
          %750 = dma.done [#allocation6], 1024
        $region116: #{_lambda_.1} parent=103 // pred_fallthru
          _
        // Predicated region
        $region117: #{_lambda_.1} parent=103 // pred_check
          %p751 = pneg %p287
        $region118: #{_lambda_.1} parent=103 // pred_check_branch
          %753 = sbr.rel (%p751) target = $region120
        $region119: #{_lambda_.1} parent=103 // pred_region
          %754 = dma.done [#allocation9], 2048
        $region120: #{_lambda_.1} parent=103 // pred_fallthru
          _
        // Predicated region
        $region121: #{_lambda_.1} parent=103 // pred_check
          %p755 = pneg %p308
        $region122: #{_lambda_.1} parent=103 // pred_check_branch
          %757 = sbr.rel (%p755) target = $region124
        $region123: #{_lambda_.1} parent=103 // pred_region
          %758 = dma.done [#allocation9], 512
        $region124: #{_lambda_.1} parent=103 // pred_fallthru
          _
        // Predicated region
        $region125: #{_lambda_.1} parent=103 // pred_check
          %p759 = pneg %p329
        $region126: #{_lambda_.1} parent=103 // pred_check_branch
          %761 = sbr.rel (%p759) target = $region128
        $region127: #{_lambda_.1} parent=103 // pred_region
          %762 = dma.done [#allocation12], 256
        $region128: #{_lambda_.1} parent=103 // pred_fallthru
          _
        // Predicated region
        $region129: #{_lambda_.1} parent=103 // pred_check
          %p763 = pneg %p350
        $region130: #{_lambda_.1} parent=103 // pred_check_branch
          %765 = sbr.rel (%p763) target = $region132
        $region131: #{_lambda_.1} parent=103 // pred_region
          %766 = dma.done [#allocation12], 64
        $region132: #{_lambda_.1} parent=103 // pred_fallthru
          _
        // Predicated region
        $region133: #{_lambda_.1} parent=103 // pred_check
          %p767 = pneg %p371
        $region134: #{_lambda_.1} parent=103 // pred_check_branch
          %769 = sbr.rel (%p767) target = $region136
        $region135: #{_lambda_.1} parent=103 // pred_region
          %770 = dma.done [#allocation15], 256
        $region136: #{_lambda_.1} parent=103 // pred_fallthru
          _
        // Predicated region
        $region137: #{_lambda_.1} parent=103 // pred_check
          %p771 = pneg %p434
        $region138: #{_lambda_.1} parent=103 // pred_check_branch
          %773 = sbr.rel (%p771) target = $region140
        $region139: #{_lambda_.1} parent=103 // pred_region
          %774 = dma.done [#allocation15], 256
        $region140: #{_lambda_.1} parent=103 // pred_fallthru
          _
        %p775 = scmp.lt.s32.totalorder %s41, 1
        %s776 = scalar_select %p775, %s41, 1
        %s777 = smul.addr %s776, 8
        %s778 = scalar_lea.vmem %s0, %s777
        %p779 = pneg %p62
        %p780 = pneg %p59
        %p781 = scmp.lt.s32.totalorder %s41, 1
        %s782 = scalar_select %p781, %s41, 1
        %s783 = scalar_lea.vmem %s1, %s782
        %p784 = pneg %p88
        %p785 = pneg %p85
        %p786 = scmp.lt.s32.totalorder %s41, 1
        %s787 = scalar_select %p786, %s41, 1
        %s788 = smul.addr %s787, 8
        %s789 = scalar_lea.vmem %s2, %s788
        %p790 = pneg %p114
        %p791 = pneg %p111
        %p792 = scmp.lt.s32.totalorder %s41, 1
        %s793 = scalar_select %p792, %s41, 1
        %s794 = smul.addr %s793, 8
        %s795 = scalar_lea.vmem %s3, %s794
        %p796 = pneg %p140
        %p797 = pneg %p137
        %p798 = pneg %p161
        %p799 = pneg %p158
        %p800 = pneg %p182
        %p801 = pneg %p179
        %p802 = pneg %p203
        %p803 = pneg %p200
        %p804 = pneg %p224
        %p805 = pneg %p221
        %p806 = pneg %p245
        %p807 = pneg %p242
        %p808 = pneg %p266
        %p809 = pneg %p263
        %p810 = pneg %p287
        %p811 = pneg %p284
        %p812 = pneg %p308
        %p813 = pneg %p305
        %p814 = pneg %p329
        %p815 = pneg %p326
        %p816 = pneg %p350
        %p817 = pneg %p347
        %p818 = pneg %p371
        %p819 = pneg %p368
        %p820 = pneg %p392
        %p821 = pneg %p389
        %p822 = pneg %p413
        %p823 = pneg %p410
        %p824 = pneg %p434
        %p825 = pneg %p431
        %p826 = pneg %p455
        %p827 = pneg %p452
        %p828 = pneg %p476
        %p829 = pneg %p473
        %p830 = pneg %p497
        %p831 = pneg %p494
        %p832 = pneg %p523
        %p833 = pneg %p520
        %p834 = scmp.lt.s32.totalorder %s41, 1
        %s835 = scalar_select %p834, %s41, 1
        %s836 = smul.addr %s835, 8
        %s837 = scalar_lea.vmem %s21, %s836
        %p838 = pneg %p549
        %p839 = pneg %p546
        %p840 = scmp.lt.s32.totalorder %s41, 1
        %s841 = scalar_select %p840, %s41, 1
        %s842 = scalar_lea.vmem %s22, %s841
        %p843 = scmp.lt.s32.totalorder %s41, 1
        %s844 = scalar_select %p843, %s41, 1
        %s845 = smul.addr %s844, 8
        %s846 = scalar_lea.vmem %s0, %s845
        %p847 = scmp.lt.s32.totalorder %s41, 1
        %s848 = scalar_select %p847, %s41, 1
        %s849 = scalar_lea.vmem %s1, %s848
        %p850 = scmp.lt.s32.totalorder %s41, 1
        %s851 = scalar_select %p850, %s41, 1
        %s852 = smul.addr %s851, 8
        %s853 = scalar_lea.vmem %s2, %s852
        %p854 = scmp.lt.s32.totalorder %s41, 1
        %s855 = scalar_select %p854, %s41, 1
        %s856 = smul.addr %s855, 8
        %s857 = scalar_lea.vmem %s3, %s856
        %p858 = scmp.lt.s32.totalorder %s41, 1
        %s859 = scalar_select %p858, %s41, 1
        %s860 = smul.addr %s859, 8
        %s861 = scalar_lea.vmem %s21, %s860
        %p862 = scmp.lt.s32.totalorder %s41, 1
        %s863 = scalar_select %p862, %s41, 1
        %s864 = scalar_lea.vmem %s22, %s863
        %v866 = vld [vmem:[%s846] sm:$0xff]
        %v867 = vld [vmem:[%s849] sm:$0x1]
        %v868 = vld [vmem:[%s5] sm:$0x3]
        %vm869 = vcmask 261120
        %v870 = vsel %vm869, %v866, 0.0
        %871 = vadd.xlane.f32.xlu0 %v870
        %v872 = vpop.xlane.xlu0 %871
        %v873 = vrcp.pop 32.0
        %v874 = vmul.f32 %v872, %v873
        %v875 = vsub.f32 %v866, %v874
        %v876 = vmul.f32 %v875, %v875
        %v877 = vsel %vm869, %v876, 0.0
        %878 = vadd.xlane.f32.xlu0 %v877
        %v879 = vpop.xlane.xlu0 %878
        %v880 = vmul.f32 %v879, %v873
        %v881 = vadd.f32 %v880, 1e-12
        %v882 = vrsqrt.pop %v881
        %v883 = vmul.f32 %v875, %v882
        %v884 = vlaneseq
        %v885 = vshrl.u32 %v884, 7
        %v886 = vsub.s32 0, %v885
        %v887 = vrot.slane %v868, %v886
        %v888 = vmul.f32 %v883, %v887
        %v889 = vlaneseq
        %v890 = vshrl.u32 %v889, 7
        %v891 = vsub.s32 1, %v890
        %v892 = vrot.slane %v868, %v891
        %v893 = vadd.f32 %v888, %v892
        %v894 = vld [vmem:[#allocation10] sm:$0x7f]
        %v895 = vpack.c.bf16 %v893, %v893
        %v896 = vld [vmem:[%s6] sm:$0xf]
        %v897 = vld [vmem:[%s6 + $0x4] sm:$0xf]
        %v898 = vld [vmem:[%s6 + $0x8] sm:$0xf]
        %v899 = vld [vmem:[%s6 + $0xc] sm:$0xf]
        %v900 = vld [vmem:[%s7] sm:$0x1]
        %v902 = vlaneseq
        %v903 = vshrl.u32 %v902, 7
        %v904 = vsub.s32 0, %v903
        %v905 = vrot.slane %v900, %v904
        %v911 = vunpack.c.l.b16 %v896
        %v912 = vunpack.c.l.b16 %v897
        %v913 = vunpack.c.l.b16 %v898
        %v914 = vunpack.c.l.b16 %v899
        %v915 = vpack.c.b16 %v912, %v911
        %v916 = vpack.c.b16 %v914, %v913
        %v920 = vsel %vm869, %v895, 0
        %922 = vmatprep.subr.bf16.mxu0 0
        %923 = vmatpush1.bf16.msra.mxu0 %v915
        %924 = vmatprep.subr.bf16.mxu0 0
        %925 = vmatpush1.bf16.msra.mxu0 %v916
        %926 = vmatprep.subr.bf16.mxu0 0
        %927 = vmatpush1.bf16.msra.mxu0 0
        %928 = vmatprep.subr.bf16.mxu0 0
        %929 = vmatpush1.bf16.msra.mxu0 0
        %930 = vmatprep.subr.bf16.mxu0 0
        %931 = vmatpush1.bf16.msra.mxu0 0
        %932 = vmatprep.subr.bf16.mxu0 0
        %933 = vmatpush1.bf16.msra.mxu0 0
        %934 = vmatprep.subr.bf16.mxu0 0
        %935 = vmatpush1.bf16.msra.mxu0 0
        %936 = vmatprep.subr.bf16.mxu0 0
        %937 = vmatpush1.bf16.msra.mxu0 0
        %938 = vmatprep.subr.bf16.mxu0 0
        %939 = vmatpush1.bf16.msra.mxu0 0
        %940 = vmatprep.subr.bf16.mxu0 0
        %941 = vmatpush1.bf16.msra.mxu0 0
        %942 = vmatprep.subr.bf16.mxu0 0
        %943 = vmatpush1.bf16.msra.mxu0 0
        %944 = vmatprep.subr.bf16.mxu0 0
        %945 = vmatpush1.bf16.msra.mxu0 0
        %946 = vmatprep.subr.bf16.mxu0 0
        %947 = vmatpush1.bf16.msra.mxu0 0
        %948 = vmatprep.subr.bf16.mxu0 0
        %949 = vmatpush1.bf16.msra.mxu0 0
        %950 = vmatprep.subr.bf16.mxu0 0
        %951 = vmatpush1.bf16.msra.mxu0 0
        %952 = vmatprep.subr.bf16.mxu0 0
        %953 = vmatpush1.bf16.msra.mxu0 0
        %954 = vmatprep.mubr.bf16.mxu0 0
        %955 = vmatmul.mubr.bf16.gmra.mrb[0].mxu0 %v920
        %v956 = vpop.f32.mrb[0].mxu0
        %v957 = vadd.f32 %v905, %v956
        %v958 = vpop.f32.mrb[0].mxu0
        %v959 = vpop.f32.mrb[0].mxu0
        %v960 = vpop.f32.mrb[0].mxu0
        %961 = vdwg.mxu0
        %s962 = scalar_lea.vmem %s6, 16
        %v963 = vld [vmem:[%s962] sm:$0xf]
        %v964 = vld [vmem:[%s962 + $0x4] sm:$0xf]
        %v965 = vld [vmem:[%s962 + $0x8] sm:$0xf]
        %v966 = vld [vmem:[%s962 + $0xc] sm:$0xf]
        %s967 = scalar_lea.vmem %s7, 1
        %v968 = vld [vmem:[%s967] sm:$0x1]
        %v970 = vlaneseq
        %v971 = vshrl.u32 %v970, 7
        %v972 = vsub.s32 0, %v971
        %v973 = vrot.slane %v968, %v972
        %v979 = vunpack.c.l.b16 %v963
        %v980 = vunpack.c.l.b16 %v964
        %v981 = vunpack.c.l.b16 %v965
        %v982 = vunpack.c.l.b16 %v966
        %v983 = vpack.c.b16 %v980, %v979
        %v984 = vpack.c.b16 %v982, %v981
        %987 = vmatprep.subr.bf16.mxu0 0
        %988 = vmatpush1.bf16.msra.mxu0 %v983
        %989 = vmatprep.subr.bf16.mxu0 0
        %990 = vmatpush1.bf16.msra.mxu0 %v984
        %991 = vmatprep.subr.bf16.mxu0 0
        %992 = vmatpush1.bf16.msra.mxu0 0
        %993 = vmatprep.subr.bf16.mxu0 0
        %994 = vmatpush1.bf16.msra.mxu0 0
        %995 = vmatprep.subr.bf16.mxu0 0
        %996 = vmatpush1.bf16.msra.mxu0 0
        %997 = vmatprep.subr.bf16.mxu0 0
        %998 = vmatpush1.bf16.msra.mxu0 0
        %999 = vmatprep.subr.bf16.mxu0 0
        %1000 = vmatpush1.bf16.msra.mxu0 0
        %1001 = vmatprep.subr.bf16.mxu0 0
        %1002 = vmatpush1.bf16.msra.mxu0 0
        %1003 = vmatprep.subr.bf16.mxu0 0
        %1004 = vmatpush1.bf16.msra.mxu0 0
        %1005 = vmatprep.subr.bf16.mxu0 0
        %1006 = vmatpush1.bf16.msra.mxu0 0
        %1007 = vmatprep.subr.bf16.mxu0 0
        %1008 = vmatpush1.bf16.msra.mxu0 0
        %1009 = vmatprep.subr.bf16.mxu0 0
        %1010 = vmatpush1.bf16.msra.mxu0 0
        %1011 = vmatprep.subr.bf16.mxu0 0
        %1012 = vmatpush1.bf16.msra.mxu0 0
        %1013 = vmatprep.subr.bf16.mxu0 0
        %1014 = vmatpush1.bf16.msra.mxu0 0
        %1015 = vmatprep.subr.bf16.mxu0 0
        %1016 = vmatpush1.bf16.msra.mxu0 0
        %1017 = vmatprep.subr.bf16.mxu0 0
        %1018 = vmatpush1.bf16.msra.mxu0 0
        %1019 = vmatprep.mubr.bf16.mxu0 0
        %1020 = vmatmul.mubr.bf16.gmra.mrb[0].mxu0 %v920
        %v1021 = vpop.f32.mrb[0].mxu0
        %v1022 = vadd.f32 %v973, %v1021
        %v1023 = vpop.f32.mrb[0].mxu0
        %v1024 = vpop.f32.mrb[0].mxu0
        %v1025 = vpop.f32.mrb[0].mxu0
        %1026 = vdwg.mxu0
        %s1027 = scalar_lea.vmem %s6, 32
        %v1028 = vld [vmem:[%s1027] sm:$0xf]
        %v1029 = vld [vmem:[%s1027 + $0x4] sm:$0xf]
        %v1030 = vld [vmem:[%s1027 + $0x8] sm:$0xf]
        %v1031 = vld [vmem:[%s1027 + $0xc] sm:$0xf]
        %s1032 = scalar_lea.vmem %s7, 2
        %v1033 = vld [vmem:[%s1032] sm:$0x1]
        %v1035 = vlaneseq
        %v1036 = vshrl.u32 %v1035, 7
        %v1037 = vsub.s32 0, %v1036
        %v1038 = vrot.slane %v1033, %v1037
        %v1044 = vunpack.c.l.b16 %v1028
        %v1045 = vunpack.c.l.b16 %v1029
        %v1046 = vunpack.c.l.b16 %v1030
        %v1047 = vunpack.c.l.b16 %v1031
        %v1048 = vpack.c.b16 %v1045, %v1044
        %v1049 = vpack.c.b16 %v1047, %v1046
        %1052 = vmatprep.subr.bf16.mxu0 0
        %1053 = vmatpush1.bf16.msra.mxu0 %v1048
        %1054 = vmatprep.subr.bf16.mxu0 0
        %1055 = vmatpush1.bf16.msra.mxu0 %v1049
        %1056 = vmatprep.subr.bf16.mxu0 0
        %1057 = vmatpush1.bf16.msra.mxu0 0
        %1058 = vmatprep.subr.bf16.mxu0 0
        %1059 = vmatpush1.bf16.msra.mxu0 0
        %1060 = vmatprep.subr.bf16.mxu0 0
        %1061 = vmatpush1.bf16.msra.mxu0 0
        %1062 = vmatprep.subr.bf16.mxu0 0
        %1063 = vmatpush1.bf16.msra.mxu0 0
        %1064 = vmatprep.subr.bf16.mxu0 0
        %1065 = vmatpush1.bf16.msra.mxu0 0
        %1066 = vmatprep.subr.bf16.mxu0 0
        %1067 = vmatpush1.bf16.msra.mxu0 0
        %1068 = vmatprep.subr.bf16.mxu0 0
        %1069 = vmatpush1.bf16.msra.mxu0 0
        %1070 = vmatprep.subr.bf16.mxu0 0
        %1071 = vmatpush1.bf16.msra.mxu0 0
        %1072 = vmatprep.subr.bf16.mxu0 0
        %1073 = vmatpush1.bf16.msra.mxu0 0
        %1074 = vmatprep.subr.bf16.mxu0 0
        %1075 = vmatpush1.bf16.msra.mxu0 0
        %1076 = vmatprep.subr.bf16.mxu0 0
        %1077 = vmatpush1.bf16.msra.mxu0 0
        %1078 = vmatprep.subr.bf16.mxu0 0
        %1079 = vmatpush1.bf16.msra.mxu0 0
        %1080 = vmatprep.subr.bf16.mxu0 0
        %1081 = vmatpush1.bf16.msra.mxu0 0
        %1082 = vmatprep.subr.bf16.mxu0 0
        %1083 = vmatpush1.bf16.msra.mxu0 0
        %1084 = vmatprep.mubr.bf16.mxu0 0
        %1085 = vmatmul.mubr.bf16.gmra.mrb[0].mxu0 %v920
        %v1086 = vpop.f32.mrb[0].mxu0
        %v1087 = vadd.f32 %v1038, %v1086
        %v1088 = vpop.f32.mrb[0].mxu0
        %v1089 = vpop.f32.mrb[0].mxu0
        %v1090 = vpop.f32.mrb[0].mxu0
        %1091 = vdwg.mxu0
        %v1092 = vpack.c.bf16 %v957, %v957
        %v1093 = vpack.c.bf16 %v1022, %v1022
        %vm1094 = vcmask 130048
        %v1096 = vsel %vm1094, %v1092, 0
        %v1099 = vsel %vm1094, %v1093, 0
        %1101 = vmatprep.subr.bf16.mxu0 0
        %1102 = vmatpush1.bf16.xpose.msra.mxu0 %v1099
        %1103 = vmatprep.subr.bf16.mxu0 0
        %1104 = vmatpush1.bf16.xpose.msra.mxu0 0
        %1105 = vmatprep.subr.bf16.mxu0 0
        %1106 = vmatpush1.bf16.xpose.msra.mxu0 0
        %1107 = vmatprep.subr.bf16.mxu0 0
        %1108 = vmatpush1.bf16.xpose.msra.mxu0 0
        %1109 = vmatprep.subr.bf16.mxu0 0
        %1110 = vmatpush1.bf16.xpose.msra.mxu0 0
        %1111 = vmatprep.subr.bf16.mxu0 0
        %1112 = vmatpush1.bf16.xpose.msra.mxu0 0
        %1113 = vmatprep.subr.bf16.mxu0 0
        %1114 = vmatpush1.bf16.xpose.msra.mxu0 0
        %1115 = vmatprep.subr.bf16.mxu0 0
        %1116 = vmatpush1.bf16.xpose.msra.mxu0 0
        %1117 = vmatprep.subr.bf16.mxu0 0
        %1118 = vmatpush1.bf16.xpose.msra.mxu0 0
        %1119 = vmatprep.subr.bf16.mxu0 0
        %1120 = vmatpush1.bf16.xpose.msra.mxu0 0
        %1121 = vmatprep.subr.bf16.mxu0 0
        %1122 = vmatpush1.bf16.xpose.msra.mxu0 0
        %1123 = vmatprep.subr.bf16.mxu0 0
        %1124 = vmatpush1.bf16.xpose.msra.mxu0 0
        %1125 = vmatprep.subr.bf16.mxu0 0
        %1126 = vmatpush1.bf16.xpose.msra.mxu0 0
        %1127 = vmatprep.subr.bf16.mxu0 0
        %1128 = vmatpush1.bf16.xpose.msra.mxu0 0
        %1129 = vmatprep.subr.bf16.mxu0 0
        %1130 = vmatpush1.bf16.xpose.msra.mxu0 0
        %1131 = vmatprep.subr.bf16.mxu0 0
        %1132 = vmatpush1.bf16.xpose.msra.mxu0 0
        %1133 = vmatprep.mubr.bf16.mxu0 0
        %1134 = vmatmul.mubr.bf16.gmra.mrb[0].mxu0 %v1096
        %v1135 = vpop.f32.mrb[0].mxu0
        %v1136 = vadd.f32 0.0, %v1135
        %v1137 = vpop.f32.mrb[0].mxu0
        %v1138 = vpop.f32.mrb[0].mxu0
        %v1139 = vpop.f32.mrb[0].mxu0
        %1140 = vdwg.mxu0
        %v1141 = vmul.f32 %v1136, 0.25
        %v1143 = vlaneseq
        %v1144 = vshrl.u32 %v1143, 7
        %v1145 = vsub.s32 0, %v1144
        %v1146 = vrot.slane %v867, %v1145
        %v1148 = vadd.f32 %v1141, %v1146
        %vm1149 = vcmask 64512
        %v1150 = vsel %vm1149, %v1148, -inf
        %1151 = vmax.xlane.f32.xlu0 %v1150
        %v1152 = vpop.xlane.xlu0 %1151
        %v1153 = vsub.f32 %v1148, %v1152
        %v1154 = vmul.f32 %v1153, 1.442695
        %v1155 = vpow.pop %v1154
        %v1156 = vsel %vm1149, %v1155, 0.0
        %1157 = vadd.xlane.f32.xlu0 %v1156
        %v1158 = vpop.xlane.xlu0 %1157
        %v1159 = vrcp.pop %v1158
        %v1160 = vmul.f32 %v1155, %v1159
        %v1161 = vpack.c.bf16 %v1160, %v1160
        %v1162 = vpack.c.bf16 %v1087, %v1087
        %v1164 = vsel %vm1149, %v1161, 0
        %vm1166 = vcmask 1043456
        %v1168 = vsel %vm1166, %v1162, 0
        %1170 = vmatprep.subr.bf16.mxu0 0
        %1171 = vmatpush1.bf16.msra.mxu0 %v1168
        %1172 = vmatprep.subr.bf16.mxu0 0
        %1173 = vmatpush1.bf16.msra.mxu0 0
        %1174 = vmatprep.subr.bf16.mxu0 0
        %1175 = vmatpush1.bf16.msra.mxu0 0
        %1176 = vmatprep.subr.bf16.mxu0 0
        %1177 = vmatpush1.bf16.msra.mxu0 0
        %1178 = vmatprep.subr.bf16.mxu0 0
        %1179 = vmatpush1.bf16.msra.mxu0 0
        %1180 = vmatprep.subr.bf16.mxu0 0
        %1181 = vmatpush1.bf16.msra.mxu0 0
        %1182 = vmatprep.subr.bf16.mxu0 0
        %1183 = vmatpush1.bf16.msra.mxu0 0
        %1184 = vmatprep.subr.bf16.mxu0 0
        %1185 = vmatpush1.bf16.msra.mxu0 0
        %1186 = vmatprep.subr.bf16.mxu0 0
        %1187 = vmatpush1.bf16.msra.mxu0 0
        %1188 = vmatprep.subr.bf16.mxu0 0
        %1189 = vmatpush1.bf16.msra.mxu0 0
        %1190 = vmatprep.subr.bf16.mxu0 0
        %1191 = vmatpush1.bf16.msra.mxu0 0
        %1192 = vmatprep.subr.bf16.mxu0 0
        %1193 = vmatpush1.bf16.msra.mxu0 0
        %1194 = vmatprep.subr.bf16.mxu0 0
        %1195 = vmatpush1.bf16.msra.mxu0 0
        %1196 = vmatprep.subr.bf16.mxu0 0
        %1197 = vmatpush1.bf16.msra.mxu0 0
        %1198 = vmatprep.subr.bf16.mxu0 0
        %1199 = vmatpush1.bf16.msra.mxu0 0
        %1200 = vmatprep.subr.bf16.mxu0 0
        %1201 = vmatpush1.bf16.msra.mxu0 0
        %1202 = vmatprep.mubr.bf16.mxu0 0
        %1203 = vmatmul.mubr.bf16.gmra.mrb[0].mxu0 %v1164
        %v1204 = vpop.f32.mrb[0].mxu0
        %v1205 = vadd.f32 0.0, %v1204
        %v1206 = vpop.f32.mrb[0].mxu0
        %v1207 = vpop.f32.mrb[0].mxu0
        %v1208 = vpop.f32.mrb[0].mxu0
        %1209 = vdwg.mxu0
        %v1210 = vpack.c.bf16 %v1205, %v1205
        %v1211 = vld [vmem:[#allocation5] sm:$0xf]
        %v1212 = vld [vmem:[#allocation5 + $0x4] sm:$0xf]
        %s1213 = scalar_lea.vmem %s6, 48
        %v1214 = vld [vmem:[%s1213] sm:$0xf]
        %v1215 = vld [vmem:[%s1213 + $0x4] sm:$0xf]
        %v1216 = vld [vmem:[%s1213 + $0x8] sm:$0xf]
        %v1217 = vld [vmem:[%s1213 + $0xc] sm:$0xf]
        %s1218 = scalar_lea.vmem %s7, 3
        %v1219 = vld [vmem:[%s1218] sm:$0x1]
        %v1221 = vlaneseq
        %v1222 = vshrl.u32 %v1221, 7
        %v1223 = vsub.s32 0, %v1222
        %v1224 = vrot.slane %v1219, %v1223
        %v1230 = vunpack.c.l.b16 %v1214
        %v1231 = vunpack.c.l.b16 %v1215
        %v1232 = vunpack.c.l.b16 %v1216
        %v1233 = vunpack.c.l.b16 %v1217
        %v1234 = vpack.c.b16 %v1231, %v1230
        %v1235 = vpack.c.b16 %v1233, %v1232
        %1238 = vmatprep.subr.bf16.mxu0 0
        %1239 = vmatpush1.bf16.msra.mxu0 %v1234
        %1240 = vmatprep.subr.bf16.mxu0 0
        %1241 = vmatpush1.bf16.msra.mxu0 %v1235
        %1242 = vmatprep.subr.bf16.mxu0 0
        %1243 = vmatpush1.bf16.msra.mxu0 0
        %1244 = vmatprep.subr.bf16.mxu0 0
        %1245 = vmatpush1.bf16.msra.mxu0 0
        %1246 = vmatprep.subr.bf16.mxu0 0
        %1247 = vmatpush1.bf16.msra.mxu0 0
        %1248 = vmatprep.subr.bf16.mxu0 0
        %1249 = vmatpush1.bf16.msra.mxu0 0
        %1250 = vmatprep.subr.bf16.mxu0 0
        %1251 = vmatpush1.bf16.msra.mxu0 0
        %1252 = vmatprep.subr.bf16.mxu0 0
        %1253 = vmatpush1.bf16.msra.mxu0 0
        %1254 = vmatprep.subr.bf16.mxu0 0
        %1255 = vmatpush1.bf16.msra.mxu0 0
        %1256 = vmatprep.subr.bf16.mxu0 0
        %1257 = vmatpush1.bf16.msra.mxu0 0
        %1258 = vmatprep.subr.bf16.mxu0 0
        %1259 = vmatpush1.bf16.msra.mxu0 0
        %1260 = vmatprep.subr.bf16.mxu0 0
        %1261 = vmatpush1.bf16.msra.mxu0 0
        %1262 = vmatprep.subr.bf16.mxu0 0
        %1263 = vmatpush1.bf16.msra.mxu0 0
        %1264 = vmatprep.subr.bf16.mxu0 0
        %1265 = vmatpush1.bf16.msra.mxu0 0
        %1266 = vmatprep.subr.bf16.mxu0 0
        %1267 = vmatpush1.bf16.msra.mxu0 0
        %1268 = vmatprep.subr.bf16.mxu0 0
        %1269 = vmatpush1.bf16.msra.mxu0 0
        %1270 = vmatprep.mubr.bf16.mxu0 0
        %1271 = vmatmul.mubr.bf16.gmra.mrb[0].mxu0 %v920
        %v1272 = vpop.f32.mrb[0].mxu0
        %v1273 = vadd.f32 %v1224, %v1272
        %v1274 = vpop.f32.mrb[0].mxu0
        %v1275 = vpop.f32.mrb[0].mxu0
        %v1276 = vpop.f32.mrb[0].mxu0
        %1277 = vdwg.mxu0
        %s1278 = scalar_lea.vmem %s6, 64
        %v1279 = vld [vmem:[%s1278] sm:$0xf]
        %v1280 = vld [vmem:[%s1278 + $0x4] sm:$0xf]
        %v1281 = vld [vmem:[%s1278 + $0x8] sm:$0xf]
        %v1282 = vld [vmem:[%s1278 + $0xc] sm:$0xf]
        %s1283 = scalar_lea.vmem %s7, 4
        %v1284 = vld [vmem:[%s1283] sm:$0x1]
        %v1286 = vlaneseq
        %v1287 = vshrl.u32 %v1286, 7
        %v1288 = vsub.s32 0, %v1287
        %v1289 = vrot.slane %v1284, %v1288
        %v1295 = vunpack.c.l.b16 %v1279
        %v1296 = vunpack.c.l.b16 %v1280
        %v1297 = vunpack.c.l.b16 %v1281
        %v1298 = vunpack.c.l.b16 %v1282
        %v1299 = vpack.c.b16 %v1296, %v1295
        %v1300 = vpack.c.b16 %v1298, %v1297
        %1303 = vmatprep.subr.bf16.mxu0 0
        %1304 = vmatpush1.bf16.msra.mxu0 %v1299
        %1305 = vmatprep.subr.bf16.mxu0 0
        %1306 = vmatpush1.bf16.msra.mxu0 %v1300
        %1307 = vmatprep.subr.bf16.mxu0 0
        %1308 = vmatpush1.bf16.msra.mxu0 0
        %1309 = vmatprep.subr.bf16.mxu0 0
        %1310 = vmatpush1.bf16.msra.mxu0 0
        %1311 = vmatprep.subr.bf16.mxu0 0
        %1312 = vmatpush1.bf16.msra.mxu0 0
        %1313 = vmatprep.subr.bf16.mxu0 0
        %1314 = vmatpush1.bf16.msra.mxu0 0
        %1315 = vmatprep.subr.bf16.mxu0 0
        %1316 = vmatpush1.bf16.msra.mxu0 0
        %1317 = vmatprep.subr.bf16.mxu0 0
        %1318 = vmatpush1.bf16.msra.mxu0 0
        %1319 = vmatprep.subr.bf16.mxu0 0
        %1320 = vmatpush1.bf16.msra.mxu0 0
        %1321 = vmatprep.subr.bf16.mxu0 0
        %1322 = vmatpush1.bf16.msra.mxu0 0
        %1323 = vmatprep.subr.bf16.mxu0 0
        %1324 = vmatpush1.bf16.msra.mxu0 0
        %1325 = vmatprep.subr.bf16.mxu0 0
        %1326 = vmatpush1.bf16.msra.mxu0 0
        %1327 = vmatprep.subr.bf16.mxu0 0
        %1328 = vmatpush1.bf16.msra.mxu0 0
        %1329 = vmatprep.subr.bf16.mxu0 0
        %1330 = vmatpush1.bf16.msra.mxu0 0
        %1331 = vmatprep.subr.bf16.mxu0 0
        %1332 = vmatpush1.bf16.msra.mxu0 0
        %1333 = vmatprep.subr.bf16.mxu0 0
        %1334 = vmatpush1.bf16.msra.mxu0 0
        %1335 = vmatprep.mubr.bf16.mxu0 0
        %1336 = vmatmul.mubr.bf16.gmra.mrb[0].mxu0 %v920
        %v1337 = vpop.f32.mrb[0].mxu0
        %v1338 = vadd.f32 %v1289, %v1337
        %v1339 = vpop.f32.mrb[0].mxu0
        %v1340 = vpop.f32.mrb[0].mxu0
        %v1341 = vpop.f32.mrb[0].mxu0
        %1342 = vdwg.mxu0
        %s1343 = scalar_lea.vmem %s6, 80
        %v1344 = vld [vmem:[%s1343] sm:$0xf]
        %v1345 = vld [vmem:[%s1343 + $0x4] sm:$0xf]
        %v1346 = vld [vmem:[%s1343 + $0x8] sm:$0xf]
        %v1347 = vld [vmem:[%s1343 + $0xc] sm:$0xf]
        %s1348 = scalar_lea.vmem %s7, 5
        %v1349 = vld [vmem:[%s1348] sm:$0x1]
        %v1351 = vlaneseq
        %v1352 = vshrl.u32 %v1351, 7
        %v1353 = vsub.s32 0, %v1352
        %v1354 = vrot.slane %v1349, %v1353
        %v1360 = vunpack.c.l.b16 %v1344
        %v1361 = vunpack.c.l.b16 %v1345
        %v1362 = vunpack.c.l.b16 %v1346
        %v1363 = vunpack.c.l.b16 %v1347
        %v1364 = vpack.c.b16 %v1361, %v1360
        %v1365 = vpack.c.b16 %v1363, %v1362
        %1368 = vmatprep.subr.bf16.mxu0 0
        %1369 = vmatpush1.bf16.msra.mxu0 %v1364
        %1370 = vmatprep.subr.bf16.mxu0 0
        %1371 = vmatpush1.bf16.msra.mxu0 %v1365
        %1372 = vmatprep.subr.bf16.mxu0 0
        %1373 = vmatpush1.bf16.msra.mxu0 0
        %1374 = vmatprep.subr.bf16.mxu0 0
        %1375 = vmatpush1.bf16.msra.mxu0 0
        %1376 = vmatprep.subr.bf16.mxu0 0
        %1377 = vmatpush1.bf16.msra.mxu0 0
        %1378 = vmatprep.subr.bf16.mxu0 0
        %1379 = vmatpush1.bf16.msra.mxu0 0
        %1380 = vmatprep.subr.bf16.mxu0 0
        %1381 = vmatpush1.bf16.msra.mxu0 0
        %1382 = vmatprep.subr.bf16.mxu0 0
        %1383 = vmatpush1.bf16.msra.mxu0 0
        %1384 = vmatprep.subr.bf16.mxu0 0
        %1385 = vmatpush1.bf16.msra.mxu0 0
        %1386 = vmatprep.subr.bf16.mxu0 0
        %1387 = vmatpush1.bf16.msra.mxu0 0
        %1388 = vmatprep.subr.bf16.mxu0 0
        %1389 = vmatpush1.bf16.msra.mxu0 0
        %1390 = vmatprep.subr.bf16.mxu0 0
        %1391 = vmatpush1.bf16.msra.mxu0 0
        %1392 = vmatprep.subr.bf16.mxu0 0
        %1393 = vmatpush1.bf16.msra.mxu0 0
        %1394 = vmatprep.subr.bf16.mxu0 0
        %1395 = vmatpush1.bf16.msra.mxu0 0
        %1396 = vmatprep.subr.bf16.mxu0 0
        %1397 = vmatpush1.bf16.msra.mxu0 0
        %1398 = vmatprep.subr.bf16.mxu0 0
        %1399 = vmatpush1.bf16.msra.mxu0 0
        %1400 = vmatprep.mubr.bf16.mxu0 0
        %1401 = vmatmul.mubr.bf16.gmra.mrb[0].mxu0 %v920
        %v1402 = vpop.f32.mrb[0].mxu0
        %v1403 = vadd.f32 %v1354, %v1402
        %v1404 = vpop.f32.mrb[0].mxu0
        %v1405 = vpop.f32.mrb[0].mxu0
        %v1406 = vpop.f32.mrb[0].mxu0
        %1407 = vdwg.mxu0
        %v1408 = vpack.c.bf16 %v1273, %v1273
        %v1409 = vpack.c.bf16 %v1338, %v1338
        %v1411 = vsel %vm1094, %v1408, 0
        %v1414 = vsel %vm1094, %v1409, 0
        %1416 = vmatprep.subr.bf16.mxu0 0
        %1417 = vmatpush1.bf16.xpose.msra.mxu0 %v1414
        %1418 = vmatprep.subr.bf16.mxu0 0
        %1419 = vmatpush1.bf16.xpose.msra.mxu0 0
        %1420 = vmatprep.subr.bf16.mxu0 0
        %1421 = vmatpush1.bf16.xpose.msra.mxu0 0
        %1422 = vmatprep.subr.bf16.mxu0 0
        %1423 = vmatpush1.bf16.xpose.msra.mxu0 0
        %1424 = vmatprep.subr.bf16.mxu0 0
        %1425 = vmatpush1.bf16.xpose.msra.mxu0 0
        %1426 = vmatprep.subr.bf16.mxu0 0
        %1427 = vmatpush1.bf16.xpose.msra.mxu0 0
        %1428 = vmatprep.subr.bf16.mxu0 0
        %1429 = vmatpush1.bf16.xpose.msra.mxu0 0
        %1430 = vmatprep.subr.bf16.mxu0 0
        %1431 = vmatpush1.bf16.xpose.msra.mxu0 0
        %1432 = vmatprep.subr.bf16.mxu0 0
        %1433 = vmatpush1.bf16.xpose.msra.mxu0 0
        %1434 = vmatprep.subr.bf16.mxu0 0
        %1435 = vmatpush1.bf16.xpose.msra.mxu0 0
        %1436 = vmatprep.subr.bf16.mxu0 0
        %1437 = vmatpush1.bf16.xpose.msra.mxu0 0
        %1438 = vmatprep.subr.bf16.mxu0 0
        %1439 = vmatpush1.bf16.xpose.msra.mxu0 0
        %1440 = vmatprep.subr.bf16.mxu0 0
        %1441 = vmatpush1.bf16.xpose.msra.mxu0 0
        %1442 = vmatprep.subr.bf16.mxu0 0
        %1443 = vmatpush1.bf16.xpose.msra.mxu0 0
        %1444 = vmatprep.subr.bf16.mxu0 0
        %1445 = vmatpush1.bf16.xpose.msra.mxu0 0
        %1446 = vmatprep.subr.bf16.mxu0 0
        %1447 = vmatpush1.bf16.xpose.msra.mxu0 0
        %1448 = vmatprep.mubr.bf16.mxu0 0
        %1449 = vmatmul.mubr.bf16.gmra.mrb[0].mxu0 %v1411
        %v1450 = vpop.f32.mrb[0].mxu0
        %v1451 = vadd.f32 0.0, %v1450
        %v1452 = vpop.f32.mrb[0].mxu0
        %v1453 = vpop.f32.mrb[0].mxu0
        %v1454 = vpop.f32.mrb[0].mxu0
        %1455 = vdwg.mxu0
        %v1456 = vmul.f32 %v1451, 0.25
        %v1457 = vadd.f32 %v1456, %v1146
        %v1458 = vsel %vm1149, %v1457, -inf
        %1459 = vmax.xlane.f32.xlu0 %v1458
        %v1460 = vpop.xlane.xlu0 %1459
        %v1461 = vsub.f32 %v1457, %v1460
        %v1462 = vmul.f32 %v1461, 1.442695
        %v1463 = vpow.pop %v1462
        %v1464 = vsel %vm1149, %v1463, 0.0
        %1465 = vadd.xlane.f32.xlu0 %v1464
        %v1466 = vpop.xlane.xlu0 %1465
        %v1467 = vrcp.pop %v1466
        %v1468 = vmul.f32 %v1463, %v1467
        %v1469 = vpack.c.bf16 %v1468, %v1468
        %v1470 = vpack.c.bf16 %v1403, %v1403
        %v1472 = vsel %vm1149, %v1469, 0
        %v1475 = vsel %vm1166, %v1470, 0
        %1477 = vmatprep.subr.bf16.mxu0 0
        %1478 = vmatpush1.bf16.msra.mxu0 %v1475
        %1479 = vmatprep.subr.bf16.mxu0 0
        %1480 = vmatpush1.bf16.msra.mxu0 0
        %1481 = vmatprep.subr.bf16.mxu0 0
        %1482 = vmatpush1.bf16.msra.mxu0 0
        %1483 = vmatprep.subr.bf16.mxu0 0
        %1484 = vmatpush1.bf16.msra.mxu0 0
        %1485 = vmatprep.subr.bf16.mxu0 0
        %1486 = vmatpush1.bf16.msra.mxu0 0
        %1487 = vmatprep.subr.bf16.mxu0 0
        %1488 = vmatpush1.bf16.msra.mxu0 0
        %1489 = vmatprep.subr.bf16.mxu0 0
        %1490 = vmatpush1.bf16.msra.mxu0 0
        %1491 = vmatprep.subr.bf16.mxu0 0
        %1492 = vmatpush1.bf16.msra.mxu0 0
        %1493 = vmatprep.subr.bf16.mxu0 0
        %1494 = vmatpush1.bf16.msra.mxu0 0
        %1495 = vmatprep.subr.bf16.mxu0 0
        %1496 = vmatpush1.bf16.msra.mxu0 0
        %1497 = vmatprep.subr.bf16.mxu0 0
        %1498 = vmatpush1.bf16.msra.mxu0 0
        %1499 = vmatprep.subr.bf16.mxu0 0
        %1500 = vmatpush1.bf16.msra.mxu0 0
        %1501 = vmatprep.subr.bf16.mxu0 0
        %1502 = vmatpush1.bf16.msra.mxu0 0
        %1503 = vmatprep.subr.bf16.mxu0 0
        %1504 = vmatpush1.bf16.msra.mxu0 0
        %1505 = vmatprep.subr.bf16.mxu0 0
        %1506 = vmatpush1.bf16.msra.mxu0 0
        %1507 = vmatprep.subr.bf16.mxu0 0
        %1508 = vmatpush1.bf16.msra.mxu0 0
        %1509 = vmatprep.mubr.bf16.mxu0 0
        %1510 = vmatmul.mubr.bf16.gmra.mrb[0].mxu0 %v1472
        %v1511 = vpop.f32.mrb[0].mxu0
        %v1512 = vadd.f32 0.0, %v1511
        %v1513 = vpop.f32.mrb[0].mxu0
        %v1514 = vpop.f32.mrb[0].mxu0
        %v1515 = vpop.f32.mrb[0].mxu0
        %1516 = vdwg.mxu0
        %v1517 = vpack.c.bf16 %v1512, %v1512
        %s1518 = scalar_lea.vmem [#allocation5], 8
        %v1519 = vld [vmem:[%s1518] sm:$0xf]
        %v1520 = vld [vmem:[%s1518 + $0x4] sm:$0xf]
        %v1523 = vunpack.c.l.b16 %v1519
        %v1524 = vunpack.c.l.b16 %v1520
        %v1525 = vpack.c.b16 %v1524, %v1523
        %v1528 = vsel %vm1094, %v1517, 0
        %1530 = vmatprep.subr.bf16.mxu0 0
        %1531 = vmatpush1.bf16.msra.mxu0 %v1525
        %1532 = vmatprep.subr.bf16.mxu0 0
        %1533 = vmatpush1.bf16.msra.mxu0 0
        %1534 = vmatprep.subr.bf16.mxu0 0
        %1535 = vmatpush1.bf16.msra.mxu0 0
        %1536 = vmatprep.subr.bf16.mxu0 0
        %1537 = vmatpush1.bf16.msra.mxu0 0
        %1538 = vmatprep.subr.bf16.mxu0 0
        %1539 = vmatpush1.bf16.msra.mxu0 0
        %1540 = vmatprep.subr.bf16.mxu0 0
        %1541 = vmatpush1.bf16.msra.mxu0 0
        %1542 = vmatprep.subr.bf16.mxu0 0
        %1543 = vmatpush1.bf16.msra.mxu0 0
        %1544 = vmatprep.subr.bf16.mxu0 0
        %1545 = vmatpush1.bf16.msra.mxu0 0
        %1546 = vmatprep.subr.bf16.mxu0 0
        %1547 = vmatpush1.bf16.msra.mxu0 0
        %1548 = vmatprep.subr.bf16.mxu0 0
        %1549 = vmatpush1.bf16.msra.mxu0 0
        %1550 = vmatprep.subr.bf16.mxu0 0
        %1551 = vmatpush1.bf16.msra.mxu0 0
        %1552 = vmatprep.subr.bf16.mxu0 0
        %1553 = vmatpush1.bf16.msra.mxu0 0
        %1554 = vmatprep.subr.bf16.mxu0 0
        %1555 = vmatpush1.bf16.msra.mxu0 0
        %1556 = vmatprep.subr.bf16.mxu0 0
        %1557 = vmatpush1.bf16.msra.mxu0 0
        %1558 = vmatprep.subr.bf16.mxu0 0
        %1559 = vmatpush1.bf16.msra.mxu0 0
        %1560 = vmatprep.subr.bf16.mxu0 0
        %1561 = vmatpush1.bf16.msra.mxu0 0
        %1562 = vmatprep.mubr.bf16.mxu0 0
        %1563 = vmatmul.mubr.bf16.gmra.mrb[0].mxu0 %v1528
        %v1564 = vpop.f32.mrb[0].mxu0
        %v1565 = vadd.f32 0.0, %v1564
        %v1566 = vpop.f32.mrb[0].mxu0
        %v1567 = vpop.f32.mrb[0].mxu0
        %v1568 = vpop.f32.mrb[0].mxu0
        %1569 = vdwg.mxu0
        %v1572 = vunpack.c.l.b16 %v1211
        %v1573 = vunpack.c.l.b16 %v1212
        %v1574 = vpack.c.b16 %v1573, %v1572
        %v1577 = vsel %vm1094, %v1210, 0
        %1579 = vmatprep.subr.bf16.mxu0 0
        %1580 = vmatpush1.bf16.msra.mxu0 %v1574
        %1581 = vmatprep.subr.bf16.mxu0 0
        %1582 = vmatpush1.bf16.msra.mxu0 0
        %1583 = vmatprep.subr.bf16.mxu0 0
        %1584 = vmatpush1.bf16.msra.mxu0 0
        %1585 = vmatprep.subr.bf16.mxu0 0
        %1586 = vmatpush1.bf16.msra.mxu0 0
        %1587 = vmatprep.subr.bf16.mxu0 0
        %1588 = vmatpush1.bf16.msra.mxu0 0
        %1589 = vmatprep.subr.bf16.mxu0 0
        %1590 = vmatpush1.bf16.msra.mxu0 0
        %1591 = vmatprep.subr.bf16.mxu0 0
        %1592 = vmatpush1.bf16.msra.mxu0 0
        %1593 = vmatprep.subr.bf16.mxu0 0
        %1594 = vmatpush1.bf16.msra.mxu0 0
        %1595 = vmatprep.subr.bf16.mxu0 0
        %1596 = vmatpush1.bf16.msra.mxu0 0
        %1597 = vmatprep.subr.bf16.mxu0 0
        %1598 = vmatpush1.bf16.msra.mxu0 0
        %1599 = vmatprep.subr.bf16.mxu0 0
        %1600 = vmatpush1.bf16.msra.mxu0 0
        %1601 = vmatprep.subr.bf16.mxu0 0
        %1602 = vmatpush1.bf16.msra.mxu0 0
        %1603 = vmatprep.subr.bf16.mxu0 0
        %1604 = vmatpush1.bf16.msra.mxu0 0
        %1605 = vmatprep.subr.bf16.mxu0 0
        %1606 = vmatpush1.bf16.msra.mxu0 0
        %1607 = vmatprep.subr.bf16.mxu0 0
        %1608 = vmatpush1.bf16.msra.mxu0 0
        %1609 = vmatprep.subr.bf16.mxu0 0
        %1610 = vmatpush1.bf16.msra.mxu0 0
        %1611 = vmatprep.mubr.bf16.mxu0 0
        %1612 = vmatmul.mubr.bf16.gmra.mrb[0].mxu0 %v1577
        %v1613 = vpop.f32.mrb[0].mxu0
        %v1614 = vadd.f32 %v1565, %v1613
        %v1615 = vpop.f32.mrb[0].mxu0
        %v1616 = vpop.f32.mrb[0].mxu0
        %v1617 = vpop.f32.mrb[0].mxu0
        %1618 = vdwg.mxu0
        %v1619 = vlaneseq
        %v1620 = vshrl.u32 %v1619, 7
        %v1621 = vsub.s32 0, %v1620
        %v1622 = vrot.slane %v894, %v1621
        %v1623 = vadd.f32 %v1614, %v1622
        %v1624 = vadd.f32 %v893, %v1623
        %v1625 = vsel %vm869, %v1624, 0.0
        %1626 = vadd.xlane.f32.xlu0 %v1625
        %v1627 = vpop.xlane.xlu0 %1626
        %v1628 = vmul.f32 %v1627, %v873
        %v1629 = vsub.f32 %v1624, %v1628
        %v1630 = vmul.f32 %v1629, %v1629
        %v1631 = vsel %vm869, %v1630, 0.0
        %1632 = vadd.xlane.f32.xlu0 %v1631
        %v1633 = vpop.xlane.xlu0 %1632
        %v1634 = vmul.f32 %v1633, %v873
        %v1635 = vadd.f32 %v1634, 1e-12
        %v1636 = vrsqrt.pop %v1635
        %v1637 = vmul.f32 %v1629, %v1636
        %v1638 = vlaneseq
        %v1639 = vshrl.u32 %v1638, 7
        %v1640 = vsub.s32 1, %v1639
        %v1641 = vrot.slane %v894, %v1640
        %v1642 = vmul.f32 %v1637, %v1641
        %v1643 = vlaneseq
        %v1644 = vshrl.u32 %v1643, 7
        %v1645 = vsub.s32 2, %v1644
        %v1646 = vrot.slane %v894, %v1645
        %v1647 = vadd.f32 %v1642, %v1646
        %v1648 = vpack.c.bf16 %v1647, %v1647
        %v1649 = vld [vmem:[#allocation7] sm:$0xf]
        %v1650 = vld [vmem:[#allocation7 + $0x4] sm:$0xf]
        %v1651 = vld [vmem:[#allocation7 + $0x8] sm:$0xf]
        %v1652 = vld [vmem:[#allocation7 + $0xc] sm:$0xf]
        %v1653 = vlaneseq
        %v1654 = vshrl.u32 %v1653, 7
        %v1655 = vsub.s32 3, %v1654
        %v1656 = vrot.slane %v894, %v1655
        %v1661 = vunpack.c.l.b16 %v1649
        %v1662 = vunpack.c.l.b16 %v1650
        %v1663 = vunpack.c.l.b16 %v1651
        %v1664 = vunpack.c.l.b16 %v1652
        %v1665 = vpack.c.b16 %v1662, %v1661
        %v1666 = vpack.c.b16 %v1664, %v1663
        %v1670 = vsel %vm869, %v1648, 0
        %1672 = vmatprep.subr.bf16.mxu0 0
        %1673 = vmatpush1.bf16.msra.mxu0 %v1665
        %1674 = vmatprep.subr.bf16.mxu0 0
        %1675 = vmatpush1.bf16.msra.mxu0 %v1666
        %1676 = vmatprep.subr.bf16.mxu0 0
        %1677 = vmatpush1.bf16.msra.mxu0 0
        %1678 = vmatprep.subr.bf16.mxu0 0
        %1679 = vmatpush1.bf16.msra.mxu0 0
        %1680 = vmatprep.subr.bf16.mxu0 0
        %1681 = vmatpush1.bf16.msra.mxu0 0
        %1682 = vmatprep.subr.bf16.mxu0 0
        %1683 = vmatpush1.bf16.msra.mxu0 0
        %1684 = vmatprep.subr.bf16.mxu0 0
        %1685 = vmatpush1.bf16.msra.mxu0 0
        %1686 = vmatprep.subr.bf16.mxu0 0
        %1687 = vmatpush1.bf16.msra.mxu0 0
        %1688 = vmatprep.subr.bf16.mxu0 0
        %1689 = vmatpush1.bf16.msra.mxu0 0
        %1690 = vmatprep.subr.bf16.mxu0 0
        %1691 = vmatpush1.bf16.msra.mxu0 0
        %1692 = vmatprep.subr.bf16.mxu0 0
        %1693 = vmatpush1.bf16.msra.mxu0 0
        %1694 = vmatprep.subr.bf16.mxu0 0
        %1695 = vmatpush1.bf16.msra.mxu0 0
        %1696 = vmatprep.subr.bf16.mxu0 0
        %1697 = vmatpush1.bf16.msra.mxu0 0
        %1698 = vmatprep.subr.bf16.mxu0 0
        %1699 = vmatpush1.bf16.msra.mxu0 0
        %1700 = vmatprep.subr.bf16.mxu0 0
        %1701 = vmatpush1.bf16.msra.mxu0 0
        %1702 = vmatprep.subr.bf16.mxu0 0
        %1703 = vmatpush1.bf16.msra.mxu0 0
        %1704 = vmatprep.mubr.bf16.mxu0 0
        %1705 = vmatmul.mubr.bf16.gmra.mrb[0].mxu0 %v1670
        %v1706 = vpop.f32.mrb[0].mxu0
        %v1707 = vadd.f32 %v1656, %v1706
        %v1708 = vpop.f32.mrb[0].mxu0
        %v1709 = vpop.f32.mrb[0].mxu0
        %v1710 = vpop.f32.mrb[0].mxu0
        %1711 = vdwg.mxu0
        %v1712 = vmul.f32 %v1707, %v1707
        %v1713 = vmul.f32 %v1707, %v1712
        %v1714 = vmul.f32 %v1713, 0.044715
        %v1715 = vadd.f32 %v1707, %v1714
        %v1716 = vmul.f32 %v1715, 0.7978846
        %v1717 = vtanh.pop %v1716
        %v1718 = vadd.f32 %v1717, 1.0
        %v1719 = vmul.f32 %v1718, 0.5
        %v1720 = vmul.f32 %v1707, %v1719
        %v1721 = vpack.c.bf16 %v1720, %v1720
        %v1722 = vld [vmem:[#allocation8] sm:$0xf]
        %v1723 = vld [vmem:[#allocation8 + $0x4] sm:$0xf]
        %v1724 = vld [vmem:[#allocation8 + $0x8] sm:$0xf]
        %v1725 = vld [vmem:[#allocation8 + $0xc] sm:$0xf]
        %v1726 = vld [vmem:[#allocation8 + $0x10] sm:$0xf]
        %v1727 = vld [vmem:[#allocation8 + $0x14] sm:$0xf]
        %v1728 = vld [vmem:[#allocation8 + $0x18] sm:$0xf]
        %v1729 = vld [vmem:[#allocation8 + $0x1c] sm:$0xf]
        %v1730 = vlaneseq
        %v1731 = vshrl.u32 %v1730, 7
        %v1732 = vsub.s32 4, %v1731
        %v1733 = vrot.slane %v894, %v1732
        %v1742 = vunpack.c.l.b16 %v1722
        %v1743 = vunpack.c.l.b16 %v1723
        %v1744 = vunpack.c.l.b16 %v1724
        %v1745 = vunpack.c.l.b16 %v1725
        %v1746 = vunpack.c.l.b16 %v1726
        %v1747 = vunpack.c.l.b16 %v1727
        %v1748 = vunpack.c.l.b16 %v1728
        %v1749 = vunpack.c.l.b16 %v1729
        %v1750 = vpack.c.b16 %v1743, %v1742
        %v1751 = vpack.c.b16 %v1745, %v1744
        %v1752 = vpack.c.b16 %v1747, %v1746
        %v1753 = vpack.c.b16 %v1749, %v1748
        %vm1758 = vcmask 523264
        %v1760 = vsel %vm1758, %v1721, 0
        %1762 = vmatprep.subr.bf16.mxu0 0
        %1763 = vmatpush1.bf16.msra.mxu0 %v1750
        %1764 = vmatprep.subr.bf16.mxu0 0
        %1765 = vmatpush1.bf16.msra.mxu0 %v1751
        %1766 = vmatprep.subr.bf16.mxu0 0
        %1767 = vmatpush1.bf16.msra.mxu0 %v1752
        %1768 = vmatprep.subr.bf16.mxu0 0
        %1769 = vmatpush1.bf16.msra.mxu0 %v1753
        %1770 = vmatprep.subr.bf16.mxu0 0
        %1771 = vmatpush1.bf16.msra.mxu0 0
        %1772 = vmatprep.subr.bf16.mxu0 0
        %1773 = vmatpush1.bf16.msra.mxu0 0
        %1774 = vmatprep.subr.bf16.mxu0 0
        %1775 = vmatpush1.bf16.msra.mxu0 0
        %1776 = vmatprep.subr.bf16.mxu0 0
        %1777 = vmatpush1.bf16.msra.mxu0 0
        %1778 = vmatprep.subr.bf16.mxu0 0
        %1779 = vmatpush1.bf16.msra.mxu0 0
        %1780 = vmatprep.subr.bf16.mxu0 0
        %1781 = vmatpush1.bf16.msra.mxu0 0
        %1782 = vmatprep.subr.bf16.mxu0 0
        %1783 = vmatpush1.bf16.msra.mxu0 0
        %1784 = vmatprep.subr.bf16.mxu0 0
        %1785 = vmatpush1.bf16.msra.mxu0 0
        %1786 = vmatprep.subr.bf16.mxu0 0
        %1787 = vmatpush1.bf16.msra.mxu0 0
        %1788 = vmatprep.subr.bf16.mxu0 0
        %1789 = vmatpush1.bf16.msra.mxu0 0
        %1790 = vmatprep.subr.bf16.mxu0 0
        %1791 = vmatpush1.bf16.msra.mxu0 0
        %1792 = vmatprep.subr.bf16.mxu0 0
        %1793 = vmatpush1.bf16.msra.mxu0 0
        %1794 = vmatprep.mubr.bf16.mxu0 0
        %1795 = vmatmul.mubr.bf16.gmra.mrb[0].mxu0 %v1760
        %v1796 = vpop.f32.mrb[0].mxu0
        %v1797 = vadd.f32 %v1733, %v1796
        %v1798 = vpop.f32.mrb[0].mxu0
        %v1799 = vpop.f32.mrb[0].mxu0
        %v1800 = vpop.f32.mrb[0].mxu0
        %1801 = vdwg.mxu0
        %v1802 = vadd.f32 %v1647, %v1797
        %v1803 = vsel %vm869, %v1802, 0.0
        %1804 = vadd.xlane.f32.xlu0 %v1803
        %v1805 = vpop.xlane.xlu0 %1804
        %v1806 = vmul.f32 %v1805, %v873
        %v1807 = vsub.f32 %v1802, %v1806
        %v1808 = vmul.f32 %v1807, %v1807
        %v1809 = vsel %vm869, %v1808, 0.0
        %1810 = vadd.xlane.f32.xlu0 %v1809
        %v1811 = vpop.xlane.xlu0 %1810
        %v1812 = vmul.f32 %v1811, %v873
        %v1813 = vadd.f32 %v1812, 1e-12
        %v1814 = vrsqrt.pop %v1813
        %v1815 = vmul.f32 %v1807, %v1814
        %v1816 = vlaneseq
        %v1817 = vshrl.u32 %v1816, 7
        %v1818 = vsub.s32 5, %v1817
        %v1819 = vrot.slane %v894, %v1818
        %v1820 = vmul.f32 %v1815, %v1819
        %v1821 = vlaneseq
        %v1822 = vshrl.u32 %v1821, 7
        %v1823 = vsub.s32 6, %v1822
        %v1824 = vrot.slane %v894, %v1823
        %v1825 = vadd.f32 %v1820, %v1824
        %s1826 = scalar_lea.vmem [#allocation10], 8
        %v1827 = vld [vmem:[%s1826] sm:$0x7f]
        %v1828 = vpack.c.bf16 %v1825, %v1825
        %s1829 = scalar_lea.vmem %s6, 96
        %v1830 = vld [vmem:[%s1829] sm:$0xf]
        %v1831 = vld [vmem:[%s1829 + $0x4] sm:$0xf]
        %v1832 = vld [vmem:[%s1829 + $0x8] sm:$0xf]
        %v1833 = vld [vmem:[%s1829 + $0xc] sm:$0xf]
        %s1834 = scalar_lea.vmem %s7, 6
        %v1835 = vld [vmem:[%s1834] sm:$0x1]
        %v1837 = vlaneseq
        %v1838 = vshrl.u32 %v1837, 7
        %v1839 = vsub.s32 0, %v1838
        %v1840 = vrot.slane %v1835, %v1839
        %v1846 = vunpack.c.l.b16 %v1830
        %v1847 = vunpack.c.l.b16 %v1831
        %v1848 = vunpack.c.l.b16 %v1832
        %v1849 = vunpack.c.l.b16 %v1833
        %v1850 = vpack.c.b16 %v1847, %v1846
        %v1851 = vpack.c.b16 %v1849, %v1848
        %v1855 = vsel %vm869, %v1828, 0
        %1857 = vmatprep.subr.bf16.mxu0 0
        %1858 = vmatpush1.bf16.msra.mxu0 %v1850
        %1859 = vmatprep.subr.bf16.mxu0 0
        %1860 = vmatpush1.bf16.msra.mxu0 %v1851
        %1861 = vmatprep.subr.bf16.mxu0 0
        %1862 = vmatpush1.bf16.msra.mxu0 0
        %1863 = vmatprep.subr.bf16.mxu0 0
        %1864 = vmatpush1.bf16.msra.mxu0 0
        %1865 = vmatprep.subr.bf16.mxu0 0
        %1866 = vmatpush1.bf16.msra.mxu0 0
        %1867 = vmatprep.subr.bf16.mxu0 0
        %1868 = vmatpush1.bf16.msra.mxu0 0
        %1869 = vmatprep.subr.bf16.mxu0 0
        %1870 = vmatpush1.bf16.msra.mxu0 0
        %1871 = vmatprep.subr.bf16.mxu0 0
        %1872 = vmatpush1.bf16.msra.mxu0 0
        %1873 = vmatprep.subr.bf16.mxu0 0
        %1874 = vmatpush1.bf16.msra.mxu0 0
        %1875 = vmatprep.subr.bf16.mxu0 0
        %1876 = vmatpush1.bf16.msra.mxu0 0
        %1877 = vmatprep.subr.bf16.mxu0 0
        %1878 = vmatpush1.bf16.msra.mxu0 0
        %1879 = vmatprep.subr.bf16.mxu0 0
        %1880 = vmatpush1.bf16.msra.mxu0 0
        %1881 = vmatprep.subr.bf16.mxu0 0
        %1882 = vmatpush1.bf16.msra.mxu0 0
        %1883 = vmatprep.subr.bf16.mxu0 0
        %1884 = vmatpush1.bf16.msra.mxu0 0
        %1885 = vmatprep.subr.bf16.mxu0 0
        %1886 = vmatpush1.bf16.msra.mxu0 0
        %1887 = vmatprep.subr.bf16.mxu0 0
        %1888 = vmatpush1.bf16.msra.mxu0 0
        %1889 = vmatprep.mubr.bf16.mxu0 0
        %1890 = vmatmul.mubr.bf16.gmra.mrb[0].mxu0 %v1855
        %v1891 = vpop.f32.mrb[0].mxu0
        %v1892 = vadd.f32 %v1840, %v1891
        %v1893 = vpop.f32.mrb[0].mxu0
        %v1894 = vpop.f32.mrb[0].mxu0
        %v1895 = vpop.f32.mrb[0].mxu0
        %1896 = vdwg.mxu0
        %s1897 = scalar_lea.vmem %s6, 112
        %v1898 = vld [vmem:[%s1897] sm:$0xf]
        %v1899 = vld [vmem:[%s1897 + $0x4] sm:$0xf]
        %v1900 = vld [vmem:[%s1897 + $0x8] sm:$0xf]
        %v1901 = vld [vmem:[%s1897 + $0xc] sm:$0xf]
        %s1902 = scalar_lea.vmem %s7, 7
        %v1903 = vld [vmem:[%s1902] sm:$0x1]
        %v1905 = vlaneseq
        %v1906 = vshrl.u32 %v1905, 7
        %v1907 = vsub.s32 0, %v1906
        %v1908 = vrot.slane %v1903, %v1907
        %v1914 = vunpack.c.l.b16 %v1898
        %v1915 = vunpack.c.l.b16 %v1899
        %v1916 = vunpack.c.l.b16 %v1900
        %v1917 = vunpack.c.l.b16 %v1901
        %v1918 = vpack.c.b16 %v1915, %v1914
        %v1919 = vpack.c.b16 %v1917, %v1916
        %1922 = vmatprep.subr.bf16.mxu0 0
        %1923 = vmatpush1.bf16.msra.mxu0 %v1918
        %1924 = vmatprep.subr.bf16.mxu0 0
        %1925 = vmatpush1.bf16.msra.mxu0 %v1919
        %1926 = vmatprep.subr.bf16.mxu0 0
        %1927 = vmatpush1.bf16.msra.mxu0 0
        %1928 = vmatprep.subr.bf16.mxu0 0
        %1929 = vmatpush1.bf16.msra.mxu0 0
        %1930 = vmatprep.subr.bf16.mxu0 0
        %1931 = vmatpush1.bf16.msra.mxu0 0
        %1932 = vmatprep.subr.bf16.mxu0 0
        %1933 = vmatpush1.bf16.msra.mxu0 0
        %1934 = vmatprep.subr.bf16.mxu0 0
        %1935 = vmatpush1.bf16.msra.mxu0 0
        %1936 = vmatprep.subr.bf16.mxu0 0
        %1937 = vmatpush1.bf16.msra.mxu0 0
        %1938 = vmatprep.subr.bf16.mxu0 0
        %1939 = vmatpush1.bf16.msra.mxu0 0
        %1940 = vmatprep.subr.bf16.mxu0 0
        %1941 = vmatpush1.bf16.msra.mxu0 0
        %1942 = vmatprep.subr.bf16.mxu0 0
        %1943 = vmatpush1.bf16.msra.mxu0 0
        %1944 = vmatprep.subr.bf16.mxu0 0
        %1945 = vmatpush1.bf16.msra.mxu0 0
        %1946 = vmatprep.subr.bf16.mxu0 0
        %1947 = vmatpush1.bf16.msra.mxu0 0
        %1948 = vmatprep.subr.bf16.mxu0 0
        %1949 = vmatpush1.bf16.msra.mxu0 0
        %1950 = vmatprep.subr.bf16.mxu0 0
        %1951 = vmatpush1.bf16.msra.mxu0 0
        %1952 = vmatprep.subr.bf16.mxu0 0
        %1953 = vmatpush1.bf16.msra.mxu0 0
        %1954 = vmatprep.mubr.bf16.mxu0 0
        %1955 = vmatmul.mubr.bf16.gmra.mrb[0].mxu0 %v1855
        %v1956 = vpop.f32.mrb[0].mxu0
        %v1957 = vadd.f32 %v1908, %v1956
        %v1958 = vpop.f32.mrb[0].mxu0
        %v1959 = vpop.f32.mrb[0].mxu0
        %v1960 = vpop.f32.mrb[0].mxu0
        %1961 = vdwg.mxu0
        %s1962 = scalar_lea.vmem %s6, 128
        %v1963 = vld [vmem:[%s1962] sm:$0xf]
        %v1964 = vld [vmem:[%s1962 + $0x4] sm:$0xf]
        %v1965 = vld [vmem:[%s1962 + $0x8] sm:$0xf]
        %v1966 = vld [vmem:[%s1962 + $0xc] sm:$0xf]
        %s1967 = scalar_lea.vmem %s7, 8
        %v1968 = vld [vmem:[%s1967] sm:$0x1]
        %v1970 = vlaneseq
        %v1971 = vshrl.u32 %v1970, 7
        %v1972 = vsub.s32 0, %v1971
        %v1973 = vrot.slane %v1968, %v1972
        %v1979 = vunpack.c.l.b16 %v1963
        %v1980 = vunpack.c.l.b16 %v1964
        %v1981 = vunpack.c.l.b16 %v1965
        %v1982 = vunpack.c.l.b16 %v1966
        %v1983 = vpack.c.b16 %v1980, %v1979
        %v1984 = vpack.c.b16 %v1982, %v1981
        %1987 = vmatprep.subr.bf16.mxu0 0
        %1988 = vmatpush1.bf16.msra.mxu0 %v1983
        %1989 = vmatprep.subr.bf16.mxu0 0
        %1990 = vmatpush1.bf16.msra.mxu0 %v1984
        %1991 = vmatprep.subr.bf16.mxu0 0
        %1992 = vmatpush1.bf16.msra.mxu0 0
        %1993 = vmatprep.subr.bf16.mxu0 0
        %1994 = vmatpush1.bf16.msra.mxu0 0
        %1995 = vmatprep.subr.bf16.mxu0 0
        %1996 = vmatpush1.bf16.msra.mxu0 0
        %1997 = vmatprep.subr.bf16.mxu0 0
        %1998 = vmatpush1.bf16.msra.mxu0 0
        %1999 = vmatprep.subr.bf16.mxu0 0
        %2000 = vmatpush1.bf16.msra.mxu0 0
        %2001 = vmatprep.subr.bf16.mxu0 0
        %2002 = vmatpush1.bf16.msra.mxu0 0
        %2003 = vmatprep.subr.bf16.mxu0 0
        %2004 = vmatpush1.bf16.msra.mxu0 0
        %2005 = vmatprep.subr.bf16.mxu0 0
        %2006 = vmatpush1.bf16.msra.mxu0 0
        %2007 = vmatprep.subr.bf16.mxu0 0
        %2008 = vmatpush1.bf16.msra.mxu0 0
        %2009 = vmatprep.subr.bf16.mxu0 0
        %2010 = vmatpush1.bf16.msra.mxu0 0
        %2011 = vmatprep.subr.bf16.mxu0 0
        %2012 = vmatpush1.bf16.msra.mxu0 0
        %2013 = vmatprep.subr.bf16.mxu0 0
        %2014 = vmatpush1.bf16.msra.mxu0 0
        %2015 = vmatprep.subr.bf16.mxu0 0
        %2016 = vmatpush1.bf16.msra.mxu0 0
        %2017 = vmatprep.subr.bf16.mxu0 0
        %2018 = vmatpush1.bf16.msra.mxu0 0
        %2019 = vmatprep.mubr.bf16.mxu0 0
        %2020 = vmatmul.mubr.bf16.gmra.mrb[0].mxu0 %v1855
        %v2021 = vpop.f32.mrb[0].mxu0
        %v2022 = vadd.f32 %v1973, %v2021
        %v2023 = vpop.f32.mrb[0].mxu0
        %v2024 = vpop.f32.mrb[0].mxu0
        %v2025 = vpop.f32.mrb[0].mxu0
        %2026 = vdwg.mxu0
        %v2027 = vpack.c.bf16 %v1892, %v1892
        %v2028 = vpack.c.bf16 %v1957, %v1957
        %v2030 = vsel %vm1094, %v2027, 0
        %v2033 = vsel %vm1094, %v2028, 0
        %2035 = vmatprep.subr.bf16.mxu0 0
        %2036 = vmatpush1.bf16.xpose.msra.mxu0 %v2033
        %2037 = vmatprep.subr.bf16.mxu0 0
        %2038 = vmatpush1.bf16.xpose.msra.mxu0 0
        %2039 = vmatprep.subr.bf16.mxu0 0
        %2040 = vmatpush1.bf16.xpose.msra.mxu0 0
        %2041 = vmatprep.subr.bf16.mxu0 0
        %2042 = vmatpush1.bf16.xpose.msra.mxu0 0
        %2043 = vmatprep.subr.bf16.mxu0 0
        %2044 = vmatpush1.bf16.xpose.msra.mxu0 0
        %2045 = vmatprep.subr.bf16.mxu0 0
        %2046 = vmatpush1.bf16.xpose.msra.mxu0 0
        %2047 = vmatprep.subr.bf16.mxu0 0
        %2048 = vmatpush1.bf16.xpose.msra.mxu0 0
        %2049 = vmatprep.subr.bf16.mxu0 0
        %2050 = vmatpush1.bf16.xpose.msra.mxu0 0
        %2051 = vmatprep.subr.bf16.mxu0 0
        %2052 = vmatpush1.bf16.xpose.msra.mxu0 0
        %2053 = vmatprep.subr.bf16.mxu0 0
        %2054 = vmatpush1.bf16.xpose.msra.mxu0 0
        %2055 = vmatprep.subr.bf16.mxu0 0
        %2056 = vmatpush1.bf16.xpose.msra.mxu0 0
        %2057 = vmatprep.subr.bf16.mxu0 0
        %2058 = vmatpush1.bf16.xpose.msra.mxu0 0
        %2059 = vmatprep.subr.bf16.mxu0 0
        %2060 = vmatpush1.bf16.xpose.msra.mxu0 0
        %2061 = vmatprep.subr.bf16.mxu0 0
        %2062 = vmatpush1.bf16.xpose.msra.mxu0 0
        %2063 = vmatprep.subr.bf16.mxu0 0
        %2064 = vmatpush1.bf16.xpose.msra.mxu0 0
        %2065 = vmatprep.subr.bf16.mxu0 0
        %2066 = vmatpush1.bf16.xpose.msra.mxu0 0
        %2067 = vmatprep.mubr.bf16.mxu0 0
        %2068 = vmatmul.mubr.bf16.gmra.mrb[0].mxu0 %v2030
        %v2069 = vpop.f32.mrb[0].mxu0
        %v2070 = vadd.f32 0.0, %v2069
        %v2071 = vpop.f32.mrb[0].mxu0
        %v2072 = vpop.f32.mrb[0].mxu0
        %v2073 = vpop.f32.mrb[0].mxu0
        %2074 = vdwg.mxu0
        %v2075 = vmul.f32 %v2070, 0.25
        %v2076 = vadd.f32 %v2075, %v1146
        %v2077 = vsel %vm1149, %v2076, -inf
        %2078 = vmax.xlane.f32.xlu0 %v2077
        %v2079 = vpop.xlane.xlu0 %2078
        %v2080 = vsub.f32 %v2076, %v2079
        %v2081 = vmul.f32 %v2080, 1.442695
        %v2082 = vpow.pop %v2081
        %v2083 = vsel %vm1149, %v2082, 0.0
        %2084 = vadd.xlane.f32.xlu0 %v2083
        %v2085 = vpop.xlane.xlu0 %2084
        %v2086 = vrcp.pop %v2085
        %v2087 = vmul.f32 %v2082, %v2086
        %v2088 = vpack.c.bf16 %v2087, %v2087
        %v2089 = vpack.c.bf16 %v2022, %v2022
        %v2091 = vsel %vm1149, %v2088, 0
        %v2094 = vsel %vm1166, %v2089, 0
        %2096 = vmatprep.subr.bf16.mxu0 0
        %2097 = vmatpush1.bf16.msra.mxu0 %v2094
        %2098 = vmatprep.subr.bf16.mxu0 0
        %2099 = vmatpush1.bf16.msra.mxu0 0
        %2100 = vmatprep.subr.bf16.mxu0 0
        %2101 = vmatpush1.bf16.msra.mxu0 0
        %2102 = vmatprep.subr.bf16.mxu0 0
        %2103 = vmatpush1.bf16.msra.mxu0 0
        %2104 = vmatprep.subr.bf16.mxu0 0
        %2105 = vmatpush1.bf16.msra.mxu0 0
        %2106 = vmatprep.subr.bf16.mxu0 0
        %2107 = vmatpush1.bf16.msra.mxu0 0
        %2108 = vmatprep.subr.bf16.mxu0 0
        %2109 = vmatpush1.bf16.msra.mxu0 0
        %2110 = vmatprep.subr.bf16.mxu0 0
        %2111 = vmatpush1.bf16.msra.mxu0 0
        %2112 = vmatprep.subr.bf16.mxu0 0
        %2113 = vmatpush1.bf16.msra.mxu0 0
        %2114 = vmatprep.subr.bf16.mxu0 0
        %2115 = vmatpush1.bf16.msra.mxu0 0
        %2116 = vmatprep.subr.bf16.mxu0 0
        %2117 = vmatpush1.bf16.msra.mxu0 0
        %2118 = vmatprep.subr.bf16.mxu0 0
        %2119 = vmatpush1.bf16.msra.mxu0 0
        %2120 = vmatprep.subr.bf16.mxu0 0
        %2121 = vmatpush1.bf16.msra.mxu0 0
        %2122 = vmatprep.subr.bf16.mxu0 0
        %2123 = vmatpush1.bf16.msra.mxu0 0
        %2124 = vmatprep.subr.bf16.mxu0 0
        %2125 = vmatpush1.bf16.msra.mxu0 0
        %2126 = vmatprep.subr.bf16.mxu0 0
        %2127 = vmatpush1.bf16.msra.mxu0 0
        %2128 = vmatprep.mubr.bf16.mxu0 0
        %2129 = vmatmul.mubr.bf16.gmra.mrb[0].mxu0 %v2091
        %v2130 = vpop.f32.mrb[0].mxu0
        %v2131 = vadd.f32 0.0, %v2130
        %v2132 = vpop.f32.mrb[0].mxu0
        %v2133 = vpop.f32.mrb[0].mxu0
        %v2134 = vpop.f32.mrb[0].mxu0
        %2135 = vdwg.mxu0
        %v2136 = vpack.c.bf16 %v2131, %v2131
        %s2137 = scalar_lea.vmem [#allocation5], 16
        %v2138 = vld [vmem:[%s2137] sm:$0xf]
        %v2139 = vld [vmem:[%s2137 + $0x4] sm:$0xf]
        %s2140 = scalar_lea.vmem %s6, 144
        %v2141 = vld [vmem:[%s2140] sm:$0xf]
        %v2142 = vld [vmem:[%s2140 + $0x4] sm:$0xf]
        %v2143 = vld [vmem:[%s2140 + $0x8] sm:$0xf]
        %v2144 = vld [vmem:[%s2140 + $0xc] sm:$0xf]
        %s2145 = scalar_lea.vmem %s7, 9
        %v2146 = vld [vmem:[%s2145] sm:$0x1]
        %v2148 = vlaneseq
        %v2149 = vshrl.u32 %v2148, 7
        %v2150 = vsub.s32 0, %v2149
        %v2151 = vrot.slane %v2146, %v2150
        %v2157 = vunpack.c.l.b16 %v2141
        %v2158 = vunpack.c.l.b16 %v2142
        %v2159 = vunpack.c.l.b16 %v2143
        %v2160 = vunpack.c.l.b16 %v2144
        %v2161 = vpack.c.b16 %v2158, %v2157
        %v2162 = vpack.c.b16 %v2160, %v2159
        %2165 = vmatprep.subr.bf16.mxu0 0
        %2166 = vmatpush1.bf16.msra.mxu0 %v2161
        %2167 = vmatprep.subr.bf16.mxu0 0
        %2168 = vmatpush1.bf16.msra.mxu0 %v2162
        %2169 = vmatprep.subr.bf16.mxu0 0
        %2170 = vmatpush1.bf16.msra.mxu0 0
        %2171 = vmatprep.subr.bf16.mxu0 0
        %2172 = vmatpush1.bf16.msra.mxu0 0
        %2173 = vmatprep.subr.bf16.mxu0 0
        %2174 = vmatpush1.bf16.msra.mxu0 0
        %2175 = vmatprep.subr.bf16.mxu0 0
        %2176 = vmatpush1.bf16.msra.mxu0 0
        %2177 = vmatprep.subr.bf16.mxu0 0
        %2178 = vmatpush1.bf16.msra.mxu0 0
        %2179 = vmatprep.subr.bf16.mxu0 0
        %2180 = vmatpush1.bf16.msra.mxu0 0
        %2181 = vmatprep.subr.bf16.mxu0 0
        %2182 = vmatpush1.bf16.msra.mxu0 0
        %2183 = vmatprep.subr.bf16.mxu0 0
        %2184 = vmatpush1.bf16.msra.mxu0 0
        %2185 = vmatprep.subr.bf16.mxu0 0
        %2186 = vmatpush1.bf16.msra.mxu0 0
        %2187 = vmatprep.subr.bf16.mxu0 0
        %2188 = vmatpush1.bf16.msra.mxu0 0
        %2189 = vmatprep.subr.bf16.mxu0 0
        %2190 = vmatpush1.bf16.msra.mxu0 0
        %2191 = vmatprep.subr.bf16.mxu0 0
        %2192 = vmatpush1.bf16.msra.mxu0 0
        %2193 = vmatprep.subr.bf16.mxu0 0
        %2194 = vmatpush1.bf16.msra.mxu0 0
        %2195 = vmatprep.subr.bf16.mxu0 0
        %2196 = vmatpush1.bf16.msra.mxu0 0
        %2197 = vmatprep.mubr.bf16.mxu0 0
        %2198 = vmatmul.mubr.bf16.gmra.mrb[0].mxu0 %v1855
        %v2199 = vpop.f32.mrb[0].mxu0
        %v2200 = vadd.f32 %v2151, %v2199
        %v2201 = vpop.f32.mrb[0].mxu0
        %v2202 = vpop.f32.mrb[0].mxu0
        %v2203 = vpop.f32.mrb[0].mxu0
        %2204 = vdwg.mxu0
        %s2205 = scalar_lea.vmem %s6, 160
        %v2206 = vld [vmem:[%s2205] sm:$0xf]
        %v2207 = vld [vmem:[%s2205 + $0x4] sm:$0xf]
        %v2208 = vld [vmem:[%s2205 + $0x8] sm:$0xf]
        %v2209 = vld [vmem:[%s2205 + $0xc] sm:$0xf]
        %s2210 = scalar_lea.vmem %s7, 10
        %v2211 = vld [vmem:[%s2210] sm:$0x1]
        %v2213 = vlaneseq
        %v2214 = vshrl.u32 %v2213, 7
        %v2215 = vsub.s32 0, %v2214
        %v2216 = vrot.slane %v2211, %v2215
        %v2222 = vunpack.c.l.b16 %v2206
        %v2223 = vunpack.c.l.b16 %v2207
        %v2224 = vunpack.c.l.b16 %v2208
        %v2225 = vunpack.c.l.b16 %v2209
        %v2226 = vpack.c.b16 %v2223, %v2222
        %v2227 = vpack.c.b16 %v2225, %v2224
        %2230 = vmatprep.subr.bf16.mxu0 0
        %2231 = vmatpush1.bf16.msra.mxu0 %v2226
        %2232 = vmatprep.subr.bf16.mxu0 0
        %2233 = vmatpush1.bf16.msra.mxu0 %v2227
        %2234 = vmatprep.subr.bf16.mxu0 0
        %2235 = vmatpush1.bf16.msra.mxu0 0
        %2236 = vmatprep.subr.bf16.mxu0 0
        %2237 = vmatpush1.bf16.msra.mxu0 0
        %2238 = vmatprep.subr.bf16.mxu0 0
        %2239 = vmatpush1.bf16.msra.mxu0 0
        %2240 = vmatprep.subr.bf16.mxu0 0
        %2241 = vmatpush1.bf16.msra.mxu0 0
        %2242 = vmatprep.subr.bf16.mxu0 0
        %2243 = vmatpush1.bf16.msra.mxu0 0
        %2244 = vmatprep.subr.bf16.mxu0 0
        %2245 = vmatpush1.bf16.msra.mxu0 0
        %2246 = vmatprep.subr.bf16.mxu0 0
        %2247 = vmatpush1.bf16.msra.mxu0 0
        %2248 = vmatprep.subr.bf16.mxu0 0
        %2249 = vmatpush1.bf16.msra.mxu0 0
        %2250 = vmatprep.subr.bf16.mxu0 0
        %2251 = vmatpush1.bf16.msra.mxu0 0
        %2252 = vmatprep.subr.bf16.mxu0 0
        %2253 = vmatpush1.bf16.msra.mxu0 0
        %2254 = vmatprep.subr.bf16.mxu0 0
        %2255 = vmatpush1.bf16.msra.mxu0 0
        %2256 = vmatprep.subr.bf16.mxu0 0
        %2257 = vmatpush1.bf16.msra.mxu0 0
        %2258 = vmatprep.subr.bf16.mxu0 0
        %2259 = vmatpush1.bf16.msra.mxu0 0
        %2260 = vmatprep.subr.bf16.mxu0 0
        %2261 = vmatpush1.bf16.msra.mxu0 0
        %2262 = vmatprep.mubr.bf16.mxu0 0
        %2263 = vmatmul.mubr.bf16.gmra.mrb[0].mxu0 %v1855
        %v2264 = vpop.f32.mrb[0].mxu0
        %v2265 = vadd.f32 %v2216, %v2264
        %v2266 = vpop.f32.mrb[0].mxu0
        %v2267 = vpop.f32.mrb[0].mxu0
        %v2268 = vpop.f32.mrb[0].mxu0
        %2269 = vdwg.mxu0
        %s2270 = scalar_lea.vmem %s6, 176
        %v2271 = vld [vmem:[%s2270] sm:$0xf]
        %v2272 = vld [vmem:[%s2270 + $0x4] sm:$0xf]
        %v2273 = vld [vmem:[%s2270 + $0x8] sm:$0xf]
        %v2274 = vld [vmem:[%s2270 + $0xc] sm:$0xf]
        %s2275 = scalar_lea.vmem %s7, 11
        %v2276 = vld [vmem:[%s2275] sm:$0x1]
        %v2278 = vlaneseq
        %v2279 = vshrl.u32 %v2278, 7
        %v2280 = vsub.s32 0, %v2279
        %v2281 = vrot.slane %v2276, %v2280
        %v2287 = vunpack.c.l.b16 %v2271
        %v2288 = vunpack.c.l.b16 %v2272
        %v2289 = vunpack.c.l.b16 %v2273
        %v2290 = vunpack.c.l.b16 %v2274
        %v2291 = vpack.c.b16 %v2288, %v2287
        %v2292 = vpack.c.b16 %v2290, %v2289
        %2295 = vmatprep.subr.bf16.mxu0 0
        %2296 = vmatpush1.bf16.msra.mxu0 %v2291
        %2297 = vmatprep.subr.bf16.mxu0 0
        %2298 = vmatpush1.bf16.msra.mxu0 %v2292
        %2299 = vmatprep.subr.bf16.mxu0 0
        %2300 = vmatpush1.bf16.msra.mxu0 0
        %2301 = vmatprep.subr.bf16.mxu0 0
        %2302 = vmatpush1.bf16.msra.mxu0 0
        %2303 = vmatprep.subr.bf16.mxu0 0
        %2304 = vmatpush1.bf16.msra.mxu0 0
        %2305 = vmatprep.subr.bf16.mxu0 0
        %2306 = vmatpush1.bf16.msra.mxu0 0
        %2307 = vmatprep.subr.bf16.mxu0 0
        %2308 = vmatpush1.bf16.msra.mxu0 0
        %2309 = vmatprep.subr.bf16.mxu0 0
        %2310 = vmatpush1.bf16.msra.mxu0 0
        %2311 = vmatprep.subr.bf16.mxu0 0
        %2312 = vmatpush1.bf16.msra.mxu0 0
        %2313 = vmatprep.subr.bf16.mxu0 0
        %2314 = vmatpush1.bf16.msra.mxu0 0
        %2315 = vmatprep.subr.bf16.mxu0 0
        %2316 = vmatpush1.bf16.msra.mxu0 0
        %2317 = vmatprep.subr.bf16.mxu0 0
        %2318 = vmatpush1.bf16.msra.mxu0 0
        %2319 = vmatprep.subr.bf16.mxu0 0
        %2320 = vmatpush1.bf16.msra.mxu0 0
        %2321 = vmatprep.subr.bf16.mxu0 0
        %2322 = vmatpush1.bf16.msra.mxu0 0
        %2323 = vmatprep.subr.bf16.mxu0 0
        %2324 = vmatpush1.bf16.msra.mxu0 0
        %2325 = vmatprep.subr.bf16.mxu0 0
        %2326 = vmatpush1.bf16.msra.mxu0 0
        %2327 = vmatprep.mubr.bf16.mxu0 0
        %2328 = vmatmul.mubr.bf16.gmra.mrb[0].mxu0 %v1855
        %v2329 = vpop.f32.mrb[0].mxu0
        %v2330 = vadd.f32 %v2281, %v2329
        %v2331 = vpop.f32.mrb[0].mxu0
        %v2332 = vpop.f32.mrb[0].mxu0
        %v2333 = vpop.f32.mrb[0].mxu0
        %2334 = vdwg.mxu0
        %v2335 = vpack.c.bf16 %v2200, %v2200
        %v2336 = vpack.c.bf16 %v2265, %v2265
        %v2338 = vsel %vm1094, %v2335, 0
        %v2341 = vsel %vm1094, %v2336, 0
        %2343 = vmatprep.subr.bf16.mxu0 0
        %2344 = vmatpush1.bf16.xpose.msra.mxu0 %v2341
        %2345 = vmatprep.subr.bf16.mxu0 0
        %2346 = vmatpush1.bf16.xpose.msra.mxu0 0
        %2347 = vmatprep.subr.bf16.mxu0 0
        %2348 = vmatpush1.bf16.xpose.msra.mxu0 0
        %2349 = vmatprep.subr.bf16.mxu0 0
        %2350 = vmatpush1.bf16.xpose.msra.mxu0 0
        %2351 = vmatprep.subr.bf16.mxu0 0
        %2352 = vmatpush1.bf16.xpose.msra.mxu0 0
        %2353 = vmatprep.subr.bf16.mxu0 0
        %2354 = vmatpush1.bf16.xpose.msra.mxu0 0
        %2355 = vmatprep.subr.bf16.mxu0 0
        %2356 = vmatpush1.bf16.xpose.msra.mxu0 0
        %2357 = vmatprep.subr.bf16.mxu0 0
        %2358 = vmatpush1.bf16.xpose.msra.mxu0 0
        %2359 = vmatprep.subr.bf16.mxu0 0
        %2360 = vmatpush1.bf16.xpose.msra.mxu0 0
        %2361 = vmatprep.subr.bf16.mxu0 0
        %2362 = vmatpush1.bf16.xpose.msra.mxu0 0
        %2363 = vmatprep.subr.bf16.mxu0 0
        %2364 = vmatpush1.bf16.xpose.msra.mxu0 0
        %2365 = vmatprep.subr.bf16.mxu0 0
        %2366 = vmatpush1.bf16.xpose.msra.mxu0 0
        %2367 = vmatprep.subr.bf16.mxu0 0
        %2368 = vmatpush1.bf16.xpose.msra.mxu0 0
        %2369 = vmatprep.subr.bf16.mxu0 0
        %2370 = vmatpush1.bf16.xpose.msra.mxu0 0
        %2371 = vmatprep.subr.bf16.mxu0 0
        %2372 = vmatpush1.bf16.xpose.msra.mxu0 0
        %2373 = vmatprep.subr.bf16.mxu0 0
        %2374 = vmatpush1.bf16.xpose.msra.mxu0 0
        %2375 = vmatprep.mubr.bf16.mxu0 0
        %2376 = vmatmul.mubr.bf16.gmra.mrb[0].mxu0 %v2338
        %v2377 = vpop.f32.mrb[0].mxu0
        %v2378 = vadd.f32 0.0, %v2377
        %v2379 = vpop.f32.mrb[0].mxu0
        %v2380 = vpop.f32.mrb[0].mxu0
        %v2381 = vpop.f32.mrb[0].mxu0
        %2382 = vdwg.mxu0
        %v2383 = vmul.f32 %v2378, 0.25
        %v2384 = vadd.f32 %v2383, %v1146
        %v2385 = vsel %vm1149, %v2384, -inf
        %2386 = vmax.xlane.f32.xlu0 %v2385
        %v2387 = vpop.xlane.xlu0 %2386
        %v2388 = vsub.f32 %v2384, %v2387
        %v2389 = vmul.f32 %v2388, 1.442695
        %v2390 = vpow.pop %v2389
        %v2391 = vsel %vm1149, %v2390, 0.0
        %2392 = vadd.xlane.f32.xlu0 %v2391
        %v2393 = vpop.xlane.xlu0 %2392
        %v2394 = vrcp.pop %v2393
        %v2395 = vmul.f32 %v2390, %v2394
        %v2396 = vpack.c.bf16 %v2395, %v2395
        %v2397 = vpack.c.bf16 %v2330, %v2330
        %v2399 = vsel %vm1149, %v2396, 0
        %v2402 = vsel %vm1166, %v2397, 0
        %2404 = vmatprep.subr.bf16.mxu0 0
        %2405 = vmatpush1.bf16.msra.mxu0 %v2402
        %2406 = vmatprep.subr.bf16.mxu0 0
        %2407 = vmatpush1.bf16.msra.mxu0 0
        %2408 = vmatprep.subr.bf16.mxu0 0
        %2409 = vmatpush1.bf16.msra.mxu0 0
        %2410 = vmatprep.subr.bf16.mxu0 0
        %2411 = vmatpush1.bf16.msra.mxu0 0
        %2412 = vmatprep.subr.bf16.mxu0 0
        %2413 = vmatpush1.bf16.msra.mxu0 0
        %2414 = vmatprep.subr.bf16.mxu0 0
        %2415 = vmatpush1.bf16.msra.mxu0 0
        %2416 = vmatprep.subr.bf16.mxu0 0
        %2417 = vmatpush1.bf16.msra.mxu0 0
        %2418 = vmatprep.subr.bf16.mxu0 0
        %2419 = vmatpush1.bf16.msra.mxu0 0
        %2420 = vmatprep.subr.bf16.mxu0 0
        %2421 = vmatpush1.bf16.msra.mxu0 0
        %2422 = vmatprep.subr.bf16.mxu0 0
        %2423 = vmatpush1.bf16.msra.mxu0 0
        %2424 = vmatprep.subr.bf16.mxu0 0
        %2425 = vmatpush1.bf16.msra.mxu0 0
        %2426 = vmatprep.subr.bf16.mxu0 0
        %2427 = vmatpush1.bf16.msra.mxu0 0
        %2428 = vmatprep.subr.bf16.mxu0 0
        %2429 = vmatpush1.bf16.msra.mxu0 0
        %2430 = vmatprep.subr.bf16.mxu0 0
        %2431 = vmatpush1.bf16.msra.mxu0 0
        %2432 = vmatprep.subr.bf16.mxu0 0
        %2433 = vmatpush1.bf16.msra.mxu0 0
        %2434 = vmatprep.subr.bf16.mxu0 0
        %2435 = vmatpush1.bf16.msra.mxu0 0
        %2436 = vmatprep.mubr.bf16.mxu0 0
        %2437 = vmatmul.mubr.bf16.gmra.mrb[0].mxu0 %v2399
        %v2438 = vpop.f32.mrb[0].mxu0
        %v2439 = vadd.f32 0.0, %v2438
        %v2440 = vpop.f32.mrb[0].mxu0
        %v2441 = vpop.f32.mrb[0].mxu0
        %v2442 = vpop.f32.mrb[0].mxu0
        %2443 = vdwg.mxu0
        %v2444 = vpack.c.bf16 %v2439, %v2439
        %s2445 = scalar_lea.vmem [#allocation5], 24
        %v2446 = vld [vmem:[%s2445] sm:$0xf]
        %v2447 = vld [vmem:[%s2445 + $0x4] sm:$0xf]
        %v2450 = vunpack.c.l.b16 %v2446
        %v2451 = vunpack.c.l.b16 %v2447
        %v2452 = vpack.c.b16 %v2451, %v2450
        %v2455 = vsel %vm1094, %v2444, 0
        %2457 = vmatprep.subr.bf16.mxu0 0
        %2458 = vmatpush1.bf16.msra.mxu0 %v2452
        %2459 = vmatprep.subr.bf16.mxu0 0
        %2460 = vmatpush1.bf16.msra.mxu0 0
        %2461 = vmatprep.subr.bf16.mxu0 0
        %2462 = vmatpush1.bf16.msra.mxu0 0
        %2463 = vmatprep.subr.bf16.mxu0 0
        %2464 = vmatpush1.bf16.msra.mxu0 0
        %2465 = vmatprep.subr.bf16.mxu0 0
        %2466 = vmatpush1.bf16.msra.mxu0 0
        %2467 = vmatprep.subr.bf16.mxu0 0
        %2468 = vmatpush1.bf16.msra.mxu0 0
        %2469 = vmatprep.subr.bf16.mxu0 0
        %2470 = vmatpush1.bf16.msra.mxu0 0
        %2471 = vmatprep.subr.bf16.mxu0 0
        %2472 = vmatpush1.bf16.msra.mxu0 0
        %2473 = vmatprep.subr.bf16.mxu0 0
        %2474 = vmatpush1.bf16.msra.mxu0 0
        %2475 = vmatprep.subr.bf16.mxu0 0
        %2476 = vmatpush1.bf16.msra.mxu0 0
        %2477 = vmatprep.subr.bf16.mxu0 0
        %2478 = vmatpush1.bf16.msra.mxu0 0
        %2479 = vmatprep.subr.bf16.mxu0 0
        %2480 = vmatpush1.bf16.msra.mxu0 0
        %2481 = vmatprep.subr.bf16.mxu0 0
        %2482 = vmatpush1.bf16.msra.mxu0 0
        %2483 = vmatprep.subr.bf16.mxu0 0
        %2484 = vmatpush1.bf16.msra.mxu0 0
        %2485 = vmatprep.subr.bf16.mxu0 0
        %2486 = vmatpush1.bf16.msra.mxu0 0
        %2487 = vmatprep.subr.bf16.mxu0 0
        %2488 = vmatpush1.bf16.msra.mxu0 0
        %2489 = vmatprep.mubr.bf16.mxu0 0
        %2490 = vmatmul.mubr.bf16.gmra.mrb[0].mxu0 %v2455
        %v2491 = vpop.f32.mrb[0].mxu0
        %v2492 = vadd.f32 0.0, %v2491
        %v2493 = vpop.f32.mrb[0].mxu0
        %v2494 = vpop.f32.mrb[0].mxu0
        %v2495 = vpop.f32.mrb[0].mxu0
        %2496 = vdwg.mxu0
        %v2499 = vunpack.c.l.b16 %v2138
        %v2500 = vunpack.c.l.b16 %v2139
        %v2501 = vpack.c.b16 %v2500, %v2499
        %v2504 = vsel %vm1094, %v2136, 0
        %2506 = vmatprep.subr.bf16.mxu0 0
        %2507 = vmatpush1.bf16.msra.mxu0 %v2501
        %2508 = vmatprep.subr.bf16.mxu0 0
        %2509 = vmatpush1.bf16.msra.mxu0 0
        %2510 = vmatprep.subr.bf16.mxu0 0
        %2511 = vmatpush1.bf16.msra.mxu0 0
        %2512 = vmatprep.subr.bf16.mxu0 0
        %2513 = vmatpush1.bf16.msra.mxu0 0
        %2514 = vmatprep.subr.bf16.mxu0 0
        %2515 = vmatpush1.bf16.msra.mxu0 0
        %2516 = vmatprep.subr.bf16.mxu0 0
        %2517 = vmatpush1.bf16.msra.mxu0 0
        %2518 = vmatprep.subr.bf16.mxu0 0
        %2519 = vmatpush1.bf16.msra.mxu0 0
        %2520 = vmatprep.subr.bf16.mxu0 0
        %2521 = vmatpush1.bf16.msra.mxu0 0
        %2522 = vmatprep.subr.bf16.mxu0 0
        %2523 = vmatpush1.bf16.msra.mxu0 0
        %2524 = vmatprep.subr.bf16.mxu0 0
        %2525 = vmatpush1.bf16.msra.mxu0 0
        %2526 = vmatprep.subr.bf16.mxu0 0
        %2527 = vmatpush1.bf16.msra.mxu0 0
        %2528 = vmatprep.subr.bf16.mxu0 0
        %2529 = vmatpush1.bf16.msra.mxu0 0
        %2530 = vmatprep.subr.bf16.mxu0 0
        %2531 = vmatpush1.bf16.msra.mxu0 0
        %2532 = vmatprep.subr.bf16.mxu0 0
        %2533 = vmatpush1.bf16.msra.mxu0 0
        %2534 = vmatprep.subr.bf16.mxu0 0
        %2535 = vmatpush1.bf16.msra.mxu0 0
        %2536 = vmatprep.subr.bf16.mxu0 0
        %2537 = vmatpush1.bf16.msra.mxu0 0
        %2538 = vmatprep.mubr.bf16.mxu0 0
        %2539 = vmatmul.mubr.bf16.gmra.mrb[0].mxu0 %v2504
        %v2540 = vpop.f32.mrb[0].mxu0
        %v2541 = vadd.f32 %v2492, %v2540
        %v2542 = vpop.f32.mrb[0].mxu0
        %v2543 = vpop.f32.mrb[0].mxu0
        %v2544 = vpop.f32.mrb[0].mxu0
        %2545 = vdwg.mxu0
        %v2546 = vlaneseq
        %v2547 = vshrl.u32 %v2546, 7
        %v2548 = vsub.s32 0, %v2547
        %v2549 = vrot.slane %v1827, %v2548
        %v2550 = vadd.f32 %v2541, %v2549
        %v2551 = vadd.f32 %v1825, %v2550
        %v2552 = vsel %vm869, %v2551, 0.0
        %2553 = vadd.xlane.f32.xlu0 %v2552
        %v2554 = vpop.xlane.xlu0 %2553
        %v2555 = vmul.f32 %v2554, %v873
        %v2556 = vsub.f32 %v2551, %v2555
        %v2557 = vmul.f32 %v2556, %v2556
        %v2558 = vsel %vm869, %v2557, 0.0
        %2559 = vadd.xlane.f32.xlu0 %v2558
        %v2560 = vpop.xlane.xlu0 %2559
        %v2561 = vmul.f32 %v2560, %v873
        %v2562 = vadd.f32 %v2561, 1e-12
        %v2563 = vrsqrt.pop %v2562
        %v2564 = vmul.f32 %v2556, %v2563
        %v2565 = vlaneseq
        %v2566 = vshrl.u32 %v2565, 7
        %v2567 = vsub.s32 1, %v2566
        %v2568 = vrot.slane %v1827, %v2567
        %v2569 = vmul.f32 %v2564, %v2568
        %v2570 = vlaneseq
        %v2571 = vshrl.u32 %v2570, 7
        %v2572 = vsub.s32 2, %v2571
        %v2573 = vrot.slane %v1827, %v2572
        %v2574 = vadd.f32 %v2569, %v2573
        %v2575 = vpack.c.bf16 %v2574, %v2574
        %s2576 = scalar_lea.vmem [#allocation7], 16
        %v2577 = vld [vmem:[%s2576] sm:$0xf]
        %v2578 = vld [vmem:[%s2576 + $0x4] sm:$0xf]
        %v2579 = vld [vmem:[%s2576 + $0x8] sm:$0xf]
        %v2580 = vld [vmem:[%s2576 + $0xc] sm:$0xf]
        %v2581 = vlaneseq
        %v2582 = vshrl.u32 %v2581, 7
        %v2583 = vsub.s32 3, %v2582
        %v2584 = vrot.slane %v1827, %v2583
        %v2589 = vunpack.c.l.b16 %v2577
        %v2590 = vunpack.c.l.b16 %v2578
        %v2591 = vunpack.c.l.b16 %v2579
        %v2592 = vunpack.c.l.b16 %v2580
        %v2593 = vpack.c.b16 %v2590, %v2589
        %v2594 = vpack.c.b16 %v2592, %v2591
        %v2598 = vsel %vm869, %v2575, 0
        %2600 = vmatprep.subr.bf16.mxu0 0
        %2601 = vmatpush1.bf16.msra.mxu0 %v2593
        %2602 = vmatprep.subr.bf16.mxu0 0
        %2603 = vmatpush1.bf16.msra.mxu0 %v2594
        %2604 = vmatprep.subr.bf16.mxu0 0
        %2605 = vmatpush1.bf16.msra.mxu0 0
        %2606 = vmatprep.subr.bf16.mxu0 0
        %2607 = vmatpush1.bf16.msra.mxu0 0
        %2608 = vmatprep.subr.bf16.mxu0 0
        %2609 = vmatpush1.bf16.msra.mxu0 0
        %2610 = vmatprep.subr.bf16.mxu0 0
        %2611 = vmatpush1.bf16.msra.mxu0 0
        %2612 = vmatprep.subr.bf16.mxu0 0
        %2613 = vmatpush1.bf16.msra.mxu0 0
        %2614 = vmatprep.subr.bf16.mxu0 0
        %2615 = vmatpush1.bf16.msra.mxu0 0
        %2616 = vmatprep.subr.bf16.mxu0 0
        %2617 = vmatpush1.bf16.msra.mxu0 0
        %2618 = vmatprep.subr.bf16.mxu0 0
        %2619 = vmatpush1.bf16.msra.mxu0 0
        %2620 = vmatprep.subr.bf16.mxu0 0
        %2621 = vmatpush1.bf16.msra.mxu0 0
        %2622 = vmatprep.subr.bf16.mxu0 0
        %2623 = vmatpush1.bf16.msra.mxu0 0
        %2624 = vmatprep.subr.bf16.mxu0 0
        %2625 = vmatpush1.bf16.msra.mxu0 0
        %2626 = vmatprep.subr.bf16.mxu0 0
        %2627 = vmatpush1.bf16.msra.mxu0 0
        %2628 = vmatprep.subr.bf16.mxu0 0
        %2629 = vmatpush1.bf16.msra.mxu0 0
        %2630 = vmatprep.subr.bf16.mxu0 0
        %2631 = vmatpush1.bf16.msra.mxu0 0
        %2632 = vmatprep.mubr.bf16.mxu0 0
        %2633 = vmatmul.mubr.bf16.gmra.mrb[0].mxu0 %v2598
        %v2634 = vpop.f32.mrb[0].mxu0
        %v2635 = vadd.f32 %v2584, %v2634
        %v2636 = vpop.f32.mrb[0].mxu0
        %v2637 = vpop.f32.mrb[0].mxu0
        %v2638 = vpop.f32.mrb[0].mxu0
        %2639 = vdwg.mxu0
        %v2640 = vmul.f32 %v2635, %v2635
        %v2641 = vmul.f32 %v2635, %v2640
        %v2642 = vmul.f32 %v2641, 0.044715
        %v2643 = vadd.f32 %v2635, %v2642
        %v2644 = vmul.f32 %v2643, 0.7978846
        %v2645 = vtanh.pop %v2644
        %v2646 = vadd.f32 %v2645, 1.0
        %v2647 = vmul.f32 %v2646, 0.5
        %v2648 = vmul.f32 %v2635, %v2647
        %v2649 = vpack.c.bf16 %v2648, %v2648
        %s2650 = scalar_lea.vmem [#allocation8], 32
        %v2651 = vld [vmem:[%s2650] sm:$0xf]
        %v2652 = vld [vmem:[%s2650 + $0x4] sm:$0xf]
        %v2653 = vld [vmem:[%s2650 + $0x8] sm:$0xf]
        %v2654 = vld [vmem:[%s2650 + $0xc] sm:$0xf]
        %v2655 = vld [vmem:[%s2650 + $0x10] sm:$0xf]
        %v2656 = vld [vmem:[%s2650 + $0x14] sm:$0xf]
        %v2657 = vld [vmem:[%s2650 + $0x18] sm:$0xf]
        %v2658 = vld [vmem:[%s2650 + $0x1c] sm:$0xf]
        %v2659 = vlaneseq
        %v2660 = vshrl.u32 %v2659, 7
        %v2661 = vsub.s32 4, %v2660
        %v2662 = vrot.slane %v1827, %v2661
        %v2671 = vunpack.c.l.b16 %v2651
        %v2672 = vunpack.c.l.b16 %v2652
        %v2673 = vunpack.c.l.b16 %v2653
        %v2674 = vunpack.c.l.b16 %v2654
        %v2675 = vunpack.c.l.b16 %v2655
        %v2676 = vunpack.c.l.b16 %v2656
        %v2677 = vunpack.c.l.b16 %v2657
        %v2678 = vunpack.c.l.b16 %v2658
        %v2679 = vpack.c.b16 %v2672, %v2671
        %v2680 = vpack.c.b16 %v2674, %v2673
        %v2681 = vpack.c.b16 %v2676, %v2675
        %v2682 = vpack.c.b16 %v2678, %v2677
        %v2688 = vsel %vm1758, %v2649, 0
        %2690 = vmatprep.subr.bf16.mxu0 0
        %2691 = vmatpush1.bf16.msra.mxu0 %v2679
        %2692 = vmatprep.subr.bf16.mxu0 0
        %2693 = vmatpush1.bf16.msra.mxu0 %v2680
        %2694 = vmatprep.subr.bf16.mxu0 0
        %2695 = vmatpush1.bf16.msra.mxu0 %v2681
        %2696 = vmatprep.subr.bf16.mxu0 0
        %2697 = vmatpush1.bf16.msra.mxu0 %v2682
        %2698 = vmatprep.subr.bf16.mxu0 0
        %2699 = vmatpush1.bf16.msra.mxu0 0
        %2700 = vmatprep.subr.bf16.mxu0 0
        %2701 = vmatpush1.bf16.msra.mxu0 0
        %2702 = vmatprep.subr.bf16.mxu0 0
        %2703 = vmatpush1.bf16.msra.mxu0 0
        %2704 = vmatprep.subr.bf16.mxu0 0
        %2705 = vmatpush1.bf16.msra.mxu0 0
        %2706 = vmatprep.subr.bf16.mxu0 0
        %2707 = vmatpush1.bf16.msra.mxu0 0
        %2708 = vmatprep.subr.bf16.mxu0 0
        %2709 = vmatpush1.bf16.msra.mxu0 0
        %2710 = vmatprep.subr.bf16.mxu0 0
        %2711 = vmatpush1.bf16.msra.mxu0 0
        %2712 = vmatprep.subr.bf16.mxu0 0
        %2713 = vmatpush1.bf16.msra.mxu0 0
        %2714 = vmatprep.subr.bf16.mxu0 0
        %2715 = vmatpush1.bf16.msra.mxu0 0
        %2716 = vmatprep.subr.bf16.mxu0 0
        %2717 = vmatpush1.bf16.msra.mxu0 0
        %2718 = vmatprep.subr.bf16.mxu0 0
        %2719 = vmatpush1.bf16.msra.mxu0 0
        %2720 = vmatprep.subr.bf16.mxu0 0
        %2721 = vmatpush1.bf16.msra.mxu0 0
        %2722 = vmatprep.mubr.bf16.mxu0 0
        %2723 = vmatmul.mubr.bf16.gmra.mrb[0].mxu0 %v2688
        %v2724 = vpop.f32.mrb[0].mxu0
        %v2725 = vadd.f32 %v2662, %v2724
        %v2726 = vpop.f32.mrb[0].mxu0
        %v2727 = vpop.f32.mrb[0].mxu0
        %v2728 = vpop.f32.mrb[0].mxu0
        %2729 = vdwg.mxu0
        %v2730 = vadd.f32 %v2574, %v2725
        %v2731 = vsel %vm869, %v2730, 0.0
        %2732 = vadd.xlane.f32.xlu0 %v2731
        %v2733 = vpop.xlane.xlu0 %2732
        %v2734 = vmul.f32 %v2733, %v873
        %v2735 = vsub.f32 %v2730, %v2734
        %v2736 = vmul.f32 %v2735, %v2735
        %v2737 = vsel %vm869, %v2736, 0.0
        %2738 = vadd.xlane.f32.xlu0 %v2737
        %v2739 = vpop.xlane.xlu0 %2738
        %v2740 = vmul.f32 %v2739, %v873
        %v2741 = vadd.f32 %v2740, 1e-12
        %v2742 = vrsqrt.pop %v2741
        %v2743 = vmul.f32 %v2735, %v2742
        %v2744 = vlaneseq
        %v2745 = vshrl.u32 %v2744, 7
        %v2746 = vsub.s32 5, %v2745
        %v2747 = vrot.slane %v1827, %v2746
        %v2748 = vmul.f32 %v2743, %v2747
        %v2749 = vlaneseq
        %v2750 = vshrl.u32 %v2749, 7
        %v2751 = vsub.s32 6, %v2750
        %v2752 = vrot.slane %v1827, %v2751
        %v2753 = vadd.f32 %v2748, %v2752
        %v2754 = vpack.c.bf16 %v2753, %v2753
        %v2755 = vld [vmem:[#allocation11] sm:$0xf]
        %v2756 = vld [vmem:[#allocation11 + $0x4] sm:$0xf]
        %v2757 = vld [vmem:[#allocation11 + $0x8] sm:$0xf]
        %v2758 = vld [vmem:[#allocation11 + $0xc] sm:$0xf]
        %v2759 = vld [vmem:[#allocation13] sm:$0x1]
        %v2760 = vlaneseq
        %v2761 = vshrl.u32 %v2760, 7
        %v2762 = vsub.s32 0, %v2761
        %v2763 = vrot.slane %v2759, %v2762
        %v2768 = vunpack.c.l.b16 %v2755
        %v2769 = vunpack.c.l.b16 %v2756
        %v2770 = vunpack.c.l.b16 %v2757
        %v2771 = vunpack.c.l.b16 %v2758
        %v2772 = vpack.c.b16 %v2769, %v2768
        %v2773 = vpack.c.b16 %v2771, %v2770
        %v2777 = vsel %vm869, %v2754, 0
        %2779 = vmatprep.subr.bf16.mxu0 0
        %2780 = vmatpush1.bf16.msra.mxu0 %v2772
        %2781 = vmatprep.subr.bf16.mxu0 0
        %2782 = vmatpush1.bf16.msra.mxu0 %v2773
        %2783 = vmatprep.subr.bf16.mxu0 0
        %2784 = vmatpush1.bf16.msra.mxu0 0
        %2785 = vmatprep.subr.bf16.mxu0 0
        %2786 = vmatpush1.bf16.msra.mxu0 0
        %2787 = vmatprep.subr.bf16.mxu0 0
        %2788 = vmatpush1.bf16.msra.mxu0 0
        %2789 = vmatprep.subr.bf16.mxu0 0
        %2790 = vmatpush1.bf16.msra.mxu0 0
        %2791 = vmatprep.subr.bf16.mxu0 0
        %2792 = vmatpush1.bf16.msra.mxu0 0
        %2793 = vmatprep.subr.bf16.mxu0 0
        %2794 = vmatpush1.bf16.msra.mxu0 0
        %2795 = vmatprep.subr.bf16.mxu0 0
        %2796 = vmatpush1.bf16.msra.mxu0 0
        %2797 = vmatprep.subr.bf16.mxu0 0
        %2798 = vmatpush1.bf16.msra.mxu0 0
        %2799 = vmatprep.subr.bf16.mxu0 0
        %2800 = vmatpush1.bf16.msra.mxu0 0
        %2801 = vmatprep.subr.bf16.mxu0 0
        %2802 = vmatpush1.bf16.msra.mxu0 0
        %2803 = vmatprep.subr.bf16.mxu0 0
        %2804 = vmatpush1.bf16.msra.mxu0 0
        %2805 = vmatprep.subr.bf16.mxu0 0
        %2806 = vmatpush1.bf16.msra.mxu0 0
        %2807 = vmatprep.subr.bf16.mxu0 0
        %2808 = vmatpush1.bf16.msra.mxu0 0
        %2809 = vmatprep.subr.bf16.mxu0 0
        %2810 = vmatpush1.bf16.msra.mxu0 0
        %2811 = vmatprep.mubr.bf16.mxu0 0
        %2812 = vmatmul.mubr.bf16.gmra.mrb[0].mxu0 %v2777
        %v2813 = vpop.f32.mrb[0].mxu0
        %v2814 = vadd.f32 %v2763, %v2813
        %v2815 = vpop.f32.mrb[0].mxu0
        %v2816 = vpop.f32.mrb[0].mxu0
        %v2817 = vpop.f32.mrb[0].mxu0
        %2818 = vdwg.mxu0
        %v2819 = vmul.f32 %v2814, %v2814
        %v2820 = vmul.f32 %v2814, %v2819
        %v2821 = vmul.f32 %v2820, 0.044715
        %v2822 = vadd.f32 %v2814, %v2821
        %v2823 = vmul.f32 %v2822, 0.7978846
        %v2824 = vtanh.pop %v2823
        %v2825 = vadd.f32 %v2824, 1.0
        %v2826 = vmul.f32 %v2825, 0.5
        %v2827 = vmul.f32 %v2814, %v2826
        %v2828 = vld [vmem:[#allocation13 + $0x1] sm:$0x1]
        %v2829 = vld [vmem:[#allocation13 + $0x2] sm:$0x1]
        %v2830 = vsel %vm869, %v2827, 0.0
        %2831 = vadd.xlane.f32.xlu0 %v2830
        %v2832 = vpop.xlane.xlu0 %2831
        %v2833 = vmul.f32 %v2832, %v873
        %v2834 = vsub.f32 %v2827, %v2833
        %v2835 = vmul.f32 %v2834, %v2834
        %v2836 = vsel %vm869, %v2835, 0.0
        %2837 = vadd.xlane.f32.xlu0 %v2836
        %v2838 = vpop.xlane.xlu0 %2837
        %v2839 = vmul.f32 %v2838, %v873
        %v2840 = vadd.f32 %v2839, 1e-12
        %v2841 = vrsqrt.pop %v2840
        %v2842 = vmul.f32 %v2834, %v2841
        %v2843 = vlaneseq
        %v2844 = vshrl.u32 %v2843, 7
        %v2845 = vsub.s32 0, %v2844
        %v2846 = vrot.slane %v2828, %v2845
        %v2847 = vmul.f32 %v2842, %v2846
        %v2848 = vlaneseq
        %v2849 = vshrl.u32 %v2848, 7
        %v2850 = vsub.s32 0, %v2849
        %v2851 = vrot.slane %v2829, %v2850
        %v2852 = vadd.f32 %v2847, %v2851
        %v2853 = vpack.c.bf16 %v2852, %v2852
        %v2854 = vld [vmem:[#allocation14] sm:$0xf]
        %v2855 = vld [vmem:[#allocation14 + $0x4] sm:$0xf]
        %v2856 = vld [vmem:[#allocation14 + $0x8] sm:$0xf]
        %v2857 = vld [vmem:[#allocation14 + $0xc] sm:$0xf]
        %v2858 = vld [vmem:[%s15] sm:$0x1]
        %v2860 = vlaneseq
        %v2861 = vshrl.u32 %v2860, 7
        %v2862 = vsub.s32 0, %v2861
        %v2863 = vrot.slane %v2858, %v2862
        %v2869 = vunpack.c.l.b16 %v2854
        %v2870 = vunpack.c.l.b16 %v2855
        %v2871 = vunpack.c.l.b16 %v2856
        %v2872 = vunpack.c.l.b16 %v2857
        %v2873 = vpack.c.b16 %v2870, %v2869
        %v2874 = vpack.c.b16 %v2872, %v2871
        %v2878 = vsel %vm869, %v2853, 0
        %2880 = vmatprep.subr.bf16.mxu0 0
        %2881 = vmatpush1.bf16.msra.mxu0 %v2873
        %2882 = vmatprep.subr.bf16.mxu0 0
        %2883 = vmatpush1.bf16.msra.mxu0 %v2874
        %2884 = vmatprep.subr.bf16.mxu0 0
        %2885 = vmatpush1.bf16.msra.mxu0 0
        %2886 = vmatprep.subr.bf16.mxu0 0
        %2887 = vmatpush1.bf16.msra.mxu0 0
        %2888 = vmatprep.subr.bf16.mxu0 0
        %2889 = vmatpush1.bf16.msra.mxu0 0
        %2890 = vmatprep.subr.bf16.mxu0 0
        %2891 = vmatpush1.bf16.msra.mxu0 0
        %2892 = vmatprep.subr.bf16.mxu0 0
        %2893 = vmatpush1.bf16.msra.mxu0 0
        %2894 = vmatprep.subr.bf16.mxu0 0
        %2895 = vmatpush1.bf16.msra.mxu0 0
        %2896 = vmatprep.subr.bf16.mxu0 0
        %2897 = vmatpush1.bf16.msra.mxu0 0
        %2898 = vmatprep.subr.bf16.mxu0 0
        %2899 = vmatpush1.bf16.msra.mxu0 0
        %2900 = vmatprep.subr.bf16.mxu0 0
        %2901 = vmatpush1.bf16.msra.mxu0 0
        %2902 = vmatprep.subr.bf16.mxu0 0
        %2903 = vmatpush1.bf16.msra.mxu0 0
        %2904 = vmatprep.subr.bf16.mxu0 0
        %2905 = vmatpush1.bf16.msra.mxu0 0
        %2906 = vmatprep.subr.bf16.mxu0 0
        %2907 = vmatpush1.bf16.msra.mxu0 0
        %2908 = vmatprep.subr.bf16.mxu0 0
        %2909 = vmatpush1.bf16.msra.mxu0 0
        %2910 = vmatprep.subr.bf16.mxu0 0
        %2911 = vmatpush1.bf16.msra.mxu0 0
        %2912 = vmatprep.mubr.bf16.mxu0 0
        %2913 = vmatmul.mubr.bf16.gmra.mrb[0].mxu0 %v2878
        %v2914 = vpop.f32.mrb[0].mxu0
        %v2915 = vadd.f32 %v2863, %v2914
        %v2916 = vpop.f32.mrb[0].mxu0
        %v2917 = vpop.f32.mrb[0].mxu0
        %v2918 = vpop.f32.mrb[0].mxu0
        %2919 = vdwg.mxu0
        %2920 = vst [vmem:[%s861] sm:$0xff] %v2915
        %2921 = vmax.xlane.f32.xlu0 %v2915
        %v2922 = vpop.xlane.xlu0 %2921
        %v2923 = vlaneseq
        %v2924 = vand.u32 %v2923, 127
        %v2925 = vcvt.s32.f32 %v2924
        %vm2926 = vcmp.ge.f32.partialorder %v2915, %v2922
        %v2927 = vsel %vm2926, %v2925, 128.0
        %2928 = vmin.xlane.f32.xlu0 %v2927
        %v2929 = vpop.xlane.xlu0 %2928
        %vm2930 = vcmp.eq.f32.partialorder %v2925, %v2929
        %v2931 = vsel %vm2930, 1, 0
        %v2932 = vcvt.s32.f32 %v2931
        %v2933 = vpack.c.bf16 %v2932, %v2932
        %v2934 = vld [vmem:[%s16] sm:$0xf]
        %v2935 = vld [vmem:[%s16 + $0x4] sm:$0xf]
        %v2936 = vld [vmem:[%s16 + $0x8] sm:$0xf]
        %v2937 = vld [vmem:[%s16 + $0xc] sm:$0xf]
        %v2938 = vld [vmem:[%s16 + $0x10] sm:$0xf]
        %v2939 = vld [vmem:[%s16 + $0x14] sm:$0xf]
        %v2940 = vld [vmem:[%s16 + $0x18] sm:$0xf]
        %v2941 = vld [vmem:[%s16 + $0x1c] sm:$0xf]
        %v2950 = vunpack.c.l.b16 %v2934
        %v2951 = vunpack.c.l.b16 %v2935
        %v2952 = vunpack.c.l.b16 %v2936
        %v2953 = vunpack.c.l.b16 %v2937
        %v2954 = vunpack.c.l.b16 %v2938
        %v2955 = vunpack.c.l.b16 %v2939
        %v2956 = vunpack.c.l.b16 %v2940
        %v2957 = vunpack.c.l.b16 %v2941
        %v2958 = vpack.c.b16 %v2951, %v2950
        %v2959 = vpack.c.b16 %v2953, %v2952
        %v2960 = vpack.c.b16 %v2955, %v2954
        %v2961 = vpack.c.b16 %v2957, %v2956
        %v2967 = vsel %vm1758, %v2933, 0
        %2969 = vmatprep.subr.bf16.mxu0 0
        %2970 = vmatpush1.bf16.msra.mxu0 %v2958
        %2971 = vmatprep.subr.bf16.mxu0 0
        %2972 = vmatpush1.bf16.msra.mxu0 %v2959
        %2973 = vmatprep.subr.bf16.mxu0 0
        %2974 = vmatpush1.bf16.msra.mxu0 %v2960
        %2975 = vmatprep.subr.bf16.mxu0 0
        %2976 = vmatpush1.bf16.msra.mxu0 %v2961
        %2977 = vmatprep.subr.bf16.mxu0 0
        %2978 = vmatpush1.bf16.msra.mxu0 0
        %2979 = vmatprep.subr.bf16.mxu0 0
        %2980 = vmatpush1.bf16.msra.mxu0 0
        %2981 = vmatprep.subr.bf16.mxu0 0
        %2982 = vmatpush1.bf16.msra.mxu0 0
        %2983 = vmatprep.subr.bf16.mxu0 0
        %2984 = vmatpush1.bf16.msra.mxu0 0
        %2985 = vmatprep.subr.bf16.mxu0 0
        %2986 = vmatpush1.bf16.msra.mxu0 0
        %2987 = vmatprep.subr.bf16.mxu0 0
        %2988 = vmatpush1.bf16.msra.mxu0 0
        %2989 = vmatprep.subr.bf16.mxu0 0
        %2990 = vmatpush1.bf16.msra.mxu0 0
        %2991 = vmatprep.subr.bf16.mxu0 0
        %2992 = vmatpush1.bf16.msra.mxu0 0
        %2993 = vmatprep.subr.bf16.mxu0 0
        %2994 = vmatpush1.bf16.msra.mxu0 0
        %2995 = vmatprep.subr.bf16.mxu0 0
        %2996 = vmatpush1.bf16.msra.mxu0 0
        %2997 = vmatprep.subr.bf16.mxu0 0
        %2998 = vmatpush1.bf16.msra.mxu0 0
        %2999 = vmatprep.subr.bf16.mxu0 0
        %3000 = vmatpush1.bf16.msra.mxu0 0
        %3001 = vmatprep.mubr.bf16.mxu0 0
        %3002 = vmatmul.mubr.bf16.gmra.mrb[0].mxu0 %v2967
        %v3003 = vpop.f32.mrb[0].mxu0
        %v3004 = vadd.f32 0.0, %v3003
        %v3005 = vpop.f32.mrb[0].mxu0
        %v3006 = vpop.f32.mrb[0].mxu0
        %v3007 = vpop.f32.mrb[0].mxu0
        %3008 = vdwg.mxu0
        %v3009 = vld [vmem:[%s857] sm:$0xff]
        %3011 = vset.pattern.permute.xlu0 0
        %3012 = vperm.xlu0 %3011, %v3009
        %v3013 = vpop.permute.xlu0 %3012
        %v3015 = vmul.f32 %v3013, %v3004
        %v3016 = vsub.f32 1.0, %v3009
        %v3017 = vld [vmem:[%s853] sm:$0xff]
        %3019 = vset.pattern.permute.xlu0 0
        %3020 = vperm.xlu0 %3019, %v3016
        %v3021 = vpop.permute.xlu0 %3020
        %v3023 = vmul.f32 %v3021, %v3017
        %v3024 = vadd.f32 %v3015, %v3023
        %v3025 = vld [vmem:[#allocation3] sm:$0xff]
        %v3026 = vadd.f32 %v3024, %v3025
        %s3027 = scalar_lea.vmem %s5, 2
        %v3028 = vld [vmem:[%s3027] sm:$0x3]
        %v3029 = vsel %vm869, %v3026, 0.0
        %3030 = vadd.xlane.f32.xlu0 %v3029
        %v3031 = vpop.xlane.xlu0 %3030
        %v3032 = vmul.f32 %v3031, %v873
        %v3033 = vsub.f32 %v3026, %v3032
        %v3034 = vmul.f32 %v3033, %v3033
        %v3035 = vsel %vm869, %v3034, 0.0
        %3036 = vadd.xlane.f32.xlu0 %v3035
        %v3037 = vpop.xlane.xlu0 %3036
        %v3038 = vmul.f32 %v3037, %v873
        %v3039 = vadd.f32 %v3038, 1e-12
        %v3040 = vrsqrt.pop %v3039
        %v3041 = vmul.f32 %v3033, %v3040
        %v3042 = vlaneseq
        %v3043 = vshrl.u32 %v3042, 7
        %v3044 = vsub.s32 0, %v3043
        %v3045 = vrot.slane %v3028, %v3044
        %v3046 = vmul.f32 %v3041, %v3045
        %v3047 = vlaneseq
        %v3048 = vshrl.u32 %v3047, 7
        %v3049 = vsub.s32 1, %v3048
        %v3050 = vrot.slane %v3028, %v3049
        %v3051 = vadd.f32 %v3046, %v3050
        %s3052 = scalar_lea.vmem [#allocation10], 16
        %v3053 = vld [vmem:[%s3052] sm:$0x7f]
        %v3054 = vpack.c.bf16 %v3051, %v3051
        %s3055 = scalar_lea.vmem %s6, 192
        %v3056 = vld [vmem:[%s3055] sm:$0xf]
        %v3057 = vld [vmem:[%s3055 + $0x4] sm:$0xf]
        %v3058 = vld [vmem:[%s3055 + $0x8] sm:$0xf]
        %v3059 = vld [vmem:[%s3055 + $0xc] sm:$0xf]
        %s3060 = scalar_lea.vmem %s7, 12
        %v3061 = vld [vmem:[%s3060] sm:$0x1]
        %v3063 = vlaneseq
        %v3064 = vshrl.u32 %v3063, 7
        %v3065 = vsub.s32 0, %v3064
        %v3066 = vrot.slane %v3061, %v3065
        %v3072 = vunpack.c.l.b16 %v3056
        %v3073 = vunpack.c.l.b16 %v3057
        %v3074 = vunpack.c.l.b16 %v3058
        %v3075 = vunpack.c.l.b16 %v3059
        %v3076 = vpack.c.b16 %v3073, %v3072
        %v3077 = vpack.c.b16 %v3075, %v3074
        %v3081 = vsel %vm869, %v3054, 0
        %3083 = vmatprep.subr.bf16.mxu0 0
        %3084 = vmatpush1.bf16.msra.mxu0 %v3076
        %3085 = vmatprep.subr.bf16.mxu0 0
        %3086 = vmatpush1.bf16.msra.mxu0 %v3077
        %3087 = vmatprep.subr.bf16.mxu0 0
        %3088 = vmatpush1.bf16.msra.mxu0 0
        %3089 = vmatprep.subr.bf16.mxu0 0
        %3090 = vmatpush1.bf16.msra.mxu0 0
        %3091 = vmatprep.subr.bf16.mxu0 0
        %3092 = vmatpush1.bf16.msra.mxu0 0
        %3093 = vmatprep.subr.bf16.mxu0 0
        %3094 = vmatpush1.bf16.msra.mxu0 0
        %3095 = vmatprep.subr.bf16.mxu0 0
        %3096 = vmatpush1.bf16.msra.mxu0 0
        %3097 = vmatprep.subr.bf16.mxu0 0
        %3098 = vmatpush1.bf16.msra.mxu0 0
        %3099 = vmatprep.subr.bf16.mxu0 0
        %3100 = vmatpush1.bf16.msra.mxu0 0
        %3101 = vmatprep.subr.bf16.mxu0 0
        %3102 = vmatpush1.bf16.msra.mxu0 0
        %3103 = vmatprep.subr.bf16.mxu0 0
        %3104 = vmatpush1.bf16.msra.mxu0 0
        %3105 = vmatprep.subr.bf16.mxu0 0
        %3106 = vmatpush1.bf16.msra.mxu0 0
        %3107 = vmatprep.subr.bf16.mxu0 0
        %3108 = vmatpush1.bf16.msra.mxu0 0
        %3109 = vmatprep.subr.bf16.mxu0 0
        %3110 = vmatpush1.bf16.msra.mxu0 0
        %3111 = vmatprep.subr.bf16.mxu0 0
        %3112 = vmatpush1.bf16.msra.mxu0 0
        %3113 = vmatprep.subr.bf16.mxu0 0
        %3114 = vmatpush1.bf16.msra.mxu0 0
        %3115 = vmatprep.mubr.bf16.mxu0 0
        %3116 = vmatmul.mubr.bf16.gmra.mrb[0].mxu0 %v3081
        %v3117 = vpop.f32.mrb[0].mxu0
        %v3118 = vadd.f32 %v3066, %v3117
        %v3119 = vpop.f32.mrb[0].mxu0
        %v3120 = vpop.f32.mrb[0].mxu0
        %v3121 = vpop.f32.mrb[0].mxu0
        %3122 = vdwg.mxu0
        %s3123 = scalar_lea.vmem %s6, 208
        %v3124 = vld [vmem:[%s3123] sm:$0xf]
        %v3125 = vld [vmem:[%s3123 + $0x4] sm:$0xf]
        %v3126 = vld [vmem:[%s3123 + $0x8] sm:$0xf]
        %v3127 = vld [vmem:[%s3123 + $0xc] sm:$0xf]
        %s3128 = scalar_lea.vmem %s7, 13
        %v3129 = vld [vmem:[%s3128] sm:$0x1]
        %v3131 = vlaneseq
        %v3132 = vshrl.u32 %v3131, 7
        %v3133 = vsub.s32 0, %v3132
        %v3134 = vrot.slane %v3129, %v3133
        %v3140 = vunpack.c.l.b16 %v3124
        %v3141 = vunpack.c.l.b16 %v3125
        %v3142 = vunpack.c.l.b16 %v3126
        %v3143 = vunpack.c.l.b16 %v3127
        %v3144 = vpack.c.b16 %v3141, %v3140
        %v3145 = vpack.c.b16 %v3143, %v3142
        %3148 = vmatprep.subr.bf16.mxu0 0
        %3149 = vmatpush1.bf16.msra.mxu0 %v3144
        %3150 = vmatprep.subr.bf16.mxu0 0
        %3151 = vmatpush1.bf16.msra.mxu0 %v3145
        %3152 = vmatprep.subr.bf16.mxu0 0
        %3153 = vmatpush1.bf16.msra.mxu0 0
        %3154 = vmatprep.subr.bf16.mxu0 0
        %3155 = vmatpush1.bf16.msra.mxu0 0
        %3156 = vmatprep.subr.bf16.mxu0 0
        %3157 = vmatpush1.bf16.msra.mxu0 0
        %3158 = vmatprep.subr.bf16.mxu0 0
        %3159 = vmatpush1.bf16.msra.mxu0 0
        %3160 = vmatprep.subr.bf16.mxu0 0
        %3161 = vmatpush1.bf16.msra.mxu0 0
        %3162 = vmatprep.subr.bf16.mxu0 0
        %3163 = vmatpush1.bf16.msra.mxu0 0
        %3164 = vmatprep.subr.bf16.mxu0 0
        %3165 = vmatpush1.bf16.msra.mxu0 0
        %3166 = vmatprep.subr.bf16.mxu0 0
        %3167 = vmatpush1.bf16.msra.mxu0 0
        %3168 = vmatprep.subr.bf16.mxu0 0
        %3169 = vmatpush1.bf16.msra.mxu0 0
        %3170 = vmatprep.subr.bf16.mxu0 0
        %3171 = vmatpush1.bf16.msra.mxu0 0
        %3172 = vmatprep.subr.bf16.mxu0 0
        %3173 = vmatpush1.bf16.msra.mxu0 0
        %3174 = vmatprep.subr.bf16.mxu0 0
        %3175 = vmatpush1.bf16.msra.mxu0 0
        %3176 = vmatprep.subr.bf16.mxu0 0
        %3177 = vmatpush1.bf16.msra.mxu0 0
        %3178 = vmatprep.subr.bf16.mxu0 0
        %3179 = vmatpush1.bf16.msra.mxu0 0
        %3180 = vmatprep.mubr.bf16.mxu0 0
        %3181 = vmatmul.mubr.bf16.gmra.mrb[0].mxu0 %v3081
        %v3182 = vpop.f32.mrb[0].mxu0
        %v3183 = vadd.f32 %v3134, %v3182
        %v3184 = vpop.f32.mrb[0].mxu0
        %v3185 = vpop.f32.mrb[0].mxu0
        %v3186 = vpop.f32.mrb[0].mxu0
        %3187 = vdwg.mxu0
        %s3188 = scalar_lea.vmem %s6, 224
        %v3189 = vld [vmem:[%s3188] sm:$0xf]
        %v3190 = vld [vmem:[%s3188 + $0x4] sm:$0xf]
        %v3191 = vld [vmem:[%s3188 + $0x8] sm:$0xf]
        %v3192 = vld [vmem:[%s3188 + $0xc] sm:$0xf]
        %s3193 = scalar_lea.vmem %s7, 14
        %v3194 = vld [vmem:[%s3193] sm:$0x1]
        %v3196 = vlaneseq
        %v3197 = vshrl.u32 %v3196, 7
        %v3198 = vsub.s32 0, %v3197
        %v3199 = vrot.slane %v3194, %v3198
        %v3205 = vunpack.c.l.b16 %v3189
        %v3206 = vunpack.c.l.b16 %v3190
        %v3207 = vunpack.c.l.b16 %v3191
        %v3208 = vunpack.c.l.b16 %v3192
        %v3209 = vpack.c.b16 %v3206, %v3205
        %v3210 = vpack.c.b16 %v3208, %v3207
        %3213 = vmatprep.subr.bf16.mxu0 0
        %3214 = vmatpush1.bf16.msra.mxu0 %v3209
        %3215 = vmatprep.subr.bf16.mxu0 0
        %3216 = vmatpush1.bf16.msra.mxu0 %v3210
        %3217 = vmatprep.subr.bf16.mxu0 0
        %3218 = vmatpush1.bf16.msra.mxu0 0
        %3219 = vmatprep.subr.bf16.mxu0 0
        %3220 = vmatpush1.bf16.msra.mxu0 0
        %3221 = vmatprep.subr.bf16.mxu0 0
        %3222 = vmatpush1.bf16.msra.mxu0 0
        %3223 = vmatprep.subr.bf16.mxu0 0
        %3224 = vmatpush1.bf16.msra.mxu0 0
        %3225 = vmatprep.subr.bf16.mxu0 0
        %3226 = vmatpush1.bf16.msra.mxu0 0
        %3227 = vmatprep.subr.bf16.mxu0 0
        %3228 = vmatpush1.bf16.msra.mxu0 0
        %3229 = vmatprep.subr.bf16.mxu0 0
        %3230 = vmatpush1.bf16.msra.mxu0 0
        %3231 = vmatprep.subr.bf16.mxu0 0
        %3232 = vmatpush1.bf16.msra.mxu0 0
        %3233 = vmatprep.subr.bf16.mxu0 0
        %3234 = vmatpush1.bf16.msra.mxu0 0
        %3235 = vmatprep.subr.bf16.mxu0 0
        %3236 = vmatpush1.bf16.msra.mxu0 0
        %3237 = vmatprep.subr.bf16.mxu0 0
        %3238 = vmatpush1.bf16.msra.mxu0 0
        %3239 = vmatprep.subr.bf16.mxu0 0
        %3240 = vmatpush1.bf16.msra.mxu0 0
        %3241 = vmatprep.subr.bf16.mxu0 0
        %3242 = vmatpush1.bf16.msra.mxu0 0
        %3243 = vmatprep.subr.bf16.mxu0 0
        %3244 = vmatpush1.bf16.msra.mxu0 0
        %3245 = vmatprep.mubr.bf16.mxu0 0
        %3246 = vmatmul.mubr.bf16.gmra.mrb[0].mxu0 %v3081
        %v3247 = vpop.f32.mrb[0].mxu0
        %v3248 = vadd.f32 %v3199, %v3247
        %v3249 = vpop.f32.mrb[0].mxu0
        %v3250 = vpop.f32.mrb[0].mxu0
        %v3251 = vpop.f32.mrb[0].mxu0
        %3252 = vdwg.mxu0
        %v3253 = vpack.c.bf16 %v3118, %v3118
        %v3254 = vpack.c.bf16 %v3183, %v3183
        %v3256 = vsel %vm1094, %v3253, 0
        %v3259 = vsel %vm1094, %v3254, 0
        %3261 = vmatprep.subr.bf16.mxu0 0
        %3262 = vmatpush1.bf16.xpose.msra.mxu0 %v3259
        %3263 = vmatprep.subr.bf16.mxu0 0
        %3264 = vmatpush1.bf16.xpose.msra.mxu0 0
        %3265 = vmatprep.subr.bf16.mxu0 0
        %3266 = vmatpush1.bf16.xpose.msra.mxu0 0
        %3267 = vmatprep.subr.bf16.mxu0 0
        %3268 = vmatpush1.bf16.xpose.msra.mxu0 0
        %3269 = vmatprep.subr.bf16.mxu0 0
        %3270 = vmatpush1.bf16.xpose.msra.mxu0 0
        %3271 = vmatprep.subr.bf16.mxu0 0
        %3272 = vmatpush1.bf16.xpose.msra.mxu0 0
        %3273 = vmatprep.subr.bf16.mxu0 0
        %3274 = vmatpush1.bf16.xpose.msra.mxu0 0
        %3275 = vmatprep.subr.bf16.mxu0 0
        %3276 = vmatpush1.bf16.xpose.msra.mxu0 0
        %3277 = vmatprep.subr.bf16.mxu0 0
        %3278 = vmatpush1.bf16.xpose.msra.mxu0 0
        %3279 = vmatprep.subr.bf16.mxu0 0
        %3280 = vmatpush1.bf16.xpose.msra.mxu0 0
        %3281 = vmatprep.subr.bf16.mxu0 0
        %3282 = vmatpush1.bf16.xpose.msra.mxu0 0
        %3283 = vmatprep.subr.bf16.mxu0 0
        %3284 = vmatpush1.bf16.xpose.msra.mxu0 0
        %3285 = vmatprep.subr.bf16.mxu0 0
        %3286 = vmatpush1.bf16.xpose.msra.mxu0 0
        %3287 = vmatprep.subr.bf16.mxu0 0
        %3288 = vmatpush1.bf16.xpose.msra.mxu0 0
        %3289 = vmatprep.subr.bf16.mxu0 0
        %3290 = vmatpush1.bf16.xpose.msra.mxu0 0
        %3291 = vmatprep.subr.bf16.mxu0 0
        %3292 = vmatpush1.bf16.xpose.msra.mxu0 0
        %3293 = vmatprep.mubr.bf16.mxu0 0
        %3294 = vmatmul.mubr.bf16.gmra.mrb[0].mxu0 %v3256
        %v3295 = vpop.f32.mrb[0].mxu0
        %v3296 = vadd.f32 0.0, %v3295
        %v3297 = vpop.f32.mrb[0].mxu0
        %v3298 = vpop.f32.mrb[0].mxu0
        %v3299 = vpop.f32.mrb[0].mxu0
        %3300 = vdwg.mxu0
        %v3301 = vmul.f32 %v3296, 0.25
        %v3302 = vsel %vm1149, %v3301, -inf
        %3303 = vmax.xlane.f32.xlu0 %v3302
        %v3304 = vpop.xlane.xlu0 %3303
        %v3305 = vsub.f32 %v3301, %v3304
        %v3306 = vmul.f32 %v3305, 1.442695
        %v3307 = vpow.pop %v3306
        %v3308 = vsel %vm1149, %v3307, 0.0
        %3309 = vadd.xlane.f32.xlu0 %v3308
        %v3310 = vpop.xlane.xlu0 %3309
        %v3311 = vrcp.pop %v3310
        %v3312 = vmul.f32 %v3307, %v3311
        %v3313 = vpack.c.bf16 %v3312, %v3312
        %v3314 = vpack.c.bf16 %v3248, %v3248
        %v3316 = vsel %vm1149, %v3313, 0
        %v3319 = vsel %vm1166, %v3314, 0
        %3321 = vmatprep.subr.bf16.mxu0 0
        %3322 = vmatpush1.bf16.msra.mxu0 %v3319
        %3323 = vmatprep.subr.bf16.mxu0 0
        %3324 = vmatpush1.bf16.msra.mxu0 0
        %3325 = vmatprep.subr.bf16.mxu0 0
        %3326 = vmatpush1.bf16.msra.mxu0 0
        %3327 = vmatprep.subr.bf16.mxu0 0
        %3328 = vmatpush1.bf16.msra.mxu0 0
        %3329 = vmatprep.subr.bf16.mxu0 0
        %3330 = vmatpush1.bf16.msra.mxu0 0
        %3331 = vmatprep.subr.bf16.mxu0 0
        %3332 = vmatpush1.bf16.msra.mxu0 0
        %3333 = vmatprep.subr.bf16.mxu0 0
        %3334 = vmatpush1.bf16.msra.mxu0 0
        %3335 = vmatprep.subr.bf16.mxu0 0
        %3336 = vmatpush1.bf16.msra.mxu0 0
        %3337 = vmatprep.subr.bf16.mxu0 0
        %3338 = vmatpush1.bf16.msra.mxu0 0
        %3339 = vmatprep.subr.bf16.mxu0 0
        %3340 = vmatpush1.bf16.msra.mxu0 0
        %3341 = vmatprep.subr.bf16.mxu0 0
        %3342 = vmatpush1.bf16.msra.mxu0 0
        %3343 = vmatprep.subr.bf16.mxu0 0
        %3344 = vmatpush1.bf16.msra.mxu0 0
        %3345 = vmatprep.subr.bf16.mxu0 0
        %3346 = vmatpush1.bf16.msra.mxu0 0
        %3347 = vmatprep.subr.bf16.mxu0 0
        %3348 = vmatpush1.bf16.msra.mxu0 0
        %3349 = vmatprep.subr.bf16.mxu0 0
        %3350 = vmatpush1.bf16.msra.mxu0 0
        %3351 = vmatprep.subr.bf16.mxu0 0
        %3352 = vmatpush1.bf16.msra.mxu0 0
        %3353 = vmatprep.mubr.bf16.mxu0 0
        %3354 = vmatmul.mubr.bf16.gmra.mrb[0].mxu0 %v3316
        %v3355 = vpop.f32.mrb[0].mxu0
        %v3356 = vadd.f32 0.0, %v3355
        %v3357 = vpop.f32.mrb[0].mxu0
        %v3358 = vpop.f32.mrb[0].mxu0
        %v3359 = vpop.f32.mrb[0].mxu0
        %3360 = vdwg.mxu0
        %v3361 = vpack.c.bf16 %v3356, %v3356
        %s3362 = scalar_lea.vmem [#allocation5], 32
        %v3363 = vld [vmem:[%s3362] sm:$0xf]
        %v3364 = vld [vmem:[%s3362 + $0x4] sm:$0xf]
        %s3365 = scalar_lea.vmem %s6, 240
        %v3366 = vld [vmem:[%s3365] sm:$0xf]
        %v3367 = vld [vmem:[%s3365 + $0x4] sm:$0xf]
        %v3368 = vld [vmem:[%s3365 + $0x8] sm:$0xf]
        %v3369 = vld [vmem:[%s3365 + $0xc] sm:$0xf]
        %s3370 = scalar_lea.vmem %s7, 15
        %v3371 = vld [vmem:[%s3370] sm:$0x1]
        %v3373 = vlaneseq
        %v3374 = vshrl.u32 %v3373, 7
        %v3375 = vsub.s32 0, %v3374
        %v3376 = vrot.slane %v3371, %v3375
        %v3382 = vunpack.c.l.b16 %v3366
        %v3383 = vunpack.c.l.b16 %v3367
        %v3384 = vunpack.c.l.b16 %v3368
        %v3385 = vunpack.c.l.b16 %v3369
        %v3386 = vpack.c.b16 %v3383, %v3382
        %v3387 = vpack.c.b16 %v3385, %v3384
        %3390 = vmatprep.subr.bf16.mxu0 0
        %3391 = vmatpush1.bf16.msra.mxu0 %v3386
        %3392 = vmatprep.subr.bf16.mxu0 0
        %3393 = vmatpush1.bf16.msra.mxu0 %v3387
        %3394 = vmatprep.subr.bf16.mxu0 0
        %3395 = vmatpush1.bf16.msra.mxu0 0
        %3396 = vmatprep.subr.bf16.mxu0 0
        %3397 = vmatpush1.bf16.msra.mxu0 0
        %3398 = vmatprep.subr.bf16.mxu0 0
        %3399 = vmatpush1.bf16.msra.mxu0 0
        %3400 = vmatprep.subr.bf16.mxu0 0
        %3401 = vmatpush1.bf16.msra.mxu0 0
        %3402 = vmatprep.subr.bf16.mxu0 0
        %3403 = vmatpush1.bf16.msra.mxu0 0
        %3404 = vmatprep.subr.bf16.mxu0 0
        %3405 = vmatpush1.bf16.msra.mxu0 0
        %3406 = vmatprep.subr.bf16.mxu0 0
        %3407 = vmatpush1.bf16.msra.mxu0 0
        %3408 = vmatprep.subr.bf16.mxu0 0
        %3409 = vmatpush1.bf16.msra.mxu0 0
        %3410 = vmatprep.subr.bf16.mxu0 0
        %3411 = vmatpush1.bf16.msra.mxu0 0
        %3412 = vmatprep.subr.bf16.mxu0 0
        %3413 = vmatpush1.bf16.msra.mxu0 0
        %3414 = vmatprep.subr.bf16.mxu0 0
        %3415 = vmatpush1.bf16.msra.mxu0 0
        %3416 = vmatprep.subr.bf16.mxu0 0
        %3417 = vmatpush1.bf16.msra.mxu0 0
        %3418 = vmatprep.subr.bf16.mxu0 0
        %3419 = vmatpush1.bf16.msra.mxu0 0
        %3420 = vmatprep.subr.bf16.mxu0 0
        %3421 = vmatpush1.bf16.msra.mxu0 0
        %3422 = vmatprep.mubr.bf16.mxu0 0
        %3423 = vmatmul.mubr.bf16.gmra.mrb[0].mxu0 %v3081
        %v3424 = vpop.f32.mrb[0].mxu0
        %v3425 = vadd.f32 %v3376, %v3424
        %v3426 = vpop.f32.mrb[0].mxu0
        %v3427 = vpop.f32.mrb[0].mxu0
        %v3428 = vpop.f32.mrb[0].mxu0
        %3429 = vdwg.mxu0
        %s3430 = scalar_lea.vmem %s6, 256
        %v3431 = vld [vmem:[%s3430] sm:$0xf]
        %v3432 = vld [vmem:[%s3430 + $0x4] sm:$0xf]
        %v3433 = vld [vmem:[%s3430 + $0x8] sm:$0xf]
        %v3434 = vld [vmem:[%s3430 + $0xc] sm:$0xf]
        %s3435 = scalar_lea.vmem %s7, 16
        %v3436 = vld [vmem:[%s3435] sm:$0x1]
        %v3438 = vlaneseq
        %v3439 = vshrl.u32 %v3438, 7
        %v3440 = vsub.s32 0, %v3439
        %v3441 = vrot.slane %v3436, %v3440
        %v3447 = vunpack.c.l.b16 %v3431
        %v3448 = vunpack.c.l.b16 %v3432
        %v3449 = vunpack.c.l.b16 %v3433
        %v3450 = vunpack.c.l.b16 %v3434
        %v3451 = vpack.c.b16 %v3448, %v3447
        %v3452 = vpack.c.b16 %v3450, %v3449
        %3455 = vmatprep.subr.bf16.mxu0 0
        %3456 = vmatpush1.bf16.msra.mxu0 %v3451
        %3457 = vmatprep.subr.bf16.mxu0 0
        %3458 = vmatpush1.bf16.msra.mxu0 %v3452
        %3459 = vmatprep.subr.bf16.mxu0 0
        %3460 = vmatpush1.bf16.msra.mxu0 0
        %3461 = vmatprep.subr.bf16.mxu0 0
        %3462 = vmatpush1.bf16.msra.mxu0 0
        %3463 = vmatprep.subr.bf16.mxu0 0
        %3464 = vmatpush1.bf16.msra.mxu0 0
        %3465 = vmatprep.subr.bf16.mxu0 0
        %3466 = vmatpush1.bf16.msra.mxu0 0
        %3467 = vmatprep.subr.bf16.mxu0 0
        %3468 = vmatpush1.bf16.msra.mxu0 0
        %3469 = vmatprep.subr.bf16.mxu0 0
        %3470 = vmatpush1.bf16.msra.mxu0 0
        %3471 = vmatprep.subr.bf16.mxu0 0
        %3472 = vmatpush1.bf16.msra.mxu0 0
        %3473 = vmatprep.subr.bf16.mxu0 0
        %3474 = vmatpush1.bf16.msra.mxu0 0
        %3475 = vmatprep.subr.bf16.mxu0 0
        %3476 = vmatpush1.bf16.msra.mxu0 0
        %3477 = vmatprep.subr.bf16.mxu0 0
        %3478 = vmatpush1.bf16.msra.mxu0 0
        %3479 = vmatprep.subr.bf16.mxu0 0
        %3480 = vmatpush1.bf16.msra.mxu0 0
        %3481 = vmatprep.subr.bf16.mxu0 0
        %3482 = vmatpush1.bf16.msra.mxu0 0
        %3483 = vmatprep.subr.bf16.mxu0 0
        %3484 = vmatpush1.bf16.msra.mxu0 0
        %3485 = vmatprep.subr.bf16.mxu0 0
        %3486 = vmatpush1.bf16.msra.mxu0 0
        %3487 = vmatprep.mubr.bf16.mxu0 0
        %3488 = vmatmul.mubr.bf16.gmra.mrb[0].mxu0 %v3081
        %v3489 = vpop.f32.mrb[0].mxu0
        %v3490 = vadd.f32 %v3441, %v3489
        %v3491 = vpop.f32.mrb[0].mxu0
        %v3492 = vpop.f32.mrb[0].mxu0
        %v3493 = vpop.f32.mrb[0].mxu0
        %3494 = vdwg.mxu0
        %s3495 = scalar_lea.vmem %s6, 272
        %v3496 = vld [vmem:[%s3495] sm:$0xf]
        %v3497 = vld [vmem:[%s3495 + $0x4] sm:$0xf]
        %v3498 = vld [vmem:[%s3495 + $0x8] sm:$0xf]
        %v3499 = vld [vmem:[%s3495 + $0xc] sm:$0xf]
        %s3500 = scalar_lea.vmem %s7, 17
        %v3501 = vld [vmem:[%s3500] sm:$0x1]
        %v3503 = vlaneseq
        %v3504 = vshrl.u32 %v3503, 7
        %v3505 = vsub.s32 0, %v3504
        %v3506 = vrot.slane %v3501, %v3505
        %v3512 = vunpack.c.l.b16 %v3496
        %v3513 = vunpack.c.l.b16 %v3497
        %v3514 = vunpack.c.l.b16 %v3498
        %v3515 = vunpack.c.l.b16 %v3499
        %v3516 = vpack.c.b16 %v3513, %v3512
        %v3517 = vpack.c.b16 %v3515, %v3514
        %3520 = vmatprep.subr.bf16.mxu0 0
        %3521 = vmatpush1.bf16.msra.mxu0 %v3516
        %3522 = vmatprep.subr.bf16.mxu0 0
        %3523 = vmatpush1.bf16.msra.mxu0 %v3517
        %3524 = vmatprep.subr.bf16.mxu0 0
        %3525 = vmatpush1.bf16.msra.mxu0 0
        %3526 = vmatprep.subr.bf16.mxu0 0
        %3527 = vmatpush1.bf16.msra.mxu0 0
        %3528 = vmatprep.subr.bf16.mxu0 0
        %3529 = vmatpush1.bf16.msra.mxu0 0
        %3530 = vmatprep.subr.bf16.mxu0 0
        %3531 = vmatpush1.bf16.msra.mxu0 0
        %3532 = vmatprep.subr.bf16.mxu0 0
        %3533 = vmatpush1.bf16.msra.mxu0 0
        %3534 = vmatprep.subr.bf16.mxu0 0
        %3535 = vmatpush1.bf16.msra.mxu0 0
        %3536 = vmatprep.subr.bf16.mxu0 0
        %3537 = vmatpush1.bf16.msra.mxu0 0
        %3538 = vmatprep.subr.bf16.mxu0 0
        %3539 = vmatpush1.bf16.msra.mxu0 0
        %3540 = vmatprep.subr.bf16.mxu0 0
        %3541 = vmatpush1.bf16.msra.mxu0 0
        %3542 = vmatprep.subr.bf16.mxu0 0
        %3543 = vmatpush1.bf16.msra.mxu0 0
        %3544 = vmatprep.subr.bf16.mxu0 0
        %3545 = vmatpush1.bf16.msra.mxu0 0
        %3546 = vmatprep.subr.bf16.mxu0 0
        %3547 = vmatpush1.bf16.msra.mxu0 0
        %3548 = vmatprep.subr.bf16.mxu0 0
        %3549 = vmatpush1.bf16.msra.mxu0 0
        %3550 = vmatprep.subr.bf16.mxu0 0
        %3551 = vmatpush1.bf16.msra.mxu0 0
        %3552 = vmatprep.mubr.bf16.mxu0 0
        %3553 = vmatmul.mubr.bf16.gmra.mrb[0].mxu0 %v3081
        %v3554 = vpop.f32.mrb[0].mxu0
        %v3555 = vadd.f32 %v3506, %v3554
        %v3556 = vpop.f32.mrb[0].mxu0
        %v3557 = vpop.f32.mrb[0].mxu0
        %v3558 = vpop.f32.mrb[0].mxu0
        %3559 = vdwg.mxu0
        %v3560 = vpack.c.bf16 %v3425, %v3425
        %v3561 = vpack.c.bf16 %v3490, %v3490
        %v3563 = vsel %vm1094, %v3560, 0
        %v3566 = vsel %vm1094, %v3561, 0
        %3568 = vmatprep.subr.bf16.mxu0 0
        %3569 = vmatpush1.bf16.xpose.msra.mxu0 %v3566
        %3570 = vmatprep.subr.bf16.mxu0 0
        %3571 = vmatpush1.bf16.xpose.msra.mxu0 0
        %3572 = vmatprep.subr.bf16.mxu0 0
        %3573 = vmatpush1.bf16.xpose.msra.mxu0 0
        %3574 = vmatprep.subr.bf16.mxu0 0
        %3575 = vmatpush1.bf16.xpose.msra.mxu0 0
        %3576 = vmatprep.subr.bf16.mxu0 0
        %3577 = vmatpush1.bf16.xpose.msra.mxu0 0
        %3578 = vmatprep.subr.bf16.mxu0 0
        %3579 = vmatpush1.bf16.xpose.msra.mxu0 0
        %3580 = vmatprep.subr.bf16.mxu0 0
        %3581 = vmatpush1.bf16.xpose.msra.mxu0 0
        %3582 = vmatprep.subr.bf16.mxu0 0
        %3583 = vmatpush1.bf16.xpose.msra.mxu0 0
        %3584 = vmatprep.subr.bf16.mxu0 0
        %3585 = vmatpush1.bf16.xpose.msra.mxu0 0
        %3586 = vmatprep.subr.bf16.mxu0 0
        %3587 = vmatpush1.bf16.xpose.msra.mxu0 0
        %3588 = vmatprep.subr.bf16.mxu0 0
        %3589 = vmatpush1.bf16.xpose.msra.mxu0 0
        %3590 = vmatprep.subr.bf16.mxu0 0
        %3591 = vmatpush1.bf16.xpose.msra.mxu0 0
        %3592 = vmatprep.subr.bf16.mxu0 0
        %3593 = vmatpush1.bf16.xpose.msra.mxu0 0
        %3594 = vmatprep.subr.bf16.mxu0 0
        %3595 = vmatpush1.bf16.xpose.msra.mxu0 0
        %3596 = vmatprep.subr.bf16.mxu0 0
        %3597 = vmatpush1.bf16.xpose.msra.mxu0 0
        %3598 = vmatprep.subr.bf16.mxu0 0
        %3599 = vmatpush1.bf16.xpose.msra.mxu0 0
        %3600 = vmatprep.mubr.bf16.mxu0 0
        %3601 = vmatmul.mubr.bf16.gmra.mrb[0].mxu0 %v3563
        %v3602 = vpop.f32.mrb[0].mxu0
        %v3603 = vadd.f32 0.0, %v3602
        %v3604 = vpop.f32.mrb[0].mxu0
        %v3605 = vpop.f32.mrb[0].mxu0
        %v3606 = vpop.f32.mrb[0].mxu0
        %3607 = vdwg.mxu0
        %v3608 = vmul.f32 %v3603, 0.25
        %v3609 = vsel %vm1149, %v3608, -inf
        %3610 = vmax.xlane.f32.xlu0 %v3609
        %v3611 = vpop.xlane.xlu0 %3610
        %v3612 = vsub.f32 %v3608, %v3611
        %v3613 = vmul.f32 %v3612, 1.442695
        %v3614 = vpow.pop %v3613
        %v3615 = vsel %vm1149, %v3614, 0.0
        %3616 = vadd.xlane.f32.xlu0 %v3615
        %v3617 = vpop.xlane.xlu0 %3616
        %v3618 = vrcp.pop %v3617
        %v3619 = vmul.f32 %v3614, %v3618
        %v3620 = vpack.c.bf16 %v3619, %v3619
        %v3621 = vpack.c.bf16 %v3555, %v3555
        %v3623 = vsel %vm1149, %v3620, 0
        %v3626 = vsel %vm1166, %v3621, 0
        %3628 = vmatprep.subr.bf16.mxu0 0
        %3629 = vmatpush1.bf16.msra.mxu0 %v3626
        %3630 = vmatprep.subr.bf16.mxu0 0
        %3631 = vmatpush1.bf16.msra.mxu0 0
        %3632 = vmatprep.subr.bf16.mxu0 0
        %3633 = vmatpush1.bf16.msra.mxu0 0
        %3634 = vmatprep.subr.bf16.mxu0 0
        %3635 = vmatpush1.bf16.msra.mxu0 0
        %3636 = vmatprep.subr.bf16.mxu0 0
        %3637 = vmatpush1.bf16.msra.mxu0 0
        %3638 = vmatprep.subr.bf16.mxu0 0
        %3639 = vmatpush1.bf16.msra.mxu0 0
        %3640 = vmatprep.subr.bf16.mxu0 0
        %3641 = vmatpush1.bf16.msra.mxu0 0
        %3642 = vmatprep.subr.bf16.mxu0 0
        %3643 = vmatpush1.bf16.msra.mxu0 0
        %3644 = vmatprep.subr.bf16.mxu0 0
        %3645 = vmatpush1.bf16.msra.mxu0 0
        %3646 = vmatprep.subr.bf16.mxu0 0
        %3647 = vmatpush1.bf16.msra.mxu0 0
        %3648 = vmatprep.subr.bf16.mxu0 0
        %3649 = vmatpush1.bf16.msra.mxu0 0
        %3650 = vmatprep.subr.bf16.mxu0 0
        %3651 = vmatpush1.bf16.msra.mxu0 0
        %3652 = vmatprep.subr.bf16.mxu0 0
        %3653 = vmatpush1.bf16.msra.mxu0 0
        %3654 = vmatprep.subr.bf16.mxu0 0
        %3655 = vmatpush1.bf16.msra.mxu0 0
        %3656 = vmatprep.subr.bf16.mxu0 0
        %3657 = vmatpush1.bf16.msra.mxu0 0
        %3658 = vmatprep.subr.bf16.mxu0 0
        %3659 = vmatpush1.bf16.msra.mxu0 0
        %3660 = vmatprep.mubr.bf16.mxu0 0
        %3661 = vmatmul.mubr.bf16.gmra.mrb[0].mxu0 %v3623
        %v3662 = vpop.f32.mrb[0].mxu0
        %v3663 = vadd.f32 0.0, %v3662
        %v3664 = vpop.f32.mrb[0].mxu0
        %v3665 = vpop.f32.mrb[0].mxu0
        %v3666 = vpop.f32.mrb[0].mxu0
        %3667 = vdwg.mxu0
        %v3668 = vpack.c.bf16 %v3663, %v3663
        %s3669 = scalar_lea.vmem [#allocation5], 40
        %v3670 = vld [vmem:[%s3669] sm:$0xf]
        %v3671 = vld [vmem:[%s3669 + $0x4] sm:$0xf]
        %v3674 = vunpack.c.l.b16 %v3670
        %v3675 = vunpack.c.l.b16 %v3671
        %v3676 = vpack.c.b16 %v3675, %v3674
        %v3679 = vsel %vm1094, %v3668, 0
        %3681 = vmatprep.subr.bf16.mxu0 0
        %3682 = vmatpush1.bf16.msra.mxu0 %v3676
        %3683 = vmatprep.subr.bf16.mxu0 0
        %3684 = vmatpush1.bf16.msra.mxu0 0
        %3685 = vmatprep.subr.bf16.mxu0 0
        %3686 = vmatpush1.bf16.msra.mxu0 0
        %3687 = vmatprep.subr.bf16.mxu0 0
        %3688 = vmatpush1.bf16.msra.mxu0 0
        %3689 = vmatprep.subr.bf16.mxu0 0
        %3690 = vmatpush1.bf16.msra.mxu0 0
        %3691 = vmatprep.subr.bf16.mxu0 0
        %3692 = vmatpush1.bf16.msra.mxu0 0
        %3693 = vmatprep.subr.bf16.mxu0 0
        %3694 = vmatpush1.bf16.msra.mxu0 0
        %3695 = vmatprep.subr.bf16.mxu0 0
        %3696 = vmatpush1.bf16.msra.mxu0 0
        %3697 = vmatprep.subr.bf16.mxu0 0
        %3698 = vmatpush1.bf16.msra.mxu0 0
        %3699 = vmatprep.subr.bf16.mxu0 0
        %3700 = vmatpush1.bf16.msra.mxu0 0
        %3701 = vmatprep.subr.bf16.mxu0 0
        %3702 = vmatpush1.bf16.msra.mxu0 0
        %3703 = vmatprep.subr.bf16.mxu0 0
        %3704 = vmatpush1.bf16.msra.mxu0 0
        %3705 = vmatprep.subr.bf16.mxu0 0
        %3706 = vmatpush1.bf16.msra.mxu0 0
        %3707 = vmatprep.subr.bf16.mxu0 0
        %3708 = vmatpush1.bf16.msra.mxu0 0
        %3709 = vmatprep.subr.bf16.mxu0 0
        %3710 = vmatpush1.bf16.msra.mxu0 0
        %3711 = vmatprep.subr.bf16.mxu0 0
        %3712 = vmatpush1.bf16.msra.mxu0 0
        %3713 = vmatprep.mubr.bf16.mxu0 0
        %3714 = vmatmul.mubr.bf16.gmra.mrb[0].mxu0 %v3679
        %v3715 = vpop.f32.mrb[0].mxu0
        %v3716 = vadd.f32 0.0, %v3715
        %v3717 = vpop.f32.mrb[0].mxu0
        %v3718 = vpop.f32.mrb[0].mxu0
        %v3719 = vpop.f32.mrb[0].mxu0
        %3720 = vdwg.mxu0
        %v3723 = vunpack.c.l.b16 %v3363
        %v3724 = vunpack.c.l.b16 %v3364
        %v3725 = vpack.c.b16 %v3724, %v3723
        %v3728 = vsel %vm1094, %v3361, 0
        %3730 = vmatprep.subr.bf16.mxu0 0
        %3731 = vmatpush1.bf16.msra.mxu0 %v3725
        %3732 = vmatprep.subr.bf16.mxu0 0
        %3733 = vmatpush1.bf16.msra.mxu0 0
        %3734 = vmatprep.subr.bf16.mxu0 0
        %3735 = vmatpush1.bf16.msra.mxu0 0
        %3736 = vmatprep.subr.bf16.mxu0 0
        %3737 = vmatpush1.bf16.msra.mxu0 0
        %3738 = vmatprep.subr.bf16.mxu0 0
        %3739 = vmatpush1.bf16.msra.mxu0 0
        %3740 = vmatprep.subr.bf16.mxu0 0
        %3741 = vmatpush1.bf16.msra.mxu0 0
        %3742 = vmatprep.subr.bf16.mxu0 0
        %3743 = vmatpush1.bf16.msra.mxu0 0
        %3744 = vmatprep.subr.bf16.mxu0 0
        %3745 = vmatpush1.bf16.msra.mxu0 0
        %3746 = vmatprep.subr.bf16.mxu0 0
        %3747 = vmatpush1.bf16.msra.mxu0 0
        %3748 = vmatprep.subr.bf16.mxu0 0
        %3749 = vmatpush1.bf16.msra.mxu0 0
        %3750 = vmatprep.subr.bf16.mxu0 0
        %3751 = vmatpush1.bf16.msra.mxu0 0
        %3752 = vmatprep.subr.bf16.mxu0 0
        %3753 = vmatpush1.bf16.msra.mxu0 0
        %3754 = vmatprep.subr.bf16.mxu0 0
        %3755 = vmatpush1.bf16.msra.mxu0 0
        %3756 = vmatprep.subr.bf16.mxu0 0
        %3757 = vmatpush1.bf16.msra.mxu0 0
        %3758 = vmatprep.subr.bf16.mxu0 0
        %3759 = vmatpush1.bf16.msra.mxu0 0
        %3760 = vmatprep.subr.bf16.mxu0 0
        %3761 = vmatpush1.bf16.msra.mxu0 0
        %3762 = vmatprep.mubr.bf16.mxu0 0
        %3763 = vmatmul.mubr.bf16.gmra.mrb[0].mxu0 %v3728
        %v3764 = vpop.f32.mrb[0].mxu0
        %v3765 = vadd.f32 %v3716, %v3764
        %v3766 = vpop.f32.mrb[0].mxu0
        %v3767 = vpop.f32.mrb[0].mxu0
        %v3768 = vpop.f32.mrb[0].mxu0
        %3769 = vdwg.mxu0
        %v3770 = vlaneseq
        %v3771 = vshrl.u32 %v3770, 7
        %v3772 = vsub.s32 0, %v3771
        %v3773 = vrot.slane %v3053, %v3772
        %v3774 = vadd.f32 %v3765, %v3773
        %v3775 = vadd.f32 %v3051, %v3774
        %v3776 = vsel %vm869, %v3775, 0.0
        %3777 = vadd.xlane.f32.xlu0 %v3776
        %v3778 = vpop.xlane.xlu0 %3777
        %v3779 = vmul.f32 %v3778, %v873
        %v3780 = vsub.f32 %v3775, %v3779
        %v3781 = vmul.f32 %v3780, %v3780
        %v3782 = vsel %vm869, %v3781, 0.0
        %3783 = vadd.xlane.f32.xlu0 %v3782
        %v3784 = vpop.xlane.xlu0 %3783
        %v3785 = vmul.f32 %v3784, %v873
        %v3786 = vadd.f32 %v3785, 1e-12
        %v3787 = vrsqrt.pop %v3786
        %v3788 = vmul.f32 %v3780, %v3787
        %v3789 = vlaneseq
        %v3790 = vshrl.u32 %v3789, 7
        %v3791 = vsub.s32 1, %v3790
        %v3792 = vrot.slane %v3053, %v3791
        %v3793 = vmul.f32 %v3788, %v3792
        %v3794 = vlaneseq
        %v3795 = vshrl.u32 %v3794, 7
        %v3796 = vsub.s32 2, %v3795
        %v3797 = vrot.slane %v3053, %v3796
        %v3798 = vadd.f32 %v3793, %v3797
        %v3799 = vpack.c.bf16 %v3798, %v3798
        %s3800 = scalar_lea.vmem [#allocation7], 32
        %v3801 = vld [vmem:[%s3800] sm:$0xf]
        %v3802 = vld [vmem:[%s3800 + $0x4] sm:$0xf]
        %v3803 = vld [vmem:[%s3800 + $0x8] sm:$0xf]
        %v3804 = vld [vmem:[%s3800 + $0xc] sm:$0xf]
        %v3805 = vlaneseq
        %v3806 = vshrl.u32 %v3805, 7
        %v3807 = vsub.s32 3, %v3806
        %v3808 = vrot.slane %v3053, %v3807
        %v3813 = vunpack.c.l.b16 %v3801
        %v3814 = vunpack.c.l.b16 %v3802
        %v3815 = vunpack.c.l.b16 %v3803
        %v3816 = vunpack.c.l.b16 %v3804
        %v3817 = vpack.c.b16 %v3814, %v3813
        %v3818 = vpack.c.b16 %v3816, %v3815
        %v3822 = vsel %vm869, %v3799, 0
        %3824 = vmatprep.subr.bf16.mxu0 0
        %3825 = vmatpush1.bf16.msra.mxu0 %v3817
        %3826 = vmatprep.subr.bf16.mxu0 0
        %3827 = vmatpush1.bf16.msra.mxu0 %v3818
        %3828 = vmatprep.subr.bf16.mxu0 0
        %3829 = vmatpush1.bf16.msra.mxu0 0
        %3830 = vmatprep.subr.bf16.mxu0 0
        %3831 = vmatpush1.bf16.msra.mxu0 0
        %3832 = vmatprep.subr.bf16.mxu0 0
        %3833 = vmatpush1.bf16.msra.mxu0 0
        %3834 = vmatprep.subr.bf16.mxu0 0
        %3835 = vmatpush1.bf16.msra.mxu0 0
        %3836 = vmatprep.subr.bf16.mxu0 0
        %3837 = vmatpush1.bf16.msra.mxu0 0
        %3838 = vmatprep.subr.bf16.mxu0 0
        %3839 = vmatpush1.bf16.msra.mxu0 0
        %3840 = vmatprep.subr.bf16.mxu0 0
        %3841 = vmatpush1.bf16.msra.mxu0 0
        %3842 = vmatprep.subr.bf16.mxu0 0
        %3843 = vmatpush1.bf16.msra.mxu0 0
        %3844 = vmatprep.subr.bf16.mxu0 0
        %3845 = vmatpush1.bf16.msra.mxu0 0
        %3846 = vmatprep.subr.bf16.mxu0 0
        %3847 = vmatpush1.bf16.msra.mxu0 0
        %3848 = vmatprep.subr.bf16.mxu0 0
        %3849 = vmatpush1.bf16.msra.mxu0 0
        %3850 = vmatprep.subr.bf16.mxu0 0
        %3851 = vmatpush1.bf16.msra.mxu0 0
        %3852 = vmatprep.subr.bf16.mxu0 0
        %3853 = vmatpush1.bf16.msra.mxu0 0
        %3854 = vmatprep.subr.bf16.mxu0 0
        %3855 = vmatpush1.bf16.msra.mxu0 0
        %3856 = vmatprep.mubr.bf16.mxu0 0
        %3857 = vmatmul.mubr.bf16.gmra.mrb[0].mxu0 %v3822
        %v3858 = vpop.f32.mrb[0].mxu0
        %v3859 = vadd.f32 %v3808, %v3858
        %v3860 = vpop.f32.mrb[0].mxu0
        %v3861 = vpop.f32.mrb[0].mxu0
        %v3862 = vpop.f32.mrb[0].mxu0
        %3863 = vdwg.mxu0
        %v3864 = vmul.f32 %v3859, %v3859
        %v3865 = vmul.f32 %v3859, %v3864
        %v3866 = vmul.f32 %v3865, 0.044715
        %v3867 = vadd.f32 %v3859, %v3866
        %v3868 = vmul.f32 %v3867, 0.7978846
        %v3869 = vtanh.pop %v3868
        %v3870 = vadd.f32 %v3869, 1.0
        %v3871 = vmul.f32 %v3870, 0.5
        %v3872 = vmul.f32 %v3859, %v3871
        %v3873 = vpack.c.bf16 %v3872, %v3872
        %s3874 = scalar_lea.vmem [#allocation8], 64
        %v3875 = vld [vmem:[%s3874] sm:$0xf]
        %v3876 = vld [vmem:[%s3874 + $0x4] sm:$0xf]
        %v3877 = vld [vmem:[%s3874 + $0x8] sm:$0xf]
        %v3878 = vld [vmem:[%s3874 + $0xc] sm:$0xf]
        %v3879 = vld [vmem:[%s3874 + $0x10] sm:$0xf]
        %v3880 = vld [vmem:[%s3874 + $0x14] sm:$0xf]
        %v3881 = vld [vmem:[%s3874 + $0x18] sm:$0xf]
        %v3882 = vld [vmem:[%s3874 + $0x1c] sm:$0xf]
        %v3883 = vlaneseq
        %v3884 = vshrl.u32 %v3883, 7
        %v3885 = vsub.s32 4, %v3884
        %v3886 = vrot.slane %v3053, %v3885
        %v3895 = vunpack.c.l.b16 %v3875
        %v3896 = vunpack.c.l.b16 %v3876
        %v3897 = vunpack.c.l.b16 %v3877
        %v3898 = vunpack.c.l.b16 %v3878
        %v3899 = vunpack.c.l.b16 %v3879
        %v3900 = vunpack.c.l.b16 %v3880
        %v3901 = vunpack.c.l.b16 %v3881
        %v3902 = vunpack.c.l.b16 %v3882
        %v3903 = vpack.c.b16 %v3896, %v3895
        %v3904 = vpack.c.b16 %v3898, %v3897
        %v3905 = vpack.c.b16 %v3900, %v3899
        %v3906 = vpack.c.b16 %v3902, %v3901
        %v3912 = vsel %vm1758, %v3873, 0
        %3914 = vmatprep.subr.bf16.mxu0 0
        %3915 = vmatpush1.bf16.msra.mxu0 %v3903
        %3916 = vmatprep.subr.bf16.mxu0 0
        %3917 = vmatpush1.bf16.msra.mxu0 %v3904
        %3918 = vmatprep.subr.bf16.mxu0 0
        %3919 = vmatpush1.bf16.msra.mxu0 %v3905
        %3920 = vmatprep.subr.bf16.mxu0 0
        %3921 = vmatpush1.bf16.msra.mxu0 %v3906
        %3922 = vmatprep.subr.bf16.mxu0 0
        %3923 = vmatpush1.bf16.msra.mxu0 0
        %3924 = vmatprep.subr.bf16.mxu0 0
        %3925 = vmatpush1.bf16.msra.mxu0 0
        %3926 = vmatprep.subr.bf16.mxu0 0
        %3927 = vmatpush1.bf16.msra.mxu0 0
        %3928 = vmatprep.subr.bf16.mxu0 0
        %3929 = vmatpush1.bf16.msra.mxu0 0
        %3930 = vmatprep.subr.bf16.mxu0 0
        %3931 = vmatpush1.bf16.msra.mxu0 0
        %3932 = vmatprep.subr.bf16.mxu0 0
        %3933 = vmatpush1.bf16.msra.mxu0 0
        %3934 = vmatprep.subr.bf16.mxu0 0
        %3935 = vmatpush1.bf16.msra.mxu0 0
        %3936 = vmatprep.subr.bf16.mxu0 0
        %3937 = vmatpush1.bf16.msra.mxu0 0
        %3938 = vmatprep.subr.bf16.mxu0 0
        %3939 = vmatpush1.bf16.msra.mxu0 0
        %3940 = vmatprep.subr.bf16.mxu0 0
        %3941 = vmatpush1.bf16.msra.mxu0 0
        %3942 = vmatprep.subr.bf16.mxu0 0
        %3943 = vmatpush1.bf16.msra.mxu0 0
        %3944 = vmatprep.subr.bf16.mxu0 0
        %3945 = vmatpush1.bf16.msra.mxu0 0
        %3946 = vmatprep.mubr.bf16.mxu0 0
        %3947 = vmatmul.mubr.bf16.gmra.mrb[0].mxu0 %v3912
        %v3948 = vpop.f32.mrb[0].mxu0
        %v3949 = vadd.f32 %v3886, %v3948
        %v3950 = vpop.f32.mrb[0].mxu0
        %v3951 = vpop.f32.mrb[0].mxu0
        %v3952 = vpop.f32.mrb[0].mxu0
        %3953 = vdwg.mxu0
        %v3954 = vadd.f32 %v3798, %v3949
        %v3955 = vsel %vm869, %v3954, 0.0
        %3956 = vadd.xlane.f32.xlu0 %v3955
        %v3957 = vpop.xlane.xlu0 %3956
        %v3958 = vmul.f32 %v3957, %v873
        %v3959 = vsub.f32 %v3954, %v3958
        %v3960 = vmul.f32 %v3959, %v3959
        %v3961 = vsel %vm869, %v3960, 0.0
        %3962 = vadd.xlane.f32.xlu0 %v3961
        %v3963 = vpop.xlane.xlu0 %3962
        %v3964 = vmul.f32 %v3963, %v873
        %v3965 = vadd.f32 %v3964, 1e-12
        %v3966 = vrsqrt.pop %v3965
        %v3967 = vmul.f32 %v3959, %v3966
        %v3968 = vlaneseq
        %v3969 = vshrl.u32 %v3968, 7
        %v3970 = vsub.s32 5, %v3969
        %v3971 = vrot.slane %v3053, %v3970
        %v3972 = vmul.f32 %v3967, %v3971
        %v3973 = vlaneseq
        %v3974 = vshrl.u32 %v3973, 7
        %v3975 = vsub.s32 6, %v3974
        %v3976 = vrot.slane %v3053, %v3975
        %v3977 = vadd.f32 %v3972, %v3976
        %s3978 = scalar_lea.vmem [#allocation10], 24
        %v3979 = vld [vmem:[%s3978] sm:$0x7f]
        %v3980 = vpack.c.bf16 %v3977, %v3977
        %s3981 = scalar_lea.vmem %s6, 288
        %v3982 = vld [vmem:[%s3981] sm:$0xf]
        %v3983 = vld [vmem:[%s3981 + $0x4] sm:$0xf]
        %v3984 = vld [vmem:[%s3981 + $0x8] sm:$0xf]
        %v3985 = vld [vmem:[%s3981 + $0xc] sm:$0xf]
        %s3986 = scalar_lea.vmem %s7, 18
        %v3987 = vld [vmem:[%s3986] sm:$0x1]
        %v3989 = vlaneseq
        %v3990 = vshrl.u32 %v3989, 7
        %v3991 = vsub.s32 0, %v3990
        %v3992 = vrot.slane %v3987, %v3991
        %v3998 = vunpack.c.l.b16 %v3982
        %v3999 = vunpack.c.l.b16 %v3983
        %v4000 = vunpack.c.l.b16 %v3984
        %v4001 = vunpack.c.l.b16 %v3985
        %v4002 = vpack.c.b16 %v3999, %v3998
        %v4003 = vpack.c.b16 %v4001, %v4000
        %v4007 = vsel %vm869, %v3980, 0
        %4009 = vmatprep.subr.bf16.mxu0 0
        %4010 = vmatpush1.bf16.msra.mxu0 %v4002
        %4011 = vmatprep.subr.bf16.mxu0 0
        %4012 = vmatpush1.bf16.msra.mxu0 %v4003
        %4013 = vmatprep.subr.bf16.mxu0 0
        %4014 = vmatpush1.bf16.msra.mxu0 0
        %4015 = vmatprep.subr.bf16.mxu0 0
        %4016 = vmatpush1.bf16.msra.mxu0 0
        %4017 = vmatprep.subr.bf16.mxu0 0
        %4018 = vmatpush1.bf16.msra.mxu0 0
        %4019 = vmatprep.subr.bf16.mxu0 0
        %4020 = vmatpush1.bf16.msra.mxu0 0
        %4021 = vmatprep.subr.bf16.mxu0 0
        %4022 = vmatpush1.bf16.msra.mxu0 0
        %4023 = vmatprep.subr.bf16.mxu0 0
        %4024 = vmatpush1.bf16.msra.mxu0 0
        %4025 = vmatprep.subr.bf16.mxu0 0
        %4026 = vmatpush1.bf16.msra.mxu0 0
        %4027 = vmatprep.subr.bf16.mxu0 0
        %4028 = vmatpush1.bf16.msra.mxu0 0
        %4029 = vmatprep.subr.bf16.mxu0 0
        %4030 = vmatpush1.bf16.msra.mxu0 0
        %4031 = vmatprep.subr.bf16.mxu0 0
        %4032 = vmatpush1.bf16.msra.mxu0 0
        %4033 = vmatprep.subr.bf16.mxu0 0
        %4034 = vmatpush1.bf16.msra.mxu0 0
        %4035 = vmatprep.subr.bf16.mxu0 0
        %4036 = vmatpush1.bf16.msra.mxu0 0
        %4037 = vmatprep.subr.bf16.mxu0 0
        %4038 = vmatpush1.bf16.msra.mxu0 0
        %4039 = vmatprep.subr.bf16.mxu0 0
        %4040 = vmatpush1.bf16.msra.mxu0 0
        %4041 = vmatprep.mubr.bf16.mxu0 0
        %4042 = vmatmul.mubr.bf16.gmra.mrb[0].mxu0 %v4007
        %v4043 = vpop.f32.mrb[0].mxu0
        %v4044 = vadd.f32 %v3992, %v4043
        %v4045 = vpop.f32.mrb[0].mxu0
        %v4046 = vpop.f32.mrb[0].mxu0
        %v4047 = vpop.f32.mrb[0].mxu0
        %4048 = vdwg.mxu0
        %s4049 = scalar_lea.vmem %s6, 304
        %v4050 = vld [vmem:[%s4049] sm:$0xf]
        %v4051 = vld [vmem:[%s4049 + $0x4] sm:$0xf]
        %v4052 = vld [vmem:[%s4049 + $0x8] sm:$0xf]
        %v4053 = vld [vmem:[%s4049 + $0xc] sm:$0xf]
        %s4054 = scalar_lea.vmem %s7, 19
        %v4055 = vld [vmem:[%s4054] sm:$0x1]
        %v4057 = vlaneseq
        %v4058 = vshrl.u32 %v4057, 7
        %v4059 = vsub.s32 0, %v4058
        %v4060 = vrot.slane %v4055, %v4059
        %v4066 = vunpack.c.l.b16 %v4050
        %v4067 = vunpack.c.l.b16 %v4051
        %v4068 = vunpack.c.l.b16 %v4052
        %v4069 = vunpack.c.l.b16 %v4053
        %v4070 = vpack.c.b16 %v4067, %v4066
        %v4071 = vpack.c.b16 %v4069, %v4068
        %4074 = vmatprep.subr.bf16.mxu0 0
        %4075 = vmatpush1.bf16.msra.mxu0 %v4070
        %4076 = vmatprep.subr.bf16.mxu0 0
        %4077 = vmatpush1.bf16.msra.mxu0 %v4071
        %4078 = vmatprep.subr.bf16.mxu0 0
        %4079 = vmatpush1.bf16.msra.mxu0 0
        %4080 = vmatprep.subr.bf16.mxu0 0
        %4081 = vmatpush1.bf16.msra.mxu0 0
        %4082 = vmatprep.subr.bf16.mxu0 0
        %4083 = vmatpush1.bf16.msra.mxu0 0
        %4084 = vmatprep.subr.bf16.mxu0 0
        %4085 = vmatpush1.bf16.msra.mxu0 0
        %4086 = vmatprep.subr.bf16.mxu0 0
        %4087 = vmatpush1.bf16.msra.mxu0 0
        %4088 = vmatprep.subr.bf16.mxu0 0
        %4089 = vmatpush1.bf16.msra.mxu0 0
        %4090 = vmatprep.subr.bf16.mxu0 0
        %4091 = vmatpush1.bf16.msra.mxu0 0
        %4092 = vmatprep.subr.bf16.mxu0 0
        %4093 = vmatpush1.bf16.msra.mxu0 0
        %4094 = vmatprep.subr.bf16.mxu0 0
        %4095 = vmatpush1.bf16.msra.mxu0 0
        %4096 = vmatprep.subr.bf16.mxu0 0
        %4097 = vmatpush1.bf16.msra.mxu0 0
        %4098 = vmatprep.subr.bf16.mxu0 0
        %4099 = vmatpush1.bf16.msra.mxu0 0
        %4100 = vmatprep.subr.bf16.mxu0 0
        %4101 = vmatpush1.bf16.msra.mxu0 0
        %4102 = vmatprep.subr.bf16.mxu0 0
        %4103 = vmatpush1.bf16.msra.mxu0 0
        %4104 = vmatprep.subr.bf16.mxu0 0
        %4105 = vmatpush1.bf16.msra.mxu0 0
        %4106 = vmatprep.mubr.bf16.mxu0 0
        %4107 = vmatmul.mubr.bf16.gmra.mrb[0].mxu0 %v4007
        %v4108 = vpop.f32.mrb[0].mxu0
        %v4109 = vadd.f32 %v4060, %v4108
        %v4110 = vpop.f32.mrb[0].mxu0
        %v4111 = vpop.f32.mrb[0].mxu0
        %v4112 = vpop.f32.mrb[0].mxu0
        %4113 = vdwg.mxu0
        %s4114 = scalar_lea.vmem %s6, 320
        %v4115 = vld [vmem:[%s4114] sm:$0xf]
        %v4116 = vld [vmem:[%s4114 + $0x4] sm:$0xf]
        %v4117 = vld [vmem:[%s4114 + $0x8] sm:$0xf]
        %v4118 = vld [vmem:[%s4114 + $0xc] sm:$0xf]
        %s4119 = scalar_lea.vmem %s7, 20
        %v4120 = vld [vmem:[%s4119] sm:$0x1]
        %v4122 = vlaneseq
        %v4123 = vshrl.u32 %v4122, 7
        %v4124 = vsub.s32 0, %v4123
        %v4125 = vrot.slane %v4120, %v4124
        %v4131 = vunpack.c.l.b16 %v4115
        %v4132 = vunpack.c.l.b16 %v4116
        %v4133 = vunpack.c.l.b16 %v4117
        %v4134 = vunpack.c.l.b16 %v4118
        %v4135 = vpack.c.b16 %v4132, %v4131
        %v4136 = vpack.c.b16 %v4134, %v4133
        %4139 = vmatprep.subr.bf16.mxu0 0
        %4140 = vmatpush1.bf16.msra.mxu0 %v4135
        %4141 = vmatprep.subr.bf16.mxu0 0
        %4142 = vmatpush1.bf16.msra.mxu0 %v4136
        %4143 = vmatprep.subr.bf16.mxu0 0
        %4144 = vmatpush1.bf16.msra.mxu0 0
        %4145 = vmatprep.subr.bf16.mxu0 0
        %4146 = vmatpush1.bf16.msra.mxu0 0
        %4147 = vmatprep.subr.bf16.mxu0 0
        %4148 = vmatpush1.bf16.msra.mxu0 0
        %4149 = vmatprep.subr.bf16.mxu0 0
        %4150 = vmatpush1.bf16.msra.mxu0 0
        %4151 = vmatprep.subr.bf16.mxu0 0
        %4152 = vmatpush1.bf16.msra.mxu0 0
        %4153 = vmatprep.subr.bf16.mxu0 0
        %4154 = vmatpush1.bf16.msra.mxu0 0
        %4155 = vmatprep.subr.bf16.mxu0 0
        %4156 = vmatpush1.bf16.msra.mxu0 0
        %4157 = vmatprep.subr.bf16.mxu0 0
        %4158 = vmatpush1.bf16.msra.mxu0 0
        %4159 = vmatprep.subr.bf16.mxu0 0
        %4160 = vmatpush1.bf16.msra.mxu0 0
        %4161 = vmatprep.subr.bf16.mxu0 0
        %4162 = vmatpush1.bf16.msra.mxu0 0
        %4163 = vmatprep.subr.bf16.mxu0 0
        %4164 = vmatpush1.bf16.msra.mxu0 0
        %4165 = vmatprep.subr.bf16.mxu0 0
        %4166 = vmatpush1.bf16.msra.mxu0 0
        %4167 = vmatprep.subr.bf16.mxu0 0
        %4168 = vmatpush1.bf16.msra.mxu0 0
        %4169 = vmatprep.subr.bf16.mxu0 0
        %4170 = vmatpush1.bf16.msra.mxu0 0
        %4171 = vmatprep.mubr.bf16.mxu0 0
        %4172 = vmatmul.mubr.bf16.gmra.mrb[0].mxu0 %v4007
        %v4173 = vpop.f32.mrb[0].mxu0
        %v4174 = vadd.f32 %v4125, %v4173
        %v4175 = vpop.f32.mrb[0].mxu0
        %v4176 = vpop.f32.mrb[0].mxu0
        %v4177 = vpop.f32.mrb[0].mxu0
        %4178 = vdwg.mxu0
        %v4179 = vpack.c.bf16 %v4044, %v4044
        %v4180 = vpack.c.bf16 %v4109, %v4109
        %v4182 = vsel %vm1094, %v4179, 0
        %v4185 = vsel %vm1094, %v4180, 0
        %4187 = vmatprep.subr.bf16.mxu0 0
        %4188 = vmatpush1.bf16.xpose.msra.mxu0 %v4185
        %4189 = vmatprep.subr.bf16.mxu0 0
        %4190 = vmatpush1.bf16.xpose.msra.mxu0 0
        %4191 = vmatprep.subr.bf16.mxu0 0
        %4192 = vmatpush1.bf16.xpose.msra.mxu0 0
        %4193 = vmatprep.subr.bf16.mxu0 0
        %4194 = vmatpush1.bf16.xpose.msra.mxu0 0
        %4195 = vmatprep.subr.bf16.mxu0 0
        %4196 = vmatpush1.bf16.xpose.msra.mxu0 0
        %4197 = vmatprep.subr.bf16.mxu0 0
        %4198 = vmatpush1.bf16.xpose.msra.mxu0 0
        %4199 = vmatprep.subr.bf16.mxu0 0
        %4200 = vmatpush1.bf16.xpose.msra.mxu0 0
        %4201 = vmatprep.subr.bf16.mxu0 0
        %4202 = vmatpush1.bf16.xpose.msra.mxu0 0
        %4203 = vmatprep.subr.bf16.mxu0 0
        %4204 = vmatpush1.bf16.xpose.msra.mxu0 0
        %4205 = vmatprep.subr.bf16.mxu0 0
        %4206 = vmatpush1.bf16.xpose.msra.mxu0 0
        %4207 = vmatprep.subr.bf16.mxu0 0
        %4208 = vmatpush1.bf16.xpose.msra.mxu0 0
        %4209 = vmatprep.subr.bf16.mxu0 0
        %4210 = vmatpush1.bf16.xpose.msra.mxu0 0
        %4211 = vmatprep.subr.bf16.mxu0 0
        %4212 = vmatpush1.bf16.xpose.msra.mxu0 0
        %4213 = vmatprep.subr.bf16.mxu0 0
        %4214 = vmatpush1.bf16.xpose.msra.mxu0 0
        %4215 = vmatprep.subr.bf16.mxu0 0
        %4216 = vmatpush1.bf16.xpose.msra.mxu0 0
        %4217 = vmatprep.subr.bf16.mxu0 0
        %4218 = vmatpush1.bf16.xpose.msra.mxu0 0
        %4219 = vmatprep.mubr.bf16.mxu0 0
        %4220 = vmatmul.mubr.bf16.gmra.mrb[0].mxu0 %v4182
        %v4221 = vpop.f32.mrb[0].mxu0
        %v4222 = vadd.f32 0.0, %v4221
        %v4223 = vpop.f32.mrb[0].mxu0
        %v4224 = vpop.f32.mrb[0].mxu0
        %v4225 = vpop.f32.mrb[0].mxu0
        %4226 = vdwg.mxu0
        %v4227 = vmul.f32 %v4222, 0.25
        %v4228 = vsel %vm1149, %v4227, -inf
        %4229 = vmax.xlane.f32.xlu0 %v4228
        %v4230 = vpop.xlane.xlu0 %4229
        %v4231 = vsub.f32 %v4227, %v4230
        %v4232 = vmul.f32 %v4231, 1.442695
        %v4233 = vpow.pop %v4232
        %v4234 = vsel %vm1149, %v4233, 0.0
        %4235 = vadd.xlane.f32.xlu0 %v4234
        %v4236 = vpop.xlane.xlu0 %4235
        %v4237 = vrcp.pop %v4236
        %v4238 = vmul.f32 %v4233, %v4237
        %v4239 = vpack.c.bf16 %v4238, %v4238
        %v4240 = vpack.c.bf16 %v4174, %v4174
        %v4242 = vsel %vm1149, %v4239, 0
        %v4245 = vsel %vm1166, %v4240, 0
        %4247 = vmatprep.subr.bf16.mxu0 0
        %4248 = vmatpush1.bf16.msra.mxu0 %v4245
        %4249 = vmatprep.subr.bf16.mxu0 0
        %4250 = vmatpush1.bf16.msra.mxu0 0
        %4251 = vmatprep.subr.bf16.mxu0 0
        %4252 = vmatpush1.bf16.msra.mxu0 0
        %4253 = vmatprep.subr.bf16.mxu0 0
        %4254 = vmatpush1.bf16.msra.mxu0 0
        %4255 = vmatprep.subr.bf16.mxu0 0
        %4256 = vmatpush1.bf16.msra.mxu0 0
        %4257 = vmatprep.subr.bf16.mxu0 0
        %4258 = vmatpush1.bf16.msra.mxu0 0
        %4259 = vmatprep.subr.bf16.mxu0 0
        %4260 = vmatpush1.bf16.msra.mxu0 0
        %4261 = vmatprep.subr.bf16.mxu0 0
        %4262 = vmatpush1.bf16.msra.mxu0 0
        %4263 = vmatprep.subr.bf16.mxu0 0
        %4264 = vmatpush1.bf16.msra.mxu0 0
        %4265 = vmatprep.subr.bf16.mxu0 0
        %4266 = vmatpush1.bf16.msra.mxu0 0
        %4267 = vmatprep.subr.bf16.mxu0 0
        %4268 = vmatpush1.bf16.msra.mxu0 0
        %4269 = vmatprep.subr.bf16.mxu0 0
        %4270 = vmatpush1.bf16.msra.mxu0 0
        %4271 = vmatprep.subr.bf16.mxu0 0
        %4272 = vmatpush1.bf16.msra.mxu0 0
        %4273 = vmatprep.subr.bf16.mxu0 0
        %4274 = vmatpush1.bf16.msra.mxu0 0
        %4275 = vmatprep.subr.bf16.mxu0 0
        %4276 = vmatpush1.bf16.msra.mxu0 0
        %4277 = vmatprep.subr.bf16.mxu0 0
        %4278 = vmatpush1.bf16.msra.mxu0 0
        %4279 = vmatprep.mubr.bf16.mxu0 0
        %4280 = vmatmul.mubr.bf16.gmra.mrb[0].mxu0 %v4242
        %v4281 = vpop.f32.mrb[0].mxu0
        %v4282 = vadd.f32 0.0, %v4281
        %v4283 = vpop.f32.mrb[0].mxu0
        %v4284 = vpop.f32.mrb[0].mxu0
        %v4285 = vpop.f32.mrb[0].mxu0
        %4286 = vdwg.mxu0
        %v4287 = vpack.c.bf16 %v4282, %v4282
        %s4288 = scalar_lea.vmem [#allocation5], 48
        %v4289 = vld [vmem:[%s4288] sm:$0xf]
        %v4290 = vld [vmem:[%s4288 + $0x4] sm:$0xf]
        %s4291 = scalar_lea.vmem %s6, 336
        %v4292 = vld [vmem:[%s4291] sm:$0xf]
        %v4293 = vld [vmem:[%s4291 + $0x4] sm:$0xf]
        %v4294 = vld [vmem:[%s4291 + $0x8] sm:$0xf]
        %v4295 = vld [vmem:[%s4291 + $0xc] sm:$0xf]
        %s4296 = scalar_lea.vmem %s7, 21
        %v4297 = vld [vmem:[%s4296] sm:$0x1]
        %v4299 = vlaneseq
        %v4300 = vshrl.u32 %v4299, 7
        %v4301 = vsub.s32 0, %v4300
        %v4302 = vrot.slane %v4297, %v4301
        %v4308 = vunpack.c.l.b16 %v4292
        %v4309 = vunpack.c.l.b16 %v4293
        %v4310 = vunpack.c.l.b16 %v4294
        %v4311 = vunpack.c.l.b16 %v4295
        %v4312 = vpack.c.b16 %v4309, %v4308
        %v4313 = vpack.c.b16 %v4311, %v4310
        %4316 = vmatprep.subr.bf16.mxu0 0
        %4317 = vmatpush1.bf16.msra.mxu0 %v4312
        %4318 = vmatprep.subr.bf16.mxu0 0
        %4319 = vmatpush1.bf16.msra.mxu0 %v4313
        %4320 = vmatprep.subr.bf16.mxu0 0
        %4321 = vmatpush1.bf16.msra.mxu0 0
        %4322 = vmatprep.subr.bf16.mxu0 0
        %4323 = vmatpush1.bf16.msra.mxu0 0
        %4324 = vmatprep.subr.bf16.mxu0 0
        %4325 = vmatpush1.bf16.msra.mxu0 0
        %4326 = vmatprep.subr.bf16.mxu0 0
        %4327 = vmatpush1.bf16.msra.mxu0 0
        %4328 = vmatprep.subr.bf16.mxu0 0
        %4329 = vmatpush1.bf16.msra.mxu0 0
        %4330 = vmatprep.subr.bf16.mxu0 0
        %4331 = vmatpush1.bf16.msra.mxu0 0
        %4332 = vmatprep.subr.bf16.mxu0 0
        %4333 = vmatpush1.bf16.msra.mxu0 0
        %4334 = vmatprep.subr.bf16.mxu0 0
        %4335 = vmatpush1.bf16.msra.mxu0 0
        %4336 = vmatprep.subr.bf16.mxu0 0
        %4337 = vmatpush1.bf16.msra.mxu0 0
        %4338 = vmatprep.subr.bf16.mxu0 0
        %4339 = vmatpush1.bf16.msra.mxu0 0
        %4340 = vmatprep.subr.bf16.mxu0 0
        %4341 = vmatpush1.bf16.msra.mxu0 0
        %4342 = vmatprep.subr.bf16.mxu0 0
        %4343 = vmatpush1.bf16.msra.mxu0 0
        %4344 = vmatprep.subr.bf16.mxu0 0
        %4345 = vmatpush1.bf16.msra.mxu0 0
        %4346 = vmatprep.subr.bf16.mxu0 0
        %4347 = vmatpush1.bf16.msra.mxu0 0
        %4348 = vmatprep.mubr.bf16.mxu0 0
        %4349 = vmatmul.mubr.bf16.gmra.mrb[0].mxu0 %v4007
        %v4350 = vpop.f32.mrb[0].mxu0
        %v4351 = vadd.f32 %v4302, %v4350
        %v4352 = vpop.f32.mrb[0].mxu0
        %v4353 = vpop.f32.mrb[0].mxu0
        %v4354 = vpop.f32.mrb[0].mxu0
        %4355 = vdwg.mxu0
        %s4356 = scalar_lea.vmem %s6, 352
        %v4357 = vld [vmem:[%s4356] sm:$0xf]
        %v4358 = vld [vmem:[%s4356 + $0x4] sm:$0xf]
        %v4359 = vld [vmem:[%s4356 + $0x8] sm:$0xf]
        %v4360 = vld [vmem:[%s4356 + $0xc] sm:$0xf]
        %s4361 = scalar_lea.vmem %s7, 22
        %v4362 = vld [vmem:[%s4361] sm:$0x1]
        %v4364 = vlaneseq
        %v4365 = vshrl.u32 %v4364, 7
        %v4366 = vsub.s32 0, %v4365
        %v4367 = vrot.slane %v4362, %v4366
        %v4373 = vunpack.c.l.b16 %v4357
        %v4374 = vunpack.c.l.b16 %v4358
        %v4375 = vunpack.c.l.b16 %v4359
        %v4376 = vunpack.c.l.b16 %v4360
        %v4377 = vpack.c.b16 %v4374, %v4373
        %v4378 = vpack.c.b16 %v4376, %v4375
        %4381 = vmatprep.subr.bf16.mxu0 0
        %4382 = vmatpush1.bf16.msra.mxu0 %v4377
        %4383 = vmatprep.subr.bf16.mxu0 0
        %4384 = vmatpush1.bf16.msra.mxu0 %v4378
        %4385 = vmatprep.subr.bf16.mxu0 0
        %4386 = vmatpush1.bf16.msra.mxu0 0
        %4387 = vmatprep.subr.bf16.mxu0 0
        %4388 = vmatpush1.bf16.msra.mxu0 0
        %4389 = vmatprep.subr.bf16.mxu0 0
        %4390 = vmatpush1.bf16.msra.mxu0 0
        %4391 = vmatprep.subr.bf16.mxu0 0
        %4392 = vmatpush1.bf16.msra.mxu0 0
        %4393 = vmatprep.subr.bf16.mxu0 0
        %4394 = vmatpush1.bf16.msra.mxu0 0
        %4395 = vmatprep.subr.bf16.mxu0 0
        %4396 = vmatpush1.bf16.msra.mxu0 0
        %4397 = vmatprep.subr.bf16.mxu0 0
        %4398 = vmatpush1.bf16.msra.mxu0 0
        %4399 = vmatprep.subr.bf16.mxu0 0
        %4400 = vmatpush1.bf16.msra.mxu0 0
        %4401 = vmatprep.subr.bf16.mxu0 0
        %4402 = vmatpush1.bf16.msra.mxu0 0
        %4403 = vmatprep.subr.bf16.mxu0 0
        %4404 = vmatpush1.bf16.msra.mxu0 0
        %4405 = vmatprep.subr.bf16.mxu0 0
        %4406 = vmatpush1.bf16.msra.mxu0 0
        %4407 = vmatprep.subr.bf16.mxu0 0
        %4408 = vmatpush1.bf16.msra.mxu0 0
        %4409 = vmatprep.subr.bf16.mxu0 0
        %4410 = vmatpush1.bf16.msra.mxu0 0
        %4411 = vmatprep.subr.bf16.mxu0 0
        %4412 = vmatpush1.bf16.msra.mxu0 0
        %4413 = vmatprep.mubr.bf16.mxu0 0
        %4414 = vmatmul.mubr.bf16.gmra.mrb[0].mxu0 %v4007
        %v4415 = vpop.f32.mrb[0].mxu0
        %v4416 = vadd.f32 %v4367, %v4415
        %v4417 = vpop.f32.mrb[0].mxu0
        %v4418 = vpop.f32.mrb[0].mxu0
        %v4419 = vpop.f32.mrb[0].mxu0
        %4420 = vdwg.mxu0
        %s4421 = scalar_lea.vmem %s6, 368
        %v4422 = vld [vmem:[%s4421] sm:$0xf]
        %v4423 = vld [vmem:[%s4421 + $0x4] sm:$0xf]
        %v4424 = vld [vmem:[%s4421 + $0x8] sm:$0xf]
        %v4425 = vld [vmem:[%s4421 + $0xc] sm:$0xf]
        %s4426 = scalar_lea.vmem %s7, 23
        %v4427 = vld [vmem:[%s4426] sm:$0x1]
        %v4429 = vlaneseq
        %v4430 = vshrl.u32 %v4429, 7
        %v4431 = vsub.s32 0, %v4430
        %v4432 = vrot.slane %v4427, %v4431
        %v4438 = vunpack.c.l.b16 %v4422
        %v4439 = vunpack.c.l.b16 %v4423
        %v4440 = vunpack.c.l.b16 %v4424
        %v4441 = vunpack.c.l.b16 %v4425
        %v4442 = vpack.c.b16 %v4439, %v4438
        %v4443 = vpack.c.b16 %v4441, %v4440
        %4446 = vmatprep.subr.bf16.mxu0 0
        %4447 = vmatpush1.bf16.msra.mxu0 %v4442
        %4448 = vmatprep.subr.bf16.mxu0 0
        %4449 = vmatpush1.bf16.msra.mxu0 %v4443
        %4450 = vmatprep.subr.bf16.mxu0 0
        %4451 = vmatpush1.bf16.msra.mxu0 0
        %4452 = vmatprep.subr.bf16.mxu0 0
        %4453 = vmatpush1.bf16.msra.mxu0 0
        %4454 = vmatprep.subr.bf16.mxu0 0
        %4455 = vmatpush1.bf16.msra.mxu0 0
        %4456 = vmatprep.subr.bf16.mxu0 0
        %4457 = vmatpush1.bf16.msra.mxu0 0
        %4458 = vmatprep.subr.bf16.mxu0 0
        %4459 = vmatpush1.bf16.msra.mxu0 0
        %4460 = vmatprep.subr.bf16.mxu0 0
        %4461 = vmatpush1.bf16.msra.mxu0 0
        %4462 = vmatprep.subr.bf16.mxu0 0
        %4463 = vmatpush1.bf16.msra.mxu0 0
        %4464 = vmatprep.subr.bf16.mxu0 0
        %4465 = vmatpush1.bf16.msra.mxu0 0
        %4466 = vmatprep.subr.bf16.mxu0 0
        %4467 = vmatpush1.bf16.msra.mxu0 0
        %4468 = vmatprep.subr.bf16.mxu0 0
        %4469 = vmatpush1.bf16.msra.mxu0 0
        %4470 = vmatprep.subr.bf16.mxu0 0
        %4471 = vmatpush1.bf16.msra.mxu0 0
        %4472 = vmatprep.subr.bf16.mxu0 0
        %4473 = vmatpush1.bf16.msra.mxu0 0
        %4474 = vmatprep.subr.bf16.mxu0 0
        %4475 = vmatpush1.bf16.msra.mxu0 0
        %4476 = vmatprep.subr.bf16.mxu0 0
        %4477 = vmatpush1.bf16.msra.mxu0 0
        %4478 = vmatprep.mubr.bf16.mxu0 0
        %4479 = vmatmul.mubr.bf16.gmra.mrb[0].mxu0 %v4007
        %v4480 = vpop.f32.mrb[0].mxu0
        %v4481 = vadd.f32 %v4432, %v4480
        %v4482 = vpop.f32.mrb[0].mxu0
        %v4483 = vpop.f32.mrb[0].mxu0
        %v4484 = vpop.f32.mrb[0].mxu0
        %4485 = vdwg.mxu0
        %v4486 = vpack.c.bf16 %v4351, %v4351
        %v4487 = vpack.c.bf16 %v4416, %v4416
        %v4489 = vsel %vm1094, %v4486, 0
        %v4492 = vsel %vm1094, %v4487, 0
        %4494 = vmatprep.subr.bf16.mxu0 0
        %4495 = vmatpush1.bf16.xpose.msra.mxu0 %v4492
        %4496 = vmatprep.subr.bf16.mxu0 0
        %4497 = vmatpush1.bf16.xpose.msra.mxu0 0
        %4498 = vmatprep.subr.bf16.mxu0 0
        %4499 = vmatpush1.bf16.xpose.msra.mxu0 0
        %4500 = vmatprep.subr.bf16.mxu0 0
        %4501 = vmatpush1.bf16.xpose.msra.mxu0 0
        %4502 = vmatprep.subr.bf16.mxu0 0
        %4503 = vmatpush1.bf16.xpose.msra.mxu0 0
        %4504 = vmatprep.subr.bf16.mxu0 0
        %4505 = vmatpush1.bf16.xpose.msra.mxu0 0
        %4506 = vmatprep.subr.bf16.mxu0 0
        %4507 = vmatpush1.bf16.xpose.msra.mxu0 0
        %4508 = vmatprep.subr.bf16.mxu0 0
        %4509 = vmatpush1.bf16.xpose.msra.mxu0 0
        %4510 = vmatprep.subr.bf16.mxu0 0
        %4511 = vmatpush1.bf16.xpose.msra.mxu0 0
        %4512 = vmatprep.subr.bf16.mxu0 0
        %4513 = vmatpush1.bf16.xpose.msra.mxu0 0
        %4514 = vmatprep.subr.bf16.mxu0 0
        %4515 = vmatpush1.bf16.xpose.msra.mxu0 0
        %4516 = vmatprep.subr.bf16.mxu0 0
        %4517 = vmatpush1.bf16.xpose.msra.mxu0 0
        %4518 = vmatprep.subr.bf16.mxu0 0
        %4519 = vmatpush1.bf16.xpose.msra.mxu0 0
        %4520 = vmatprep.subr.bf16.mxu0 0
        %4521 = vmatpush1.bf16.xpose.msra.mxu0 0
        %4522 = vmatprep.subr.bf16.mxu0 0
        %4523 = vmatpush1.bf16.xpose.msra.mxu0 0
        %4524 = vmatprep.subr.bf16.mxu0 0
        %4525 = vmatpush1.bf16.xpose.msra.mxu0 0
        %4526 = vmatprep.mubr.bf16.mxu0 0
        %4527 = vmatmul.mubr.bf16.gmra.mrb[0].mxu0 %v4489
        %v4528 = vpop.f32.mrb[0].mxu0
        %v4529 = vadd.f32 0.0, %v4528
        %v4530 = vpop.f32.mrb[0].mxu0
        %v4531 = vpop.f32.mrb[0].mxu0
        %v4532 = vpop.f32.mrb[0].mxu0
        %4533 = vdwg.mxu0
        %v4534 = vmul.f32 %v4529, 0.25
        %v4535 = vsel %vm1149, %v4534, -inf
        %4536 = vmax.xlane.f32.xlu0 %v4535
        %v4537 = vpop.xlane.xlu0 %4536
        %v4538 = vsub.f32 %v4534, %v4537
        %v4539 = vmul.f32 %v4538, 1.442695
        %v4540 = vpow.pop %v4539
        %v4541 = vsel %vm1149, %v4540, 0.0
        %4542 = vadd.xlane.f32.xlu0 %v4541
        %v4543 = vpop.xlane.xlu0 %4542
        %v4544 = vrcp.pop %v4543
        %v4545 = vmul.f32 %v4540, %v4544
        %v4546 = vpack.c.bf16 %v4545, %v4545
        %v4547 = vpack.c.bf16 %v4481, %v4481
        %v4549 = vsel %vm1149, %v4546, 0
        %v4552 = vsel %vm1166, %v4547, 0
        %4554 = vmatprep.subr.bf16.mxu0 0
        %4555 = vmatpush1.bf16.msra.mxu0 %v4552
        %4556 = vmatprep.subr.bf16.mxu0 0
        %4557 = vmatpush1.bf16.msra.mxu0 0
        %4558 = vmatprep.subr.bf16.mxu0 0
        %4559 = vmatpush1.bf16.msra.mxu0 0
        %4560 = vmatprep.subr.bf16.mxu0 0
        %4561 = vmatpush1.bf16.msra.mxu0 0
        %4562 = vmatprep.subr.bf16.mxu0 0
        %4563 = vmatpush1.bf16.msra.mxu0 0
        %4564 = vmatprep.subr.bf16.mxu0 0
        %4565 = vmatpush1.bf16.msra.mxu0 0
        %4566 = vmatprep.subr.bf16.mxu0 0
        %4567 = vmatpush1.bf16.msra.mxu0 0
        %4568 = vmatprep.subr.bf16.mxu0 0
        %4569 = vmatpush1.bf16.msra.mxu0 0
        %4570 = vmatprep.subr.bf16.mxu0 0
        %4571 = vmatpush1.bf16.msra.mxu0 0
        %4572 = vmatprep.subr.bf16.mxu0 0
        %4573 = vmatpush1.bf16.msra.mxu0 0
        %4574 = vmatprep.subr.bf16.mxu0 0
        %4575 = vmatpush1.bf16.msra.mxu0 0
        %4576 = vmatprep.subr.bf16.mxu0 0
        %4577 = vmatpush1.bf16.msra.mxu0 0
        %4578 = vmatprep.subr.bf16.mxu0 0
        %4579 = vmatpush1.bf16.msra.mxu0 0
        %4580 = vmatprep.subr.bf16.mxu0 0
        %4581 = vmatpush1.bf16.msra.mxu0 0
        %4582 = vmatprep.subr.bf16.mxu0 0
        %4583 = vmatpush1.bf16.msra.mxu0 0
        %4584 = vmatprep.subr.bf16.mxu0 0
        %4585 = vmatpush1.bf16.msra.mxu0 0
        %4586 = vmatprep.mubr.bf16.mxu0 0
        %4587 = vmatmul.mubr.bf16.gmra.mrb[0].mxu0 %v4549
        %v4588 = vpop.f32.mrb[0].mxu0
        %v4589 = vadd.f32 0.0, %v4588
        %v4590 = vpop.f32.mrb[0].mxu0
        %v4591 = vpop.f32.mrb[0].mxu0
        %v4592 = vpop.f32.mrb[0].mxu0
        %4593 = vdwg.mxu0
        %v4594 = vpack.c.bf16 %v4589, %v4589
        %s4595 = scalar_lea.vmem [#allocation5], 56
        %v4596 = vld [vmem:[%s4595] sm:$0xf]
        %v4597 = vld [vmem:[%s4595 + $0x4] sm:$0xf]
        %v4600 = vunpack.c.l.b16 %v4596
        %v4601 = vunpack.c.l.b16 %v4597
        %v4602 = vpack.c.b16 %v4601, %v4600
        %v4605 = vsel %vm1094, %v4594, 0
        %4607 = vmatprep.subr.bf16.mxu0 0
        %4608 = vmatpush1.bf16.msra.mxu0 %v4602
        %4609 = vmatprep.subr.bf16.mxu0 0
        %4610 = vmatpush1.bf16.msra.mxu0 0
        %4611 = vmatprep.subr.bf16.mxu0 0
        %4612 = vmatpush1.bf16.msra.mxu0 0
        %4613 = vmatprep.subr.bf16.mxu0 0
        %4614 = vmatpush1.bf16.msra.mxu0 0
        %4615 = vmatprep.subr.bf16.mxu0 0
        %4616 = vmatpush1.bf16.msra.mxu0 0
        %4617 = vmatprep.subr.bf16.mxu0 0
        %4618 = vmatpush1.bf16.msra.mxu0 0
        %4619 = vmatprep.subr.bf16.mxu0 0
        %4620 = vmatpush1.bf16.msra.mxu0 0
        %4621 = vmatprep.subr.bf16.mxu0 0
        %4622 = vmatpush1.bf16.msra.mxu0 0
        %4623 = vmatprep.subr.bf16.mxu0 0
        %4624 = vmatpush1.bf16.msra.mxu0 0
        %4625 = vmatprep.subr.bf16.mxu0 0
        %4626 = vmatpush1.bf16.msra.mxu0 0
        %4627 = vmatprep.subr.bf16.mxu0 0
        %4628 = vmatpush1.bf16.msra.mxu0 0
        %4629 = vmatprep.subr.bf16.mxu0 0
        %4630 = vmatpush1.bf16.msra.mxu0 0
        %4631 = vmatprep.subr.bf16.mxu0 0
        %4632 = vmatpush1.bf16.msra.mxu0 0
        %4633 = vmatprep.subr.bf16.mxu0 0
        %4634 = vmatpush1.bf16.msra.mxu0 0
        %4635 = vmatprep.subr.bf16.mxu0 0
        %4636 = vmatpush1.bf16.msra.mxu0 0
        %4637 = vmatprep.subr.bf16.mxu0 0
        %4638 = vmatpush1.bf16.msra.mxu0 0
        %4639 = vmatprep.mubr.bf16.mxu0 0
        %4640 = vmatmul.mubr.bf16.gmra.mrb[0].mxu0 %v4605
        %v4641 = vpop.f32.mrb[0].mxu0
        %v4642 = vadd.f32 0.0, %v4641
        %v4643 = vpop.f32.mrb[0].mxu0
        %v4644 = vpop.f32.mrb[0].mxu0
        %v4645 = vpop.f32.mrb[0].mxu0
        %4646 = vdwg.mxu0
        %v4649 = vunpack.c.l.b16 %v4289
        %v4650 = vunpack.c.l.b16 %v4290
        %v4651 = vpack.c.b16 %v4650, %v4649
        %v4654 = vsel %vm1094, %v4287, 0
        %4656 = vmatprep.subr.bf16.mxu0 0
        %4657 = vmatpush1.bf16.msra.mxu0 %v4651
        %4658 = vmatprep.subr.bf16.mxu0 0
        %4659 = vmatpush1.bf16.msra.mxu0 0
        %4660 = vmatprep.subr.bf16.mxu0 0
        %4661 = vmatpush1.bf16.msra.mxu0 0
        %4662 = vmatprep.subr.bf16.mxu0 0
        %4663 = vmatpush1.bf16.msra.mxu0 0
        %4664 = vmatprep.subr.bf16.mxu0 0
        %4665 = vmatpush1.bf16.msra.mxu0 0
        %4666 = vmatprep.subr.bf16.mxu0 0
        %4667 = vmatpush1.bf16.msra.mxu0 0
        %4668 = vmatprep.subr.bf16.mxu0 0
        %4669 = vmatpush1.bf16.msra.mxu0 0
        %4670 = vmatprep.subr.bf16.mxu0 0
        %4671 = vmatpush1.bf16.msra.mxu0 0
        %4672 = vmatprep.subr.bf16.mxu0 0
        %4673 = vmatpush1.bf16.msra.mxu0 0
        %4674 = vmatprep.subr.bf16.mxu0 0
        %4675 = vmatpush1.bf16.msra.mxu0 0
        %4676 = vmatprep.subr.bf16.mxu0 0
        %4677 = vmatpush1.bf16.msra.mxu0 0
        %4678 = vmatprep.subr.bf16.mxu0 0
        %4679 = vmatpush1.bf16.msra.mxu0 0
        %4680 = vmatprep.subr.bf16.mxu0 0
        %4681 = vmatpush1.bf16.msra.mxu0 0
        %4682 = vmatprep.subr.bf16.mxu0 0
        %4683 = vmatpush1.bf16.msra.mxu0 0
        %4684 = vmatprep.subr.bf16.mxu0 0
        %4685 = vmatpush1.bf16.msra.mxu0 0
        %4686 = vmatprep.subr.bf16.mxu0 0
        %4687 = vmatpush1.bf16.msra.mxu0 0
        %4688 = vmatprep.mubr.bf16.mxu0 0
        %4689 = vmatmul.mubr.bf16.gmra.mrb[0].mxu0 %v4654
        %v4690 = vpop.f32.mrb[0].mxu0
        %v4691 = vadd.f32 %v4642, %v4690
        %v4692 = vpop.f32.mrb[0].mxu0
        %v4693 = vpop.f32.mrb[0].mxu0
        %v4694 = vpop.f32.mrb[0].mxu0
        %4695 = vdwg.mxu0
        %v4696 = vlaneseq
        %v4697 = vshrl.u32 %v4696, 7
        %v4698 = vsub.s32 0, %v4697
        %v4699 = vrot.slane %v3979, %v4698
        %v4700 = vadd.f32 %v4691, %v4699
        %v4701 = vadd.f32 %v3977, %v4700
        %v4702 = vsel %vm869, %v4701, 0.0
        %4703 = vadd.xlane.f32.xlu0 %v4702
        %v4704 = vpop.xlane.xlu0 %4703
        %v4705 = vmul.f32 %v4704, %v873
        %v4706 = vsub.f32 %v4701, %v4705
        %v4707 = vmul.f32 %v4706, %v4706
        %v4708 = vsel %vm869, %v4707, 0.0
        %4709 = vadd.xlane.f32.xlu0 %v4708
        %v4710 = vpop.xlane.xlu0 %4709
        %v4711 = vmul.f32 %v4710, %v873
        %v4712 = vadd.f32 %v4711, 1e-12
        %v4713 = vrsqrt.pop %v4712
        %v4714 = vmul.f32 %v4706, %v4713
        %v4715 = vlaneseq
        %v4716 = vshrl.u32 %v4715, 7
        %v4717 = vsub.s32 1, %v4716
        %v4718 = vrot.slane %v3979, %v4717
        %v4719 = vmul.f32 %v4714, %v4718
        %v4720 = vlaneseq
        %v4721 = vshrl.u32 %v4720, 7
        %v4722 = vsub.s32 2, %v4721
        %v4723 = vrot.slane %v3979, %v4722
        %v4724 = vadd.f32 %v4719, %v4723
        %v4725 = vpack.c.bf16 %v4724, %v4724
        %s4726 = scalar_lea.vmem [#allocation7], 48
        %v4727 = vld [vmem:[%s4726] sm:$0xf]
        %v4728 = vld [vmem:[%s4726 + $0x4] sm:$0xf]
        %v4729 = vld [vmem:[%s4726 + $0x8] sm:$0xf]
        %v4730 = vld [vmem:[%s4726 + $0xc] sm:$0xf]
        %v4731 = vlaneseq
        %v4732 = vshrl.u32 %v4731, 7
        %v4733 = vsub.s32 3, %v4732
        %v4734 = vrot.slane %v3979, %v4733
        %v4739 = vunpack.c.l.b16 %v4727
        %v4740 = vunpack.c.l.b16 %v4728
        %v4741 = vunpack.c.l.b16 %v4729
        %v4742 = vunpack.c.l.b16 %v4730
        %v4743 = vpack.c.b16 %v4740, %v4739
        %v4744 = vpack.c.b16 %v4742, %v4741
        %v4748 = vsel %vm869, %v4725, 0
        %4750 = vmatprep.subr.bf16.mxu0 0
        %4751 = vmatpush1.bf16.msra.mxu0 %v4743
        %4752 = vmatprep.subr.bf16.mxu0 0
        %4753 = vmatpush1.bf16.msra.mxu0 %v4744
        %4754 = vmatprep.subr.bf16.mxu0 0
        %4755 = vmatpush1.bf16.msra.mxu0 0
        %4756 = vmatprep.subr.bf16.mxu0 0
        %4757 = vmatpush1.bf16.msra.mxu0 0
        %4758 = vmatprep.subr.bf16.mxu0 0
        %4759 = vmatpush1.bf16.msra.mxu0 0
        %4760 = vmatprep.subr.bf16.mxu0 0
        %4761 = vmatpush1.bf16.msra.mxu0 0
        %4762 = vmatprep.subr.bf16.mxu0 0
        %4763 = vmatpush1.bf16.msra.mxu0 0
        %4764 = vmatprep.subr.bf16.mxu0 0
        %4765 = vmatpush1.bf16.msra.mxu0 0
        %4766 = vmatprep.subr.bf16.mxu0 0
        %4767 = vmatpush1.bf16.msra.mxu0 0
        %4768 = vmatprep.subr.bf16.mxu0 0
        %4769 = vmatpush1.bf16.msra.mxu0 0
        %4770 = vmatprep.subr.bf16.mxu0 0
        %4771 = vmatpush1.bf16.msra.mxu0 0
        %4772 = vmatprep.subr.bf16.mxu0 0
        %4773 = vmatpush1.bf16.msra.mxu0 0
        %4774 = vmatprep.subr.bf16.mxu0 0
        %4775 = vmatpush1.bf16.msra.mxu0 0
        %4776 = vmatprep.subr.bf16.mxu0 0
        %4777 = vmatpush1.bf16.msra.mxu0 0
        %4778 = vmatprep.subr.bf16.mxu0 0
        %4779 = vmatpush1.bf16.msra.mxu0 0
        %4780 = vmatprep.subr.bf16.mxu0 0
        %4781 = vmatpush1.bf16.msra.mxu0 0
        %4782 = vmatprep.mubr.bf16.mxu0 0
        %4783 = vmatmul.mubr.bf16.gmra.mrb[0].mxu0 %v4748
        %v4784 = vpop.f32.mrb[0].mxu0
        %v4785 = vadd.f32 %v4734, %v4784
        %v4786 = vpop.f32.mrb[0].mxu0
        %v4787 = vpop.f32.mrb[0].mxu0
        %v4788 = vpop.f32.mrb[0].mxu0
        %4789 = vdwg.mxu0
        %v4790 = vmul.f32 %v4785, %v4785
        %v4791 = vmul.f32 %v4785, %v4790
        %v4792 = vmul.f32 %v4791, 0.044715
        %v4793 = vadd.f32 %v4785, %v4792
        %v4794 = vmul.f32 %v4793, 0.7978846
        %v4795 = vtanh.pop %v4794
        %v4796 = vadd.f32 %v4795, 1.0
        %v4797 = vmul.f32 %v4796, 0.5
        %v4798 = vmul.f32 %v4785, %v4797
        %v4799 = vpack.c.bf16 %v4798, %v4798
        %s4800 = scalar_lea.vmem [#allocation8], 96
        %v4801 = vld [vmem:[%s4800] sm:$0xf]
        %v4802 = vld [vmem:[%s4800 + $0x4] sm:$0xf]
        %v4803 = vld [vmem:[%s4800 + $0x8] sm:$0xf]
        %v4804 = vld [vmem:[%s4800 + $0xc] sm:$0xf]
        %v4805 = vld [vmem:[%s4800 + $0x10] sm:$0xf]
        %v4806 = vld [vmem:[%s4800 + $0x14] sm:$0xf]
        %v4807 = vld [vmem:[%s4800 + $0x18] sm:$0xf]
        %v4808 = vld [vmem:[%s4800 + $0x1c] sm:$0xf]
        %v4809 = vlaneseq
        %v4810 = vshrl.u32 %v4809, 7
        %v4811 = vsub.s32 4, %v4810
        %v4812 = vrot.slane %v3979, %v4811
        %v4821 = vunpack.c.l.b16 %v4801
        %v4822 = vunpack.c.l.b16 %v4802
        %v4823 = vunpack.c.l.b16 %v4803
        %v4824 = vunpack.c.l.b16 %v4804
        %v4825 = vunpack.c.l.b16 %v4805
        %v4826 = vunpack.c.l.b16 %v4806
        %v4827 = vunpack.c.l.b16 %v4807
        %v4828 = vunpack.c.l.b16 %v4808
        %v4829 = vpack.c.b16 %v4822, %v4821
        %v4830 = vpack.c.b16 %v4824, %v4823
        %v4831 = vpack.c.b16 %v4826, %v4825
        %v4832 = vpack.c.b16 %v4828, %v4827
        %v4838 = vsel %vm1758, %v4799, 0
        %4840 = vmatprep.subr.bf16.mxu0 0
        %4841 = vmatpush1.bf16.msra.mxu0 %v4829
        %4842 = vmatprep.subr.bf16.mxu0 0
        %4843 = vmatpush1.bf16.msra.mxu0 %v4830
        %4844 = vmatprep.subr.bf16.mxu0 0
        %4845 = vmatpush1.bf16.msra.mxu0 %v4831
        %4846 = vmatprep.subr.bf16.mxu0 0
        %4847 = vmatpush1.bf16.msra.mxu0 %v4832
        %4848 = vmatprep.subr.bf16.mxu0 0
        %4849 = vmatpush1.bf16.msra.mxu0 0
        %4850 = vmatprep.subr.bf16.mxu0 0
        %4851 = vmatpush1.bf16.msra.mxu0 0
        %4852 = vmatprep.subr.bf16.mxu0 0
        %4853 = vmatpush1.bf16.msra.mxu0 0
        %4854 = vmatprep.subr.bf16.mxu0 0
        %4855 = vmatpush1.bf16.msra.mxu0 0
        %4856 = vmatprep.subr.bf16.mxu0 0
        %4857 = vmatpush1.bf16.msra.mxu0 0
        %4858 = vmatprep.subr.bf16.mxu0 0
        %4859 = vmatpush1.bf16.msra.mxu0 0
        %4860 = vmatprep.subr.bf16.mxu0 0
        %4861 = vmatpush1.bf16.msra.mxu0 0
        %4862 = vmatprep.subr.bf16.mxu0 0
        %4863 = vmatpush1.bf16.msra.mxu0 0
        %4864 = vmatprep.subr.bf16.mxu0 0
        %4865 = vmatpush1.bf16.msra.mxu0 0
        %4866 = vmatprep.subr.bf16.mxu0 0
        %4867 = vmatpush1.bf16.msra.mxu0 0
        %4868 = vmatprep.subr.bf16.mxu0 0
        %4869 = vmatpush1.bf16.msra.mxu0 0
        %4870 = vmatprep.subr.bf16.mxu0 0
        %4871 = vmatpush1.bf16.msra.mxu0 0
        %4872 = vmatprep.mubr.bf16.mxu0 0
        %4873 = vmatmul.mubr.bf16.gmra.mrb[0].mxu0 %v4838
        %v4874 = vpop.f32.mrb[0].mxu0
        %v4875 = vadd.f32 %v4812, %v4874
        %v4876 = vpop.f32.mrb[0].mxu0
        %v4877 = vpop.f32.mrb[0].mxu0
        %v4878 = vpop.f32.mrb[0].mxu0
        %4879 = vdwg.mxu0
        %v4880 = vadd.f32 %v4724, %v4875
        %v4881 = vsel %vm869, %v4880, 0.0
        %4882 = vadd.xlane.f32.xlu0 %v4881
        %v4883 = vpop.xlane.xlu0 %4882
        %v4884 = vmul.f32 %v4883, %v873
        %v4885 = vsub.f32 %v4880, %v4884
        %v4886 = vmul.f32 %v4885, %v4885
        %v4887 = vsel %vm869, %v4886, 0.0
        %4888 = vadd.xlane.f32.xlu0 %v4887
        %v4889 = vpop.xlane.xlu0 %4888
        %v4890 = vmul.f32 %v4889, %v873
        %v4891 = vadd.f32 %v4890, 1e-12
        %v4892 = vrsqrt.pop %v4891
        %v4893 = vmul.f32 %v4885, %v4892
        %v4894 = vlaneseq
        %v4895 = vshrl.u32 %v4894, 7
        %v4896 = vsub.s32 5, %v4895
        %v4897 = vrot.slane %v3979, %v4896
        %v4898 = vmul.f32 %v4893, %v4897
        %v4899 = vlaneseq
        %v4900 = vshrl.u32 %v4899, 7
        %v4901 = vsub.s32 6, %v4900
        %v4902 = vrot.slane %v3979, %v4901
        %v4903 = vadd.f32 %v4898, %v4902
        %v4904 = vpack.c.bf16 %v4903, %v4903
        %v4905 = vld [vmem:[#allocation16] sm:$0xf]
        %v4906 = vld [vmem:[#allocation16 + $0x4] sm:$0xf]
        %v4907 = vld [vmem:[#allocation16 + $0x8] sm:$0xf]
        %v4908 = vld [vmem:[#allocation16 + $0xc] sm:$0xf]
        %v4909 = vld [vmem:[%s18] sm:$0x1]
        %v4911 = vlaneseq
        %v4912 = vshrl.u32 %v4911, 7
        %v4913 = vsub.s32 0, %v4912
        %v4914 = vrot.slane %v4909, %v4913
        %v4920 = vunpack.c.l.b16 %v4905
        %v4921 = vunpack.c.l.b16 %v4906
        %v4922 = vunpack.c.l.b16 %v4907
        %v4923 = vunpack.c.l.b16 %v4908
        %v4924 = vpack.c.b16 %v4921, %v4920
        %v4925 = vpack.c.b16 %v4923, %v4922
        %v4929 = vsel %vm869, %v4904, 0
        %4931 = vmatprep.subr.bf16.mxu0 0
        %4932 = vmatpush1.bf16.msra.mxu0 %v4924
        %4933 = vmatprep.subr.bf16.mxu0 0
        %4934 = vmatpush1.bf16.msra.mxu0 %v4925
        %4935 = vmatprep.subr.bf16.mxu0 0
        %4936 = vmatpush1.bf16.msra.mxu0 0
        %4937 = vmatprep.subr.bf16.mxu0 0
        %4938 = vmatpush1.bf16.msra.mxu0 0
        %4939 = vmatprep.subr.bf16.mxu0 0
        %4940 = vmatpush1.bf16.msra.mxu0 0
        %4941 = vmatprep.subr.bf16.mxu0 0
        %4942 = vmatpush1.bf16.msra.mxu0 0
        %4943 = vmatprep.subr.bf16.mxu0 0
        %4944 = vmatpush1.bf16.msra.mxu0 0
        %4945 = vmatprep.subr.bf16.mxu0 0
        %4946 = vmatpush1.bf16.msra.mxu0 0
        %4947 = vmatprep.subr.bf16.mxu0 0
        %4948 = vmatpush1.bf16.msra.mxu0 0
        %4949 = vmatprep.subr.bf16.mxu0 0
        %4950 = vmatpush1.bf16.msra.mxu0 0
        %4951 = vmatprep.subr.bf16.mxu0 0
        %4952 = vmatpush1.bf16.msra.mxu0 0
        %4953 = vmatprep.subr.bf16.mxu0 0
        %4954 = vmatpush1.bf16.msra.mxu0 0
        %4955 = vmatprep.subr.bf16.mxu0 0
        %4956 = vmatpush1.bf16.msra.mxu0 0
        %4957 = vmatprep.subr.bf16.mxu0 0
        %4958 = vmatpush1.bf16.msra.mxu0 0
        %4959 = vmatprep.subr.bf16.mxu0 0
        %4960 = vmatpush1.bf16.msra.mxu0 0
        %4961 = vmatprep.subr.bf16.mxu0 0
        %4962 = vmatpush1.bf16.msra.mxu0 0
        %4963 = vmatprep.mubr.bf16.mxu0 0
        %4964 = vmatmul.mubr.bf16.gmra.mrb[0].mxu0 %v4929
        %v4965 = vpop.f32.mrb[0].mxu0
        %v4966 = vadd.f32 %v4914, %v4965
        %v4967 = vpop.f32.mrb[0].mxu0
        %v4968 = vpop.f32.mrb[0].mxu0
        %v4969 = vpop.f32.mrb[0].mxu0
        %4970 = vdwg.mxu0
        %v4971 = vmul.f32 %v4966, %v4966
        %v4972 = vmul.f32 %v4966, %v4971
        %v4973 = vmul.f32 %v4972, 0.044715
        %v4974 = vadd.f32 %v4966, %v4973
        %v4975 = vmul.f32 %v4974, 0.7978846
        %v4976 = vtanh.pop %v4975
        %v4977 = vadd.f32 %v4976, 1.0
        %v4978 = vmul.f32 %v4977, 0.5
        %v4979 = vmul.f32 %v4966, %v4978
        %v4980 = vld [vmem:[%s19] sm:$0x1]
        %v4981 = vpack.c.bf16 %v4980, %v4980
        %v4982 = vpack.c.bf16 %v4979, %v4979
        %v4983 = vld [vmem:[#allocation2] sm:$0x1]
        %4985 = vset.pattern.permute.xlu0 0
        %4986 = vperm.xlu0 %4985, %v4983
        %v4987 = vpop.permute.xlu0 %4986
        %v4989 = vlaneseq
        %v4990 = vshrl.u32 %v4989, 7
        %v4991 = vsub.s32 0, %v4990
        %v4992 = vrot.slane %v4987, %v4991
        %v4994 = vsel %vm869, %v4981, 0
        %v4997 = vsel %vm869, %v4982, 0
        %4999 = vmatprep.subr.bf16.mxu0 0
        %5000 = vmatpush1.bf16.xpose.msra.mxu0 %v4997
        %5001 = vmatprep.subr.bf16.mxu0 0
        %5002 = vmatpush1.bf16.xpose.msra.mxu0 0
        %5003 = vmatprep.subr.bf16.mxu0 0
        %5004 = vmatpush1.bf16.xpose.msra.mxu0 0
        %5005 = vmatprep.subr.bf16.mxu0 0
        %5006 = vmatpush1.bf16.xpose.msra.mxu0 0
        %5007 = vmatprep.subr.bf16.mxu0 0
        %5008 = vmatpush1.bf16.xpose.msra.mxu0 0
        %5009 = vmatprep.subr.bf16.mxu0 0
        %5010 = vmatpush1.bf16.xpose.msra.mxu0 0
        %5011 = vmatprep.subr.bf16.mxu0 0
        %5012 = vmatpush1.bf16.xpose.msra.mxu0 0
        %5013 = vmatprep.subr.bf16.mxu0 0
        %5014 = vmatpush1.bf16.xpose.msra.mxu0 0
        %5015 = vmatprep.subr.bf16.mxu0 0
        %5016 = vmatpush1.bf16.xpose.msra.mxu0 0
        %5017 = vmatprep.subr.bf16.mxu0 0
        %5018 = vmatpush1.bf16.xpose.msra.mxu0 0
        %5019 = vmatprep.subr.bf16.mxu0 0
        %5020 = vmatpush1.bf16.xpose.msra.mxu0 0
        %5021 = vmatprep.subr.bf16.mxu0 0
        %5022 = vmatpush1.bf16.xpose.msra.mxu0 0
        %5023 = vmatprep.subr.bf16.mxu0 0
        %5024 = vmatpush1.bf16.xpose.msra.mxu0 0
        %5025 = vmatprep.subr.bf16.mxu0 0
        %5026 = vmatpush1.bf16.xpose.msra.mxu0 0
        %5027 = vmatprep.subr.bf16.mxu0 0
        %5028 = vmatpush1.bf16.xpose.msra.mxu0 0
        %5029 = vmatprep.subr.bf16.mxu0 0
        %5030 = vmatpush1.bf16.xpose.msra.mxu0 0
        %5031 = vmatprep.mubr.bf16.mxu0 0
        %5032 = vmatmul.mubr.bf16.gmra.mrb[0].mxu0 %v4994
        %v5033 = vpop.f32.mrb[0].mxu0
        %v5034 = vadd.f32 %v4992, %v5033
        %v5035 = vpop.f32.mrb[0].mxu0
        %v5036 = vpop.f32.mrb[0].mxu0
        %v5037 = vpop.f32.mrb[0].mxu0
        %5038 = vdwg.mxu0
        %v5039 = vsel %vm1149, %v5034, 0.0
        %5040 = vst [vmem:[%s864] sm:$0x1] %v5039
        %p5041 = scmp.lt.s32.totalorder %s41, 1
        %s5042 = scalar_select %p5041, %s41, 1
        %s5043 = smul.addr %s5042, 8
        %s5044 = scalar_lea.vmem %s21, %s5043
        %p5045 = scmp.lt.s32.totalorder %s41, 1
        %s5046 = scalar_select %p5045, %s41, 1
        %s5047 = scalar_lea.vmem %s22, %s5046
        // Predicated region
        $region141: #{_lambda_.1} parent=103 // pred_check
          %p5048 = pneg %p520
        $region142: #{_lambda_.1} parent=103 // pred_check_branch
          %5050 = sbr.rel (%p5048) target = $region144
        $region143: #{_lambda_.1} parent=103 // pred_region
          _
        $region144: #{_lambda_.1} parent=103 // pred_fallthru
          _
        // Predicated region
        $region145: #{_lambda_.1} parent=103 // pred_check
          %p5051 = pneg %p546
        $region146: #{_lambda_.1} parent=103 // pred_check_branch
          %5053 = sbr.rel (%p5051) target = $region148
        $region147: #{_lambda_.1} parent=103 // pred_region
          _
        $region148: #{_lambda_.1} parent=103 // pred_fallthru
          _
      $region104: #{_lambda_.1} parent=5 // pred_fallthru
        _
      %p5054 = scmp.le.s32.totalorder 2, %s36
      // Predicated region
      $region149: #{_lambda_.1} parent=5 // pred_check
        %p5055 = pneg %p5054
      $region150: #{_lambda_.1} parent=5 // pred_check_branch
        %5057 = sbr.rel (%p5055) target = $region152
      $region151: #{_lambda_.1} parent=5 // pred_region
        %s5058 = ssub.s32 %s36, 2
        // Predicated region
        $region153: #{_lambda_.1} parent=151 // pred_check
          %p5059 = pneg %p526
        $region154: #{_lambda_.1} parent=151 // pred_check_branch
          %5061 = sbr.rel (%p5059) target = $region156
        $region155: #{_lambda_.1} parent=151 // pred_region
          %p5062 = scmp.lt.s32.totalorder %s42, 1
          %s5063 = scalar_select %p5062, %s42, 1
          %s5064 = smul.addr %s5063, 8
          %s5065 = scalar_lea.vmem %s21, %s5064
        $region156: #{_lambda_.1} parent=151 // pred_fallthru
          _
        // Predicated region
        $region157: #{_lambda_.1} parent=151 // pred_check
          %p5066 = pneg %p552
        $region158: #{_lambda_.1} parent=151 // pred_check_branch
          %5068 = sbr.rel (%p5066) target = $region160
        $region159: #{_lambda_.1} parent=151 // pred_region
          %p5069 = scmp.lt.s32.totalorder %s42, 1
          %s5070 = scalar_select %p5069, %s42, 1
          %s5071 = scalar_lea.vmem %s22, %s5070
        $region160: #{_lambda_.1} parent=151 // pred_fallthru
          _
      $region152: #{_lambda_.1} parent=5 // pred_fallthru
        _
    $region6: #{_lambda_.1} parent=1 // loop_footer
      %s40 = sadd.s32 1, %s36
    $region7: #{_lambda_.1} parent=1 // loop_footer_branch
      %35 = sbr.rel target = $region3
    $region8: #{_lambda_.1} parent=1 // loop_exit
      _
    %5072 = vsyncpa [#allocation4], 1
    %s5073 = scalar_lea.sflag [#allocation4], 1
    %5074 = vsyncpa %s5073, 1
    %5075 = vsyncpa [#allocation6], 1
    %5076 = vsyncpa [#allocation9], 1
    %5077 = vsyncpa [#allocation12], 1
    %5078 = vsyncpa [#allocation15], 1

</llo_original>
